<compile_context>
chip_gen: v7x
topology: tpu7x:2x2x1
jax: 0.10.0
libtpu: 0.0.40
codegen_flags: <defaults>
</compile_context>

<pallas_src>
import functools
import math

import jax
import jax.numpy as jnp
from jax.experimental import pallas as pl
from jax.experimental.pallas import tpu as pltpu

# ----------------------------- model config (small, synthetic) ---------------
CFG = dict(
    image=16,      # input spatial size (H = W)
    channels=3,    # RGB
    patch=8,       # conv1 kernel = stride  -> 2x2 = 4 patches
    width=32,      # transformer hidden dim D
    heads=4,       # attention heads (head_dim = 8)
    layers=2,      # transformer depth
    out_dim=16,    # visual projection output dim
)

BF16 = jnp.bfloat16


def _ln(x, g, b, eps=1e-5):
    """LayerNorm over the last axis; var = E[x^2] - E[x]^2 so both reductions overlap."""
    m = jnp.mean(x, axis=-1, keepdims=True)
    m2 = jnp.mean(x * x, axis=-1, keepdims=True)
    var = m2 - m * m
    return (x - m) * jax.lax.rsqrt(var + eps) * g + b


# ----------------------------- fused encoder kernel ---------------------------
def encoder_kernel(
    patches_ref,                         # [Bt, S, C*P*P] bf16 (row 0/image zeros -> cls slot)
    patch_w_ref,                         # [C*P*P, D]     bf16
    pos_ref,                             # [Bt*S, D]      f32  (class token folded into row 0)
    ln_pre_g_ref, ln_pre_b_ref,          # [1, D]         f32
    ln1_g_ref, ln1_b_ref,                # [L, 1, D]      f32
    w_qkv_ref, b_qkv_ref,                # [L, D, 3D] bf16, [L, 1, 3D] f32
    w_o_ref, b_o_ref,                    # [L, D, D]  bf16, [L, 1, D]  f32
    ln2_g_ref, ln2_b_ref,                # [L, 1, D]      f32
    w_fc_ref, b_fc_ref,                  # [L, D, 4D] bf16, [L, 1, 4D] f32
    w_out_ref, b_out_ref,                # [L, 4D, D] bf16, [L, 1, D]  f32
    ln_post_g_ref, ln_post_b_ref,        # [1, D]         f32
    proj_ref,                            # [D, out_dim]   bf16
    out_ref,                             # [1, Bt, out_dim] f32
    *, Bt, S, D, H, L,
):
    hd = D // H
    scale = 1.0 / math.sqrt(hd)
    CPP = patches_ref.shape[-1]

    # conv1 patch embedding (stride = kernel, no bias) for the whole batch block as one
    # [Bt*S, CPP] x [CPP, D] MXU push.  Row 0 of each image's slab is zeros -> emb 0.
    p = patches_ref[...].reshape(Bt * S, CPP)
    emb = jnp.dot(p, patch_w_ref[...], preferred_element_type=jnp.float32)     # [Bt*S, D] f32

    # positional embedding with the class token pre-folded into row 0 (host-side prep,
    # already tiled to the batch block) -> no iota / where / broadcast in the kernel.
    x = emb + pos_ref[...]
    x = _ln(x, ln_pre_g_ref[...], ln_pre_b_ref[...])

    # ---- transformer blocks (static unrolled; all params VMEM-resident at toy size) ----
    for l in range(L):
        # --- attention sub-block ---
        y = _ln(x, ln1_g_ref[l], ln1_b_ref[l])
        qkv = jnp.dot(y.astype(BF16), w_qkv_ref[l],
                      preferred_element_type=jnp.float32) + b_qkv_ref[l]       # [Bt*S, 3D] f32
        qkv3 = qkv.reshape(Bt, S, 3 * D)                                       # per-image view

        head_outs = []
        for h in range(H):
            q = (qkv3[:, :, h * hd:(h + 1) * hd] * scale).astype(BF16)         # [Bt, S, hd]
            k = qkv3[:, :, D + h * hd:D + (h + 1) * hd].astype(BF16)
            v = qkv3[:, :, 2 * D + h * hd:2 * D + (h + 1) * hd].astype(BF16)
            s = jnp.einsum("bqd,bkd->bqk", q, k,
                           preferred_element_type=jnp.float32)                 # [Bt, S, S]
            s = s - jnp.max(s, axis=-1, keepdims=True)
            pr = jnp.exp(s)
            pr = pr * pl.reciprocal(jnp.sum(pr, axis=-1, keepdims=True), approx=True)
            head_outs.append(
                jnp.einsum("bqk,bkd->bqd", pr.astype(BF16), v,
                           preferred_element_type=jnp.float32))                # [Bt, S, hd]

        # merge heads along lanes, then a single [Bt*S, D] x [D, D] output projection.
        o = jnp.concatenate(head_outs, axis=-1).reshape(Bt * S, D)
        x = x + jnp.dot(o.astype(BF16), w_o_ref[l],
                        preferred_element_type=jnp.float32) + b_o_ref[l]

        # --- MLP sub-block (QuickGELU) ---
        y = _ln(x, ln2_g_ref[l], ln2_b_ref[l])
        hmid = jnp.dot(y.astype(BF16), w_fc_ref[l],
                       preferred_element_type=jnp.float32) + b_fc_ref[l]       # [Bt*S, 4D]
        hmid = hmid * jax.nn.sigmoid(1.702 * hmid)
        x = x + jnp.dot(hmid.astype(BF16), w_out_ref[l],
                        preferred_element_type=jnp.float32) + b_out_ref[l]

    # ---- ln_post on the class tokens, then visual projection (lane-contiguous store) ----
    cls = x.reshape(Bt, S, D)[:, 0, :]                                         # [Bt, D]
    cls = _ln(cls, ln_post_g_ref[...], ln_post_b_ref[...])
    out_ref[0] = jnp.dot(cls.astype(BF16), proj_ref[...],
                         preferred_element_type=jnp.float32)                   # [Bt, out_dim]


# ----------------------------- wrapper -----------------------------------------
def _full_spec(arr):
    """Whole-array VMEM block (same block index every grid step => loaded once)."""
    zeros = (0,) * arr.ndim
    return pl.BlockSpec(arr.shape, lambda i, _z=zeros: _z)


def encode_image(images, params, *, block_batch=4):
    B, C, Himg, Wimg = images.shape
    P, D, H, L = CFG["patch"], CFG["width"], CFG["heads"], CFG["layers"]
    out_dim = CFG["out_dim"]
    g = Himg // P
    N = g * g
    S = N + 1
    CPP = C * P * P
    hd = D // H

    # batch-block size: largest divisor of B that is <= block_batch
    Bt = next(bt for bt in range(min(B, block_batch), 0, -1) if B % bt == 0)
    NB = B // Bt

    # patchify (layout glue only; the conv1 matmul runs inside the kernel).
    patches = (
        images.reshape(B, C, g, P, g, P)
        .transpose(0, 2, 4, 1, 3, 5)
        .reshape(B, N, CPP)
    )
    # prepend one zero "patch" per image -> row 0 (class-token slot) has zero conv output.
    patches = jnp.concatenate(
        [jnp.zeros((B, 1, CPP), images.dtype), patches], axis=1)               # [B, S, CPP]
    patches = patches.astype(BF16)

    # fold the class token into row 0 of the positional embedding (host-side prep),
    # tiled to one batch block so the kernel works on a flat [Bt*S, D] token slab.
    pos_eff = params["pos_emb"].at[0].add(params["class_emb"][0])              # [S, D] f32
    pos_block = jnp.tile(pos_eff, (Bt, 1))                                     # [Bt*S, D]

    param_arrays = [
        params["patch_w"], pos_block,
        params["ln_pre_g"], params["ln_pre_b"],
        params["ln1_g"], params["ln1_b"],
        params["w_qkv"], params["b_qkv"],
        params["w_o"], params["b_o"],
        params["ln2_g"], params["ln2_b"],
        params["w_fc"], params["b_fc"],
        params["w_out"], params["b_out"],
        params["ln_post_g"], params["ln_post_b"],
        params["proj"],
    ]

    # advisory cost estimate for the XLA scheduler
    rows = B * S
    per_layer = (2 * rows * D * 3 * D                 # qkv projection
                 + 4 * B * H * S * S * hd             # scores + p@v
                 + 2 * rows * D * D                   # output projection
                 + 4 * rows * D * 4 * D)              # MLP fc + out
    flops = 2 * rows * CPP * D + L * per_layer + 2 * B * D * out_dim
    transcendentals = B * L * (H * S * S + S * 4 * D)
    bytes_accessed = int(
        patches.size * patches.dtype.itemsize
        + NB * sum(a.size * a.dtype.itemsize for a in param_arrays)
        + B * out_dim * 4)

    kernel = functools.partial(encoder_kernel, Bt=Bt, S=S, D=D, H=H, L=L)

    grid_spec = pltpu.PrefetchScalarGridSpec(
        num_scalar_prefetch=0,
        grid=(NB,),
        in_specs=[pl.BlockSpec((Bt, S, CPP), lambda i: (i, 0, 0))]
        + [_full_spec(a) for a in param_arrays],
        out_specs=pl.BlockSpec((1, Bt, out_dim), lambda i: (i, 0, 0)),
    )

    out = pl.pallas_call(
        kernel,
        out_shape=jax.ShapeDtypeStruct((NB, Bt, out_dim), jnp.float32),
        grid_spec=grid_spec,
        compiler_params=pltpu.CompilerParams(
            dimension_semantics=("parallel",)),       # 2 batch blocks -> both v7x TCs busy
        cost_estimate=pl.CostEstimate(
            flops=flops, transcendentals=transcendentals,
            bytes_accessed=bytes_accessed),
    )(patches, *param_arrays)
    return out.reshape(B, out_dim)


# ----------------------------- parameters --------------------------------------
def init_params(key):
    C, P, D = CFG["channels"], CFG["patch"], CFG["width"]
    L, out_dim = CFG["layers"], CFG["out_dim"]
    g = CFG["image"] // P
    S = g * g + 1

    def w(k, shape, scale=0.02, dtype=BF16):
        return (scale * jax.random.normal(k, shape, jnp.float32)).astype(dtype)

    keys = jax.random.split(key, 4 + L)
    params = dict(
        patch_w=w(keys[0], (C * P * P, D)),                 # conv1 weight, flattened, bf16
        class_emb=w(keys[1], (1, D), dtype=jnp.float32),
        pos_emb=w(keys[2], (S, D), dtype=jnp.float32),
        ln_pre_g=jnp.ones((1, D), jnp.float32),
        ln_pre_b=jnp.zeros((1, D), jnp.float32),
        ln_post_g=jnp.ones((1, D), jnp.float32),
        ln_post_b=jnp.zeros((1, D), jnp.float32),
        proj=w(keys[3], (D, out_dim)),                      # bf16
    )

    w_qkv, b_qkv, w_o, b_o, w_fc, b_fc, w_out, b_out = ([] for _ in range(8))
    for l in range(L):
        ks = jax.random.split(keys[4 + l], 8)
        w_qkv.append(w(ks[0], (D, 3 * D)))
        b_qkv.append(w(ks[1], (1, 3 * D), dtype=jnp.float32))
        w_o.append(w(ks[2], (D, D)))
        b_o.append(w(ks[3], (1, D), dtype=jnp.float32))
        w_fc.append(w(ks[4], (D, 4 * D)))
        b_fc.append(w(ks[5], (1, 4 * D), dtype=jnp.float32))
        w_out.append(w(ks[6], (4 * D, D)))
        b_out.append(w(ks[7], (1, D), dtype=jnp.float32))

    params.update(
        ln1_g=jnp.ones((L, 1, D), jnp.float32),
        ln1_b=jnp.zeros((L, 1, D), jnp.float32),
        w_qkv=jnp.stack(w_qkv), b_qkv=jnp.stack(b_qkv),
        w_o=jnp.stack(w_o), b_o=jnp.stack(b_o),
        ln2_g=jnp.ones((L, 1, D), jnp.float32),
        ln2_b=jnp.zeros((L, 1, D), jnp.float32),
        w_fc=jnp.stack(w_fc), b_fc=jnp.stack(b_fc),
        w_out=jnp.stack(w_out), b_out=jnp.stack(b_out),
    )
    return params


# ----------------------------- pure-JAX reference (for verification) -----------
def encode_image_ref(images, params):
    B, C, Himg, _ = images.shape
    P, D, H, L = CFG["patch"], CFG["width"], CFG["heads"], CFG["layers"]
    g = Himg // P
    N = g * g
    S = N + 1
    hd = D // H
    scale = 1.0 / math.sqrt(hd)
    f32 = jnp.float32

    patches = (
        images.reshape(B, C, g, P, g, P)
        .transpose(0, 2, 4, 1, 3, 5)
        .reshape(B, N, C * P * P)
    ).astype(BF16)
    emb = jnp.einsum("bnk,kd->bnd", patches, params["patch_w"],
                     preferred_element_type=f32)
    cls = jnp.broadcast_to(params["class_emb"][None], (B, 1, D))
    x = jnp.concatenate([cls, emb], axis=1) + params["pos_emb"][None]
    x = _ln(x, params["ln_pre_g"], params["ln_pre_b"])
    for l in range(L):
        y = _ln(x, params["ln1_g"][l], params["ln1_b"][l])
        qkv = jnp.einsum("bsd,de->bse", y.astype(BF16), params["w_qkv"][l],
                         preferred_element_type=f32) + params["b_qkv"][l]
        qkv = qkv.reshape(B, S, 3, H, hd)
        q, k, v = (qkv[:, :, i].transpose(0, 2, 1, 3) for i in range(3))
        q = q * scale
        s = jnp.einsum("bhqd,bhkd->bhqk", q.astype(BF16), k.astype(BF16),
                       preferred_element_type=f32)
        a = jnp.einsum("bhqk,bhkd->bhqd", jax.nn.softmax(s, -1).astype(BF16),
                       v.astype(BF16), preferred_element_type=f32)
        a = a.transpose(0, 2, 1, 3).reshape(B, S, D)
        x = x + jnp.einsum("bsd,de->bse", a.astype(BF16), params["w_o"][l],
                           preferred_element_type=f32) + params["b_o"][l]
        y = _ln(x, params["ln2_g"][l], params["ln2_b"][l])
        hmid = jnp.einsum("bsd,de->bse", y.astype(BF16), params["w_fc"][l],
                          preferred_element_type=f32) + params["b_fc"][l]
        hmid = hmid * jax.nn.sigmoid(1.702 * hmid)
        x = x + jnp.einsum("bsd,de->bse", hmid.astype(BF16), params["w_out"][l],
                           preferred_element_type=f32) + params["b_out"][l]
    cls_tok = _ln(x[:, 0, :], params["ln_post_g"], params["ln_post_b"])
    return jnp.einsum("bd,de->be", cls_tok.astype(BF16), params["proj"],
                      preferred_element_type=f32)


# ----------------------------- main ---------------------------------------------
if __name__ == "__main__":
    key = jax.random.PRNGKey(0)
    k_img, k_par = jax.random.split(key)
    B = 8
    images = jax.random.normal(
        k_img, (B, CFG["channels"], CFG["image"], CFG["image"]), jnp.float32
    )
    params = init_params(k_par)

    out = jax.block_until_ready(jax.jit(encode_image)(images, params))
    ref = encode_image_ref(images, params)

    assert out.shape == (B, CFG["out_dim"]), out.shape
    assert bool(jnp.all(jnp.isfinite(out)))
    # approx EUP reciprocal in the in-kernel softmax + bf16 matmul operands (applied
    # identically in the reference) => modestly relaxed tolerance.
    err = float(jnp.max(jnp.abs(out - ref)))
    assert jnp.allclose(out, ref, atol=5e-3, rtol=5e-3), err

    print("KERNEL_OK")
</pallas_src>

<mosaic_0001>
module attributes {stable_mosaic.version = 11 : i64} {
  func.func @encoder_kernel(%arg0: i32, %arg1: memref<4x5x192xbf16, #tpu.memory_space<vmem>>, %arg2: memref<192x32xbf16, #tpu.memory_space<vmem>>, %arg3: memref<20x32xf32, #tpu.memory_space<vmem>>, %arg4: memref<1x32xf32, #tpu.memory_space<vmem>>, %arg5: memref<1x32xf32, #tpu.memory_space<vmem>>, %arg6: memref<2x1x32xf32, #tpu.memory_space<vmem>>, %arg7: memref<2x1x32xf32, #tpu.memory_space<vmem>>, %arg8: memref<2x32x96xbf16, #tpu.memory_space<vmem>>, %arg9: memref<2x1x96xf32, #tpu.memory_space<vmem>>, %arg10: memref<2x32x32xbf16, #tpu.memory_space<vmem>>, %arg11: memref<2x1x32xf32, #tpu.memory_space<vmem>>, %arg12: memref<2x1x32xf32, #tpu.memory_space<vmem>>, %arg13: memref<2x1x32xf32, #tpu.memory_space<vmem>>, %arg14: memref<2x32x128xbf16, #tpu.memory_space<vmem>>, %arg15: memref<2x1x128xf32, #tpu.memory_space<vmem>>, %arg16: memref<2x128x32xbf16, #tpu.memory_space<vmem>>, %arg17: memref<2x1x32xf32, #tpu.memory_space<vmem>>, %arg18: memref<1x32xf32, #tpu.memory_space<vmem>>, %arg19: memref<1x32xf32, #tpu.memory_space<vmem>>, %arg20: memref<32x16xbf16, #tpu.memory_space<vmem>>, %arg21: memref<1x4x16xf32, #tpu.memory_space<vmem>>) attributes {dimension_semantics = [#tpu.dimension_semantics<parallel>], iteration_bounds = array<i64: 2>, scalar_prefetch = 0 : i64, scratch_operands = 0 : i64, tpu.core_type = #tpu.core_type<tc>, window_params = [{transform_indices = @transform_0, window_bounds = array<i64: 4, 5, 192>}, {pipeline_mode = #tpu.pipeline_mode<synchronous>, transform_indices = @transform_1, window_bounds = array<i64: 192, 32>}, {pipeline_mode = #tpu.pipeline_mode<synchronous>, transform_indices = @transform_2, window_bounds = array<i64: 20, 32>}, {pipeline_mode = #tpu.pipeline_mode<synchronous>, transform_indices = @transform_3, window_bounds = array<i64: 1, 32>}, {pipeline_mode = #tpu.pipeline_mode<synchronous>, transform_indices = @transform_4, window_bounds = array<i64: 1, 32>}, {pipeline_mode = #tpu.pipeline_mode<synchronous>, transform_indices = @transform_5, window_bounds = array<i64: 2, 1, 32>}, {pipeline_mode = #tpu.pipeline_mode<synchronous>, transform_indices = @transform_6, window_bounds = array<i64: 2, 1, 32>}, {pipeline_mode = #tpu.pipeline_mode<synchronous>, transform_indices = @transform_7, window_bounds = array<i64: 2, 32, 96>}, {pipeline_mode = #tpu.pipeline_mode<synchronous>, transform_indices = @transform_8, window_bounds = array<i64: 2, 1, 96>}, {pipeline_mode = #tpu.pipeline_mode<synchronous>, transform_indices = @transform_9, window_bounds = array<i64: 2, 32, 32>}, {pipeline_mode = #tpu.pipeline_mode<synchronous>, transform_indices = @transform_10, window_bounds = array<i64: 2, 1, 32>}, {pipeline_mode = #tpu.pipeline_mode<synchronous>, transform_indices = @transform_11, window_bounds = array<i64: 2, 1, 32>}, {pipeline_mode = #tpu.pipeline_mode<synchronous>, transform_indices = @transform_12, window_bounds = array<i64: 2, 1, 32>}, {pipeline_mode = #tpu.pipeline_mode<synchronous>, transform_indices = @transform_13, window_bounds = array<i64: 2, 32, 128>}, {pipeline_mode = #tpu.pipeline_mode<synchronous>, transform_indices = @transform_14, window_bounds = array<i64: 2, 1, 128>}, {pipeline_mode = #tpu.pipeline_mode<synchronous>, transform_indices = @transform_15, window_bounds = array<i64: 2, 128, 32>}, {pipeline_mode = #tpu.pipeline_mode<synchronous>, transform_indices = @transform_16, window_bounds = array<i64: 2, 1, 32>}, {pipeline_mode = #tpu.pipeline_mode<synchronous>, transform_indices = @transform_17, window_bounds = array<i64: 1, 32>}, {pipeline_mode = #tpu.pipeline_mode<synchronous>, transform_indices = @transform_18, window_bounds = array<i64: 1, 32>}, {pipeline_mode = #tpu.pipeline_mode<synchronous>, transform_indices = @transform_19, window_bounds = array<i64: 32, 16>}, {transform_indices = @transform_20, window_bounds = array<i64: 1, 4, 16>}]} {
    %c0 = arith.constant 0 : index
    %c0_0 = arith.constant 0 : index
    %c0_1 = arith.constant 0 : index
    %0 = vector.load %arg1[%c0, %c0_0, %c0_1] : memref<4x5x192xbf16, #tpu.memory_space<vmem>>, vector<4x5x192xbf16>
    %1 = vector.shape_cast %0 : vector<4x5x192xbf16> to vector<20x192xbf16>
    %c0_2 = arith.constant 0 : index
    %c0_3 = arith.constant 0 : index
    %2 = vector.load %arg2[%c0_2, %c0_3] : memref<192x32xbf16, #tpu.memory_space<vmem>>, vector<192x32xbf16>
    %cst = arith.constant dense<0.000000e+00> : vector<20x32xf32>
    %3 = tpu.matmul %1, %2, %cst {dimension_numbers = #tpu.dot_dimension_numbers<[1], [0], [0], [1], [0, 0, 1, 1], [], []>} : vector<20x192xbf16>, vector<192x32xbf16>, vector<20x32xf32> -> vector<20x32xf32>
    %c0_4 = arith.constant 0 : index
    %c0_5 = arith.constant 0 : index
    %4 = vector.load %arg3[%c0_4, %c0_5] : memref<20x32xf32, #tpu.memory_space<vmem>>, vector<20x32xf32>
    %5 = arith.addf %3, %4 : vector<20x32xf32>
    %c0_6 = arith.constant 0 : index
    %c0_7 = arith.constant 0 : index
    %6 = vector.load %arg4[%c0_6, %c0_7] : memref<1x32xf32, #tpu.memory_space<vmem>>, vector<1x32xf32>
    %c0_8 = arith.constant 0 : index
    %c0_9 = arith.constant 0 : index
    %7 = vector.load %arg5[%c0_8, %c0_9] : memref<1x32xf32, #tpu.memory_space<vmem>>, vector<1x32xf32>
    %cst_10 = arith.constant dense<0.000000e+00> : vector<20xf32>
    %8 = vector.multi_reduction <add>, %5, %cst_10 [1] : vector<20x32xf32> to vector<20xf32>
    %9 = vector.shape_cast %8 : vector<20xf32> to vector<20x1xf32>
    %cst_11 = arith.constant 3.200000e+01 : f32
    %10 = vector.broadcast %cst_11 : f32 to vector<20x1xf32>
    %11 = arith.divf %9, %10 : vector<20x1xf32>
    %12 = arith.mulf %5, %5 : vector<20x32xf32>
    %cst_12 = arith.constant dense<0.000000e+00> : vector<20xf32>
    %13 = vector.multi_reduction <add>, %12, %cst_12 [1] : vector<20x32xf32> to vector<20xf32>
    %14 = vector.shape_cast %13 : vector<20xf32> to vector<20x1xf32>
    %cst_13 = arith.constant 3.200000e+01 : f32
    %15 = vector.broadcast %cst_13 : f32 to vector<20x1xf32>
    %16 = arith.divf %14, %15 : vector<20x1xf32>
    %17 = arith.mulf %11, %11 : vector<20x1xf32>
    %18 = arith.subf %16, %17 : vector<20x1xf32>
    %19 = vector.broadcast %11 : vector<20x1xf32> to vector<20x32xf32>
    %20 = arith.subf %5, %19 : vector<20x32xf32>
    %cst_14 = arith.constant 9.99999974E-6 : f32
    %21 = vector.broadcast %cst_14 : f32 to vector<20x1xf32>
    %22 = arith.addf %18, %21 : vector<20x1xf32>
    %23 = math.rsqrt %22 : vector<20x1xf32>
    %24 = vector.broadcast %23 : vector<20x1xf32> to vector<20x32xf32>
    %25 = arith.mulf %20, %24 : vector<20x32xf32>
    %26 = vector.broadcast %6 : vector<1x32xf32> to vector<20x32xf32>
    %27 = arith.mulf %25, %26 : vector<20x32xf32>
    %28 = vector.broadcast %7 : vector<1x32xf32> to vector<20x32xf32>
    %29 = arith.addf %27, %28 : vector<20x32xf32>
    %c0_15 = arith.constant 0 : index
    %c0_16 = arith.constant 0 : index
    %c0_17 = arith.constant 0 : index
    %30 = vector.load %arg6[%c0_15, %c0_16, %c0_17] : memref<2x1x32xf32, #tpu.memory_space<vmem>>, vector<1x1x32xf32>
    %31 = vector.shape_cast %30 : vector<1x1x32xf32> to vector<1x32xf32>
    %c0_18 = arith.constant 0 : index
    %c0_19 = arith.constant 0 : index
    %c0_20 = arith.constant 0 : index
    %32 = vector.load %arg7[%c0_18, %c0_19, %c0_20] : memref<2x1x32xf32, #tpu.memory_space<vmem>>, vector<1x1x32xf32>
    %33 = vector.shape_cast %32 : vector<1x1x32xf32> to vector<1x32xf32>
    %cst_21 = arith.constant dense<0.000000e+00> : vector<20xf32>
    %34 = vector.multi_reduction <add>, %29, %cst_21 [1] : vector<20x32xf32> to vector<20xf32>
    %35 = vector.shape_cast %34 : vector<20xf32> to vector<20x1xf32>
    %cst_22 = arith.constant 3.200000e+01 : f32
    %36 = vector.broadcast %cst_22 : f32 to vector<20x1xf32>
    %37 = arith.divf %35, %36 : vector<20x1xf32>
    %38 = arith.mulf %29, %29 : vector<20x32xf32>
    %cst_23 = arith.constant dense<0.000000e+00> : vector<20xf32>
    %39 = vector.multi_reduction <add>, %38, %cst_23 [1] : vector<20x32xf32> to vector<20xf32>
    %40 = vector.shape_cast %39 : vector<20xf32> to vector<20x1xf32>
    %cst_24 = arith.constant 3.200000e+01 : f32
    %41 = vector.broadcast %cst_24 : f32 to vector<20x1xf32>
    %42 = arith.divf %40, %41 : vector<20x1xf32>
    %43 = arith.mulf %37, %37 : vector<20x1xf32>
    %44 = arith.subf %42, %43 : vector<20x1xf32>
    %45 = vector.broadcast %37 : vector<20x1xf32> to vector<20x32xf32>
    %46 = arith.subf %29, %45 : vector<20x32xf32>
    %cst_25 = arith.constant 9.99999974E-6 : f32
    %47 = vector.broadcast %cst_25 : f32 to vector<20x1xf32>
    %48 = arith.addf %44, %47 : vector<20x1xf32>
    %49 = math.rsqrt %48 : vector<20x1xf32>
    %50 = vector.broadcast %49 : vector<20x1xf32> to vector<20x32xf32>
    %51 = arith.mulf %46, %50 : vector<20x32xf32>
    %52 = vector.broadcast %31 : vector<1x32xf32> to vector<20x32xf32>
    %53 = arith.mulf %51, %52 : vector<20x32xf32>
    %54 = vector.broadcast %33 : vector<1x32xf32> to vector<20x32xf32>
    %55 = arith.addf %53, %54 : vector<20x32xf32>
    %56 = arith.truncf %55 : vector<20x32xf32> to vector<20x32xbf16>
    %c0_26 = arith.constant 0 : index
    %c0_27 = arith.constant 0 : index
    %c0_28 = arith.constant 0 : index
    %57 = vector.load %arg8[%c0_26, %c0_27, %c0_28] : memref<2x32x96xbf16, #tpu.memory_space<vmem>>, vector<1x32x96xbf16>
    %58 = vector.shape_cast %57 : vector<1x32x96xbf16> to vector<32x96xbf16>
    %cst_29 = arith.constant dense<0.000000e+00> : vector<20x96xf32>
    %59 = tpu.matmul %56, %58, %cst_29 {dimension_numbers = #tpu.dot_dimension_numbers<[1], [0], [0], [1], [0, 0, 1, 1], [], []>} : vector<20x32xbf16>, vector<32x96xbf16>, vector<20x96xf32> -> vector<20x96xf32>
    %c0_30 = arith.constant 0 : index
    %c0_31 = arith.constant 0 : index
    %c0_32 = arith.constant 0 : index
    %60 = vector.load %arg9[%c0_30, %c0_31, %c0_32] : memref<2x1x96xf32, #tpu.memory_space<vmem>>, vector<1x1x96xf32>
    %61 = vector.shape_cast %60 : vector<1x1x96xf32> to vector<1x96xf32>
    %62 = vector.broadcast %61 : vector<1x96xf32> to vector<20x96xf32>
    %63 = arith.addf %59, %62 : vector<20x96xf32>
    %64 = vector.shape_cast %63 : vector<20x96xf32> to vector<4x5x96xf32>
    %65 = vector.extract_strided_slice %64 {offsets = [0, 0, 0], sizes = [4, 5, 8], strides = [1, 1, 1]} : vector<4x5x96xf32> to vector<4x5x8xf32>
    %cst_33 = arith.constant 0.353553385 : f32
    %66 = vector.broadcast %cst_33 : f32 to vector<4x5x8xf32>
    %67 = arith.mulf %65, %66 : vector<4x5x8xf32>
    %68 = arith.truncf %67 : vector<4x5x8xf32> to vector<4x5x8xbf16>
    %69 = vector.extract_strided_slice %64 {offsets = [0, 0, 32], sizes = [4, 5, 8], strides = [1, 1, 1]} : vector<4x5x96xf32> to vector<4x5x8xf32>
    %70 = arith.truncf %69 : vector<4x5x8xf32> to vector<4x5x8xbf16>
    %71 = vector.extract_strided_slice %64 {offsets = [0, 0, 64], sizes = [4, 5, 8], strides = [1, 1, 1]} : vector<4x5x96xf32> to vector<4x5x8xf32>
    %72 = arith.truncf %71 : vector<4x5x8xf32> to vector<4x5x8xbf16>
    "tpu.trace_start"() <{level = 10 : i32, message = "bqd,bkd->bqk"}> : () -> ()
    %cst_34 = arith.constant dense<0.000000e+00> : vector<4x5x5xf32>
    %73 = tpu.matmul %68, %70, %cst_34 {dimension_numbers = #tpu.dot_dimension_numbers<[2], [2], [1], [1], [0, 0, 0, 1, 1, 1], [0], [0]>} : vector<4x5x8xbf16>, vector<4x5x8xbf16>, vector<4x5x5xf32> -> vector<4x5x5xf32>
    "tpu.trace_stop"() : () -> ()
    %cst_35 = arith.constant dense<0xFF800000> : vector<4x5xf32>
    %74 = vector.multi_reduction <maximumf>, %73, %cst_35 [2] : vector<4x5x5xf32> to vector<4x5xf32>
    %75 = vector.shape_cast %74 : vector<4x5xf32> to vector<4x5x1xf32>
    %76 = vector.broadcast %75 : vector<4x5x1xf32> to vector<4x5x5xf32>
    %77 = arith.subf %73, %76 : vector<4x5x5xf32>
    %78 = math.exp %77 : vector<4x5x5xf32>
    %cst_36 = arith.constant dense<0.000000e+00> : vector<4x5xf32>
    %79 = vector.multi_reduction <add>, %78, %cst_36 [2] : vector<4x5x5xf32> to vector<4x5xf32>
    %80 = vector.shape_cast %79 : vector<4x5xf32> to vector<4x5x1xf32>
    %81 = tpu.reciprocal %80 {approx = true} : vector<4x5x1xf32> -> vector<4x5x1xf32>
    %82 = vector.broadcast %81 : vector<4x5x1xf32> to vector<4x5x5xf32>
    %83 = arith.mulf %78, %82 : vector<4x5x5xf32>
    %84 = arith.truncf %83 : vector<4x5x5xf32> to vector<4x5x5xbf16>
    "tpu.trace_start"() <{level = 10 : i32, message = "bqk,bkd->bqd"}> : () -> ()
    %cst_37 = arith.constant dense<0.000000e+00> : vector<4x5x8xf32>
    %85 = tpu.matmul %84, %72, %cst_37 {dimension_numbers = #tpu.dot_dimension_numbers<[2], [1], [1], [2], [0, 0, 0, 1, 1, 2], [0], [0]>} : vector<4x5x5xbf16>, vector<4x5x8xbf16>, vector<4x5x8xf32> -> vector<4x5x8xf32>
    "tpu.trace_stop"() : () -> ()
    %86 = vector.extract_strided_slice %64 {offsets = [0, 0, 8], sizes = [4, 5, 8], strides = [1, 1, 1]} : vector<4x5x96xf32> to vector<4x5x8xf32>
    %cst_38 = arith.constant 0.353553385 : f32
    %87 = vector.broadcast %cst_38 : f32 to vector<4x5x8xf32>
    %88 = arith.mulf %86, %87 : vector<4x5x8xf32>
    %89 = arith.truncf %88 : vector<4x5x8xf32> to vector<4x5x8xbf16>
    %90 = vector.extract_strided_slice %64 {offsets = [0, 0, 40], sizes = [4, 5, 8], strides = [1, 1, 1]} : vector<4x5x96xf32> to vector<4x5x8xf32>
    %91 = arith.truncf %90 : vector<4x5x8xf32> to vector<4x5x8xbf16>
    %92 = vector.extract_strided_slice %64 {offsets = [0, 0, 72], sizes = [4, 5, 8], strides = [1, 1, 1]} : vector<4x5x96xf32> to vector<4x5x8xf32>
    %93 = arith.truncf %92 : vector<4x5x8xf32> to vector<4x5x8xbf16>
    "tpu.trace_start"() <{level = 10 : i32, message = "bqd,bkd->bqk"}> : () -> ()
    %cst_39 = arith.constant dense<0.000000e+00> : vector<4x5x5xf32>
    %94 = tpu.matmul %89, %91, %cst_39 {dimension_numbers = #tpu.dot_dimension_numbers<[2], [2], [1], [1], [0, 0, 0, 1, 1, 1], [0], [0]>} : vector<4x5x8xbf16>, vector<4x5x8xbf16>, vector<4x5x5xf32> -> vector<4x5x5xf32>
    "tpu.trace_stop"() : () -> ()
    %cst_40 = arith.constant dense<0xFF800000> : vector<4x5xf32>
    %95 = vector.multi_reduction <maximumf>, %94, %cst_40 [2] : vector<4x5x5xf32> to vector<4x5xf32>
    %96 = vector.shape_cast %95 : vector<4x5xf32> to vector<4x5x1xf32>
    %97 = vector.broadcast %96 : vector<4x5x1xf32> to vector<4x5x5xf32>
    %98 = arith.subf %94, %97 : vector<4x5x5xf32>
    %99 = math.exp %98 : vector<4x5x5xf32>
    %cst_41 = arith.constant dense<0.000000e+00> : vector<4x5xf32>
    %100 = vector.multi_reduction <add>, %99, %cst_41 [2] : vector<4x5x5xf32> to vector<4x5xf32>
    %101 = vector.shape_cast %100 : vector<4x5xf32> to vector<4x5x1xf32>
    %102 = tpu.reciprocal %101 {approx = true} : vector<4x5x1xf32> -> vector<4x5x1xf32>
    %103 = vector.broadcast %102 : vector<4x5x1xf32> to vector<4x5x5xf32>
    %104 = arith.mulf %99, %103 : vector<4x5x5xf32>
    %105 = arith.truncf %104 : vector<4x5x5xf32> to vector<4x5x5xbf16>
    "tpu.trace_start"() <{level = 10 : i32, message = "bqk,bkd->bqd"}> : () -> ()
    %cst_42 = arith.constant dense<0.000000e+00> : vector<4x5x8xf32>
    %106 = tpu.matmul %105, %93, %cst_42 {dimension_numbers = #tpu.dot_dimension_numbers<[2], [1], [1], [2], [0, 0, 0, 1, 1, 2], [0], [0]>} : vector<4x5x5xbf16>, vector<4x5x8xbf16>, vector<4x5x8xf32> -> vector<4x5x8xf32>
    "tpu.trace_stop"() : () -> ()
    %107 = vector.extract_strided_slice %64 {offsets = [0, 0, 16], sizes = [4, 5, 8], strides = [1, 1, 1]} : vector<4x5x96xf32> to vector<4x5x8xf32>
    %cst_43 = arith.constant 0.353553385 : f32
    %108 = vector.broadcast %cst_43 : f32 to vector<4x5x8xf32>
    %109 = arith.mulf %107, %108 : vector<4x5x8xf32>
    %110 = arith.truncf %109 : vector<4x5x8xf32> to vector<4x5x8xbf16>
    %111 = vector.extract_strided_slice %64 {offsets = [0, 0, 48], sizes = [4, 5, 8], strides = [1, 1, 1]} : vector<4x5x96xf32> to vector<4x5x8xf32>
    %112 = arith.truncf %111 : vector<4x5x8xf32> to vector<4x5x8xbf16>
    %113 = vector.extract_strided_slice %64 {offsets = [0, 0, 80], sizes = [4, 5, 8], strides = [1, 1, 1]} : vector<4x5x96xf32> to vector<4x5x8xf32>
    %114 = arith.truncf %113 : vector<4x5x8xf32> to vector<4x5x8xbf16>
    "tpu.trace_start"() <{level = 10 : i32, message = "bqd,bkd->bqk"}> : () -> ()
    %cst_44 = arith.constant dense<0.000000e+00> : vector<4x5x5xf32>
    %115 = tpu.matmul %110, %112, %cst_44 {dimension_numbers = #tpu.dot_dimension_numbers<[2], [2], [1], [1], [0, 0, 0, 1, 1, 1], [0], [0]>} : vector<4x5x8xbf16>, vector<4x5x8xbf16>, vector<4x5x5xf32> -> vector<4x5x5xf32>
    "tpu.trace_stop"() : () -> ()
    %cst_45 = arith.constant dense<0xFF800000> : vector<4x5xf32>
    %116 = vector.multi_reduction <maximumf>, %115, %cst_45 [2] : vector<4x5x5xf32> to vector<4x5xf32>
    %117 = vector.shape_cast %116 : vector<4x5xf32> to vector<4x5x1xf32>
    %118 = vector.broadcast %117 : vector<4x5x1xf32> to vector<4x5x5xf32>
    %119 = arith.subf %115, %118 : vector<4x5x5xf32>
    %120 = math.exp %119 : vector<4x5x5xf32>
    %cst_46 = arith.constant dense<0.000000e+00> : vector<4x5xf32>
    %121 = vector.multi_reduction <add>, %120, %cst_46 [2] : vector<4x5x5xf32> to vector<4x5xf32>
    %122 = vector.shape_cast %121 : vector<4x5xf32> to vector<4x5x1xf32>
    %123 = tpu.reciprocal %122 {approx = true} : vector<4x5x1xf32> -> vector<4x5x1xf32>
    %124 = vector.broadcast %123 : vector<4x5x1xf32> to vector<4x5x5xf32>
    %125 = arith.mulf %120, %124 : vector<4x5x5xf32>
    %126 = arith.truncf %125 : vector<4x5x5xf32> to vector<4x5x5xbf16>
    "tpu.trace_start"() <{level = 10 : i32, message = "bqk,bkd->bqd"}> : () -> ()
    %cst_47 = arith.constant dense<0.000000e+00> : vector<4x5x8xf32>
    %127 = tpu.matmul %126, %114, %cst_47 {dimension_numbers = #tpu.dot_dimension_numbers<[2], [1], [1], [2], [0, 0, 0, 1, 1, 2], [0], [0]>} : vector<4x5x5xbf16>, vector<4x5x8xbf16>, vector<4x5x8xf32> -> vector<4x5x8xf32>
    "tpu.trace_stop"() : () -> ()
    %128 = vector.extract_strided_slice %64 {offsets = [0, 0, 24], sizes = [4, 5, 8], strides = [1, 1, 1]} : vector<4x5x96xf32> to vector<4x5x8xf32>
    %cst_48 = arith.constant 0.353553385 : f32
    %129 = vector.broadcast %cst_48 : f32 to vector<4x5x8xf32>
    %130 = arith.mulf %128, %129 : vector<4x5x8xf32>
    %131 = arith.truncf %130 : vector<4x5x8xf32> to vector<4x5x8xbf16>
    %132 = vector.extract_strided_slice %64 {offsets = [0, 0, 56], sizes = [4, 5, 8], strides = [1, 1, 1]} : vector<4x5x96xf32> to vector<4x5x8xf32>
    %133 = arith.truncf %132 : vector<4x5x8xf32> to vector<4x5x8xbf16>
    %134 = vector.extract_strided_slice %64 {offsets = [0, 0, 88], sizes = [4, 5, 8], strides = [1, 1, 1]} : vector<4x5x96xf32> to vector<4x5x8xf32>
    %135 = arith.truncf %134 : vector<4x5x8xf32> to vector<4x5x8xbf16>
    "tpu.trace_start"() <{level = 10 : i32, message = "bqd,bkd->bqk"}> : () -> ()
    %cst_49 = arith.constant dense<0.000000e+00> : vector<4x5x5xf32>
    %136 = tpu.matmul %131, %133, %cst_49 {dimension_numbers = #tpu.dot_dimension_numbers<[2], [2], [1], [1], [0, 0, 0, 1, 1, 1], [0], [0]>} : vector<4x5x8xbf16>, vector<4x5x8xbf16>, vector<4x5x5xf32> -> vector<4x5x5xf32>
    "tpu.trace_stop"() : () -> ()
    %cst_50 = arith.constant dense<0xFF800000> : vector<4x5xf32>
    %137 = vector.multi_reduction <maximumf>, %136, %cst_50 [2] : vector<4x5x5xf32> to vector<4x5xf32>
    %138 = vector.shape_cast %137 : vector<4x5xf32> to vector<4x5x1xf32>
    %139 = vector.broadcast %138 : vector<4x5x1xf32> to vector<4x5x5xf32>
    %140 = arith.subf %136, %139 : vector<4x5x5xf32>
    %141 = math.exp %140 : vector<4x5x5xf32>
    %cst_51 = arith.constant dense<0.000000e+00> : vector<4x5xf32>
    %142 = vector.multi_reduction <add>, %141, %cst_51 [2] : vector<4x5x5xf32> to vector<4x5xf32>
    %143 = vector.shape_cast %142 : vector<4x5xf32> to vector<4x5x1xf32>
    %144 = tpu.reciprocal %143 {approx = true} : vector<4x5x1xf32> -> vector<4x5x1xf32>
    %145 = vector.broadcast %144 : vector<4x5x1xf32> to vector<4x5x5xf32>
    %146 = arith.mulf %141, %145 : vector<4x5x5xf32>
    %147 = arith.truncf %146 : vector<4x5x5xf32> to vector<4x5x5xbf16>
    "tpu.trace_start"() <{level = 10 : i32, message = "bqk,bkd->bqd"}> : () -> ()
    %cst_52 = arith.constant dense<0.000000e+00> : vector<4x5x8xf32>
    %148 = tpu.matmul %147, %135, %cst_52 {dimension_numbers = #tpu.dot_dimension_numbers<[2], [1], [1], [2], [0, 0, 0, 1, 1, 2], [0], [0]>} : vector<4x5x5xbf16>, vector<4x5x8xbf16>, vector<4x5x8xf32> -> vector<4x5x8xf32>
    "tpu.trace_stop"() : () -> ()
    %149 = tpu.concatenate %85, %106, %127, %148 in 2 : vector<4x5x8xf32>, vector<4x5x8xf32>, vector<4x5x8xf32>, vector<4x5x8xf32> -> vector<4x5x32xf32>
    %150 = vector.shape_cast %149 : vector<4x5x32xf32> to vector<20x32xf32>
    %151 = arith.truncf %150 : vector<20x32xf32> to vector<20x32xbf16>
    %c0_53 = arith.constant 0 : index
    %c0_54 = arith.constant 0 : index
    %c0_55 = arith.constant 0 : index
    %152 = vector.load %arg10[%c0_53, %c0_54, %c0_55] : memref<2x32x32xbf16, #tpu.memory_space<vmem>>, vector<1x32x32xbf16>
    %153 = vector.shape_cast %152 : vector<1x32x32xbf16> to vector<32x32xbf16>
    %cst_56 = arith.constant dense<0.000000e+00> : vector<20x32xf32>
    %154 = tpu.matmul %151, %153, %cst_56 {dimension_numbers = #tpu.dot_dimension_numbers<[1], [0], [0], [1], [0, 0, 1, 1], [], []>} : vector<20x32xbf16>, vector<32x32xbf16>, vector<20x32xf32> -> vector<20x32xf32>
    %155 = arith.addf %29, %154 : vector<20x32xf32>
    %c0_57 = arith.constant 0 : index
    %c0_58 = arith.constant 0 : index
    %c0_59 = arith.constant 0 : index
    %156 = vector.load %arg11[%c0_57, %c0_58, %c0_59] : memref<2x1x32xf32, #tpu.memory_space<vmem>>, vector<1x1x32xf32>
    %157 = vector.shape_cast %156 : vector<1x1x32xf32> to vector<1x32xf32>
    %158 = vector.broadcast %157 : vector<1x32xf32> to vector<20x32xf32>
    %159 = arith.addf %155, %158 : vector<20x32xf32>
    %c0_60 = arith.constant 0 : index
    %c0_61 = arith.constant 0 : index
    %c0_62 = arith.constant 0 : index
    %160 = vector.load %arg12[%c0_60, %c0_61, %c0_62] : memref<2x1x32xf32, #tpu.memory_space<vmem>>, vector<1x1x32xf32>
    %161 = vector.shape_cast %160 : vector<1x1x32xf32> to vector<1x32xf32>
    %c0_63 = arith.constant 0 : index
    %c0_64 = arith.constant 0 : index
    %c0_65 = arith.constant 0 : index
    %162 = vector.load %arg13[%c0_63, %c0_64, %c0_65] : memref<2x1x32xf32, #tpu.memory_space<vmem>>, vector<1x1x32xf32>
    %163 = vector.shape_cast %162 : vector<1x1x32xf32> to vector<1x32xf32>
    %cst_66 = arith.constant dense<0.000000e+00> : vector<20xf32>
    %164 = vector.multi_reduction <add>, %159, %cst_66 [1] : vector<20x32xf32> to vector<20xf32>
    %165 = vector.shape_cast %164 : vector<20xf32> to vector<20x1xf32>
    %cst_67 = arith.constant 3.200000e+01 : f32
    %166 = vector.broadcast %cst_67 : f32 to vector<20x1xf32>
    %167 = arith.divf %165, %166 : vector<20x1xf32>
    %168 = arith.mulf %159, %159 : vector<20x32xf32>
    %cst_68 = arith.constant dense<0.000000e+00> : vector<20xf32>
    %169 = vector.multi_reduction <add>, %168, %cst_68 [1] : vector<20x32xf32> to vector<20xf32>
    %170 = vector.shape_cast %169 : vector<20xf32> to vector<20x1xf32>
    %cst_69 = arith.constant 3.200000e+01 : f32
    %171 = vector.broadcast %cst_69 : f32 to vector<20x1xf32>
    %172 = arith.divf %170, %171 : vector<20x1xf32>
    %173 = arith.mulf %167, %167 : vector<20x1xf32>
    %174 = arith.subf %172, %173 : vector<20x1xf32>
    %175 = vector.broadcast %167 : vector<20x1xf32> to vector<20x32xf32>
    %176 = arith.subf %159, %175 : vector<20x32xf32>
    %cst_70 = arith.constant 9.99999974E-6 : f32
    %177 = vector.broadcast %cst_70 : f32 to vector<20x1xf32>
    %178 = arith.addf %174, %177 : vector<20x1xf32>
    %179 = math.rsqrt %178 : vector<20x1xf32>
    %180 = vector.broadcast %179 : vector<20x1xf32> to vector<20x32xf32>
    %181 = arith.mulf %176, %180 : vector<20x32xf32>
    %182 = vector.broadcast %161 : vector<1x32xf32> to vector<20x32xf32>
    %183 = arith.mulf %181, %182 : vector<20x32xf32>
    %184 = vector.broadcast %163 : vector<1x32xf32> to vector<20x32xf32>
    %185 = arith.addf %183, %184 : vector<20x32xf32>
    %186 = arith.truncf %185 : vector<20x32xf32> to vector<20x32xbf16>
    %c0_71 = arith.constant 0 : index
    %c0_72 = arith.constant 0 : index
    %c0_73 = arith.constant 0 : index
    %187 = vector.load %arg14[%c0_71, %c0_72, %c0_73] : memref<2x32x128xbf16, #tpu.memory_space<vmem>>, vector<1x32x128xbf16>
    %188 = vector.shape_cast %187 : vector<1x32x128xbf16> to vector<32x128xbf16>
    %cst_74 = arith.constant dense<0.000000e+00> : vector<20x128xf32>
    %189 = tpu.matmul %186, %188, %cst_74 {dimension_numbers = #tpu.dot_dimension_numbers<[1], [0], [0], [1], [0, 0, 1, 1], [], []>} : vector<20x32xbf16>, vector<32x128xbf16>, vector<20x128xf32> -> vector<20x128xf32>
    %c0_75 = arith.constant 0 : index
    %c0_76 = arith.constant 0 : index
    %c0_77 = arith.constant 0 : index
    %190 = vector.load %arg15[%c0_75, %c0_76, %c0_77] : memref<2x1x128xf32, #tpu.memory_space<vmem>>, vector<1x1x128xf32>
    %191 = vector.shape_cast %190 : vector<1x1x128xf32> to vector<1x128xf32>
    %192 = vector.broadcast %191 : vector<1x128xf32> to vector<20x128xf32>
    %193 = arith.addf %189, %192 : vector<20x128xf32>
    %cst_78 = arith.constant 1.702000e+00 : f32
    %194 = vector.broadcast %cst_78 : f32 to vector<20x128xf32>
    %195 = arith.mulf %194, %193 : vector<20x128xf32>
    %196 = arith.negf %195 : vector<20x128xf32>
    %197 = math.exp %196 : vector<20x128xf32>
    %cst_79 = arith.constant 1.000000e+00 : f32
    %198 = vector.broadcast %cst_79 : f32 to vector<20x128xf32>
    %199 = arith.addf %198, %197 : vector<20x128xf32>
    %200 = arith.divf %198, %199 : vector<20x128xf32>
    %201 = arith.mulf %193, %200 : vector<20x128xf32>
    %202 = arith.truncf %201 : vector<20x128xf32> to vector<20x128xbf16>
    %c0_80 = arith.constant 0 : index
    %c0_81 = arith.constant 0 : index
    %c0_82 = arith.constant 0 : index
    %203 = vector.load %arg16[%c0_80, %c0_81, %c0_82] : memref<2x128x32xbf16, #tpu.memory_space<vmem>>, vector<1x128x32xbf16>
    %204 = vector.shape_cast %203 : vector<1x128x32xbf16> to vector<128x32xbf16>
    %cst_83 = arith.constant dense<0.000000e+00> : vector<20x32xf32>
    %205 = tpu.matmul %202, %204, %cst_83 {dimension_numbers = #tpu.dot_dimension_numbers<[1], [0], [0], [1], [0, 0, 1, 1], [], []>} : vector<20x128xbf16>, vector<128x32xbf16>, vector<20x32xf32> -> vector<20x32xf32>
    %206 = arith.addf %159, %205 : vector<20x32xf32>
    %c0_84 = arith.constant 0 : index
    %c0_85 = arith.constant 0 : index
    %c0_86 = arith.constant 0 : index
    %207 = vector.load %arg17[%c0_84, %c0_85, %c0_86] : memref<2x1x32xf32, #tpu.memory_space<vmem>>, vector<1x1x32xf32>
    %208 = vector.shape_cast %207 : vector<1x1x32xf32> to vector<1x32xf32>
    %209 = vector.broadcast %208 : vector<1x32xf32> to vector<20x32xf32>
    %210 = arith.addf %206, %209 : vector<20x32xf32>
    %c1 = arith.constant 1 : index
    %c0_87 = arith.constant 0 : index
    %c0_88 = arith.constant 0 : index
    %211 = vector.load %arg6[%c1, %c0_87, %c0_88] : memref<2x1x32xf32, #tpu.memory_space<vmem>>, vector<1x1x32xf32>
    %212 = vector.shape_cast %211 : vector<1x1x32xf32> to vector<1x32xf32>
    %c1_89 = arith.constant 1 : index
    %c0_90 = arith.constant 0 : index
    %c0_91 = arith.constant 0 : index
    %213 = vector.load %arg7[%c1_89, %c0_90, %c0_91] : memref<2x1x32xf32, #tpu.memory_space<vmem>>, vector<1x1x32xf32>
    %214 = vector.shape_cast %213 : vector<1x1x32xf32> to vector<1x32xf32>
    %cst_92 = arith.constant dense<0.000000e+00> : vector<20xf32>
    %215 = vector.multi_reduction <add>, %210, %cst_92 [1] : vector<20x32xf32> to vector<20xf32>
    %216 = vector.shape_cast %215 : vector<20xf32> to vector<20x1xf32>
    %cst_93 = arith.constant 3.200000e+01 : f32
    %217 = vector.broadcast %cst_93 : f32 to vector<20x1xf32>
    %218 = arith.divf %216, %217 : vector<20x1xf32>
    %219 = arith.mulf %210, %210 : vector<20x32xf32>
    %cst_94 = arith.constant dense<0.000000e+00> : vector<20xf32>
    %220 = vector.multi_reduction <add>, %219, %cst_94 [1] : vector<20x32xf32> to vector<20xf32>
    %221 = vector.shape_cast %220 : vector<20xf32> to vector<20x1xf32>
    %cst_95 = arith.constant 3.200000e+01 : f32
    %222 = vector.broadcast %cst_95 : f32 to vector<20x1xf32>
    %223 = arith.divf %221, %222 : vector<20x1xf32>
    %224 = arith.mulf %218, %218 : vector<20x1xf32>
    %225 = arith.subf %223, %224 : vector<20x1xf32>
    %226 = vector.broadcast %218 : vector<20x1xf32> to vector<20x32xf32>
    %227 = arith.subf %210, %226 : vector<20x32xf32>
    %cst_96 = arith.constant 9.99999974E-6 : f32
    %228 = vector.broadcast %cst_96 : f32 to vector<20x1xf32>
    %229 = arith.addf %225, %228 : vector<20x1xf32>
    %230 = math.rsqrt %229 : vector<20x1xf32>
    %231 = vector.broadcast %230 : vector<20x1xf32> to vector<20x32xf32>
    %232 = arith.mulf %227, %231 : vector<20x32xf32>
    %233 = vector.broadcast %212 : vector<1x32xf32> to vector<20x32xf32>
    %234 = arith.mulf %232, %233 : vector<20x32xf32>
    %235 = vector.broadcast %214 : vector<1x32xf32> to vector<20x32xf32>
    %236 = arith.addf %234, %235 : vector<20x32xf32>
    %237 = arith.truncf %236 : vector<20x32xf32> to vector<20x32xbf16>
    %c1_97 = arith.constant 1 : index
    %c0_98 = arith.constant 0 : index
    %c0_99 = arith.constant 0 : index
    %238 = vector.load %arg8[%c1_97, %c0_98, %c0_99] : memref<2x32x96xbf16, #tpu.memory_space<vmem>>, vector<1x32x96xbf16>
    %239 = vector.shape_cast %238 : vector<1x32x96xbf16> to vector<32x96xbf16>
    %cst_100 = arith.constant dense<0.000000e+00> : vector<20x96xf32>
    %240 = tpu.matmul %237, %239, %cst_100 {dimension_numbers = #tpu.dot_dimension_numbers<[1], [0], [0], [1], [0, 0, 1, 1], [], []>} : vector<20x32xbf16>, vector<32x96xbf16>, vector<20x96xf32> -> vector<20x96xf32>
    %c1_101 = arith.constant 1 : index
    %c0_102 = arith.constant 0 : index
    %c0_103 = arith.constant 0 : index
    %241 = vector.load %arg9[%c1_101, %c0_102, %c0_103] : memref<2x1x96xf32, #tpu.memory_space<vmem>>, vector<1x1x96xf32>
    %242 = vector.shape_cast %241 : vector<1x1x96xf32> to vector<1x96xf32>
    %243 = vector.broadcast %242 : vector<1x96xf32> to vector<20x96xf32>
    %244 = arith.addf %240, %243 : vector<20x96xf32>
    %245 = vector.shape_cast %244 : vector<20x96xf32> to vector<4x5x96xf32>
    %246 = vector.extract_strided_slice %245 {offsets = [0, 0, 0], sizes = [4, 5, 8], strides = [1, 1, 1]} : vector<4x5x96xf32> to vector<4x5x8xf32>
    %cst_104 = arith.constant 0.353553385 : f32
    %247 = vector.broadcast %cst_104 : f32 to vector<4x5x8xf32>
    %248 = arith.mulf %246, %247 : vector<4x5x8xf32>
    %249 = arith.truncf %248 : vector<4x5x8xf32> to vector<4x5x8xbf16>
    %250 = vector.extract_strided_slice %245 {offsets = [0, 0, 32], sizes = [4, 5, 8], strides = [1, 1, 1]} : vector<4x5x96xf32> to vector<4x5x8xf32>
    %251 = arith.truncf %250 : vector<4x5x8xf32> to vector<4x5x8xbf16>
    %252 = vector.extract_strided_slice %245 {offsets = [0, 0, 64], sizes = [4, 5, 8], strides = [1, 1, 1]} : vector<4x5x96xf32> to vector<4x5x8xf32>
    %253 = arith.truncf %252 : vector<4x5x8xf32> to vector<4x5x8xbf16>
    "tpu.trace_start"() <{level = 10 : i32, message = "bqd,bkd->bqk"}> : () -> ()
    %cst_105 = arith.constant dense<0.000000e+00> : vector<4x5x5xf32>
    %254 = tpu.matmul %249, %251, %cst_105 {dimension_numbers = #tpu.dot_dimension_numbers<[2], [2], [1], [1], [0, 0, 0, 1, 1, 1], [0], [0]>} : vector<4x5x8xbf16>, vector<4x5x8xbf16>, vector<4x5x5xf32> -> vector<4x5x5xf32>
    "tpu.trace_stop"() : () -> ()
    %cst_106 = arith.constant dense<0xFF800000> : vector<4x5xf32>
    %255 = vector.multi_reduction <maximumf>, %254, %cst_106 [2] : vector<4x5x5xf32> to vector<4x5xf32>
    %256 = vector.shape_cast %255 : vector<4x5xf32> to vector<4x5x1xf32>
    %257 = vector.broadcast %256 : vector<4x5x1xf32> to vector<4x5x5xf32>
    %258 = arith.subf %254, %257 : vector<4x5x5xf32>
    %259 = math.exp %258 : vector<4x5x5xf32>
    %cst_107 = arith.constant dense<0.000000e+00> : vector<4x5xf32>
    %260 = vector.multi_reduction <add>, %259, %cst_107 [2] : vector<4x5x5xf32> to vector<4x5xf32>
    %261 = vector.shape_cast %260 : vector<4x5xf32> to vector<4x5x1xf32>
    %262 = tpu.reciprocal %261 {approx = true} : vector<4x5x1xf32> -> vector<4x5x1xf32>
    %263 = vector.broadcast %262 : vector<4x5x1xf32> to vector<4x5x5xf32>
    %264 = arith.mulf %259, %263 : vector<4x5x5xf32>
    %265 = arith.truncf %264 : vector<4x5x5xf32> to vector<4x5x5xbf16>
    "tpu.trace_start"() <{level = 10 : i32, message = "bqk,bkd->bqd"}> : () -> ()
    %cst_108 = arith.constant dense<0.000000e+00> : vector<4x5x8xf32>
    %266 = tpu.matmul %265, %253, %cst_108 {dimension_numbers = #tpu.dot_dimension_numbers<[2], [1], [1], [2], [0, 0, 0, 1, 1, 2], [0], [0]>} : vector<4x5x5xbf16>, vector<4x5x8xbf16>, vector<4x5x8xf32> -> vector<4x5x8xf32>
    "tpu.trace_stop"() : () -> ()
    %267 = vector.extract_strided_slice %245 {offsets = [0, 0, 8], sizes = [4, 5, 8], strides = [1, 1, 1]} : vector<4x5x96xf32> to vector<4x5x8xf32>
    %cst_109 = arith.constant 0.353553385 : f32
    %268 = vector.broadcast %cst_109 : f32 to vector<4x5x8xf32>
    %269 = arith.mulf %267, %268 : vector<4x5x8xf32>
    %270 = arith.truncf %269 : vector<4x5x8xf32> to vector<4x5x8xbf16>
    %271 = vector.extract_strided_slice %245 {offsets = [0, 0, 40], sizes = [4, 5, 8], strides = [1, 1, 1]} : vector<4x5x96xf32> to vector<4x5x8xf32>
    %272 = arith.truncf %271 : vector<4x5x8xf32> to vector<4x5x8xbf16>
    %273 = vector.extract_strided_slice %245 {offsets = [0, 0, 72], sizes = [4, 5, 8], strides = [1, 1, 1]} : vector<4x5x96xf32> to vector<4x5x8xf32>
    %274 = arith.truncf %273 : vector<4x5x8xf32> to vector<4x5x8xbf16>
    "tpu.trace_start"() <{level = 10 : i32, message = "bqd,bkd->bqk"}> : () -> ()
    %cst_110 = arith.constant dense<0.000000e+00> : vector<4x5x5xf32>
    %275 = tpu.matmul %270, %272, %cst_110 {dimension_numbers = #tpu.dot_dimension_numbers<[2], [2], [1], [1], [0, 0, 0, 1, 1, 1], [0], [0]>} : vector<4x5x8xbf16>, vector<4x5x8xbf16>, vector<4x5x5xf32> -> vector<4x5x5xf32>
    "tpu.trace_stop"() : () -> ()
    %cst_111 = arith.constant dense<0xFF800000> : vector<4x5xf32>
    %276 = vector.multi_reduction <maximumf>, %275, %cst_111 [2] : vector<4x5x5xf32> to vector<4x5xf32>
    %277 = vector.shape_cast %276 : vector<4x5xf32> to vector<4x5x1xf32>
    %278 = vector.broadcast %277 : vector<4x5x1xf32> to vector<4x5x5xf32>
    %279 = arith.subf %275, %278 : vector<4x5x5xf32>
    %280 = math.exp %279 : vector<4x5x5xf32>
    %cst_112 = arith.constant dense<0.000000e+00> : vector<4x5xf32>
    %281 = vector.multi_reduction <add>, %280, %cst_112 [2] : vector<4x5x5xf32> to vector<4x5xf32>
    %282 = vector.shape_cast %281 : vector<4x5xf32> to vector<4x5x1xf32>
    %283 = tpu.reciprocal %282 {approx = true} : vector<4x5x1xf32> -> vector<4x5x1xf32>
    %284 = vector.broadcast %283 : vector<4x5x1xf32> to vector<4x5x5xf32>
    %285 = arith.mulf %280, %284 : vector<4x5x5xf32>
    %286 = arith.truncf %285 : vector<4x5x5xf32> to vector<4x5x5xbf16>
    "tpu.trace_start"() <{level = 10 : i32, message = "bqk,bkd->bqd"}> : () -> ()
    %cst_113 = arith.constant dense<0.000000e+00> : vector<4x5x8xf32>
    %287 = tpu.matmul %286, %274, %cst_113 {dimension_numbers = #tpu.dot_dimension_numbers<[2], [1], [1], [2], [0, 0, 0, 1, 1, 2], [0], [0]>} : vector<4x5x5xbf16>, vector<4x5x8xbf16>, vector<4x5x8xf32> -> vector<4x5x8xf32>
    "tpu.trace_stop"() : () -> ()
    %288 = vector.extract_strided_slice %245 {offsets = [0, 0, 16], sizes = [4, 5, 8], strides = [1, 1, 1]} : vector<4x5x96xf32> to vector<4x5x8xf32>
    %cst_114 = arith.constant 0.353553385 : f32
    %289 = vector.broadcast %cst_114 : f32 to vector<4x5x8xf32>
    %290 = arith.mulf %288, %289 : vector<4x5x8xf32>
    %291 = arith.truncf %290 : vector<4x5x8xf32> to vector<4x5x8xbf16>
    %292 = vector.extract_strided_slice %245 {offsets = [0, 0, 48], sizes = [4, 5, 8], strides = [1, 1, 1]} : vector<4x5x96xf32> to vector<4x5x8xf32>
    %293 = arith.truncf %292 : vector<4x5x8xf32> to vector<4x5x8xbf16>
    %294 = vector.extract_strided_slice %245 {offsets = [0, 0, 80], sizes = [4, 5, 8], strides = [1, 1, 1]} : vector<4x5x96xf32> to vector<4x5x8xf32>
    %295 = arith.truncf %294 : vector<4x5x8xf32> to vector<4x5x8xbf16>
    "tpu.trace_start"() <{level = 10 : i32, message = "bqd,bkd->bqk"}> : () -> ()
    %cst_115 = arith.constant dense<0.000000e+00> : vector<4x5x5xf32>
    %296 = tpu.matmul %291, %293, %cst_115 {dimension_numbers = #tpu.dot_dimension_numbers<[2], [2], [1], [1], [0, 0, 0, 1, 1, 1], [0], [0]>} : vector<4x5x8xbf16>, vector<4x5x8xbf16>, vector<4x5x5xf32> -> vector<4x5x5xf32>
    "tpu.trace_stop"() : () -> ()
    %cst_116 = arith.constant dense<0xFF800000> : vector<4x5xf32>
    %297 = vector.multi_reduction <maximumf>, %296, %cst_116 [2] : vector<4x5x5xf32> to vector<4x5xf32>
    %298 = vector.shape_cast %297 : vector<4x5xf32> to vector<4x5x1xf32>
    %299 = vector.broadcast %298 : vector<4x5x1xf32> to vector<4x5x5xf32>
    %300 = arith.subf %296, %299 : vector<4x5x5xf32>
    %301 = math.exp %300 : vector<4x5x5xf32>
    %cst_117 = arith.constant dense<0.000000e+00> : vector<4x5xf32>
    %302 = vector.multi_reduction <add>, %301, %cst_117 [2] : vector<4x5x5xf32> to vector<4x5xf32>
    %303 = vector.shape_cast %302 : vector<4x5xf32> to vector<4x5x1xf32>
    %304 = tpu.reciprocal %303 {approx = true} : vector<4x5x1xf32> -> vector<4x5x1xf32>
    %305 = vector.broadcast %304 : vector<4x5x1xf32> to vector<4x5x5xf32>
    %306 = arith.mulf %301, %305 : vector<4x5x5xf32>
    %307 = arith.truncf %306 : vector<4x5x5xf32> to vector<4x5x5xbf16>
    "tpu.trace_start"() <{level = 10 : i32, message = "bqk,bkd->bqd"}> : () -> ()
    %cst_118 = arith.constant dense<0.000000e+00> : vector<4x5x8xf32>
    %308 = tpu.matmul %307, %295, %cst_118 {dimension_numbers = #tpu.dot_dimension_numbers<[2], [1], [1], [2], [0, 0, 0, 1, 1, 2], [0], [0]>} : vector<4x5x5xbf16>, vector<4x5x8xbf16>, vector<4x5x8xf32> -> vector<4x5x8xf32>
    "tpu.trace_stop"() : () -> ()
    %309 = vector.extract_strided_slice %245 {offsets = [0, 0, 24], sizes = [4, 5, 8], strides = [1, 1, 1]} : vector<4x5x96xf32> to vector<4x5x8xf32>
    %cst_119 = arith.constant 0.353553385 : f32
    %310 = vector.broadcast %cst_119 : f32 to vector<4x5x8xf32>
    %311 = arith.mulf %309, %310 : vector<4x5x8xf32>
    %312 = arith.truncf %311 : vector<4x5x8xf32> to vector<4x5x8xbf16>
    %313 = vector.extract_strided_slice %245 {offsets = [0, 0, 56], sizes = [4, 5, 8], strides = [1, 1, 1]} : vector<4x5x96xf32> to vector<4x5x8xf32>
    %314 = arith.truncf %313 : vector<4x5x8xf32> to vector<4x5x8xbf16>
    %315 = vector.extract_strided_slice %245 {offsets = [0, 0, 88], sizes = [4, 5, 8], strides = [1, 1, 1]} : vector<4x5x96xf32> to vector<4x5x8xf32>
    %316 = arith.truncf %315 : vector<4x5x8xf32> to vector<4x5x8xbf16>
    "tpu.trace_start"() <{level = 10 : i32, message = "bqd,bkd->bqk"}> : () -> ()
    %cst_120 = arith.constant dense<0.000000e+00> : vector<4x5x5xf32>
    %317 = tpu.matmul %312, %314, %cst_120 {dimension_numbers = #tpu.dot_dimension_numbers<[2], [2], [1], [1], [0, 0, 0, 1, 1, 1], [0], [0]>} : vector<4x5x8xbf16>, vector<4x5x8xbf16>, vector<4x5x5xf32> -> vector<4x5x5xf32>
    "tpu.trace_stop"() : () -> ()
    %cst_121 = arith.constant dense<0xFF800000> : vector<4x5xf32>
    %318 = vector.multi_reduction <maximumf>, %317, %cst_121 [2] : vector<4x5x5xf32> to vector<4x5xf32>
    %319 = vector.shape_cast %318 : vector<4x5xf32> to vector<4x5x1xf32>
    %320 = vector.broadcast %319 : vector<4x5x1xf32> to vector<4x5x5xf32>
    %321 = arith.subf %317, %320 : vector<4x5x5xf32>
    %322 = math.exp %321 : vector<4x5x5xf32>
    %cst_122 = arith.constant dense<0.000000e+00> : vector<4x5xf32>
    %323 = vector.multi_reduction <add>, %322, %cst_122 [2] : vector<4x5x5xf32> to vector<4x5xf32>
    %324 = vector.shape_cast %323 : vector<4x5xf32> to vector<4x5x1xf32>
    %325 = tpu.reciprocal %324 {approx = true} : vector<4x5x1xf32> -> vector<4x5x1xf32>
    %326 = vector.broadcast %325 : vector<4x5x1xf32> to vector<4x5x5xf32>
    %327 = arith.mulf %322, %326 : vector<4x5x5xf32>
    %328 = arith.truncf %327 : vector<4x5x5xf32> to vector<4x5x5xbf16>
    "tpu.trace_start"() <{level = 10 : i32, message = "bqk,bkd->bqd"}> : () -> ()
    %cst_123 = arith.constant dense<0.000000e+00> : vector<4x5x8xf32>
    %329 = tpu.matmul %328, %316, %cst_123 {dimension_numbers = #tpu.dot_dimension_numbers<[2], [1], [1], [2], [0, 0, 0, 1, 1, 2], [0], [0]>} : vector<4x5x5xbf16>, vector<4x5x8xbf16>, vector<4x5x8xf32> -> vector<4x5x8xf32>
    "tpu.trace_stop"() : () -> ()
    %330 = tpu.concatenate %266, %287, %308, %329 in 2 : vector<4x5x8xf32>, vector<4x5x8xf32>, vector<4x5x8xf32>, vector<4x5x8xf32> -> vector<4x5x32xf32>
    %331 = vector.shape_cast %330 : vector<4x5x32xf32> to vector<20x32xf32>
    %332 = arith.truncf %331 : vector<20x32xf32> to vector<20x32xbf16>
    %c1_124 = arith.constant 1 : index
    %c0_125 = arith.constant 0 : index
    %c0_126 = arith.constant 0 : index
    %333 = vector.load %arg10[%c1_124, %c0_125, %c0_126] : memref<2x32x32xbf16, #tpu.memory_space<vmem>>, vector<1x32x32xbf16>
    %334 = vector.shape_cast %333 : vector<1x32x32xbf16> to vector<32x32xbf16>
    %cst_127 = arith.constant dense<0.000000e+00> : vector<20x32xf32>
    %335 = tpu.matmul %332, %334, %cst_127 {dimension_numbers = #tpu.dot_dimension_numbers<[1], [0], [0], [1], [0, 0, 1, 1], [], []>} : vector<20x32xbf16>, vector<32x32xbf16>, vector<20x32xf32> -> vector<20x32xf32>
    %336 = arith.addf %210, %335 : vector<20x32xf32>
    %c1_128 = arith.constant 1 : index
    %c0_129 = arith.constant 0 : index
    %c0_130 = arith.constant 0 : index
    %337 = vector.load %arg11[%c1_128, %c0_129, %c0_130] : memref<2x1x32xf32, #tpu.memory_space<vmem>>, vector<1x1x32xf32>
    %338 = vector.shape_cast %337 : vector<1x1x32xf32> to vector<1x32xf32>
    %339 = vector.broadcast %338 : vector<1x32xf32> to vector<20x32xf32>
    %340 = arith.addf %336, %339 : vector<20x32xf32>
    %c1_131 = arith.constant 1 : index
    %c0_132 = arith.constant 0 : index
    %c0_133 = arith.constant 0 : index
    %341 = vector.load %arg12[%c1_131, %c0_132, %c0_133] : memref<2x1x32xf32, #tpu.memory_space<vmem>>, vector<1x1x32xf32>
    %342 = vector.shape_cast %341 : vector<1x1x32xf32> to vector<1x32xf32>
    %c1_134 = arith.constant 1 : index
    %c0_135 = arith.constant 0 : index
    %c0_136 = arith.constant 0 : index
    %343 = vector.load %arg13[%c1_134, %c0_135, %c0_136] : memref<2x1x32xf32, #tpu.memory_space<vmem>>, vector<1x1x32xf32>
    %344 = vector.shape_cast %343 : vector<1x1x32xf32> to vector<1x32xf32>
    %cst_137 = arith.constant dense<0.000000e+00> : vector<20xf32>
    %345 = vector.multi_reduction <add>, %340, %cst_137 [1] : vector<20x32xf32> to vector<20xf32>
    %346 = vector.shape_cast %345 : vector<20xf32> to vector<20x1xf32>
    %cst_138 = arith.constant 3.200000e+01 : f32
    %347 = vector.broadcast %cst_138 : f32 to vector<20x1xf32>
    %348 = arith.divf %346, %347 : vector<20x1xf32>
    %349 = arith.mulf %340, %340 : vector<20x32xf32>
    %cst_139 = arith.constant dense<0.000000e+00> : vector<20xf32>
    %350 = vector.multi_reduction <add>, %349, %cst_139 [1] : vector<20x32xf32> to vector<20xf32>
    %351 = vector.shape_cast %350 : vector<20xf32> to vector<20x1xf32>
    %cst_140 = arith.constant 3.200000e+01 : f32
    %352 = vector.broadcast %cst_140 : f32 to vector<20x1xf32>
    %353 = arith.divf %351, %352 : vector<20x1xf32>
    %354 = arith.mulf %348, %348 : vector<20x1xf32>
    %355 = arith.subf %353, %354 : vector<20x1xf32>
    %356 = vector.broadcast %348 : vector<20x1xf32> to vector<20x32xf32>
    %357 = arith.subf %340, %356 : vector<20x32xf32>
    %cst_141 = arith.constant 9.99999974E-6 : f32
    %358 = vector.broadcast %cst_141 : f32 to vector<20x1xf32>
    %359 = arith.addf %355, %358 : vector<20x1xf32>
    %360 = math.rsqrt %359 : vector<20x1xf32>
    %361 = vector.broadcast %360 : vector<20x1xf32> to vector<20x32xf32>
    %362 = arith.mulf %357, %361 : vector<20x32xf32>
    %363 = vector.broadcast %342 : vector<1x32xf32> to vector<20x32xf32>
    %364 = arith.mulf %362, %363 : vector<20x32xf32>
    %365 = vector.broadcast %344 : vector<1x32xf32> to vector<20x32xf32>
    %366 = arith.addf %364, %365 : vector<20x32xf32>
    %367 = arith.truncf %366 : vector<20x32xf32> to vector<20x32xbf16>
    %c1_142 = arith.constant 1 : index
    %c0_143 = arith.constant 0 : index
    %c0_144 = arith.constant 0 : index
    %368 = vector.load %arg14[%c1_142, %c0_143, %c0_144] : memref<2x32x128xbf16, #tpu.memory_space<vmem>>, vector<1x32x128xbf16>
    %369 = vector.shape_cast %368 : vector<1x32x128xbf16> to vector<32x128xbf16>
    %cst_145 = arith.constant dense<0.000000e+00> : vector<20x128xf32>
    %370 = tpu.matmul %367, %369, %cst_145 {dimension_numbers = #tpu.dot_dimension_numbers<[1], [0], [0], [1], [0, 0, 1, 1], [], []>} : vector<20x32xbf16>, vector<32x128xbf16>, vector<20x128xf32> -> vector<20x128xf32>
    %c1_146 = arith.constant 1 : index
    %c0_147 = arith.constant 0 : index
    %c0_148 = arith.constant 0 : index
    %371 = vector.load %arg15[%c1_146, %c0_147, %c0_148] : memref<2x1x128xf32, #tpu.memory_space<vmem>>, vector<1x1x128xf32>
    %372 = vector.shape_cast %371 : vector<1x1x128xf32> to vector<1x128xf32>
    %373 = vector.broadcast %372 : vector<1x128xf32> to vector<20x128xf32>
    %374 = arith.addf %370, %373 : vector<20x128xf32>
    %cst_149 = arith.constant 1.702000e+00 : f32
    %375 = vector.broadcast %cst_149 : f32 to vector<20x128xf32>
    %376 = arith.mulf %375, %374 : vector<20x128xf32>
    %377 = arith.negf %376 : vector<20x128xf32>
    %378 = math.exp %377 : vector<20x128xf32>
    %cst_150 = arith.constant 1.000000e+00 : f32
    %379 = vector.broadcast %cst_150 : f32 to vector<20x128xf32>
    %380 = arith.addf %379, %378 : vector<20x128xf32>
    %381 = arith.divf %379, %380 : vector<20x128xf32>
    %382 = arith.mulf %374, %381 : vector<20x128xf32>
    %383 = arith.truncf %382 : vector<20x128xf32> to vector<20x128xbf16>
    %c1_151 = arith.constant 1 : index
    %c0_152 = arith.constant 0 : index
    %c0_153 = arith.constant 0 : index
    %384 = vector.load %arg16[%c1_151, %c0_152, %c0_153] : memref<2x128x32xbf16, #tpu.memory_space<vmem>>, vector<1x128x32xbf16>
    %385 = vector.shape_cast %384 : vector<1x128x32xbf16> to vector<128x32xbf16>
    %cst_154 = arith.constant dense<0.000000e+00> : vector<20x32xf32>
    %386 = tpu.matmul %383, %385, %cst_154 {dimension_numbers = #tpu.dot_dimension_numbers<[1], [0], [0], [1], [0, 0, 1, 1], [], []>} : vector<20x128xbf16>, vector<128x32xbf16>, vector<20x32xf32> -> vector<20x32xf32>
    %387 = arith.addf %340, %386 : vector<20x32xf32>
    %c1_155 = arith.constant 1 : index
    %c0_156 = arith.constant 0 : index
    %c0_157 = arith.constant 0 : index
    %388 = vector.load %arg17[%c1_155, %c0_156, %c0_157] : memref<2x1x32xf32, #tpu.memory_space<vmem>>, vector<1x1x32xf32>
    %389 = vector.shape_cast %388 : vector<1x1x32xf32> to vector<1x32xf32>
    %390 = vector.broadcast %389 : vector<1x32xf32> to vector<20x32xf32>
    %391 = arith.addf %387, %390 : vector<20x32xf32>
    %392 = vector.shape_cast %391 : vector<20x32xf32> to vector<4x5x32xf32>
    %393 = vector.extract_strided_slice %392 {offsets = [0, 0, 0], sizes = [4, 1, 32], strides = [1, 1, 1]} : vector<4x5x32xf32> to vector<4x1x32xf32>
    %394 = vector.shape_cast %393 : vector<4x1x32xf32> to vector<4x32xf32>
    %c0_158 = arith.constant 0 : index
    %c0_159 = arith.constant 0 : index
    %395 = vector.load %arg18[%c0_158, %c0_159] : memref<1x32xf32, #tpu.memory_space<vmem>>, vector<1x32xf32>
    %c0_160 = arith.constant 0 : index
    %c0_161 = arith.constant 0 : index
    %396 = vector.load %arg19[%c0_160, %c0_161] : memref<1x32xf32, #tpu.memory_space<vmem>>, vector<1x32xf32>
    %cst_162 = arith.constant dense<0.000000e+00> : vector<4xf32>
    %397 = vector.multi_reduction <add>, %394, %cst_162 [1] : vector<4x32xf32> to vector<4xf32>
    %398 = vector.shape_cast %397 : vector<4xf32> to vector<4x1xf32>
    %cst_163 = arith.constant 3.200000e+01 : f32
    %399 = vector.broadcast %cst_163 : f32 to vector<4x1xf32>
    %400 = arith.divf %398, %399 : vector<4x1xf32>
    %401 = arith.mulf %394, %394 : vector<4x32xf32>
    %cst_164 = arith.constant dense<0.000000e+00> : vector<4xf32>
    %402 = vector.multi_reduction <add>, %401, %cst_164 [1] : vector<4x32xf32> to vector<4xf32>
    %403 = vector.shape_cast %402 : vector<4xf32> to vector<4x1xf32>
    %cst_165 = arith.constant 3.200000e+01 : f32
    %404 = vector.broadcast %cst_165 : f32 to vector<4x1xf32>
    %405 = arith.divf %403, %404 : vector<4x1xf32>
    %406 = arith.mulf %400, %400 : vector<4x1xf32>
    %407 = arith.subf %405, %406 : vector<4x1xf32>
    %408 = vector.broadcast %400 : vector<4x1xf32> to vector<4x32xf32>
    %409 = arith.subf %394, %408 : vector<4x32xf32>
    %cst_166 = arith.constant 9.99999974E-6 : f32
    %410 = vector.broadcast %cst_166 : f32 to vector<4x1xf32>
    %411 = arith.addf %407, %410 : vector<4x1xf32>
    %412 = math.rsqrt %411 : vector<4x1xf32>
    %413 = vector.broadcast %412 : vector<4x1xf32> to vector<4x32xf32>
    %414 = arith.mulf %409, %413 : vector<4x32xf32>
    %415 = vector.broadcast %395 : vector<1x32xf32> to vector<4x32xf32>
    %416 = arith.mulf %414, %415 : vector<4x32xf32>
    %417 = vector.broadcast %396 : vector<1x32xf32> to vector<4x32xf32>
    %418 = arith.addf %416, %417 : vector<4x32xf32>
    %419 = arith.truncf %418 : vector<4x32xf32> to vector<4x32xbf16>
    %c0_167 = arith.constant 0 : index
    %c0_168 = arith.constant 0 : index
    %420 = vector.load %arg20[%c0_167, %c0_168] : memref<32x16xbf16, #tpu.memory_space<vmem>>, vector<32x16xbf16>
    %cst_169 = arith.constant dense<0.000000e+00> : vector<4x16xf32>
    %421 = tpu.matmul %419, %420, %cst_169 {dimension_numbers = #tpu.dot_dimension_numbers<[1], [0], [0], [1], [0, 0, 1, 1], [], []>} : vector<4x32xbf16>, vector<32x16xbf16>, vector<4x16xf32> -> vector<4x16xf32>
    %c0_170 = arith.constant 0 : index
    %c0_171 = arith.constant 0 : index
    %c0_172 = arith.constant 0 : index
    %422 = vector.load %arg21[%c0_170, %c0_171, %c0_172] : memref<1x4x16xf32, #tpu.memory_space<vmem>>, vector<1x4x16xf32>
    %423 = vector.shape_cast %422 : vector<1x4x16xf32> to vector<4x16xf32>
    %424 = vector.shape_cast %421 : vector<4x16xf32> to vector<1x4x16xf32>
    tpu.vector_store %arg21[%c0_170, %c0_171, %c0_172], %424 {strides = array<i32>} : memref<1x4x16xf32, #tpu.memory_space<vmem>>, vector<1x4x16xf32>,
    return
  }
  func.func @transform_0(%arg0: i32) -> (i32, i32, i32) {
    %c0_i32 = arith.constant 0 : i32
    %c0_i32_0 = arith.constant 0 : i32
    %c0_i32_1 = arith.constant 0 : i32
    return %arg0, %c0_i32, %c0_i32_0 : i32, i32, i32
  }
  func.func @transform_1(%arg0: i32) -> (i32, i32) {
    %c0_i32 = arith.constant 0 : i32
    %c0_i32_0 = arith.constant 0 : i32
    %c0_i32_1 = arith.constant 0 : i32
    return %c0_i32, %c0_i32_0 : i32, i32
  }
  func.func @transform_2(%arg0: i32) -> (i32, i32) {
    %c0_i32 = arith.constant 0 : i32
    %c0_i32_0 = arith.constant 0 : i32
    %c0_i32_1 = arith.constant 0 : i32
    return %c0_i32, %c0_i32_0 : i32, i32
  }
  func.func @transform_3(%arg0: i32) -> (i32, i32) {
    %c0_i32 = arith.constant 0 : i32
    %c0_i32_0 = arith.constant 0 : i32
    %c0_i32_1 = arith.constant 0 : i32
    return %c0_i32, %c0_i32_0 : i32, i32
  }
  func.func @transform_4(%arg0: i32) -> (i32, i32) {
    %c0_i32 = arith.constant 0 : i32
    %c0_i32_0 = arith.constant 0 : i32
    %c0_i32_1 = arith.constant 0 : i32
    return %c0_i32, %c0_i32_0 : i32, i32
  }
  func.func @transform_5(%arg0: i32) -> (i32, i32, i32) {
    %c0_i32 = arith.constant 0 : i32
    %c0_i32_0 = arith.constant 0 : i32
    %c0_i32_1 = arith.constant 0 : i32
    %c0_i32_2 = arith.constant 0 : i32
    return %c0_i32, %c0_i32_0, %c0_i32_1 : i32, i32, i32
  }
  func.func @transform_6(%arg0: i32) -> (i32, i32, i32) {
    %c0_i32 = arith.constant 0 : i32
    %c0_i32_0 = arith.constant 0 : i32
    %c0_i32_1 = arith.constant 0 : i32
    %c0_i32_2 = arith.constant 0 : i32
    return %c0_i32, %c0_i32_0, %c0_i32_1 : i32, i32, i32
  }
  func.func @transform_7(%arg0: i32) -> (i32, i32, i32) {
    %c0_i32 = arith.constant 0 : i32
    %c0_i32_0 = arith.constant 0 : i32
    %c0_i32_1 = arith.constant 0 : i32
    %c0_i32_2 = arith.constant 0 : i32
    return %c0_i32, %c0_i32_0, %c0_i32_1 : i32, i32, i32
  }
  func.func @transform_8(%arg0: i32) -> (i32, i32, i32) {
    %c0_i32 = arith.constant 0 : i32
    %c0_i32_0 = arith.constant 0 : i32
    %c0_i32_1 = arith.constant 0 : i32
    %c0_i32_2 = arith.constant 0 : i32
    return %c0_i32, %c0_i32_0, %c0_i32_1 : i32, i32, i32
  }
  func.func @transform_9(%arg0: i32) -> (i32, i32, i32) {
    %c0_i32 = arith.constant 0 : i32
    %c0_i32_0 = arith.constant 0 : i32
    %c0_i32_1 = arith.constant 0 : i32
    %c0_i32_2 = arith.constant 0 : i32
    return %c0_i32, %c0_i32_0, %c0_i32_1 : i32, i32, i32
  }
  func.func @transform_10(%arg0: i32) -> (i32, i32, i32) {
    %c0_i32 = arith.constant 0 : i32
    %c0_i32_0 = arith.constant 0 : i32
    %c0_i32_1 = arith.constant 0 : i32
    %c0_i32_2 = arith.constant 0 : i32
    return %c0_i32, %c0_i32_0, %c0_i32_1 : i32, i32, i32
  }
  func.func @transform_11(%arg0: i32) -> (i32, i32, i32) {
    %c0_i32 = arith.constant 0 : i32
    %c0_i32_0 = arith.constant 0 : i32
    %c0_i32_1 = arith.constant 0 : i32
    %c0_i32_2 = arith.constant 0 : i32
    return %c0_i32, %c0_i32_0, %c0_i32_1 : i32, i32, i32
  }
  func.func @transform_12(%arg0: i32) -> (i32, i32, i32) {
    %c0_i32 = arith.constant 0 : i32
    %c0_i32_0 = arith.constant 0 : i32
    %c0_i32_1 = arith.constant 0 : i32
    %c0_i32_2 = arith.constant 0 : i32
    return %c0_i32, %c0_i32_0, %c0_i32_1 : i32, i32, i32
  }
  func.func @transform_13(%arg0: i32) -> (i32, i32, i32) {
    %c0_i32 = arith.constant 0 : i32
    %c0_i32_0 = arith.constant 0 : i32
    %c0_i32_1 = arith.constant 0 : i32
    %c0_i32_2 = arith.constant 0 : i32
    return %c0_i32, %c0_i32_0, %c0_i32_1 : i32, i32, i32
  }
  func.func @transform_14(%arg0: i32) -> (i32, i32, i32) {
    %c0_i32 = arith.constant 0 : i32
    %c0_i32_0 = arith.constant 0 : i32
    %c0_i32_1 = arith.constant 0 : i32
    %c0_i32_2 = arith.constant 0 : i32
    return %c0_i32, %c0_i32_0, %c0_i32_1 : i32, i32, i32
  }
  func.func @transform_15(%arg0: i32) -> (i32, i32, i32) {
    %c0_i32 = arith.constant 0 : i32
    %c0_i32_0 = arith.constant 0 : i32
    %c0_i32_1 = arith.constant 0 : i32
    %c0_i32_2 = arith.constant 0 : i32
    return %c0_i32, %c0_i32_0, %c0_i32_1 : i32, i32, i32
  }
  func.func @transform_16(%arg0: i32) -> (i32, i32, i32) {
    %c0_i32 = arith.constant 0 : i32
    %c0_i32_0 = arith.constant 0 : i32
    %c0_i32_1 = arith.constant 0 : i32
    %c0_i32_2 = arith.constant 0 : i32
    return %c0_i32, %c0_i32_0, %c0_i32_1 : i32, i32, i32
  }
  func.func @transform_17(%arg0: i32) -> (i32, i32) {
    %c0_i32 = arith.constant 0 : i32
    %c0_i32_0 = arith.constant 0 : i32
    %c0_i32_1 = arith.constant 0 : i32
    return %c0_i32, %c0_i32_0 : i32, i32
  }
  func.func @transform_18(%arg0: i32) -> (i32, i32) {
    %c0_i32 = arith.constant 0 : i32
    %c0_i32_0 = arith.constant 0 : i32
    %c0_i32_1 = arith.constant 0 : i32
    return %c0_i32, %c0_i32_0 : i32, i32
  }
  func.func @transform_19(%arg0: i32) -> (i32, i32) {
    %c0_i32 = arith.constant 0 : i32
    %c0_i32_0 = arith.constant 0 : i32
    %c0_i32_1 = arith.constant 0 : i32
    return %c0_i32, %c0_i32_0 : i32, i32
  }
  func.func @transform_20(%arg0: i32) -> (i32, i32, i32) {
    %c0_i32 = arith.constant 0 : i32
    %c0_i32_0 = arith.constant 0 : i32
    %c0_i32_1 = arith.constant 0 : i32
    return %arg0, %c0_i32, %c0_i32_0 : i32, i32, i32
  }
}

</mosaic_0001>

<llo_original>
// kernel: tile.9
$region0: #{tile.9}
  %s0 = inlined_call_operand.vmem [shape: f32[4,5,32], index: 0, kind: input, shape index: {}]
  %s1 = inlined_call_operand.vmem [shape: f32[20,32], index: 1, kind: output, shape index: {}]
  %v2 = vld [vmem:[%s0] sm:$0x1f]
  %vm3 = vcmask 261120
  %4 = vst.msk [vmem:[%s1] sm:$0x1f] %vm3, %v2
  %s5 = scalar_lea.vmem %s0, 8
  %v6 = vld [vmem:[%s5] sm:$0x1f]
  %vm7 = vcmask 261120
  %s8 = scalar_lea.vmem %s1, 5
  %9 = vst.msk [vmem:[%s8] sm:$0x1f] %vm7, %v6
  %s10 = scalar_lea.vmem %s0, 16
  %v11 = vld [vmem:[%s10] sm:$0x1f]
  %vm12 = vcmask 261120
  %s13 = scalar_lea.vmem %s1, 10
  %14 = vst.msk [vmem:[%s13] sm:$0x1f] %vm12, %v11
  %s15 = scalar_lea.vmem %s0, 24
  %v16 = vld [vmem:[%s15] sm:$0x1f]
  %vm17 = vcmask 261120
  %s18 = scalar_lea.vmem %s1, 15
  %19 = vst.msk [vmem:[%s18] sm:$0x1f] %vm17, %v16

// kernel: encode_image.1
$region0: #{encode_image.1}
  #allocation0 [shape = 'u32[]', space=smem, size = 0x4, offset = 0x4, fixed_abs, tag = 'smem constant byte address 0x4 - core index']
  #allocation1 [shape = 'u32[144,128]{1,0:T(1,128)}', space=vmem, size = 0x12000, scoped, tag = 'internal scratch']
  %s0 = inlined_call_operand.vmem [shape: bf16[8,5,192], index: 0, kind: input, shape index: {}]
  %s1 = inlined_call_operand.vmem [shape: bf16[192,32], index: 1, kind: input, shape index: {}]
  %s2 = inlined_call_operand.vmem [shape: f32[20,32], index: 2, kind: input, shape index: {}]
  %s3 = inlined_call_operand.vmem [shape: f32[1,32], index: 3, kind: input, shape index: {}]
  %s4 = inlined_call_operand.vmem [shape: f32[1,32], index: 4, kind: input, shape index: {}]
  %s5 = inlined_call_operand.vmem [shape: f32[2,1,32], index: 5, kind: input, shape index: {}]
  %s6 = inlined_call_operand.vmem [shape: f32[2,1,32], index: 6, kind: input, shape index: {}]
  %s7 = inlined_call_operand.vmem [shape: bf16[2,32,96], index: 7, kind: input, shape index: {}]
  %s8 = inlined_call_operand.vmem [shape: f32[2,1,96], index: 8, kind: input, shape index: {}]
  %s9 = inlined_call_operand.vmem [shape: bf16[2,32,32], index: 9, kind: input, shape index: {}]
  %s10 = inlined_call_operand.vmem [shape: f32[2,1,32], index: 10, kind: input, shape index: {}]
  %s11 = inlined_call_operand.vmem [shape: f32[2,1,32], index: 11, kind: input, shape index: {}]
  %s12 = inlined_call_operand.vmem [shape: f32[2,1,32], index: 12, kind: input, shape index: {}]
  %s13 = inlined_call_operand.vmem [shape: bf16[2,32,128], index: 13, kind: input, shape index: {}]
  %s14 = inlined_call_operand.vmem [shape: f32[2,1,128], index: 14, kind: input, shape index: {}]
  %s15 = inlined_call_operand.vmem [shape: bf16[2,128,32], index: 15, kind: input, shape index: {}]
  %s16 = inlined_call_operand.vmem [shape: f32[2,1,32], index: 16, kind: input, shape index: {}]
  %s17 = inlined_call_operand.vmem [shape: f32[1,32], index: 17, kind: input, shape index: {}]
  %s18 = inlined_call_operand.vmem [shape: f32[1,32], index: 18, kind: input, shape index: {}]
  %s19 = inlined_call_operand.vmem [shape: bf16[32,16], index: 19, kind: input, shape index: {}]
  %s20 = inlined_call_operand.hbm [shape: f32[2,4,16], index: 20, kind: output, shape index: {}]
  %s21 = sld [smem:[#allocation0]]
  $region113: #{encode_image.1} parent=0
    _
  %s23 = ssub.s32 1, %s21
  %s24 = scalar_select 0, %s23, %s21
  $region1: #{encode_image.1} parent=0
    #allocation2 [shape = 'u8[4096]{0}', space=vmem, size = 0x1000, scoped, tag = 'output window, operand 0']
    #allocation3 [shape = 's32[2]{0}', space=sflag, size = 0x8, scoped, tag = 'scoped memory for encode_image.1']
    %25 = vsyncpa [#allocation3], 0
    %s26 = scalar_lea.sflag [#allocation3], 1
    %27 = vsyncpa %s26, 0
    loop: start=0, step=1, limit=4
    $region2: #{encode_image.1} parent=1 // loop_pre_header
      _
    $region3: #{encode_image.1} parent=1 // loop_header
      %s29 = sphi 0, %s33
      %p30 = scmp.ge.s32.totalorder %s29, 4
      %s39 = sphi 0, %s41
      %s42 = sphi 0, %s39
      %s43 = sphi 0, %s42
      %s59 = sphi 0, %s43
      %s63 = sphi 0, %s63
      %s65 = sphi 0, %s63
      %s66 = sphi 0, %s65
      %s80 = sphi 0, %s66
      %s84 = sphi 0, %s84
      %s86 = sphi 0, %s84
      %s87 = sphi 0, %s86
      %s101 = sphi 0, %s87
      %s105 = sphi 0, %s105
      %s107 = sphi 0, %s105
      %s108 = sphi 0, %s107
      %s122 = sphi 0, %s108
      %s126 = sphi 0, %s126
      %s128 = sphi 0, %s126
      %s129 = sphi 0, %s128
      %s143 = sphi 0, %s129
      %s147 = sphi 0, %s147
      %s149 = sphi 0, %s147
      %s150 = sphi 0, %s149
      %s164 = sphi 0, %s150
      %s168 = sphi 0, %s168
      %s170 = sphi 0, %s168
      %s171 = sphi 0, %s170
      %s185 = sphi 0, %s171
      %s189 = sphi 0, %s189
      %s191 = sphi 0, %s189
      %s192 = sphi 0, %s191
      %s206 = sphi 0, %s192
      %s210 = sphi 0, %s210
      %s212 = sphi 0, %s210
      %s213 = sphi 0, %s212
      %s227 = sphi 0, %s213
      %s231 = sphi 0, %s231
      %s233 = sphi 0, %s231
      %s234 = sphi 0, %s233
      %s248 = sphi 0, %s234
      %s252 = sphi 0, %s252
      %s254 = sphi 0, %s252
      %s255 = sphi 0, %s254
      %s269 = sphi 0, %s255
      %s273 = sphi 0, %s273
      %s275 = sphi 0, %s273
      %s276 = sphi 0, %s275
      %s290 = sphi 0, %s276
      %s294 = sphi 0, %s294
      %s296 = sphi 0, %s294
      %s297 = sphi 0, %s296
      %s311 = sphi 0, %s297
      %s315 = sphi 0, %s315
      %s317 = sphi 0, %s315
      %s318 = sphi 0, %s317
      %s332 = sphi 0, %s318
      %s336 = sphi 0, %s336
      %s338 = sphi 0, %s336
      %s339 = sphi 0, %s338
      %s353 = sphi 0, %s339
      %s357 = sphi 0, %s357
      %s359 = sphi 0, %s357
      %s360 = sphi 0, %s359
      %s374 = sphi 0, %s360
      %s378 = sphi 0, %s378
      %s380 = sphi 0, %s378
      %s381 = sphi 0, %s380
      %s395 = sphi 0, %s381
      %s399 = sphi 0, %s399
      %s401 = sphi 0, %s399
      %s402 = sphi 0, %s401
      %s416 = sphi 0, %s402
      %s420 = sphi 0, %s420
      %s422 = sphi 0, %s420
      %s423 = sphi 0, %s422
      %s437 = sphi 0, %s423
      %s441 = sphi 0, %s441
      %s443 = sphi 0, %s441
      %s444 = sphi 0, %s443
      %s458 = sphi 0, %s444
      %s464 = sphi 0, %s466
      %s467 = sphi 0, %s464
      %s468 = sphi 0, %s467
      %s484 = sphi 0, %s468
    $region4: #{encode_image.1} parent=1 // loop_header_branch
      %32 = sbr.rel (%p30) target = $region8
    $region5: #{encode_image.1} parent=1 // loop_body
      %s34 = ssub.s32 %s29, 1
      %s35 = ssub.s32 %s29, 2
      %s36 = sadd.s32 %s29, 1
      %s37 = ssub.s32 %s29, %s36
      %p38 = scmp.eq.s32.totalorder %s37, 0
      %s40 = sadd.s32 %s39, 1
      %s41 = scalar_select %p38, %s39, %s40
      %p44 = pneg %p38
      %p45 = scmp.eq.s32.totalorder %s29, 1
      %p46 = por %p44, %p45
      %p47 = scmp.ne.s32.totalorder %s39, %s42
      %p48 = scmp.eq.s32.totalorder %s29, 0
      %p49 = por %p47, %p48
      %p50 = scmp.ne.s32.totalorder %s39, %s42
      %p51 = scmp.eq.s32.totalorder %s34, 1
      %p52 = por %p50, %p51
      %p53 = scmp.ne.s32.totalorder %s42, %s43
      %p54 = scmp.eq.s32.totalorder %s34, 0
      %p55 = por %p53, %p54
      %p56 = scmp.ne.s32.totalorder %s42, %s43
      %p57 = scmp.eq.s32.totalorder %s35, 1
      %p58 = por %p56, %p57
      %p60 = scmp.ne.s32.totalorder %s43, %s59
      %p61 = scmp.eq.s32.totalorder %s35, 0
      %p62 = por %p60, %p61
      %s64 = sadd.s32 %s63, 1
      %p67 = scmp.eq.s32.totalorder %s29, 1
      %p68 = scmp.ne.s32.totalorder %s63, %s65
      %p69 = scmp.eq.s32.totalorder %s29, 0
      %p70 = por %p68, %p69
      %p71 = scmp.ne.s32.totalorder %s63, %s65
      %p72 = scmp.eq.s32.totalorder %s34, 1
      %p73 = por %p71, %p72
      %p74 = scmp.ne.s32.totalorder %s65, %s66
      %p75 = scmp.eq.s32.totalorder %s34, 0
      %p76 = por %p74, %p75
      %p77 = scmp.ne.s32.totalorder %s65, %s66
      %p78 = scmp.eq.s32.totalorder %s35, 1
      %p79 = por %p77, %p78
      %p81 = scmp.ne.s32.totalorder %s66, %s80
      %p82 = scmp.eq.s32.totalorder %s35, 0
      %p83 = por %p81, %p82
      %s85 = sadd.s32 %s84, 1
      %p88 = scmp.eq.s32.totalorder %s29, 1
      %p89 = scmp.ne.s32.totalorder %s84, %s86
      %p90 = scmp.eq.s32.totalorder %s29, 0
      %p91 = por %p89, %p90
      %p92 = scmp.ne.s32.totalorder %s84, %s86
      %p93 = scmp.eq.s32.totalorder %s34, 1
      %p94 = por %p92, %p93
      %p95 = scmp.ne.s32.totalorder %s86, %s87
      %p96 = scmp.eq.s32.totalorder %s34, 0
      %p97 = por %p95, %p96
      %p98 = scmp.ne.s32.totalorder %s86, %s87
      %p99 = scmp.eq.s32.totalorder %s35, 1
      %p100 = por %p98, %p99
      %p102 = scmp.ne.s32.totalorder %s87, %s101
      %p103 = scmp.eq.s32.totalorder %s35, 0
      %p104 = por %p102, %p103
      %s106 = sadd.s32 %s105, 1
      %p109 = scmp.eq.s32.totalorder %s29, 1
      %p110 = scmp.ne.s32.totalorder %s105, %s107
      %p111 = scmp.eq.s32.totalorder %s29, 0
      %p112 = por %p110, %p111
      %p113 = scmp.ne.s32.totalorder %s105, %s107
      %p114 = scmp.eq.s32.totalorder %s34, 1
      %p115 = por %p113, %p114
      %p116 = scmp.ne.s32.totalorder %s107, %s108
      %p117 = scmp.eq.s32.totalorder %s34, 0
      %p118 = por %p116, %p117
      %p119 = scmp.ne.s32.totalorder %s107, %s108
      %p120 = scmp.eq.s32.totalorder %s35, 1
      %p121 = por %p119, %p120
      %p123 = scmp.ne.s32.totalorder %s108, %s122
      %p124 = scmp.eq.s32.totalorder %s35, 0
      %p125 = por %p123, %p124
      %s127 = sadd.s32 %s126, 1
      %p130 = scmp.eq.s32.totalorder %s29, 1
      %p131 = scmp.ne.s32.totalorder %s126, %s128
      %p132 = scmp.eq.s32.totalorder %s29, 0
      %p133 = por %p131, %p132
      %p134 = scmp.ne.s32.totalorder %s126, %s128
      %p135 = scmp.eq.s32.totalorder %s34, 1
      %p136 = por %p134, %p135
      %p137 = scmp.ne.s32.totalorder %s128, %s129
      %p138 = scmp.eq.s32.totalorder %s34, 0
      %p139 = por %p137, %p138
      %p140 = scmp.ne.s32.totalorder %s128, %s129
      %p141 = scmp.eq.s32.totalorder %s35, 1
      %p142 = por %p140, %p141
      %p144 = scmp.ne.s32.totalorder %s129, %s143
      %p145 = scmp.eq.s32.totalorder %s35, 0
      %p146 = por %p144, %p145
      %s148 = sadd.s32 %s147, 1
      %p151 = scmp.eq.s32.totalorder %s29, 1
      %p152 = scmp.ne.s32.totalorder %s147, %s149
      %p153 = scmp.eq.s32.totalorder %s29, 0
      %p154 = por %p152, %p153
      %p155 = scmp.ne.s32.totalorder %s147, %s149
      %p156 = scmp.eq.s32.totalorder %s34, 1
      %p157 = por %p155, %p156
      %p158 = scmp.ne.s32.totalorder %s149, %s150
      %p159 = scmp.eq.s32.totalorder %s34, 0
      %p160 = por %p158, %p159
      %p161 = scmp.ne.s32.totalorder %s149, %s150
      %p162 = scmp.eq.s32.totalorder %s35, 1
      %p163 = por %p161, %p162
      %p165 = scmp.ne.s32.totalorder %s150, %s164
      %p166 = scmp.eq.s32.totalorder %s35, 0
      %p167 = por %p165, %p166
      %s169 = sadd.s32 %s168, 1
      %p172 = scmp.eq.s32.totalorder %s29, 1
      %p173 = scmp.ne.s32.totalorder %s168, %s170
      %p174 = scmp.eq.s32.totalorder %s29, 0
      %p175 = por %p173, %p174
      %p176 = scmp.ne.s32.totalorder %s168, %s170
      %p177 = scmp.eq.s32.totalorder %s34, 1
      %p178 = por %p176, %p177
      %p179 = scmp.ne.s32.totalorder %s170, %s171
      %p180 = scmp.eq.s32.totalorder %s34, 0
      %p181 = por %p179, %p180
      %p182 = scmp.ne.s32.totalorder %s170, %s171
      %p183 = scmp.eq.s32.totalorder %s35, 1
      %p184 = por %p182, %p183
      %p186 = scmp.ne.s32.totalorder %s171, %s185
      %p187 = scmp.eq.s32.totalorder %s35, 0
      %p188 = por %p186, %p187
      %s190 = sadd.s32 %s189, 1
      %p193 = scmp.eq.s32.totalorder %s29, 1
      %p194 = scmp.ne.s32.totalorder %s189, %s191
      %p195 = scmp.eq.s32.totalorder %s29, 0
      %p196 = por %p194, %p195
      %p197 = scmp.ne.s32.totalorder %s189, %s191
      %p198 = scmp.eq.s32.totalorder %s34, 1
      %p199 = por %p197, %p198
      %p200 = scmp.ne.s32.totalorder %s191, %s192
      %p201 = scmp.eq.s32.totalorder %s34, 0
      %p202 = por %p200, %p201
      %p203 = scmp.ne.s32.totalorder %s191, %s192
      %p204 = scmp.eq.s32.totalorder %s35, 1
      %p205 = por %p203, %p204
      %p207 = scmp.ne.s32.totalorder %s192, %s206
      %p208 = scmp.eq.s32.totalorder %s35, 0
      %p209 = por %p207, %p208
      %s211 = sadd.s32 %s210, 1
      %p214 = scmp.eq.s32.totalorder %s29, 1
      %p215 = scmp.ne.s32.totalorder %s210, %s212
      %p216 = scmp.eq.s32.totalorder %s29, 0
      %p217 = por %p215, %p216
      %p218 = scmp.ne.s32.totalorder %s210, %s212
      %p219 = scmp.eq.s32.totalorder %s34, 1
      %p220 = por %p218, %p219
      %p221 = scmp.ne.s32.totalorder %s212, %s213
      %p222 = scmp.eq.s32.totalorder %s34, 0
      %p223 = por %p221, %p222
      %p224 = scmp.ne.s32.totalorder %s212, %s213
      %p225 = scmp.eq.s32.totalorder %s35, 1
      %p226 = por %p224, %p225
      %p228 = scmp.ne.s32.totalorder %s213, %s227
      %p229 = scmp.eq.s32.totalorder %s35, 0
      %p230 = por %p228, %p229
      %s232 = sadd.s32 %s231, 1
      %p235 = scmp.eq.s32.totalorder %s29, 1
      %p236 = scmp.ne.s32.totalorder %s231, %s233
      %p237 = scmp.eq.s32.totalorder %s29, 0
      %p238 = por %p236, %p237
      %p239 = scmp.ne.s32.totalorder %s231, %s233
      %p240 = scmp.eq.s32.totalorder %s34, 1
      %p241 = por %p239, %p240
      %p242 = scmp.ne.s32.totalorder %s233, %s234
      %p243 = scmp.eq.s32.totalorder %s34, 0
      %p244 = por %p242, %p243
      %p245 = scmp.ne.s32.totalorder %s233, %s234
      %p246 = scmp.eq.s32.totalorder %s35, 1
      %p247 = por %p245, %p246
      %p249 = scmp.ne.s32.totalorder %s234, %s248
      %p250 = scmp.eq.s32.totalorder %s35, 0
      %p251 = por %p249, %p250
      %s253 = sadd.s32 %s252, 1
      %p256 = scmp.eq.s32.totalorder %s29, 1
      %p257 = scmp.ne.s32.totalorder %s252, %s254
      %p258 = scmp.eq.s32.totalorder %s29, 0
      %p259 = por %p257, %p258
      %p260 = scmp.ne.s32.totalorder %s252, %s254
      %p261 = scmp.eq.s32.totalorder %s34, 1
      %p262 = por %p260, %p261
      %p263 = scmp.ne.s32.totalorder %s254, %s255
      %p264 = scmp.eq.s32.totalorder %s34, 0
      %p265 = por %p263, %p264
      %p266 = scmp.ne.s32.totalorder %s254, %s255
      %p267 = scmp.eq.s32.totalorder %s35, 1
      %p268 = por %p266, %p267
      %p270 = scmp.ne.s32.totalorder %s255, %s269
      %p271 = scmp.eq.s32.totalorder %s35, 0
      %p272 = por %p270, %p271
      %s274 = sadd.s32 %s273, 1
      %p277 = scmp.eq.s32.totalorder %s29, 1
      %p278 = scmp.ne.s32.totalorder %s273, %s275
      %p279 = scmp.eq.s32.totalorder %s29, 0
      %p280 = por %p278, %p279
      %p281 = scmp.ne.s32.totalorder %s273, %s275
      %p282 = scmp.eq.s32.totalorder %s34, 1
      %p283 = por %p281, %p282
      %p284 = scmp.ne.s32.totalorder %s275, %s276
      %p285 = scmp.eq.s32.totalorder %s34, 0
      %p286 = por %p284, %p285
      %p287 = scmp.ne.s32.totalorder %s275, %s276
      %p288 = scmp.eq.s32.totalorder %s35, 1
      %p289 = por %p287, %p288
      %p291 = scmp.ne.s32.totalorder %s276, %s290
      %p292 = scmp.eq.s32.totalorder %s35, 0
      %p293 = por %p291, %p292
      %s295 = sadd.s32 %s294, 1
      %p298 = scmp.eq.s32.totalorder %s29, 1
      %p299 = scmp.ne.s32.totalorder %s294, %s296
      %p300 = scmp.eq.s32.totalorder %s29, 0
      %p301 = por %p299, %p300
      %p302 = scmp.ne.s32.totalorder %s294, %s296
      %p303 = scmp.eq.s32.totalorder %s34, 1
      %p304 = por %p302, %p303
      %p305 = scmp.ne.s32.totalorder %s296, %s297
      %p306 = scmp.eq.s32.totalorder %s34, 0
      %p307 = por %p305, %p306
      %p308 = scmp.ne.s32.totalorder %s296, %s297
      %p309 = scmp.eq.s32.totalorder %s35, 1
      %p310 = por %p308, %p309
      %p312 = scmp.ne.s32.totalorder %s297, %s311
      %p313 = scmp.eq.s32.totalorder %s35, 0
      %p314 = por %p312, %p313
      %s316 = sadd.s32 %s315, 1
      %p319 = scmp.eq.s32.totalorder %s29, 1
      %p320 = scmp.ne.s32.totalorder %s315, %s317
      %p321 = scmp.eq.s32.totalorder %s29, 0
      %p322 = por %p320, %p321
      %p323 = scmp.ne.s32.totalorder %s315, %s317
      %p324 = scmp.eq.s32.totalorder %s34, 1
      %p325 = por %p323, %p324
      %p326 = scmp.ne.s32.totalorder %s317, %s318
      %p327 = scmp.eq.s32.totalorder %s34, 0
      %p328 = por %p326, %p327
      %p329 = scmp.ne.s32.totalorder %s317, %s318
      %p330 = scmp.eq.s32.totalorder %s35, 1
      %p331 = por %p329, %p330
      %p333 = scmp.ne.s32.totalorder %s318, %s332
      %p334 = scmp.eq.s32.totalorder %s35, 0
      %p335 = por %p333, %p334
      %s337 = sadd.s32 %s336, 1
      %p340 = scmp.eq.s32.totalorder %s29, 1
      %p341 = scmp.ne.s32.totalorder %s336, %s338
      %p342 = scmp.eq.s32.totalorder %s29, 0
      %p343 = por %p341, %p342
      %p344 = scmp.ne.s32.totalorder %s336, %s338
      %p345 = scmp.eq.s32.totalorder %s34, 1
      %p346 = por %p344, %p345
      %p347 = scmp.ne.s32.totalorder %s338, %s339
      %p348 = scmp.eq.s32.totalorder %s34, 0
      %p349 = por %p347, %p348
      %p350 = scmp.ne.s32.totalorder %s338, %s339
      %p351 = scmp.eq.s32.totalorder %s35, 1
      %p352 = por %p350, %p351
      %p354 = scmp.ne.s32.totalorder %s339, %s353
      %p355 = scmp.eq.s32.totalorder %s35, 0
      %p356 = por %p354, %p355
      %s358 = sadd.s32 %s357, 1
      %p361 = scmp.eq.s32.totalorder %s29, 1
      %p362 = scmp.ne.s32.totalorder %s357, %s359
      %p363 = scmp.eq.s32.totalorder %s29, 0
      %p364 = por %p362, %p363
      %p365 = scmp.ne.s32.totalorder %s357, %s359
      %p366 = scmp.eq.s32.totalorder %s34, 1
      %p367 = por %p365, %p366
      %p368 = scmp.ne.s32.totalorder %s359, %s360
      %p369 = scmp.eq.s32.totalorder %s34, 0
      %p370 = por %p368, %p369
      %p371 = scmp.ne.s32.totalorder %s359, %s360
      %p372 = scmp.eq.s32.totalorder %s35, 1
      %p373 = por %p371, %p372
      %p375 = scmp.ne.s32.totalorder %s360, %s374
      %p376 = scmp.eq.s32.totalorder %s35, 0
      %p377 = por %p375, %p376
      %s379 = sadd.s32 %s378, 1
      %p382 = scmp.eq.s32.totalorder %s29, 1
      %p383 = scmp.ne.s32.totalorder %s378, %s380
      %p384 = scmp.eq.s32.totalorder %s29, 0
      %p385 = por %p383, %p384
      %p386 = scmp.ne.s32.totalorder %s378, %s380
      %p387 = scmp.eq.s32.totalorder %s34, 1
      %p388 = por %p386, %p387
      %p389 = scmp.ne.s32.totalorder %s380, %s381
      %p390 = scmp.eq.s32.totalorder %s34, 0
      %p391 = por %p389, %p390
      %p392 = scmp.ne.s32.totalorder %s380, %s381
      %p393 = scmp.eq.s32.totalorder %s35, 1
      %p394 = por %p392, %p393
      %p396 = scmp.ne.s32.totalorder %s381, %s395
      %p397 = scmp.eq.s32.totalorder %s35, 0
      %p398 = por %p396, %p397
      %s400 = sadd.s32 %s399, 1
      %p403 = scmp.eq.s32.totalorder %s29, 1
      %p404 = scmp.ne.s32.totalorder %s399, %s401
      %p405 = scmp.eq.s32.totalorder %s29, 0
      %p406 = por %p404, %p405
      %p407 = scmp.ne.s32.totalorder %s399, %s401
      %p408 = scmp.eq.s32.totalorder %s34, 1
      %p409 = por %p407, %p408
      %p410 = scmp.ne.s32.totalorder %s401, %s402
      %p411 = scmp.eq.s32.totalorder %s34, 0
      %p412 = por %p410, %p411
      %p413 = scmp.ne.s32.totalorder %s401, %s402
      %p414 = scmp.eq.s32.totalorder %s35, 1
      %p415 = por %p413, %p414
      %p417 = scmp.ne.s32.totalorder %s402, %s416
      %p418 = scmp.eq.s32.totalorder %s35, 0
      %p419 = por %p417, %p418
      %s421 = sadd.s32 %s420, 1
      %p424 = scmp.eq.s32.totalorder %s29, 1
      %p425 = scmp.ne.s32.totalorder %s420, %s422
      %p426 = scmp.eq.s32.totalorder %s29, 0
      %p427 = por %p425, %p426
      %p428 = scmp.ne.s32.totalorder %s420, %s422
      %p429 = scmp.eq.s32.totalorder %s34, 1
      %p430 = por %p428, %p429
      %p431 = scmp.ne.s32.totalorder %s422, %s423
      %p432 = scmp.eq.s32.totalorder %s34, 0
      %p433 = por %p431, %p432
      %p434 = scmp.ne.s32.totalorder %s422, %s423
      %p435 = scmp.eq.s32.totalorder %s35, 1
      %p436 = por %p434, %p435
      %p438 = scmp.ne.s32.totalorder %s423, %s437
      %p439 = scmp.eq.s32.totalorder %s35, 0
      %p440 = por %p438, %p439
      %s442 = sadd.s32 %s441, 1
      %p445 = scmp.eq.s32.totalorder %s29, 1
      %p446 = scmp.ne.s32.totalorder %s441, %s443
      %p447 = scmp.eq.s32.totalorder %s29, 0
      %p448 = por %p446, %p447
      %p449 = scmp.ne.s32.totalorder %s441, %s443
      %p450 = scmp.eq.s32.totalorder %s34, 1
      %p451 = por %p449, %p450
      %p452 = scmp.ne.s32.totalorder %s443, %s444
      %p453 = scmp.eq.s32.totalorder %s34, 0
      %p454 = por %p452, %p453
      %p455 = scmp.ne.s32.totalorder %s443, %s444
      %p456 = scmp.eq.s32.totalorder %s35, 1
      %p457 = por %p455, %p456
      %p459 = scmp.ne.s32.totalorder %s444, %s458
      %p460 = scmp.eq.s32.totalorder %s35, 0
      %p461 = por %p459, %p460
      %s462 = ssub.s32 %s29, %s36
      %p463 = scmp.eq.s32.totalorder %s462, 0
      %s465 = sadd.s32 %s464, 1
      %s466 = scalar_select %p463, %s464, %s465
      %p469 = pneg %p463
      %p470 = scmp.eq.s32.totalorder %s29, 1
      %p471 = por %p469, %p470
      %p472 = scmp.ne.s32.totalorder %s464, %s467
      %p473 = scmp.eq.s32.totalorder %s29, 0
      %p474 = por %p472, %p473
      %p475 = scmp.ne.s32.totalorder %s464, %s467
      %p476 = scmp.eq.s32.totalorder %s34, 1
      %p477 = por %p475, %p476
      %p478 = scmp.ne.s32.totalorder %s467, %s468
      %p479 = scmp.eq.s32.totalorder %s34, 0
      %p480 = por %p478, %p479
      %p481 = scmp.ne.s32.totalorder %s467, %s468
      %p482 = scmp.eq.s32.totalorder %s35, 1
      %p483 = por %p481, %p482
      %p485 = scmp.ne.s32.totalorder %s468, %s484
      %p486 = scmp.eq.s32.totalorder %s35, 0
      %p487 = por %p485, %p486
      %p488 = scmp.le.s32.totalorder 1, %s29
      %p489 = scmp.lt.s32.totalorder %s29, 3
      %p490 = pnand %p488, %p489
      %p491 = pneg %p490
      // Predicated region
      $region9: #{encode_image.1} parent=5 // pred_check
        _
      $region10: #{encode_image.1} parent=5 // pred_check_branch
        %493 = sbr.rel (%p490) target = $region12
      $region11: #{encode_image.1} parent=5 // pred_region
        %s494 = ssub.s32 %s29, 1
        // Predicated region
        $region13: #{encode_image.1} parent=11 // pred_check
          %p495 = pneg %p76
        $region14: #{encode_image.1} parent=11 // pred_check_branch
          %497 = sbr.rel (%p495) target = $region16
        $region15: #{encode_image.1} parent=11 // pred_region
          _
        $region16: #{encode_image.1} parent=11 // pred_fallthru
          _
        // Predicated region
        $region17: #{encode_image.1} parent=11 // pred_check
          %p498 = pneg %p97
        $region18: #{encode_image.1} parent=11 // pred_check_branch
          %500 = sbr.rel (%p498) target = $region20
        $region19: #{encode_image.1} parent=11 // pred_region
          _
        $region20: #{encode_image.1} parent=11 // pred_fallthru
          _
        // Predicated region
        $region21: #{encode_image.1} parent=11 // pred_check
          %p501 = pneg %p118
        $region22: #{encode_image.1} parent=11 // pred_check_branch
          %503 = sbr.rel (%p501) target = $region24
        $region23: #{encode_image.1} parent=11 // pred_region
          _
        $region24: #{encode_image.1} parent=11 // pred_fallthru
          _
        // Predicated region
        $region25: #{encode_image.1} parent=11 // pred_check
          %p504 = pneg %p139
        $region26: #{encode_image.1} parent=11 // pred_check_branch
          %506 = sbr.rel (%p504) target = $region28
        $region27: #{encode_image.1} parent=11 // pred_region
          _
        $region28: #{encode_image.1} parent=11 // pred_fallthru
          _
        // Predicated region
        $region29: #{encode_image.1} parent=11 // pred_check
          %p507 = pneg %p160
        $region30: #{encode_image.1} parent=11 // pred_check_branch
          %509 = sbr.rel (%p507) target = $region32
        $region31: #{encode_image.1} parent=11 // pred_region
          _
        $region32: #{encode_image.1} parent=11 // pred_fallthru
          _
        // Predicated region
        $region33: #{encode_image.1} parent=11 // pred_check
          %p510 = pneg %p181
        $region34: #{encode_image.1} parent=11 // pred_check_branch
          %512 = sbr.rel (%p510) target = $region36
        $region35: #{encode_image.1} parent=11 // pred_region
          _
        $region36: #{encode_image.1} parent=11 // pred_fallthru
          _
        // Predicated region
        $region37: #{encode_image.1} parent=11 // pred_check
          %p513 = pneg %p202
        $region38: #{encode_image.1} parent=11 // pred_check_branch
          %515 = sbr.rel (%p513) target = $region40
        $region39: #{encode_image.1} parent=11 // pred_region
          _
        $region40: #{encode_image.1} parent=11 // pred_fallthru
          _
        // Predicated region
        $region41: #{encode_image.1} parent=11 // pred_check
          %p516 = pneg %p223
        $region42: #{encode_image.1} parent=11 // pred_check_branch
          %518 = sbr.rel (%p516) target = $region44
        $region43: #{encode_image.1} parent=11 // pred_region
          _
        $region44: #{encode_image.1} parent=11 // pred_fallthru
          _
        // Predicated region
        $region45: #{encode_image.1} parent=11 // pred_check
          %p519 = pneg %p244
        $region46: #{encode_image.1} parent=11 // pred_check_branch
          %521 = sbr.rel (%p519) target = $region48
        $region47: #{encode_image.1} parent=11 // pred_region
          _
        $region48: #{encode_image.1} parent=11 // pred_fallthru
          _
        // Predicated region
        $region49: #{encode_image.1} parent=11 // pred_check
          %p522 = pneg %p265
        $region50: #{encode_image.1} parent=11 // pred_check_branch
          %524 = sbr.rel (%p522) target = $region52
        $region51: #{encode_image.1} parent=11 // pred_region
          _
        $region52: #{encode_image.1} parent=11 // pred_fallthru
          _
        // Predicated region
        $region53: #{encode_image.1} parent=11 // pred_check
          %p525 = pneg %p286
        $region54: #{encode_image.1} parent=11 // pred_check_branch
          %527 = sbr.rel (%p525) target = $region56
        $region55: #{encode_image.1} parent=11 // pred_region
          _
        $region56: #{encode_image.1} parent=11 // pred_fallthru
          _
        // Predicated region
        $region57: #{encode_image.1} parent=11 // pred_check
          %p528 = pneg %p307
        $region58: #{encode_image.1} parent=11 // pred_check_branch
          %530 = sbr.rel (%p528) target = $region60
        $region59: #{encode_image.1} parent=11 // pred_region
          _
        $region60: #{encode_image.1} parent=11 // pred_fallthru
          _
        // Predicated region
        $region61: #{encode_image.1} parent=11 // pred_check
          %p531 = pneg %p328
        $region62: #{encode_image.1} parent=11 // pred_check_branch
          %533 = sbr.rel (%p531) target = $region64
        $region63: #{encode_image.1} parent=11 // pred_region
          _
        $region64: #{encode_image.1} parent=11 // pred_fallthru
          _
        // Predicated region
        $region65: #{encode_image.1} parent=11 // pred_check
          %p534 = pneg %p349
        $region66: #{encode_image.1} parent=11 // pred_check_branch
          %536 = sbr.rel (%p534) target = $region68
        $region67: #{encode_image.1} parent=11 // pred_region
          _
        $region68: #{encode_image.1} parent=11 // pred_fallthru
          _
        // Predicated region
        $region69: #{encode_image.1} parent=11 // pred_check
          %p537 = pneg %p370
        $region70: #{encode_image.1} parent=11 // pred_check_branch
          %539 = sbr.rel (%p537) target = $region72
        $region71: #{encode_image.1} parent=11 // pred_region
          _
        $region72: #{encode_image.1} parent=11 // pred_fallthru
          _
        // Predicated region
        $region73: #{encode_image.1} parent=11 // pred_check
          %p540 = pneg %p391
        $region74: #{encode_image.1} parent=11 // pred_check_branch
          %542 = sbr.rel (%p540) target = $region76
        $region75: #{encode_image.1} parent=11 // pred_region
          _
        $region76: #{encode_image.1} parent=11 // pred_fallthru
          _
        // Predicated region
        $region77: #{encode_image.1} parent=11 // pred_check
          %p543 = pneg %p412
        $region78: #{encode_image.1} parent=11 // pred_check_branch
          %545 = sbr.rel (%p543) target = $region80
        $region79: #{encode_image.1} parent=11 // pred_region
          _
        $region80: #{encode_image.1} parent=11 // pred_fallthru
          _
        // Predicated region
        $region81: #{encode_image.1} parent=11 // pred_check
          %p546 = pneg %p433
        $region82: #{encode_image.1} parent=11 // pred_check_branch
          %548 = sbr.rel (%p546) target = $region84
        $region83: #{encode_image.1} parent=11 // pred_region
          _
        $region84: #{encode_image.1} parent=11 // pred_fallthru
          _
        // Predicated region
        $region85: #{encode_image.1} parent=11 // pred_check
          %p549 = pneg %p454
        $region86: #{encode_image.1} parent=11 // pred_check_branch
          %551 = sbr.rel (%p549) target = $region88
        $region87: #{encode_image.1} parent=11 // pred_region
          _
        $region88: #{encode_image.1} parent=11 // pred_fallthru
          _
      $region12: #{encode_image.1} parent=5 // pred_fallthru
        _
      %p552 = scmp.lt.s32.totalorder %s29, 2
      // Predicated region
      $region89: #{encode_image.1} parent=5 // pred_check
        %p553 = pneg %p552
      $region90: #{encode_image.1} parent=5 // pred_check_branch
        %555 = sbr.rel (%p553) target = $region92
      $region91: #{encode_image.1} parent=5 // pred_region
        // Predicated region
        $region93: #{encode_image.1} parent=91 // pred_check
          %p556 = pneg %p49
        $region94: #{encode_image.1} parent=91 // pred_check_branch
          %558 = sbr.rel (%p556) target = $region96
        $region95: #{encode_image.1} parent=91 // pred_region
          %s559 = smul.u32 4, %s29
          %p560 = scmp.lt.s32.totalorder %s559, 7
          %s561 = scalar_select %p560, %s559, 7
          %s562 = smul.addr %s561, 2
          %s563 = smul.addr %s562, 4
          %s564 = scalar_lea.vmem %s0, %s563
          %s565 = smul.u32 4, %s29
        $region96: #{encode_image.1} parent=91 // pred_fallthru
          _
      $region92: #{encode_image.1} parent=5 // pred_fallthru
        _
      %p566 = scmp.le.s32.totalorder 1, %s29
      %p567 = scmp.lt.s32.totalorder %s29, 3
      %p568 = pnand %p566, %p567
      %p569 = pneg %p568
      // Predicated region
      $region97: #{encode_image.1} parent=5 // pred_check
        _
      $region98: #{encode_image.1} parent=5 // pred_check_branch
        %571 = sbr.rel (%p568) target = $region100
      $region99: #{encode_image.1} parent=5 // pred_region
        %s572 = ssub.s32 %s29, 1
        %s573 = smul.u32 4, %s34
        %p574 = scmp.lt.s32.totalorder %s573, 7
        %s575 = scalar_select %p574, %s573, 7
        %s576 = smul.addr %s575, 2
        %s577 = smul.addr %s576, 4
        %s578 = scalar_lea.vmem %s0, %s577
        %p579 = pneg %p55
        %p580 = pneg %p52
        %p581 = pneg %p76
        %p582 = pneg %p73
        %p583 = pneg %p97
        %p584 = pneg %p94
        %p585 = pneg %p118
        %p586 = pneg %p115
        %p587 = pneg %p139
        %p588 = pneg %p136
        %p589 = pneg %p160
        %p590 = pneg %p157
        %p591 = pneg %p181
        %p592 = pneg %p178
        %p593 = pneg %p202
        %p594 = pneg %p199
        %p595 = pneg %p223
        %p596 = pneg %p220
        %p597 = pneg %p244
        %p598 = pneg %p241
        %p599 = pneg %p265
        %p600 = pneg %p262
        %p601 = pneg %p286
        %p602 = pneg %p283
        %p603 = pneg %p307
        %p604 = pneg %p304
        %p605 = pneg %p328
        %p606 = pneg %p325
        %p607 = pneg %p349
        %p608 = pneg %p346
        %p609 = pneg %p370
        %p610 = pneg %p367
        %p611 = pneg %p391
        %p612 = pneg %p388
        %p613 = pneg %p412
        %p614 = pneg %p409
        %p615 = pneg %p433
        %p616 = pneg %p430
        %p617 = pneg %p454
        %p618 = pneg %p451
        %p619 = pneg %p480
        %p620 = pneg %p477
        %s621 = sand.u32 %s467, 1
        %s622 = scalar_lea.sflag [#allocation3], %s621
        %s623 = sand.u32 %s467, 1
        %s624 = smul.addr %s623, 4
        %s625 = scalar_lea.vmem [#allocation2], %s624
        %s626 = smul.u32 4, %s34
        %p627 = scmp.lt.s32.totalorder %s626, 7
        %s628 = scalar_select %p627, %s626, 7
        %s629 = smul.addr %s628, 2
        %s630 = smul.addr %s629, 4
        %s631 = scalar_lea.vmem %s0, %s630
        %s632 = smul.u32 4, %s34
        %v634 = vld [vmem:[%s631] sm:$0x77]
        %v635 = vld [vmem:[%s631 + $0x8] sm:$0x77]
        %v636 = vld [vmem:[%s631 + $0x10] sm:$0x77]
        %v637 = vld [vmem:[%s631 + $0x18] sm:$0x77]
        %v643 = vunpack.c.l.s4 1966171168
        %v644 = vunpack.c.0.s8 %v643
        %v645 = vlaneseq
        %v646 = vshrl.u32 %v645, 7
        %v647 = vsub.s32 %v644, %v646
        %v648 = vrot.slane %v634, %v647
        %v649 = vcombine.high %v648, %v648
        %v651 = vunpack.c.l.s4 1966171168
        %v652 = vunpack.c.0.s8 %v651
        %v653 = vlaneseq
        %v654 = vshrl.u32 %v653, 7
        %v655 = vsub.s32 %v652, %v654
        %v656 = vrot.slane %v648, %v655
        %v658 = vunpack.c.l.s4 1966171168
        %v659 = vunpack.c.0.s8 %v658
        %v660 = vlaneseq
        %v661 = vshrl.u32 %v660, 7
        %v662 = vsub.s32 %v659, %v661
        %v663 = vrot.slane %v649, %v662
        %v664 = vcombine.high %v656, %v656
        %v666 = vunpack.c.l.s4 1966171168
        %v667 = vunpack.c.0.s8 %v666
        %v668 = vlaneseq
        %v669 = vshrl.u32 %v668, 7
        %v670 = vsub.s32 %v667, %v669
        %v671 = vrot.slane %v635, %v670
        %v672 = vcombine.high %v671, %v671
        %v674 = vunpack.c.l.s4 1966171168
        %v675 = vunpack.c.0.s8 %v674
        %v676 = vlaneseq
        %v677 = vshrl.u32 %v676, 7
        %v678 = vsub.s32 %v675, %v677
        %v679 = vrot.slane %v671, %v678
        %v681 = vunpack.c.l.s4 1966171168
        %v682 = vunpack.c.0.s8 %v681
        %v683 = vlaneseq
        %v684 = vshrl.u32 %v683, 7
        %v685 = vsub.s32 %v682, %v684
        %v686 = vrot.slane %v672, %v685
        %v687 = vcombine.high %v679, %v679
        %v689 = vunpack.c.l.s4 1966171168
        %v690 = vunpack.c.0.s8 %v689
        %v691 = vlaneseq
        %v692 = vshrl.u32 %v691, 7
        %v693 = vsub.s32 %v690, %v692
        %v694 = vrot.slane %v636, %v693
        %v695 = vcombine.high %v694, %v694
        %v697 = vunpack.c.l.s4 1966171168
        %v698 = vunpack.c.0.s8 %v697
        %v699 = vlaneseq
        %v700 = vshrl.u32 %v699, 7
        %v701 = vsub.s32 %v698, %v700
        %v702 = vrot.slane %v694, %v701
        %v704 = vunpack.c.l.s4 1966171168
        %v705 = vunpack.c.0.s8 %v704
        %v706 = vlaneseq
        %v707 = vshrl.u32 %v706, 7
        %v708 = vsub.s32 %v705, %v707
        %v709 = vrot.slane %v695, %v708
        %v710 = vcombine.high %v702, %v702
        %v712 = vunpack.c.l.s4 1966171168
        %v713 = vunpack.c.0.s8 %v712
        %v714 = vlaneseq
        %v715 = vshrl.u32 %v714, 7
        %v716 = vsub.s32 %v713, %v715
        %v717 = vrot.slane %v637, %v716
        %v718 = vcombine.high %v717, %v717
        %v720 = vunpack.c.l.s4 1966171168
        %v721 = vunpack.c.0.s8 %v720
        %v722 = vlaneseq
        %v723 = vshrl.u32 %v722, 7
        %v724 = vsub.s32 %v721, %v723
        %v725 = vrot.slane %v717, %v724
        %v727 = vunpack.c.l.s4 1966171168
        %v728 = vunpack.c.0.s8 %v727
        %v729 = vlaneseq
        %v730 = vshrl.u32 %v729, 7
        %v731 = vsub.s32 %v728, %v730
        %v732 = vrot.slane %v718, %v731
        %v733 = vcombine.high %v725, %v725
        %v734 = vunpack.i.l.s16 %v656
        %v735 = vunpack.i.h.s16 %v656
        %v736 = vunpack.i.l.s16 %v663
        %v737 = vunpack.i.h.s16 %v663
        %v738 = vunpack.i.l.s16 %v664
        %v739 = vunpack.i.l.s16 %v679
        %v740 = vunpack.i.h.s16 %v679
        %v741 = vunpack.i.l.s16 %v686
        %v742 = vunpack.i.h.s16 %v686
        %v743 = vunpack.i.l.s16 %v687
        %v744 = vunpack.i.l.s16 %v702
        %v745 = vunpack.i.h.s16 %v702
        %v746 = vunpack.i.l.s16 %v709
        %v747 = vunpack.i.h.s16 %v709
        %v748 = vunpack.i.l.s16 %v710
        %v749 = vunpack.i.l.s16 %v725
        %v750 = vunpack.i.h.s16 %v725
        %v751 = vunpack.i.l.s16 %v732
        %v752 = vunpack.i.h.s16 %v732
        %v753 = vunpack.i.l.s16 %v733
        %v754 = vld [vmem:[%s1] sm:$0xf]
        %v755 = vld [vmem:[%s1 + $0x4] sm:$0xf]
        %v756 = vld [vmem:[%s1 + $0x8] sm:$0xf]
        %v757 = vld [vmem:[%s1 + $0xc] sm:$0xf]
        %v758 = vld [vmem:[%s1 + $0x10] sm:$0xf]
        %v759 = vld [vmem:[%s1 + $0x14] sm:$0xf]
        %v760 = vld [vmem:[%s1 + $0x18] sm:$0xf]
        %v761 = vld [vmem:[%s1 + $0x1c] sm:$0xf]
        %v762 = vld [vmem:[%s1 + $0x20] sm:$0xf]
        %v763 = vld [vmem:[%s1 + $0x24] sm:$0xf]
        %v764 = vld [vmem:[%s1 + $0x28] sm:$0xf]
        %v765 = vld [vmem:[%s1 + $0x2c] sm:$0xf]
        %v766 = vld [vmem:[%s1 + $0x30] sm:$0xf]
        %v767 = vld [vmem:[%s1 + $0x34] sm:$0xf]
        %v768 = vld [vmem:[%s1 + $0x38] sm:$0xf]
        %v769 = vld [vmem:[%s1 + $0x3c] sm:$0xf]
        %v770 = vld [vmem:[%s1 + $0x40] sm:$0xf]
        %v771 = vld [vmem:[%s1 + $0x44] sm:$0xf]
        %v772 = vld [vmem:[%s1 + $0x48] sm:$0xf]
        %v773 = vld [vmem:[%s1 + $0x4c] sm:$0xf]
        %v774 = vld [vmem:[%s1 + $0x50] sm:$0xf]
        %v775 = vld [vmem:[%s1 + $0x54] sm:$0xf]
        %v776 = vld [vmem:[%s1 + $0x58] sm:$0xf]
        %v777 = vld [vmem:[%s1 + $0x5c] sm:$0xf]
        %v778 = vld [vmem:[%s2] sm:$0xff]
        %v779 = vld [vmem:[%s2 + $0x8] sm:$0xff]
        %v780 = vld [vmem:[%s2 + $0x10] sm:$0xf]
        %v781 = vpack.i.b16 %v735, %v734
        %v782 = vpack.i.b16 %v737, %v736
        %v783 = vpack.i.b16 %v739, %v738
        %v784 = vpack.i.b16 %v741, %v740
        %v785 = vpack.i.b16 %v743, %v742
        %v786 = vpack.i.b16 %v745, %v744
        %v787 = vpack.i.b16 %v747, %v746
        %v788 = vpack.i.b16 %v749, %v748
        %v789 = vpack.i.b16 %v751, %v750
        %v790 = vpack.i.b16 %v753, %v752
        %v791 = vcombine.low %v781, %v782
        %v792 = vcombine.low %v783, %v784
        %v793 = vcombine.low %v785, %v786
        %v794 = vcombine.low %v787, %v788
        %v796 = vunpack.c.l.s4 1966171168
        %v797 = vunpack.c.0.s8 %v796
        %v798 = vlaneseq
        %v799 = vshrl.u32 %v798, 7
        %v800 = vsub.s32 %v797, %v799
        %v801 = vrot.slane %v791, %v800
        %v803 = vunpack.c.l.s4 1966171168
        %v804 = vunpack.c.0.s8 %v803
        %v805 = vlaneseq
        %v806 = vshrl.u32 %v805, 7
        %v807 = vsub.s32 %v804, %v806
        %v808 = vrot.slane %v792, %v807
        %v810 = vunpack.c.l.s4 1966171168
        %v811 = vunpack.c.0.s8 %v810
        %v812 = vlaneseq
        %v813 = vshrl.u32 %v812, 7
        %v814 = vsub.s32 %v811, %v813
        %v815 = vrot.slane %v793, %v814
        %v817 = vunpack.c.l.s4 1966171168
        %v818 = vunpack.c.0.s8 %v817
        %v819 = vlaneseq
        %v820 = vshrl.u32 %v819, 7
        %v821 = vsub.s32 %v818, %v820
        %v822 = vrot.slane %v794, %v821
        %v823 = vcombine.low %v801, %v808
        %v824 = vcombine.high %v801, %v808
        %v825 = vcombine.low %v815, %v822
        %v826 = vcombine.high %v815, %v822
        %v828 = vunpack.c.l.s4 1966171168
        %v829 = vunpack.c.0.s8 %v828
        %v830 = vlaneseq
        %v831 = vshrl.u32 %v830, 7
        %v832 = vsub.s32 %v829, %v831
        %v833 = vrot.slane %v823, %v832
        %v835 = vunpack.c.l.s4 1966171168
        %v836 = vunpack.c.0.s8 %v835
        %v837 = vlaneseq
        %v838 = vshrl.u32 %v837, 7
        %v839 = vsub.s32 %v836, %v838
        %v840 = vrot.slane %v824, %v839
        %v842 = vunpack.c.l.s4 1966171168
        %v843 = vunpack.c.0.s8 %v842
        %v844 = vlaneseq
        %v845 = vshrl.u32 %v844, 7
        %v846 = vsub.s32 %v843, %v845
        %v847 = vrot.slane %v825, %v846
        %v849 = vunpack.c.l.s4 1966171168
        %v850 = vunpack.c.0.s8 %v849
        %v851 = vlaneseq
        %v852 = vshrl.u32 %v851, 7
        %v853 = vsub.s32 %v850, %v852
        %v854 = vrot.slane %v826, %v853
        %v855 = vcombine.low %v833, %v847
        %v856 = vcombine.low %v840, %v854
        %v857 = vcombine.low %v789, %v790
        %v859 = vunpack.c.l.s4 1966171168
        %v860 = vunpack.c.0.s8 %v859
        %v861 = vlaneseq
        %v862 = vshrl.u32 %v861, 7
        %v863 = vsub.s32 %v860, %v862
        %v864 = vrot.slane %v857, %v863
        %v865 = vcombine.high %v864, %v864
        %v867 = vunpack.c.l.s4 1966171168
        %v868 = vunpack.c.0.s8 %v867
        %v869 = vlaneseq
        %v870 = vshrl.u32 %v869, 7
        %v871 = vsub.s32 %v868, %v870
        %v872 = vrot.slane %v864, %v871
        %v874 = vunpack.c.l.s4 1966171168
        %v875 = vunpack.c.0.s8 %v874
        %v876 = vlaneseq
        %v877 = vshrl.u32 %v876, 7
        %v878 = vsub.s32 %v875, %v877
        %v879 = vrot.slane %v865, %v878
        %v906 = vunpack.c.l.b16 %v754
        %v907 = vunpack.c.l.b16 %v755
        %v908 = vunpack.c.l.b16 %v756
        %v909 = vunpack.c.l.b16 %v757
        %v910 = vunpack.c.l.b16 %v758
        %v911 = vunpack.c.l.b16 %v759
        %v912 = vunpack.c.l.b16 %v760
        %v913 = vunpack.c.l.b16 %v761
        %v914 = vunpack.c.l.b16 %v762
        %v915 = vunpack.c.l.b16 %v763
        %v916 = vunpack.c.l.b16 %v764
        %v917 = vunpack.c.l.b16 %v765
        %v918 = vunpack.c.l.b16 %v766
        %v919 = vunpack.c.l.b16 %v767
        %v920 = vunpack.c.l.b16 %v768
        %v921 = vunpack.c.l.b16 %v769
        %v922 = vunpack.c.l.b16 %v770
        %v923 = vunpack.c.l.b16 %v771
        %v924 = vunpack.c.l.b16 %v772
        %v925 = vunpack.c.l.b16 %v773
        %v926 = vunpack.c.l.b16 %v774
        %v927 = vunpack.c.l.b16 %v775
        %v928 = vunpack.c.l.b16 %v776
        %v929 = vunpack.c.l.b16 %v777
        %v930 = vpack.c.b16 %v907, %v906
        %v931 = vpack.c.b16 %v909, %v908
        %v932 = vpack.c.b16 %v911, %v910
        %v933 = vpack.c.b16 %v913, %v912
        %v934 = vpack.c.b16 %v915, %v914
        %v935 = vpack.c.b16 %v917, %v916
        %v936 = vpack.c.b16 %v919, %v918
        %v937 = vpack.c.b16 %v921, %v920
        %v938 = vpack.c.b16 %v923, %v922
        %v939 = vpack.c.b16 %v925, %v924
        %v940 = vpack.c.b16 %v927, %v926
        %v941 = vpack.c.b16 %v929, %v928
        %vm954 = vcmask 523264
        %v956 = vsel %vm954, %v856, 0
        %v959 = vsel %vm954, %v879, 0
        %961 = vmatprep.subr.bf16.mxu0 0
        %962 = vmatpush1.bf16.msra.mxu0 %v930
        %963 = vmatprep.subr.bf16.mxu0 0
        %964 = vmatpush1.bf16.msra.mxu0 %v931
        %965 = vmatprep.subr.bf16.mxu0 0
        %966 = vmatpush1.bf16.msra.mxu0 %v932
        %967 = vmatprep.subr.bf16.mxu0 0
        %968 = vmatpush1.bf16.msra.mxu0 %v933
        %969 = vmatprep.subr.bf16.mxu0 0
        %970 = vmatpush1.bf16.msra.mxu0 %v934
        %971 = vmatprep.subr.bf16.mxu0 0
        %972 = vmatpush1.bf16.msra.mxu0 %v935
        %973 = vmatprep.subr.bf16.mxu0 0
        %974 = vmatpush1.bf16.msra.mxu0 %v936
        %975 = vmatprep.subr.bf16.mxu0 0
        %976 = vmatpush1.bf16.msra.mxu0 %v937
        %977 = vmatprep.subr.bf16.mxu0 0
        %978 = vmatpush1.bf16.msra.mxu0 %v938
        %979 = vmatprep.subr.bf16.mxu0 0
        %980 = vmatpush1.bf16.msra.mxu0 %v939
        %981 = vmatprep.subr.bf16.mxu0 0
        %982 = vmatpush1.bf16.msra.mxu0 %v940
        %983 = vmatprep.subr.bf16.mxu0 0
        %984 = vmatpush1.bf16.msra.mxu0 %v941
        %985 = vmatprep.subr.bf16.mxu0 0
        %986 = vmatpush1.bf16.msra.mxu0 0
        %987 = vmatprep.subr.bf16.mxu0 0
        %988 = vmatpush1.bf16.msra.mxu0 0
        %989 = vmatprep.subr.bf16.mxu0 0
        %990 = vmatpush1.bf16.msra.mxu0 0
        %991 = vmatprep.subr.bf16.mxu0 0
        %992 = vmatpush1.bf16.msra.mxu0 0
        %993 = vmatprep.mubr.bf16.mxu0 %v956
        %994 = vmatmul.mubr.bf16.gmra.mrb[0].mxu0 %v855
        %v995 = vpop.f32.mrb[0].mxu0
        %v996 = vadd.f32 %v778, %v995
        %v997 = vpop.f32.mrb[0].mxu0
        %v998 = vpop.f32.mrb[0].mxu0
        %v999 = vadd.f32 %v779, %v998
        %v1000 = vpop.f32.mrb[0].mxu0
        %1001 = vmatprep.mubr.bf16.mxu0 %v959
        %1002 = vmatmul.mubr.bf16.gmra.mrb[0].mxu0 %v872
        %v1003 = vpop.f32.mrb[0].mxu0
        %v1004 = vadd.f32 %v780, %v1003
        %v1005 = vpop.f32.mrb[0].mxu0
        %v1006 = vpop.f32.mrb[0].mxu0
        %v1007 = vpop.f32.mrb[0].mxu0
        %1008 = vdwg.mxu0
        %v1009 = vld [vmem:[%s3] sm:$0x1]
        %v1010 = vld [vmem:[%s4] sm:$0x1]
        %vm1011 = vcmask 261120
        %v1012 = vsel %vm1011, %v996, 0.0
        %1013 = vadd.xlane.f32.xlu0 %v1012
        %v1014 = vpop.xlane.xlu0 %1013
        %v1015 = vsel %vm1011, %v999, 0.0
        %1016 = vadd.xlane.f32.xlu0 %v1015
        %v1017 = vpop.xlane.xlu0 %1016
        %vm1018 = vcmask 257024
        %v1019 = vsel %vm1018, %v1004, 0.0
        %1020 = vadd.xlane.f32.xlu0 %v1019
        %v1021 = vpop.xlane.xlu0 %1020
        %v1022 = vrcp.pop 32.0
        %v1023 = vmul.f32 %v1014, %v1022
        %v1024 = vmul.f32 %v1017, %v1022
        %v1025 = vmul.f32 %v1021, %v1022
        %v1026 = vmul.f32 %v996, %v996
        %v1027 = vmul.f32 %v999, %v999
        %v1028 = vmul.f32 %v1004, %v1004
        %v1029 = vsel %vm1011, %v1026, 0.0
        %1030 = vadd.xlane.f32.xlu0 %v1029
        %v1031 = vpop.xlane.xlu0 %1030
        %v1032 = vsel %vm1011, %v1027, 0.0
        %1033 = vadd.xlane.f32.xlu0 %v1032
        %v1034 = vpop.xlane.xlu0 %1033
        %v1035 = vsel %vm1018, %v1028, 0.0
        %1036 = vadd.xlane.f32.xlu0 %v1035
        %v1037 = vpop.xlane.xlu0 %1036
        %v1038 = vmul.f32 %v1031, %v1022
        %v1039 = vmul.f32 %v1034, %v1022
        %v1040 = vmul.f32 %v1037, %v1022
        %v1041 = vmul.f32 %v1023, %v1023
        %v1042 = vmul.f32 %v1024, %v1024
        %v1043 = vmul.f32 %v1025, %v1025
        %v1044 = vsub.f32 %v1038, %v1041
        %v1045 = vsub.f32 %v1039, %v1042
        %v1046 = vsub.f32 %v1040, %v1043
        %v1047 = vsub.f32 %v996, %v1023
        %v1048 = vsub.f32 %v999, %v1024
        %v1049 = vsub.f32 %v1004, %v1025
        %v1050 = vadd.f32 %v1044, 1e-05
        %v1051 = vadd.f32 %v1045, 1e-05
        %v1052 = vadd.f32 %v1046, 1e-05
        %v1053 = vrsqrt.pop %v1050
        %v1054 = vrsqrt.pop %v1051
        %v1055 = vrsqrt.pop %v1052
        %v1056 = vmul.f32 %v1047, %v1053
        %v1057 = vmul.f32 %v1048, %v1054
        %v1058 = vmul.f32 %v1049, %v1055
        %v1060 = vlaneseq
        %v1061 = vshrl.u32 %v1060, 7
        %v1062 = vsub.s32 0, %v1061
        %v1063 = vrot.slane %v1009, %v1062
        %v1065 = vmul.f32 %v1056, %v1063
        %v1066 = vmul.f32 %v1057, %v1063
        %v1067 = vmul.f32 %v1058, %v1063
        %v1069 = vlaneseq
        %v1070 = vshrl.u32 %v1069, 7
        %v1071 = vsub.s32 0, %v1070
        %v1072 = vrot.slane %v1010, %v1071
        %v1074 = vadd.f32 %v1065, %v1072
        %v1075 = vadd.f32 %v1066, %v1072
        %v1076 = vadd.f32 %v1067, %v1072
        %v1077 = vld [vmem:[%s5] sm:$0x1]
        %v1078 = vld [vmem:[%s6] sm:$0x1]
        %v1079 = vsel %vm1011, %v1074, 0.0
        %1080 = vadd.xlane.f32.xlu0 %v1079
        %v1081 = vpop.xlane.xlu0 %1080
        %v1082 = vsel %vm1011, %v1075, 0.0
        %1083 = vadd.xlane.f32.xlu0 %v1082
        %v1084 = vpop.xlane.xlu0 %1083
        %v1085 = vsel %vm1018, %v1076, 0.0
        %1086 = vadd.xlane.f32.xlu0 %v1085
        %v1087 = vpop.xlane.xlu0 %1086
        %v1088 = vmul.f32 %v1081, %v1022
        %v1089 = vmul.f32 %v1084, %v1022
        %v1090 = vmul.f32 %v1087, %v1022
        %v1091 = vmul.f32 %v1074, %v1074
        %v1092 = vmul.f32 %v1075, %v1075
        %v1093 = vmul.f32 %v1076, %v1076
        %v1094 = vsel %vm1011, %v1091, 0.0
        %1095 = vadd.xlane.f32.xlu0 %v1094
        %v1096 = vpop.xlane.xlu0 %1095
        %v1097 = vsel %vm1011, %v1092, 0.0
        %1098 = vadd.xlane.f32.xlu0 %v1097
        %v1099 = vpop.xlane.xlu0 %1098
        %v1100 = vsel %vm1018, %v1093, 0.0
        %1101 = vadd.xlane.f32.xlu0 %v1100
        %v1102 = vpop.xlane.xlu0 %1101
        %v1103 = vmul.f32 %v1096, %v1022
        %v1104 = vmul.f32 %v1099, %v1022
        %v1105 = vmul.f32 %v1102, %v1022
        %v1106 = vmul.f32 %v1088, %v1088
        %v1107 = vmul.f32 %v1089, %v1089
        %v1108 = vmul.f32 %v1090, %v1090
        %v1109 = vsub.f32 %v1103, %v1106
        %v1110 = vsub.f32 %v1104, %v1107
        %v1111 = vsub.f32 %v1105, %v1108
        %v1112 = vsub.f32 %v1074, %v1088
        %v1113 = vsub.f32 %v1075, %v1089
        %v1114 = vsub.f32 %v1076, %v1090
        %v1115 = vadd.f32 %v1109, 1e-05
        %v1116 = vadd.f32 %v1110, 1e-05
        %v1117 = vadd.f32 %v1111, 1e-05
        %v1118 = vrsqrt.pop %v1115
        %v1119 = vrsqrt.pop %v1116
        %v1120 = vrsqrt.pop %v1117
        %v1121 = vmul.f32 %v1112, %v1118
        %v1122 = vmul.f32 %v1113, %v1119
        %v1123 = vmul.f32 %v1114, %v1120
        %v1125 = vlaneseq
        %v1126 = vshrl.u32 %v1125, 7
        %v1127 = vsub.s32 0, %v1126
        %v1128 = vrot.slane %v1077, %v1127
        %v1130 = vmul.f32 %v1121, %v1128
        %v1131 = vmul.f32 %v1122, %v1128
        %v1132 = vmul.f32 %v1123, %v1128
        %v1134 = vlaneseq
        %v1135 = vshrl.u32 %v1134, 7
        %v1136 = vsub.s32 0, %v1135
        %v1137 = vrot.slane %v1078, %v1136
        %v1139 = vadd.f32 %v1130, %v1137
        %v1140 = vadd.f32 %v1131, %v1137
        %v1141 = vadd.f32 %v1132, %v1137
        %v1142 = vpack.c.bf16 %v1140, %v1139
        %v1143 = vpack.c.bf16 %v1141, %v1141
        %v1144 = vld [vmem:[%s7] sm:$0xf]
        %v1145 = vld [vmem:[%s7 + $0x4] sm:$0xf]
        %v1146 = vld [vmem:[%s7 + $0x8] sm:$0xf]
        %v1147 = vld [vmem:[%s7 + $0xc] sm:$0xf]
        %v1148 = vld [vmem:[%s8] sm:$0x1]
        %v1150 = vlaneseq
        %v1151 = vshrl.u32 %v1150, 7
        %v1152 = vsub.s32 0, %v1151
        %v1153 = vrot.slane %v1148, %v1152
        %v1159 = vunpack.c.l.b16 %v1144
        %v1160 = vunpack.c.l.b16 %v1145
        %v1161 = vunpack.c.l.b16 %v1146
        %v1162 = vunpack.c.l.b16 %v1147
        %v1163 = vpack.c.b16 %v1160, %v1159
        %v1164 = vpack.c.b16 %v1162, %v1161
        %v1168 = vsel %vm1011, %v1142, 0
        %v1171 = vsel %vm1011, %v1143, 0
        %1173 = vmatprep.subr.bf16.mxu0 0
        %1174 = vmatpush1.bf16.msra.mxu0 %v1163
        %1175 = vmatprep.subr.bf16.mxu0 0
        %1176 = vmatpush1.bf16.msra.mxu0 %v1164
        %1177 = vmatprep.subr.bf16.mxu0 0
        %1178 = vmatpush1.bf16.msra.mxu0 0
        %1179 = vmatprep.subr.bf16.mxu0 0
        %1180 = vmatpush1.bf16.msra.mxu0 0
        %1181 = vmatprep.subr.bf16.mxu0 0
        %1182 = vmatpush1.bf16.msra.mxu0 0
        %1183 = vmatprep.subr.bf16.mxu0 0
        %1184 = vmatpush1.bf16.msra.mxu0 0
        %1185 = vmatprep.subr.bf16.mxu0 0
        %1186 = vmatpush1.bf16.msra.mxu0 0
        %1187 = vmatprep.subr.bf16.mxu0 0
        %1188 = vmatpush1.bf16.msra.mxu0 0
        %1189 = vmatprep.subr.bf16.mxu0 0
        %1190 = vmatpush1.bf16.msra.mxu0 0
        %1191 = vmatprep.subr.bf16.mxu0 0
        %1192 = vmatpush1.bf16.msra.mxu0 0
        %1193 = vmatprep.subr.bf16.mxu0 0
        %1194 = vmatpush1.bf16.msra.mxu0 0
        %1195 = vmatprep.subr.bf16.mxu0 0
        %1196 = vmatpush1.bf16.msra.mxu0 0
        %1197 = vmatprep.subr.bf16.mxu0 0
        %1198 = vmatpush1.bf16.msra.mxu0 0
        %1199 = vmatprep.subr.bf16.mxu0 0
        %1200 = vmatpush1.bf16.msra.mxu0 0
        %1201 = vmatprep.subr.bf16.mxu0 0
        %1202 = vmatpush1.bf16.msra.mxu0 0
        %1203 = vmatprep.subr.bf16.mxu0 0
        %1204 = vmatpush1.bf16.msra.mxu0 0
        %1205 = vmatprep.mubr.bf16.mxu0 0
        %1206 = vmatmul.mubr.bf16.gmra.mrb[0].mxu0 %v1168
        %v1207 = vpop.f32.mrb[0].mxu0
        %v1208 = vadd.f32 %v1153, %v1207
        %v1209 = vpop.f32.mrb[0].mxu0
        %v1210 = vpop.f32.mrb[0].mxu0
        %v1211 = vadd.f32 %v1153, %v1210
        %v1212 = vpop.f32.mrb[0].mxu0
        %1213 = vmatprep.mubr.bf16.mxu0 0
        %1214 = vmatmul.mubr.bf16.gmra.mrb[0].mxu0 %v1171
        %v1215 = vpop.f32.mrb[0].mxu0
        %v1216 = vadd.f32 %v1153, %v1215
        %v1217 = vpop.f32.mrb[0].mxu0
        %v1218 = vpop.f32.mrb[0].mxu0
        %v1219 = vpop.f32.mrb[0].mxu0
        %1220 = vdwg.mxu0
        %v1224 = vcombine.high %v1208, %v1208
        %v1226 = vunpack.c.l.s4 1966171168
        %v1227 = vunpack.c.0.s8 %v1226
        %v1228 = vlaneseq
        %v1229 = vshrl.u32 %v1228, 7
        %v1230 = vsub.s32 %v1227, %v1229
        %v1231 = vrot.slane %v1208, %v1230
        %v1233 = vunpack.c.l.s4 1966171168
        %v1234 = vunpack.c.0.s8 %v1233
        %v1235 = vlaneseq
        %v1236 = vshrl.u32 %v1235, 7
        %v1237 = vsub.s32 %v1234, %v1236
        %v1238 = vrot.slane %v1224, %v1237
        %v1239 = vcombine.high %v1231, %v1231
        %v1240 = vcombine.high %v1238, %v1238
        %v1242 = vunpack.c.l.s4 1966171168
        %v1243 = vunpack.c.0.s8 %v1242
        %v1244 = vlaneseq
        %v1245 = vshrl.u32 %v1244, 7
        %v1246 = vsub.s32 %v1243, %v1245
        %v1247 = vrot.slane %v1231, %v1246
        %v1249 = vunpack.c.l.s4 1966171168
        %v1250 = vunpack.c.0.s8 %v1249
        %v1251 = vlaneseq
        %v1252 = vshrl.u32 %v1251, 7
        %v1253 = vsub.s32 %v1250, %v1252
        %v1254 = vrot.slane %v1238, %v1253
        %v1256 = vunpack.c.l.s4 1966171168
        %v1257 = vunpack.c.0.s8 %v1256
        %v1258 = vlaneseq
        %v1259 = vshrl.u32 %v1258, 7
        %v1260 = vsub.s32 %v1257, %v1259
        %v1261 = vrot.slane %v1239, %v1260
        %v1263 = vunpack.c.l.s4 1966171168
        %v1264 = vunpack.c.0.s8 %v1263
        %v1265 = vlaneseq
        %v1266 = vshrl.u32 %v1265, 7
        %v1267 = vsub.s32 %v1264, %v1266
        %v1268 = vrot.slane %v1240, %v1267
        %v1269 = vcombine.high %v1247, %v1247
        %v1270 = vcombine.high %v1254, %v1254
        %v1271 = vcombine.high %v1261, %v1261
        %v1272 = vcombine.high %v1268, %v1268
        %v1273 = vcombine.high %v1211, %v1211
        %v1275 = vunpack.c.l.s4 1966171168
        %v1276 = vunpack.c.0.s8 %v1275
        %v1277 = vlaneseq
        %v1278 = vshrl.u32 %v1277, 7
        %v1279 = vsub.s32 %v1276, %v1278
        %v1280 = vrot.slane %v1211, %v1279
        %v1282 = vunpack.c.l.s4 1966171168
        %v1283 = vunpack.c.0.s8 %v1282
        %v1284 = vlaneseq
        %v1285 = vshrl.u32 %v1284, 7
        %v1286 = vsub.s32 %v1283, %v1285
        %v1287 = vrot.slane %v1273, %v1286
        %v1288 = vcombine.high %v1280, %v1280
        %v1289 = vcombine.high %v1287, %v1287
        %v1291 = vunpack.c.l.s4 1966171168
        %v1292 = vunpack.c.0.s8 %v1291
        %v1293 = vlaneseq
        %v1294 = vshrl.u32 %v1293, 7
        %v1295 = vsub.s32 %v1292, %v1294
        %v1296 = vrot.slane %v1280, %v1295
        %v1298 = vunpack.c.l.s4 1966171168
        %v1299 = vunpack.c.0.s8 %v1298
        %v1300 = vlaneseq
        %v1301 = vshrl.u32 %v1300, 7
        %v1302 = vsub.s32 %v1299, %v1301
        %v1303 = vrot.slane %v1287, %v1302
        %v1305 = vunpack.c.l.s4 1966171168
        %v1306 = vunpack.c.0.s8 %v1305
        %v1307 = vlaneseq
        %v1308 = vshrl.u32 %v1307, 7
        %v1309 = vsub.s32 %v1306, %v1308
        %v1310 = vrot.slane %v1288, %v1309
        %v1312 = vunpack.c.l.s4 1966171168
        %v1313 = vunpack.c.0.s8 %v1312
        %v1314 = vlaneseq
        %v1315 = vshrl.u32 %v1314, 7
        %v1316 = vsub.s32 %v1313, %v1315
        %v1317 = vrot.slane %v1289, %v1316
        %v1318 = vcombine.high %v1296, %v1296
        %v1319 = vcombine.high %v1303, %v1303
        %v1320 = vcombine.high %v1310, %v1310
        %v1321 = vcombine.high %v1317, %v1317
        %v1323 = vunpack.c.l.s4 1966171168
        %v1324 = vunpack.c.0.s8 %v1323
        %v1325 = vlaneseq
        %v1326 = vshrl.u32 %v1325, 7
        %v1327 = vsub.s32 %v1324, %v1326
        %v1328 = vrot.slane %v1216, %v1327
        %v1329 = vcombine.high %v1328, %v1328
        %v1331 = vunpack.c.l.s4 1966171168
        %v1332 = vunpack.c.0.s8 %v1331
        %v1333 = vlaneseq
        %v1334 = vshrl.u32 %v1333, 7
        %v1335 = vsub.s32 %v1332, %v1334
        %v1336 = vrot.slane %v1328, %v1335
        %v1338 = vunpack.c.l.s4 1966171168
        %v1339 = vunpack.c.0.s8 %v1338
        %v1340 = vlaneseq
        %v1341 = vshrl.u32 %v1340, 7
        %v1342 = vsub.s32 %v1339, %v1341
        %v1343 = vrot.slane %v1329, %v1342
        %v1344 = vcombine.high %v1336, %v1336
        %v1345 = vcombine.high %v1343, %v1343
        %v1366 = vmul.f32 %v1247, 0.35355338
        %v1367 = vmul.f32 %v1261, 0.35355338
        %v1368 = vmul.f32 %v1269, 0.35355338
        %v1369 = vmul.f32 %v1271, 0.35355338
        %v1370 = vmul.f32 %v1254, 0.35355338
        %v1371 = vmul.f32 %v1268, 0.35355338
        %v1372 = vmul.f32 %v1270, 0.35355338
        %v1373 = vmul.f32 %v1272, 0.35355338
        %v1374 = vmul.f32 %v1296, 0.35355338
        %v1375 = vmul.f32 %v1310, 0.35355338
        %v1376 = vmul.f32 %v1318, 0.35355338
        %v1377 = vmul.f32 %v1320, 0.35355338
        %v1378 = vmul.f32 %v1303, 0.35355338
        %v1379 = vmul.f32 %v1317, 0.35355338
        %v1380 = vmul.f32 %v1319, 0.35355338
        %v1381 = vmul.f32 %v1321, 0.35355338
        %v1382 = vmul.f32 %v1336, 0.35355338
        %v1383 = vmul.f32 %v1343, 0.35355338
        %v1384 = vmul.f32 %v1344, 0.35355338
        %v1385 = vmul.f32 %v1345, 0.35355338
        %v1406 = vcombine.low %v1366, %v1367
        %v1407 = vcombine.low %v1368, %v1369
        %v1409 = vunpack.c.l.s4 1966171168
        %v1410 = vunpack.c.0.s8 %v1409
        %v1411 = vlaneseq
        %v1412 = vshrl.u32 %v1411, 7
        %v1413 = vsub.s32 %v1410, %v1412
        %v1414 = vrot.slane %v1406, %v1413
        %v1416 = vunpack.c.l.s4 1966171168
        %v1417 = vunpack.c.0.s8 %v1416
        %v1418 = vlaneseq
        %v1419 = vshrl.u32 %v1418, 7
        %v1420 = vsub.s32 %v1417, %v1419
        %v1421 = vrot.slane %v1407, %v1420
        %v1423 = vunpack.c.l.s4 1966171168
        %v1424 = vunpack.c.0.s8 %v1423
        %v1425 = vlaneseq
        %v1426 = vshrl.u32 %v1425, 7
        %v1427 = vsub.s32 %v1424, %v1426
        %v1428 = vrot.slane %v1370, %v1427
        %v1429 = vcombine.low %v1414, %v1421
        %v1431 = vunpack.c.l.s4 1966171168
        %v1432 = vunpack.c.0.s8 %v1431
        %v1433 = vlaneseq
        %v1434 = vshrl.u32 %v1433, 7
        %v1435 = vsub.s32 %v1432, %v1434
        %v1436 = vrot.slane %v1429, %v1435
        %v1438 = vunpack.c.l.s4 1966171168
        %v1439 = vunpack.c.0.s8 %v1438
        %v1440 = vlaneseq
        %v1441 = vshrl.u32 %v1440, 7
        %v1442 = vsub.s32 %v1439, %v1441
        %v1443 = vrot.slane %v1428, %v1442
        %v1444 = vcombine.low %v1436, %v1443
        %v1445 = vcombine.low %v1371, %v1372
        %v1446 = vcombine.low %v1373, %v1374
        %v1448 = vunpack.c.l.s4 1966171168
        %v1449 = vunpack.c.0.s8 %v1448
        %v1450 = vlaneseq
        %v1451 = vshrl.u32 %v1450, 7
        %v1452 = vsub.s32 %v1449, %v1451
        %v1453 = vrot.slane %v1445, %v1452
        %v1455 = vunpack.c.l.s4 1966171168
        %v1456 = vunpack.c.0.s8 %v1455
        %v1457 = vlaneseq
        %v1458 = vshrl.u32 %v1457, 7
        %v1459 = vsub.s32 %v1456, %v1458
        %v1460 = vrot.slane %v1446, %v1459
        %v1462 = vunpack.c.l.s4 1966171168
        %v1463 = vunpack.c.0.s8 %v1462
        %v1464 = vlaneseq
        %v1465 = vshrl.u32 %v1464, 7
        %v1466 = vsub.s32 %v1463, %v1465
        %v1467 = vrot.slane %v1375, %v1466
        %v1468 = vcombine.low %v1453, %v1460
        %v1470 = vunpack.c.l.s4 1966171168
        %v1471 = vunpack.c.0.s8 %v1470
        %v1472 = vlaneseq
        %v1473 = vshrl.u32 %v1472, 7
        %v1474 = vsub.s32 %v1471, %v1473
        %v1475 = vrot.slane %v1468, %v1474
        %v1477 = vunpack.c.l.s4 1966171168
        %v1478 = vunpack.c.0.s8 %v1477
        %v1479 = vlaneseq
        %v1480 = vshrl.u32 %v1479, 7
        %v1481 = vsub.s32 %v1478, %v1480
        %v1482 = vrot.slane %v1467, %v1481
        %v1483 = vcombine.low %v1475, %v1482
        %v1484 = vcombine.low %v1376, %v1377
        %v1485 = vcombine.low %v1378, %v1379
        %v1487 = vunpack.c.l.s4 1966171168
        %v1488 = vunpack.c.0.s8 %v1487
        %v1489 = vlaneseq
        %v1490 = vshrl.u32 %v1489, 7
        %v1491 = vsub.s32 %v1488, %v1490
        %v1492 = vrot.slane %v1484, %v1491
        %v1494 = vunpack.c.l.s4 1966171168
        %v1495 = vunpack.c.0.s8 %v1494
        %v1496 = vlaneseq
        %v1497 = vshrl.u32 %v1496, 7
        %v1498 = vsub.s32 %v1495, %v1497
        %v1499 = vrot.slane %v1485, %v1498
        %v1501 = vunpack.c.l.s4 1966171168
        %v1502 = vunpack.c.0.s8 %v1501
        %v1503 = vlaneseq
        %v1504 = vshrl.u32 %v1503, 7
        %v1505 = vsub.s32 %v1502, %v1504
        %v1506 = vrot.slane %v1380, %v1505
        %v1507 = vcombine.low %v1492, %v1499
        %v1509 = vunpack.c.l.s4 1966171168
        %v1510 = vunpack.c.0.s8 %v1509
        %v1511 = vlaneseq
        %v1512 = vshrl.u32 %v1511, 7
        %v1513 = vsub.s32 %v1510, %v1512
        %v1514 = vrot.slane %v1507, %v1513
        %v1516 = vunpack.c.l.s4 1966171168
        %v1517 = vunpack.c.0.s8 %v1516
        %v1518 = vlaneseq
        %v1519 = vshrl.u32 %v1518, 7
        %v1520 = vsub.s32 %v1517, %v1519
        %v1521 = vrot.slane %v1506, %v1520
        %v1522 = vcombine.low %v1514, %v1521
        %v1523 = vcombine.low %v1381, %v1382
        %v1524 = vcombine.low %v1383, %v1384
        %v1526 = vunpack.c.l.s4 1966171168
        %v1527 = vunpack.c.0.s8 %v1526
        %v1528 = vlaneseq
        %v1529 = vshrl.u32 %v1528, 7
        %v1530 = vsub.s32 %v1527, %v1529
        %v1531 = vrot.slane %v1523, %v1530
        %v1533 = vunpack.c.l.s4 1966171168
        %v1534 = vunpack.c.0.s8 %v1533
        %v1535 = vlaneseq
        %v1536 = vshrl.u32 %v1535, 7
        %v1537 = vsub.s32 %v1534, %v1536
        %v1538 = vrot.slane %v1524, %v1537
        %v1540 = vunpack.c.l.s4 1966171168
        %v1541 = vunpack.c.0.s8 %v1540
        %v1542 = vlaneseq
        %v1543 = vshrl.u32 %v1542, 7
        %v1544 = vsub.s32 %v1541, %v1543
        %v1545 = vrot.slane %v1385, %v1544
        %v1546 = vcombine.low %v1531, %v1538
        %v1548 = vunpack.c.l.s4 1966171168
        %v1549 = vunpack.c.0.s8 %v1548
        %v1550 = vlaneseq
        %v1551 = vshrl.u32 %v1550, 7
        %v1552 = vsub.s32 %v1549, %v1551
        %v1553 = vrot.slane %v1546, %v1552
        %v1555 = vunpack.c.l.s4 1966171168
        %v1556 = vunpack.c.0.s8 %v1555
        %v1557 = vlaneseq
        %v1558 = vshrl.u32 %v1557, 7
        %v1559 = vsub.s32 %v1556, %v1558
        %v1560 = vrot.slane %v1545, %v1559
        %v1561 = vcombine.low %v1553, %v1560
        %v1566 = vpack.c.bf16 %v1444, %v1444
        %v1567 = vpack.c.bf16 %v1483, %v1483
        %v1568 = vpack.c.bf16 %v1522, %v1522
        %v1569 = vpack.c.bf16 %v1561, %v1561
        %v1570 = vcombine.low %v1247, %v1261
        %v1571 = vcombine.low %v1269, %v1271
        %v1573 = vunpack.c.l.s4 1966171168
        %v1574 = vunpack.c.0.s8 %v1573
        %v1575 = vlaneseq
        %v1576 = vshrl.u32 %v1575, 7
        %v1577 = vsub.s32 %v1574, %v1576
        %v1578 = vrot.slane %v1570, %v1577
        %v1580 = vunpack.c.l.s4 1966171168
        %v1581 = vunpack.c.0.s8 %v1580
        %v1582 = vlaneseq
        %v1583 = vshrl.u32 %v1582, 7
        %v1584 = vsub.s32 %v1581, %v1583
        %v1585 = vrot.slane %v1571, %v1584
        %v1587 = vunpack.c.l.s4 1966171168
        %v1588 = vunpack.c.0.s8 %v1587
        %v1589 = vlaneseq
        %v1590 = vshrl.u32 %v1589, 7
        %v1591 = vsub.s32 %v1588, %v1590
        %v1592 = vrot.slane %v1254, %v1591
        %v1593 = vcombine.low %v1578, %v1585
        %v1595 = vunpack.c.l.s4 1966171168
        %v1596 = vunpack.c.0.s8 %v1595
        %v1597 = vlaneseq
        %v1598 = vshrl.u32 %v1597, 7
        %v1599 = vsub.s32 %v1596, %v1598
        %v1600 = vrot.slane %v1593, %v1599
        %v1602 = vunpack.c.l.s4 1966171168
        %v1603 = vunpack.c.0.s8 %v1602
        %v1604 = vlaneseq
        %v1605 = vshrl.u32 %v1604, 7
        %v1606 = vsub.s32 %v1603, %v1605
        %v1607 = vrot.slane %v1592, %v1606
        %v1608 = vcombine.low %v1600, %v1607
        %v1609 = vcombine.low %v1268, %v1270
        %v1610 = vcombine.low %v1272, %v1296
        %v1612 = vunpack.c.l.s4 1966171168
        %v1613 = vunpack.c.0.s8 %v1612
        %v1614 = vlaneseq
        %v1615 = vshrl.u32 %v1614, 7
        %v1616 = vsub.s32 %v1613, %v1615
        %v1617 = vrot.slane %v1609, %v1616
        %v1619 = vunpack.c.l.s4 1966171168
        %v1620 = vunpack.c.0.s8 %v1619
        %v1621 = vlaneseq
        %v1622 = vshrl.u32 %v1621, 7
        %v1623 = vsub.s32 %v1620, %v1622
        %v1624 = vrot.slane %v1610, %v1623
        %v1626 = vunpack.c.l.s4 1966171168
        %v1627 = vunpack.c.0.s8 %v1626
        %v1628 = vlaneseq
        %v1629 = vshrl.u32 %v1628, 7
        %v1630 = vsub.s32 %v1627, %v1629
        %v1631 = vrot.slane %v1310, %v1630
        %v1632 = vcombine.low %v1617, %v1624
        %v1634 = vunpack.c.l.s4 1966171168
        %v1635 = vunpack.c.0.s8 %v1634
        %v1636 = vlaneseq
        %v1637 = vshrl.u32 %v1636, 7
        %v1638 = vsub.s32 %v1635, %v1637
        %v1639 = vrot.slane %v1632, %v1638
        %v1641 = vunpack.c.l.s4 1966171168
        %v1642 = vunpack.c.0.s8 %v1641
        %v1643 = vlaneseq
        %v1644 = vshrl.u32 %v1643, 7
        %v1645 = vsub.s32 %v1642, %v1644
        %v1646 = vrot.slane %v1631, %v1645
        %v1647 = vcombine.low %v1639, %v1646
        %v1648 = vcombine.low %v1318, %v1320
        %v1649 = vcombine.low %v1303, %v1317
        %v1651 = vunpack.c.l.s4 1966171168
        %v1652 = vunpack.c.0.s8 %v1651
        %v1653 = vlaneseq
        %v1654 = vshrl.u32 %v1653, 7
        %v1655 = vsub.s32 %v1652, %v1654
        %v1656 = vrot.slane %v1648, %v1655
        %v1658 = vunpack.c.l.s4 1966171168
        %v1659 = vunpack.c.0.s8 %v1658
        %v1660 = vlaneseq
        %v1661 = vshrl.u32 %v1660, 7
        %v1662 = vsub.s32 %v1659, %v1661
        %v1663 = vrot.slane %v1649, %v1662
        %v1665 = vunpack.c.l.s4 1966171168
        %v1666 = vunpack.c.0.s8 %v1665
        %v1667 = vlaneseq
        %v1668 = vshrl.u32 %v1667, 7
        %v1669 = vsub.s32 %v1666, %v1668
        %v1670 = vrot.slane %v1319, %v1669
        %v1671 = vcombine.low %v1656, %v1663
        %v1673 = vunpack.c.l.s4 1966171168
        %v1674 = vunpack.c.0.s8 %v1673
        %v1675 = vlaneseq
        %v1676 = vshrl.u32 %v1675, 7
        %v1677 = vsub.s32 %v1674, %v1676
        %v1678 = vrot.slane %v1671, %v1677
        %v1680 = vunpack.c.l.s4 1966171168
        %v1681 = vunpack.c.0.s8 %v1680
        %v1682 = vlaneseq
        %v1683 = vshrl.u32 %v1682, 7
        %v1684 = vsub.s32 %v1681, %v1683
        %v1685 = vrot.slane %v1670, %v1684
        %v1686 = vcombine.low %v1678, %v1685
        %v1687 = vcombine.low %v1321, %v1336
        %v1688 = vcombine.low %v1343, %v1344
        %v1690 = vunpack.c.l.s4 1966171168
        %v1691 = vunpack.c.0.s8 %v1690
        %v1692 = vlaneseq
        %v1693 = vshrl.u32 %v1692, 7
        %v1694 = vsub.s32 %v1691, %v1693
        %v1695 = vrot.slane %v1687, %v1694
        %v1697 = vunpack.c.l.s4 1966171168
        %v1698 = vunpack.c.0.s8 %v1697
        %v1699 = vlaneseq
        %v1700 = vshrl.u32 %v1699, 7
        %v1701 = vsub.s32 %v1698, %v1700
        %v1702 = vrot.slane %v1688, %v1701
        %v1704 = vunpack.c.l.s4 1966171168
        %v1705 = vunpack.c.0.s8 %v1704
        %v1706 = vlaneseq
        %v1707 = vshrl.u32 %v1706, 7
        %v1708 = vsub.s32 %v1705, %v1707
        %v1709 = vrot.slane %v1345, %v1708
        %v1710 = vcombine.low %v1695, %v1702
        %v1712 = vunpack.c.l.s4 1966171168
        %v1713 = vunpack.c.0.s8 %v1712
        %v1714 = vlaneseq
        %v1715 = vshrl.u32 %v1714, 7
        %v1716 = vsub.s32 %v1713, %v1715
        %v1717 = vrot.slane %v1710, %v1716
        %v1719 = vunpack.c.l.s4 1966171168
        %v1720 = vunpack.c.0.s8 %v1719
        %v1721 = vlaneseq
        %v1722 = vshrl.u32 %v1721, 7
        %v1723 = vsub.s32 %v1720, %v1722
        %v1724 = vrot.slane %v1709, %v1723
        %v1725 = vcombine.low %v1717, %v1724
        %v1730 = vpack.c.bf16 %v1608, %v1608
        %v1731 = vpack.c.bf16 %v1647, %v1647
        %v1732 = vpack.c.bf16 %v1686, %v1686
        %v1733 = vpack.c.bf16 %v1725, %v1725
        %1735 = vrot.lane.b32.xlu0 %v1730, 96
        %v1736 = vpop.permute.xlu0 %1735
        %vm1737 = vcmask 64512
        %v1739 = vsel %vm1737, %v1566, 0
        %v1742 = vsel %vm1737, %v1736, 0
        %1744 = vmatprep.subr.bf16.mxu0 0
        %1745 = vmatpush1.bf16.xpose.msra.mxu0 %v1742
        %1746 = vmatprep.subr.bf16.mxu0 0
        %1747 = vmatpush1.bf16.xpose.msra.mxu0 0
        %1748 = vmatprep.subr.bf16.mxu0 0
        %1749 = vmatpush1.bf16.xpose.msra.mxu0 0
        %1750 = vmatprep.subr.bf16.mxu0 0
        %1751 = vmatpush1.bf16.xpose.msra.mxu0 0
        %1752 = vmatprep.subr.bf16.mxu0 0
        %1753 = vmatpush1.bf16.xpose.msra.mxu0 0
        %1754 = vmatprep.subr.bf16.mxu0 0
        %1755 = vmatpush1.bf16.xpose.msra.mxu0 0
        %1756 = vmatprep.subr.bf16.mxu0 0
        %1757 = vmatpush1.bf16.xpose.msra.mxu0 0
        %1758 = vmatprep.subr.bf16.mxu0 0
        %1759 = vmatpush1.bf16.xpose.msra.mxu0 0
        %1760 = vmatprep.subr.bf16.mxu0 0
        %1761 = vmatpush1.bf16.xpose.msra.mxu0 0
        %1762 = vmatprep.subr.bf16.mxu0 0
        %1763 = vmatpush1.bf16.xpose.msra.mxu0 0
        %1764 = vmatprep.subr.bf16.mxu0 0
        %1765 = vmatpush1.bf16.xpose.msra.mxu0 0
        %1766 = vmatprep.subr.bf16.mxu0 0
        %1767 = vmatpush1.bf16.xpose.msra.mxu0 0
        %1768 = vmatprep.subr.bf16.mxu0 0
        %1769 = vmatpush1.bf16.xpose.msra.mxu0 0
        %1770 = vmatprep.subr.bf16.mxu0 0
        %1771 = vmatpush1.bf16.xpose.msra.mxu0 0
        %1772 = vmatprep.subr.bf16.mxu0 0
        %1773 = vmatpush1.bf16.xpose.msra.mxu0 0
        %1774 = vmatprep.subr.bf16.mxu0 0
        %1775 = vmatpush1.bf16.xpose.msra.mxu0 0
        %1776 = vmatprep.mubr.bf16.mxu0 0
        %1777 = vmatmul.mubr.bf16.gmra.mrb[0].mxu0 %v1739
        %v1778 = vpop.f32.mrb[0].mxu0
        %v1779 = vadd.f32 0.0, %v1778
        %v1780 = vpop.f32.mrb[0].mxu0
        %v1781 = vpop.f32.mrb[0].mxu0
        %v1782 = vpop.f32.mrb[0].mxu0
        %1783 = vdwg.mxu0
        %1785 = vrot.lane.b32.xlu0 %v1731, 96
        %v1786 = vpop.permute.xlu0 %1785
        %v1788 = vsel %vm1737, %v1567, 0
        %v1791 = vsel %vm1737, %v1786, 0
        %1793 = vmatprep.subr.bf16.mxu0 0
        %1794 = vmatpush1.bf16.xpose.msra.mxu0 %v1791
        %1795 = vmatprep.subr.bf16.mxu0 0
        %1796 = vmatpush1.bf16.xpose.msra.mxu0 0
        %1797 = vmatprep.subr.bf16.mxu0 0
        %1798 = vmatpush1.bf16.xpose.msra.mxu0 0
        %1799 = vmatprep.subr.bf16.mxu0 0
        %1800 = vmatpush1.bf16.xpose.msra.mxu0 0
        %1801 = vmatprep.subr.bf16.mxu0 0
        %1802 = vmatpush1.bf16.xpose.msra.mxu0 0
        %1803 = vmatprep.subr.bf16.mxu0 0
        %1804 = vmatpush1.bf16.xpose.msra.mxu0 0
        %1805 = vmatprep.subr.bf16.mxu0 0
        %1806 = vmatpush1.bf16.xpose.msra.mxu0 0
        %1807 = vmatprep.subr.bf16.mxu0 0
        %1808 = vmatpush1.bf16.xpose.msra.mxu0 0
        %1809 = vmatprep.subr.bf16.mxu0 0
        %1810 = vmatpush1.bf16.xpose.msra.mxu0 0
        %1811 = vmatprep.subr.bf16.mxu0 0
        %1812 = vmatpush1.bf16.xpose.msra.mxu0 0
        %1813 = vmatprep.subr.bf16.mxu0 0
        %1814 = vmatpush1.bf16.xpose.msra.mxu0 0
        %1815 = vmatprep.subr.bf16.mxu0 0
        %1816 = vmatpush1.bf16.xpose.msra.mxu0 0
        %1817 = vmatprep.subr.bf16.mxu0 0
        %1818 = vmatpush1.bf16.xpose.msra.mxu0 0
        %1819 = vmatprep.subr.bf16.mxu0 0
        %1820 = vmatpush1.bf16.xpose.msra.mxu0 0
        %1821 = vmatprep.subr.bf16.mxu0 0
        %1822 = vmatpush1.bf16.xpose.msra.mxu0 0
        %1823 = vmatprep.subr.bf16.mxu0 0
        %1824 = vmatpush1.bf16.xpose.msra.mxu0 0
        %1825 = vmatprep.mubr.bf16.mxu0 0
        %1826 = vmatmul.mubr.bf16.gmra.mrb[0].mxu0 %v1788
        %v1827 = vpop.f32.mrb[0].mxu0
        %v1828 = vadd.f32 0.0, %v1827
        %v1829 = vpop.f32.mrb[0].mxu0
        %v1830 = vpop.f32.mrb[0].mxu0
        %v1831 = vpop.f32.mrb[0].mxu0
        %1832 = vdwg.mxu0
        %1834 = vrot.lane.b32.xlu0 %v1732, 96
        %v1835 = vpop.permute.xlu0 %1834
        %v1837 = vsel %vm1737, %v1568, 0
        %v1840 = vsel %vm1737, %v1835, 0
        %1842 = vmatprep.subr.bf16.mxu0 0
        %1843 = vmatpush1.bf16.xpose.msra.mxu0 %v1840
        %1844 = vmatprep.subr.bf16.mxu0 0
        %1845 = vmatpush1.bf16.xpose.msra.mxu0 0
        %1846 = vmatprep.subr.bf16.mxu0 0
        %1847 = vmatpush1.bf16.xpose.msra.mxu0 0
        %1848 = vmatprep.subr.bf16.mxu0 0
        %1849 = vmatpush1.bf16.xpose.msra.mxu0 0
        %1850 = vmatprep.subr.bf16.mxu0 0
        %1851 = vmatpush1.bf16.xpose.msra.mxu0 0
        %1852 = vmatprep.subr.bf16.mxu0 0
        %1853 = vmatpush1.bf16.xpose.msra.mxu0 0
        %1854 = vmatprep.subr.bf16.mxu0 0
        %1855 = vmatpush1.bf16.xpose.msra.mxu0 0
        %1856 = vmatprep.subr.bf16.mxu0 0
        %1857 = vmatpush1.bf16.xpose.msra.mxu0 0
        %1858 = vmatprep.subr.bf16.mxu0 0
        %1859 = vmatpush1.bf16.xpose.msra.mxu0 0
        %1860 = vmatprep.subr.bf16.mxu0 0
        %1861 = vmatpush1.bf16.xpose.msra.mxu0 0
        %1862 = vmatprep.subr.bf16.mxu0 0
        %1863 = vmatpush1.bf16.xpose.msra.mxu0 0
        %1864 = vmatprep.subr.bf16.mxu0 0
        %1865 = vmatpush1.bf16.xpose.msra.mxu0 0
        %1866 = vmatprep.subr.bf16.mxu0 0
        %1867 = vmatpush1.bf16.xpose.msra.mxu0 0
        %1868 = vmatprep.subr.bf16.mxu0 0
        %1869 = vmatpush1.bf16.xpose.msra.mxu0 0
        %1870 = vmatprep.subr.bf16.mxu0 0
        %1871 = vmatpush1.bf16.xpose.msra.mxu0 0
        %1872 = vmatprep.subr.bf16.mxu0 0
        %1873 = vmatpush1.bf16.xpose.msra.mxu0 0
        %1874 = vmatprep.mubr.bf16.mxu0 0
        %1875 = vmatmul.mubr.bf16.gmra.mrb[0].mxu0 %v1837
        %v1876 = vpop.f32.mrb[0].mxu0
        %v1877 = vadd.f32 0.0, %v1876
        %v1878 = vpop.f32.mrb[0].mxu0
        %v1879 = vpop.f32.mrb[0].mxu0
        %v1880 = vpop.f32.mrb[0].mxu0
        %1881 = vdwg.mxu0
        %1883 = vrot.lane.b32.xlu0 %v1733, 96
        %v1884 = vpop.permute.xlu0 %1883
        %v1886 = vsel %vm1737, %v1569, 0
        %v1889 = vsel %vm1737, %v1884, 0
        %1891 = vmatprep.subr.bf16.mxu0 0
        %1892 = vmatpush1.bf16.xpose.msra.mxu0 %v1889
        %1893 = vmatprep.subr.bf16.mxu0 0
        %1894 = vmatpush1.bf16.xpose.msra.mxu0 0
        %1895 = vmatprep.subr.bf16.mxu0 0
        %1896 = vmatpush1.bf16.xpose.msra.mxu0 0
        %1897 = vmatprep.subr.bf16.mxu0 0
        %1898 = vmatpush1.bf16.xpose.msra.mxu0 0
        %1899 = vmatprep.subr.bf16.mxu0 0
        %1900 = vmatpush1.bf16.xpose.msra.mxu0 0
        %1901 = vmatprep.subr.bf16.mxu0 0
        %1902 = vmatpush1.bf16.xpose.msra.mxu0 0
        %1903 = vmatprep.subr.bf16.mxu0 0
        %1904 = vmatpush1.bf16.xpose.msra.mxu0 0
        %1905 = vmatprep.subr.bf16.mxu0 0
        %1906 = vmatpush1.bf16.xpose.msra.mxu0 0
        %1907 = vmatprep.subr.bf16.mxu0 0
        %1908 = vmatpush1.bf16.xpose.msra.mxu0 0
        %1909 = vmatprep.subr.bf16.mxu0 0
        %1910 = vmatpush1.bf16.xpose.msra.mxu0 0
        %1911 = vmatprep.subr.bf16.mxu0 0
        %1912 = vmatpush1.bf16.xpose.msra.mxu0 0
        %1913 = vmatprep.subr.bf16.mxu0 0
        %1914 = vmatpush1.bf16.xpose.msra.mxu0 0
        %1915 = vmatprep.subr.bf16.mxu0 0
        %1916 = vmatpush1.bf16.xpose.msra.mxu0 0
        %1917 = vmatprep.subr.bf16.mxu0 0
        %1918 = vmatpush1.bf16.xpose.msra.mxu0 0
        %1919 = vmatprep.subr.bf16.mxu0 0
        %1920 = vmatpush1.bf16.xpose.msra.mxu0 0
        %1921 = vmatprep.subr.bf16.mxu0 0
        %1922 = vmatpush1.bf16.xpose.msra.mxu0 0
        %1923 = vmatprep.mubr.bf16.mxu0 0
        %1924 = vmatmul.mubr.bf16.gmra.mrb[0].mxu0 %v1886
        %v1925 = vpop.f32.mrb[0].mxu0
        %v1926 = vadd.f32 0.0, %v1925
        %v1927 = vpop.f32.mrb[0].mxu0
        %v1928 = vpop.f32.mrb[0].mxu0
        %v1929 = vpop.f32.mrb[0].mxu0
        %1930 = vdwg.mxu0
        %vm1931 = vcmask 36864
        %v1932 = vsel %vm1931, %v1779, -inf
        %1933 = vmax.xlane.f32.xlu0 %v1932
        %v1934 = vpop.xlane.xlu0 %1933
        %v1935 = vsel %vm1931, %v1828, -inf
        %1936 = vmax.xlane.f32.xlu0 %v1935
        %v1937 = vpop.xlane.xlu0 %1936
        %v1938 = vsel %vm1931, %v1877, -inf
        %1939 = vmax.xlane.f32.xlu0 %v1938
        %v1940 = vpop.xlane.xlu0 %1939
        %v1941 = vsel %vm1931, %v1926, -inf
        %1942 = vmax.xlane.f32.xlu0 %v1941
        %v1943 = vpop.xlane.xlu0 %1942
        %v1944 = vsub.f32 %v1779, %v1934
        %v1945 = vsub.f32 %v1828, %v1937
        %v1946 = vsub.f32 %v1877, %v1940
        %v1947 = vsub.f32 %v1926, %v1943
        %v1948 = vmul.f32 %v1944, 1.442695
        %v1949 = vpow.pop %v1948
        %v1950 = vmul.f32 %v1945, 1.442695
        %v1951 = vpow.pop %v1950
        %v1952 = vmul.f32 %v1946, 1.442695
        %v1953 = vpow.pop %v1952
        %v1954 = vmul.f32 %v1947, 1.442695
        %v1955 = vpow.pop %v1954
        %v1956 = vsel %vm1931, %v1949, 0.0
        %1957 = vadd.xlane.f32.xlu0 %v1956
        %v1958 = vpop.xlane.xlu0 %1957
        %v1959 = vsel %vm1931, %v1951, 0.0
        %1960 = vadd.xlane.f32.xlu0 %v1959
        %v1961 = vpop.xlane.xlu0 %1960
        %v1962 = vsel %vm1931, %v1953, 0.0
        %1963 = vadd.xlane.f32.xlu0 %v1962
        %v1964 = vpop.xlane.xlu0 %1963
        %v1965 = vsel %vm1931, %v1955, 0.0
        %1966 = vadd.xlane.f32.xlu0 %v1965
        %v1967 = vpop.xlane.xlu0 %1966
        %v1968 = vrcp.pop %v1958
        %v1969 = vrcp.pop %v1961
        %v1970 = vrcp.pop %v1964
        %v1971 = vrcp.pop %v1967
        %v1972 = vmul.f32 %v1949, %v1968
        %v1973 = vmul.f32 %v1951, %v1969
        %v1974 = vmul.f32 %v1953, %v1970
        %v1975 = vmul.f32 %v1955, %v1971
        %v1976 = vpack.c.bf16 %v1972, %v1972
        %v1977 = vpack.c.bf16 %v1973, %v1973
        %v1978 = vpack.c.bf16 %v1974, %v1974
        %v1979 = vpack.c.bf16 %v1975, %v1975
        %1980 = vrot.lane.b32.xlu0 %v1730, 64
        %v1981 = vpop.permute.xlu0 %1980
        %vm1982 = vcmask 39936
        %v1984 = vsel %vm1982, %v1976, 0
        %vm1986 = vcmask 1041408
        %vm1987 = vcmask 1042432
        %v1988 = vsel %vm1986, 4294967295, 65535
        %v1989 = vsel %vm1987, %v1988, 0
        %v1991 = vand.u32 %v1981, %v1989
        %1993 = vmatprep.subr.bf16.mxu0 0
        %1994 = vmatpush1.bf16.msra.mxu0 %v1991
        %1995 = vmatprep.subr.bf16.mxu0 0
        %1996 = vmatpush1.bf16.msra.mxu0 0
        %1997 = vmatprep.subr.bf16.mxu0 0
        %1998 = vmatpush1.bf16.msra.mxu0 0
        %1999 = vmatprep.subr.bf16.mxu0 0
        %2000 = vmatpush1.bf16.msra.mxu0 0
        %2001 = vmatprep.subr.bf16.mxu0 0
        %2002 = vmatpush1.bf16.msra.mxu0 0
        %2003 = vmatprep.subr.bf16.mxu0 0
        %2004 = vmatpush1.bf16.msra.mxu0 0
        %2005 = vmatprep.subr.bf16.mxu0 0
        %2006 = vmatpush1.bf16.msra.mxu0 0
        %2007 = vmatprep.subr.bf16.mxu0 0
        %2008 = vmatpush1.bf16.msra.mxu0 0
        %2009 = vmatprep.subr.bf16.mxu0 0
        %2010 = vmatpush1.bf16.msra.mxu0 0
        %2011 = vmatprep.subr.bf16.mxu0 0
        %2012 = vmatpush1.bf16.msra.mxu0 0
        %2013 = vmatprep.subr.bf16.mxu0 0
        %2014 = vmatpush1.bf16.msra.mxu0 0
        %2015 = vmatprep.subr.bf16.mxu0 0
        %2016 = vmatpush1.bf16.msra.mxu0 0
        %2017 = vmatprep.subr.bf16.mxu0 0
        %2018 = vmatpush1.bf16.msra.mxu0 0
        %2019 = vmatprep.subr.bf16.mxu0 0
        %2020 = vmatpush1.bf16.msra.mxu0 0
        %2021 = vmatprep.subr.bf16.mxu0 0
        %2022 = vmatpush1.bf16.msra.mxu0 0
        %2023 = vmatprep.subr.bf16.mxu0 0
        %2024 = vmatpush1.bf16.msra.mxu0 0
        %2025 = vmatprep.mubr.bf16.mxu0 0
        %2026 = vmatmul.mubr.bf16.gmra.mrb[0].mxu0 %v1984
        %v2027 = vpop.f32.mrb[0].mxu0
        %v2028 = vadd.f32 0.0, %v2027
        %v2029 = vpop.f32.mrb[0].mxu0
        %v2030 = vpop.f32.mrb[0].mxu0
        %v2031 = vpop.f32.mrb[0].mxu0
        %2032 = vdwg.mxu0
        %2033 = vrot.lane.b32.xlu0 %v1731, 64
        %v2034 = vpop.permute.xlu0 %2033
        %v2036 = vsel %vm1982, %v1977, 0
        %v2039 = vand.u32 %v2034, %v1989
        %2041 = vmatprep.subr.bf16.mxu0 0
        %2042 = vmatpush1.bf16.msra.mxu0 %v2039
        %2043 = vmatprep.subr.bf16.mxu0 0
        %2044 = vmatpush1.bf16.msra.mxu0 0
        %2045 = vmatprep.subr.bf16.mxu0 0
        %2046 = vmatpush1.bf16.msra.mxu0 0
        %2047 = vmatprep.subr.bf16.mxu0 0
        %2048 = vmatpush1.bf16.msra.mxu0 0
        %2049 = vmatprep.subr.bf16.mxu0 0
        %2050 = vmatpush1.bf16.msra.mxu0 0
        %2051 = vmatprep.subr.bf16.mxu0 0
        %2052 = vmatpush1.bf16.msra.mxu0 0
        %2053 = vmatprep.subr.bf16.mxu0 0
        %2054 = vmatpush1.bf16.msra.mxu0 0
        %2055 = vmatprep.subr.bf16.mxu0 0
        %2056 = vmatpush1.bf16.msra.mxu0 0
        %2057 = vmatprep.subr.bf16.mxu0 0
        %2058 = vmatpush1.bf16.msra.mxu0 0
        %2059 = vmatprep.subr.bf16.mxu0 0
        %2060 = vmatpush1.bf16.msra.mxu0 0
        %2061 = vmatprep.subr.bf16.mxu0 0
        %2062 = vmatpush1.bf16.msra.mxu0 0
        %2063 = vmatprep.subr.bf16.mxu0 0
        %2064 = vmatpush1.bf16.msra.mxu0 0
        %2065 = vmatprep.subr.bf16.mxu0 0
        %2066 = vmatpush1.bf16.msra.mxu0 0
        %2067 = vmatprep.subr.bf16.mxu0 0
        %2068 = vmatpush1.bf16.msra.mxu0 0
        %2069 = vmatprep.subr.bf16.mxu0 0
        %2070 = vmatpush1.bf16.msra.mxu0 0
        %2071 = vmatprep.subr.bf16.mxu0 0
        %2072 = vmatpush1.bf16.msra.mxu0 0
        %2073 = vmatprep.mubr.bf16.mxu0 0
        %2074 = vmatmul.mubr.bf16.gmra.mrb[0].mxu0 %v2036
        %v2075 = vpop.f32.mrb[0].mxu0
        %v2076 = vadd.f32 0.0, %v2075
        %v2077 = vpop.f32.mrb[0].mxu0
        %v2078 = vpop.f32.mrb[0].mxu0
        %v2079 = vpop.f32.mrb[0].mxu0
        %2080 = vdwg.mxu0
        %2081 = vrot.lane.b32.xlu0 %v1732, 64
        %v2082 = vpop.permute.xlu0 %2081
        %v2084 = vsel %vm1982, %v1978, 0
        %v2087 = vand.u32 %v2082, %v1989
        %2089 = vmatprep.subr.bf16.mxu0 0
        %2090 = vmatpush1.bf16.msra.mxu0 %v2087
        %2091 = vmatprep.subr.bf16.mxu0 0
        %2092 = vmatpush1.bf16.msra.mxu0 0
        %2093 = vmatprep.subr.bf16.mxu0 0
        %2094 = vmatpush1.bf16.msra.mxu0 0
        %2095 = vmatprep.subr.bf16.mxu0 0
        %2096 = vmatpush1.bf16.msra.mxu0 0
        %2097 = vmatprep.subr.bf16.mxu0 0
        %2098 = vmatpush1.bf16.msra.mxu0 0
        %2099 = vmatprep.subr.bf16.mxu0 0
        %2100 = vmatpush1.bf16.msra.mxu0 0
        %2101 = vmatprep.subr.bf16.mxu0 0
        %2102 = vmatpush1.bf16.msra.mxu0 0
        %2103 = vmatprep.subr.bf16.mxu0 0
        %2104 = vmatpush1.bf16.msra.mxu0 0
        %2105 = vmatprep.subr.bf16.mxu0 0
        %2106 = vmatpush1.bf16.msra.mxu0 0
        %2107 = vmatprep.subr.bf16.mxu0 0
        %2108 = vmatpush1.bf16.msra.mxu0 0
        %2109 = vmatprep.subr.bf16.mxu0 0
        %2110 = vmatpush1.bf16.msra.mxu0 0
        %2111 = vmatprep.subr.bf16.mxu0 0
        %2112 = vmatpush1.bf16.msra.mxu0 0
        %2113 = vmatprep.subr.bf16.mxu0 0
        %2114 = vmatpush1.bf16.msra.mxu0 0
        %2115 = vmatprep.subr.bf16.mxu0 0
        %2116 = vmatpush1.bf16.msra.mxu0 0
        %2117 = vmatprep.subr.bf16.mxu0 0
        %2118 = vmatpush1.bf16.msra.mxu0 0
        %2119 = vmatprep.subr.bf16.mxu0 0
        %2120 = vmatpush1.bf16.msra.mxu0 0
        %2121 = vmatprep.mubr.bf16.mxu0 0
        %2122 = vmatmul.mubr.bf16.gmra.mrb[0].mxu0 %v2084
        %v2123 = vpop.f32.mrb[0].mxu0
        %v2124 = vadd.f32 0.0, %v2123
        %v2125 = vpop.f32.mrb[0].mxu0
        %v2126 = vpop.f32.mrb[0].mxu0
        %v2127 = vpop.f32.mrb[0].mxu0
        %2128 = vdwg.mxu0
        %2129 = vrot.lane.b32.xlu0 %v1733, 64
        %v2130 = vpop.permute.xlu0 %2129
        %v2132 = vsel %vm1982, %v1979, 0
        %v2135 = vand.u32 %v2130, %v1989
        %2137 = vmatprep.subr.bf16.mxu0 0
        %2138 = vmatpush1.bf16.msra.mxu0 %v2135
        %2139 = vmatprep.subr.bf16.mxu0 0
        %2140 = vmatpush1.bf16.msra.mxu0 0
        %2141 = vmatprep.subr.bf16.mxu0 0
        %2142 = vmatpush1.bf16.msra.mxu0 0
        %2143 = vmatprep.subr.bf16.mxu0 0
        %2144 = vmatpush1.bf16.msra.mxu0 0
        %2145 = vmatprep.subr.bf16.mxu0 0
        %2146 = vmatpush1.bf16.msra.mxu0 0
        %2147 = vmatprep.subr.bf16.mxu0 0
        %2148 = vmatpush1.bf16.msra.mxu0 0
        %2149 = vmatprep.subr.bf16.mxu0 0
        %2150 = vmatpush1.bf16.msra.mxu0 0
        %2151 = vmatprep.subr.bf16.mxu0 0
        %2152 = vmatpush1.bf16.msra.mxu0 0
        %2153 = vmatprep.subr.bf16.mxu0 0
        %2154 = vmatpush1.bf16.msra.mxu0 0
        %2155 = vmatprep.subr.bf16.mxu0 0
        %2156 = vmatpush1.bf16.msra.mxu0 0
        %2157 = vmatprep.subr.bf16.mxu0 0
        %2158 = vmatpush1.bf16.msra.mxu0 0
        %2159 = vmatprep.subr.bf16.mxu0 0
        %2160 = vmatpush1.bf16.msra.mxu0 0
        %2161 = vmatprep.subr.bf16.mxu0 0
        %2162 = vmatpush1.bf16.msra.mxu0 0
        %2163 = vmatprep.subr.bf16.mxu0 0
        %2164 = vmatpush1.bf16.msra.mxu0 0
        %2165 = vmatprep.subr.bf16.mxu0 0
        %2166 = vmatpush1.bf16.msra.mxu0 0
        %2167 = vmatprep.subr.bf16.mxu0 0
        %2168 = vmatpush1.bf16.msra.mxu0 0
        %2169 = vmatprep.mubr.bf16.mxu0 0
        %2170 = vmatmul.mubr.bf16.gmra.mrb[0].mxu0 %v2132
        %v2171 = vpop.f32.mrb[0].mxu0
        %v2172 = vadd.f32 0.0, %v2171
        %v2173 = vpop.f32.mrb[0].mxu0
        %v2174 = vpop.f32.mrb[0].mxu0
        %v2175 = vpop.f32.mrb[0].mxu0
        %2176 = vdwg.mxu0
        %2178 = vrot.lane.b32.xlu0 %v1566, 120
        %v2179 = vpop.permute.xlu0 %2178
        %2180 = vrot.lane.b32.xlu0 %v1730, 88
        %v2181 = vpop.permute.xlu0 %2180
        %v2183 = vsel %vm1737, %v2179, 0
        %v2186 = vsel %vm1737, %v2181, 0
        %2188 = vmatprep.subr.bf16.mxu0 0
        %2189 = vmatpush1.bf16.xpose.msra.mxu0 %v2186
        %2190 = vmatprep.subr.bf16.mxu0 0
        %2191 = vmatpush1.bf16.xpose.msra.mxu0 0
        %2192 = vmatprep.subr.bf16.mxu0 0
        %2193 = vmatpush1.bf16.xpose.msra.mxu0 0
        %2194 = vmatprep.subr.bf16.mxu0 0
        %2195 = vmatpush1.bf16.xpose.msra.mxu0 0
        %2196 = vmatprep.subr.bf16.mxu0 0
        %2197 = vmatpush1.bf16.xpose.msra.mxu0 0
        %2198 = vmatprep.subr.bf16.mxu0 0
        %2199 = vmatpush1.bf16.xpose.msra.mxu0 0
        %2200 = vmatprep.subr.bf16.mxu0 0
        %2201 = vmatpush1.bf16.xpose.msra.mxu0 0
        %2202 = vmatprep.subr.bf16.mxu0 0
        %2203 = vmatpush1.bf16.xpose.msra.mxu0 0
        %2204 = vmatprep.subr.bf16.mxu0 0
        %2205 = vmatpush1.bf16.xpose.msra.mxu0 0
        %2206 = vmatprep.subr.bf16.mxu0 0
        %2207 = vmatpush1.bf16.xpose.msra.mxu0 0
        %2208 = vmatprep.subr.bf16.mxu0 0
        %2209 = vmatpush1.bf16.xpose.msra.mxu0 0
        %2210 = vmatprep.subr.bf16.mxu0 0
        %2211 = vmatpush1.bf16.xpose.msra.mxu0 0
        %2212 = vmatprep.subr.bf16.mxu0 0
        %2213 = vmatpush1.bf16.xpose.msra.mxu0 0
        %2214 = vmatprep.subr.bf16.mxu0 0
        %2215 = vmatpush1.bf16.xpose.msra.mxu0 0
        %2216 = vmatprep.subr.bf16.mxu0 0
        %2217 = vmatpush1.bf16.xpose.msra.mxu0 0
        %2218 = vmatprep.subr.bf16.mxu0 0
        %2219 = vmatpush1.bf16.xpose.msra.mxu0 0
        %2220 = vmatprep.mubr.bf16.mxu0 0
        %2221 = vmatmul.mubr.bf16.gmra.mrb[0].mxu0 %v2183
        %v2222 = vpop.f32.mrb[0].mxu0
        %v2223 = vadd.f32 0.0, %v2222
        %v2224 = vpop.f32.mrb[0].mxu0
        %v2225 = vpop.f32.mrb[0].mxu0
        %v2226 = vpop.f32.mrb[0].mxu0
        %2227 = vdwg.mxu0
        %2229 = vrot.lane.b32.xlu0 %v1567, 120
        %v2230 = vpop.permute.xlu0 %2229
        %2231 = vrot.lane.b32.xlu0 %v1731, 88
        %v2232 = vpop.permute.xlu0 %2231
        %v2234 = vsel %vm1737, %v2230, 0
        %v2237 = vsel %vm1737, %v2232, 0
        %2239 = vmatprep.subr.bf16.mxu0 0
        %2240 = vmatpush1.bf16.xpose.msra.mxu0 %v2237
        %2241 = vmatprep.subr.bf16.mxu0 0
        %2242 = vmatpush1.bf16.xpose.msra.mxu0 0
        %2243 = vmatprep.subr.bf16.mxu0 0
        %2244 = vmatpush1.bf16.xpose.msra.mxu0 0
        %2245 = vmatprep.subr.bf16.mxu0 0
        %2246 = vmatpush1.bf16.xpose.msra.mxu0 0
        %2247 = vmatprep.subr.bf16.mxu0 0
        %2248 = vmatpush1.bf16.xpose.msra.mxu0 0
        %2249 = vmatprep.subr.bf16.mxu0 0
        %2250 = vmatpush1.bf16.xpose.msra.mxu0 0
        %2251 = vmatprep.subr.bf16.mxu0 0
        %2252 = vmatpush1.bf16.xpose.msra.mxu0 0
        %2253 = vmatprep.subr.bf16.mxu0 0
        %2254 = vmatpush1.bf16.xpose.msra.mxu0 0
        %2255 = vmatprep.subr.bf16.mxu0 0
        %2256 = vmatpush1.bf16.xpose.msra.mxu0 0
        %2257 = vmatprep.subr.bf16.mxu0 0
        %2258 = vmatpush1.bf16.xpose.msra.mxu0 0
        %2259 = vmatprep.subr.bf16.mxu0 0
        %2260 = vmatpush1.bf16.xpose.msra.mxu0 0
        %2261 = vmatprep.subr.bf16.mxu0 0
        %2262 = vmatpush1.bf16.xpose.msra.mxu0 0
        %2263 = vmatprep.subr.bf16.mxu0 0
        %2264 = vmatpush1.bf16.xpose.msra.mxu0 0
        %2265 = vmatprep.subr.bf16.mxu0 0
        %2266 = vmatpush1.bf16.xpose.msra.mxu0 0
        %2267 = vmatprep.subr.bf16.mxu0 0
        %2268 = vmatpush1.bf16.xpose.msra.mxu0 0
        %2269 = vmatprep.subr.bf16.mxu0 0
        %2270 = vmatpush1.bf16.xpose.msra.mxu0 0
        %2271 = vmatprep.mubr.bf16.mxu0 0
        %2272 = vmatmul.mubr.bf16.gmra.mrb[0].mxu0 %v2234
        %v2273 = vpop.f32.mrb[0].mxu0
        %v2274 = vadd.f32 0.0, %v2273
        %v2275 = vpop.f32.mrb[0].mxu0
        %v2276 = vpop.f32.mrb[0].mxu0
        %v2277 = vpop.f32.mrb[0].mxu0
        %2278 = vdwg.mxu0
        %2280 = vrot.lane.b32.xlu0 %v1568, 120
        %v2281 = vpop.permute.xlu0 %2280
        %2282 = vrot.lane.b32.xlu0 %v1732, 88
        %v2283 = vpop.permute.xlu0 %2282
        %v2285 = vsel %vm1737, %v2281, 0
        %v2288 = vsel %vm1737, %v2283, 0
        %2290 = vmatprep.subr.bf16.mxu0 0
        %2291 = vmatpush1.bf16.xpose.msra.mxu0 %v2288
        %2292 = vmatprep.subr.bf16.mxu0 0
        %2293 = vmatpush1.bf16.xpose.msra.mxu0 0
        %2294 = vmatprep.subr.bf16.mxu0 0
        %2295 = vmatpush1.bf16.xpose.msra.mxu0 0
        %2296 = vmatprep.subr.bf16.mxu0 0
        %2297 = vmatpush1.bf16.xpose.msra.mxu0 0
        %2298 = vmatprep.subr.bf16.mxu0 0
        %2299 = vmatpush1.bf16.xpose.msra.mxu0 0
        %2300 = vmatprep.subr.bf16.mxu0 0
        %2301 = vmatpush1.bf16.xpose.msra.mxu0 0
        %2302 = vmatprep.subr.bf16.mxu0 0
        %2303 = vmatpush1.bf16.xpose.msra.mxu0 0
        %2304 = vmatprep.subr.bf16.mxu0 0
        %2305 = vmatpush1.bf16.xpose.msra.mxu0 0
        %2306 = vmatprep.subr.bf16.mxu0 0
        %2307 = vmatpush1.bf16.xpose.msra.mxu0 0
        %2308 = vmatprep.subr.bf16.mxu0 0
        %2309 = vmatpush1.bf16.xpose.msra.mxu0 0
        %2310 = vmatprep.subr.bf16.mxu0 0
        %2311 = vmatpush1.bf16.xpose.msra.mxu0 0
        %2312 = vmatprep.subr.bf16.mxu0 0
        %2313 = vmatpush1.bf16.xpose.msra.mxu0 0
        %2314 = vmatprep.subr.bf16.mxu0 0
        %2315 = vmatpush1.bf16.xpose.msra.mxu0 0
        %2316 = vmatprep.subr.bf16.mxu0 0
        %2317 = vmatpush1.bf16.xpose.msra.mxu0 0
        %2318 = vmatprep.subr.bf16.mxu0 0
        %2319 = vmatpush1.bf16.xpose.msra.mxu0 0
        %2320 = vmatprep.subr.bf16.mxu0 0
        %2321 = vmatpush1.bf16.xpose.msra.mxu0 0
        %2322 = vmatprep.mubr.bf16.mxu0 0
        %2323 = vmatmul.mubr.bf16.gmra.mrb[0].mxu0 %v2285
        %v2324 = vpop.f32.mrb[0].mxu0
        %v2325 = vadd.f32 0.0, %v2324
        %v2326 = vpop.f32.mrb[0].mxu0
        %v2327 = vpop.f32.mrb[0].mxu0
        %v2328 = vpop.f32.mrb[0].mxu0
        %2329 = vdwg.mxu0
        %2331 = vrot.lane.b32.xlu0 %v1569, 120
        %v2332 = vpop.permute.xlu0 %2331
        %2333 = vrot.lane.b32.xlu0 %v1733, 88
        %v2334 = vpop.permute.xlu0 %2333
        %v2336 = vsel %vm1737, %v2332, 0
        %v2339 = vsel %vm1737, %v2334, 0
        %2341 = vmatprep.subr.bf16.mxu0 0
        %2342 = vmatpush1.bf16.xpose.msra.mxu0 %v2339
        %2343 = vmatprep.subr.bf16.mxu0 0
        %2344 = vmatpush1.bf16.xpose.msra.mxu0 0
        %2345 = vmatprep.subr.bf16.mxu0 0
        %2346 = vmatpush1.bf16.xpose.msra.mxu0 0
        %2347 = vmatprep.subr.bf16.mxu0 0
        %2348 = vmatpush1.bf16.xpose.msra.mxu0 0
        %2349 = vmatprep.subr.bf16.mxu0 0
        %2350 = vmatpush1.bf16.xpose.msra.mxu0 0
        %2351 = vmatprep.subr.bf16.mxu0 0
        %2352 = vmatpush1.bf16.xpose.msra.mxu0 0
        %2353 = vmatprep.subr.bf16.mxu0 0
        %2354 = vmatpush1.bf16.xpose.msra.mxu0 0
        %2355 = vmatprep.subr.bf16.mxu0 0
        %2356 = vmatpush1.bf16.xpose.msra.mxu0 0
        %2357 = vmatprep.subr.bf16.mxu0 0
        %2358 = vmatpush1.bf16.xpose.msra.mxu0 0
        %2359 = vmatprep.subr.bf16.mxu0 0
        %2360 = vmatpush1.bf16.xpose.msra.mxu0 0
        %2361 = vmatprep.subr.bf16.mxu0 0
        %2362 = vmatpush1.bf16.xpose.msra.mxu0 0
        %2363 = vmatprep.subr.bf16.mxu0 0
        %2364 = vmatpush1.bf16.xpose.msra.mxu0 0
        %2365 = vmatprep.subr.bf16.mxu0 0
        %2366 = vmatpush1.bf16.xpose.msra.mxu0 0
        %2367 = vmatprep.subr.bf16.mxu0 0
        %2368 = vmatpush1.bf16.xpose.msra.mxu0 0
        %2369 = vmatprep.subr.bf16.mxu0 0
        %2370 = vmatpush1.bf16.xpose.msra.mxu0 0
        %2371 = vmatprep.subr.bf16.mxu0 0
        %2372 = vmatpush1.bf16.xpose.msra.mxu0 0
        %2373 = vmatprep.mubr.bf16.mxu0 0
        %2374 = vmatmul.mubr.bf16.gmra.mrb[0].mxu0 %v2336
        %v2375 = vpop.f32.mrb[0].mxu0
        %v2376 = vadd.f32 0.0, %v2375
        %v2377 = vpop.f32.mrb[0].mxu0
        %v2378 = vpop.f32.mrb[0].mxu0
        %v2379 = vpop.f32.mrb[0].mxu0
        %2380 = vdwg.mxu0
        %v2381 = vsel %vm1931, %v2223, -inf
        %2382 = vmax.xlane.f32.xlu0 %v2381
        %v2383 = vpop.xlane.xlu0 %2382
        %v2384 = vsel %vm1931, %v2274, -inf
        %2385 = vmax.xlane.f32.xlu0 %v2384
        %v2386 = vpop.xlane.xlu0 %2385
        %v2387 = vsel %vm1931, %v2325, -inf
        %2388 = vmax.xlane.f32.xlu0 %v2387
        %v2389 = vpop.xlane.xlu0 %2388
        %v2390 = vsel %vm1931, %v2376, -inf
        %2391 = vmax.xlane.f32.xlu0 %v2390
        %v2392 = vpop.xlane.xlu0 %2391
        %v2393 = vsub.f32 %v2223, %v2383
        %v2394 = vsub.f32 %v2274, %v2386
        %v2395 = vsub.f32 %v2325, %v2389
        %v2396 = vsub.f32 %v2376, %v2392
        %v2397 = vmul.f32 %v2393, 1.442695
        %v2398 = vpow.pop %v2397
        %v2399 = vmul.f32 %v2394, 1.442695
        %v2400 = vpow.pop %v2399
        %v2401 = vmul.f32 %v2395, 1.442695
        %v2402 = vpow.pop %v2401
        %v2403 = vmul.f32 %v2396, 1.442695
        %v2404 = vpow.pop %v2403
        %v2405 = vsel %vm1931, %v2398, 0.0
        %2406 = vadd.xlane.f32.xlu0 %v2405
        %v2407 = vpop.xlane.xlu0 %2406
        %v2408 = vsel %vm1931, %v2400, 0.0
        %2409 = vadd.xlane.f32.xlu0 %v2408
        %v2410 = vpop.xlane.xlu0 %2409
        %v2411 = vsel %vm1931, %v2402, 0.0
        %2412 = vadd.xlane.f32.xlu0 %v2411
        %v2413 = vpop.xlane.xlu0 %2412
        %v2414 = vsel %vm1931, %v2404, 0.0
        %2415 = vadd.xlane.f32.xlu0 %v2414
        %v2416 = vpop.xlane.xlu0 %2415
        %v2417 = vrcp.pop %v2407
        %v2418 = vrcp.pop %v2410
        %v2419 = vrcp.pop %v2413
        %v2420 = vrcp.pop %v2416
        %v2421 = vmul.f32 %v2398, %v2417
        %v2422 = vmul.f32 %v2400, %v2418
        %v2423 = vmul.f32 %v2402, %v2419
        %v2424 = vmul.f32 %v2404, %v2420
        %v2425 = vpack.c.bf16 %v2421, %v2421
        %v2426 = vpack.c.bf16 %v2422, %v2422
        %v2427 = vpack.c.bf16 %v2423, %v2423
        %v2428 = vpack.c.bf16 %v2424, %v2424
        %2429 = vrot.lane.b32.xlu0 %v1730, 56
        %v2430 = vpop.permute.xlu0 %2429
        %v2432 = vsel %vm1982, %v2425, 0
        %v2435 = vand.u32 %v2430, %v1989
        %2437 = vmatprep.subr.bf16.mxu0 0
        %2438 = vmatpush1.bf16.msra.mxu0 %v2435
        %2439 = vmatprep.subr.bf16.mxu0 0
        %2440 = vmatpush1.bf16.msra.mxu0 0
        %2441 = vmatprep.subr.bf16.mxu0 0
        %2442 = vmatpush1.bf16.msra.mxu0 0
        %2443 = vmatprep.subr.bf16.mxu0 0
        %2444 = vmatpush1.bf16.msra.mxu0 0
        %2445 = vmatprep.subr.bf16.mxu0 0
        %2446 = vmatpush1.bf16.msra.mxu0 0
        %2447 = vmatprep.subr.bf16.mxu0 0
        %2448 = vmatpush1.bf16.msra.mxu0 0
        %2449 = vmatprep.subr.bf16.mxu0 0
        %2450 = vmatpush1.bf16.msra.mxu0 0
        %2451 = vmatprep.subr.bf16.mxu0 0
        %2452 = vmatpush1.bf16.msra.mxu0 0
        %2453 = vmatprep.subr.bf16.mxu0 0
        %2454 = vmatpush1.bf16.msra.mxu0 0
        %2455 = vmatprep.subr.bf16.mxu0 0
        %2456 = vmatpush1.bf16.msra.mxu0 0
        %2457 = vmatprep.subr.bf16.mxu0 0
        %2458 = vmatpush1.bf16.msra.mxu0 0
        %2459 = vmatprep.subr.bf16.mxu0 0
        %2460 = vmatpush1.bf16.msra.mxu0 0
        %2461 = vmatprep.subr.bf16.mxu0 0
        %2462 = vmatpush1.bf16.msra.mxu0 0
        %2463 = vmatprep.subr.bf16.mxu0 0
        %2464 = vmatpush1.bf16.msra.mxu0 0
        %2465 = vmatprep.subr.bf16.mxu0 0
        %2466 = vmatpush1.bf16.msra.mxu0 0
        %2467 = vmatprep.subr.bf16.mxu0 0
        %2468 = vmatpush1.bf16.msra.mxu0 0
        %2469 = vmatprep.mubr.bf16.mxu0 0
        %2470 = vmatmul.mubr.bf16.gmra.mrb[0].mxu0 %v2432
        %v2471 = vpop.f32.mrb[0].mxu0
        %v2472 = vadd.f32 0.0, %v2471
        %v2473 = vpop.f32.mrb[0].mxu0
        %v2474 = vpop.f32.mrb[0].mxu0
        %v2475 = vpop.f32.mrb[0].mxu0
        %2476 = vdwg.mxu0
        %2477 = vrot.lane.b32.xlu0 %v1731, 56
        %v2478 = vpop.permute.xlu0 %2477
        %v2480 = vsel %vm1982, %v2426, 0
        %v2483 = vand.u32 %v2478, %v1989
        %2485 = vmatprep.subr.bf16.mxu0 0
        %2486 = vmatpush1.bf16.msra.mxu0 %v2483
        %2487 = vmatprep.subr.bf16.mxu0 0
        %2488 = vmatpush1.bf16.msra.mxu0 0
        %2489 = vmatprep.subr.bf16.mxu0 0
        %2490 = vmatpush1.bf16.msra.mxu0 0
        %2491 = vmatprep.subr.bf16.mxu0 0
        %2492 = vmatpush1.bf16.msra.mxu0 0
        %2493 = vmatprep.subr.bf16.mxu0 0
        %2494 = vmatpush1.bf16.msra.mxu0 0
        %2495 = vmatprep.subr.bf16.mxu0 0
        %2496 = vmatpush1.bf16.msra.mxu0 0
        %2497 = vmatprep.subr.bf16.mxu0 0
        %2498 = vmatpush1.bf16.msra.mxu0 0
        %2499 = vmatprep.subr.bf16.mxu0 0
        %2500 = vmatpush1.bf16.msra.mxu0 0
        %2501 = vmatprep.subr.bf16.mxu0 0
        %2502 = vmatpush1.bf16.msra.mxu0 0
        %2503 = vmatprep.subr.bf16.mxu0 0
        %2504 = vmatpush1.bf16.msra.mxu0 0
        %2505 = vmatprep.subr.bf16.mxu0 0
        %2506 = vmatpush1.bf16.msra.mxu0 0
        %2507 = vmatprep.subr.bf16.mxu0 0
        %2508 = vmatpush1.bf16.msra.mxu0 0
        %2509 = vmatprep.subr.bf16.mxu0 0
        %2510 = vmatpush1.bf16.msra.mxu0 0
        %2511 = vmatprep.subr.bf16.mxu0 0
        %2512 = vmatpush1.bf16.msra.mxu0 0
        %2513 = vmatprep.subr.bf16.mxu0 0
        %2514 = vmatpush1.bf16.msra.mxu0 0
        %2515 = vmatprep.subr.bf16.mxu0 0
        %2516 = vmatpush1.bf16.msra.mxu0 0
        %2517 = vmatprep.mubr.bf16.mxu0 0
        %2518 = vmatmul.mubr.bf16.gmra.mrb[0].mxu0 %v2480
        %v2519 = vpop.f32.mrb[0].mxu0
        %v2520 = vadd.f32 0.0, %v2519
        %v2521 = vpop.f32.mrb[0].mxu0
        %v2522 = vpop.f32.mrb[0].mxu0
        %v2523 = vpop.f32.mrb[0].mxu0
        %2524 = vdwg.mxu0
        %2525 = vrot.lane.b32.xlu0 %v1732, 56
        %v2526 = vpop.permute.xlu0 %2525
        %v2528 = vsel %vm1982, %v2427, 0
        %v2531 = vand.u32 %v2526, %v1989
        %2533 = vmatprep.subr.bf16.mxu0 0
        %2534 = vmatpush1.bf16.msra.mxu0 %v2531
        %2535 = vmatprep.subr.bf16.mxu0 0
        %2536 = vmatpush1.bf16.msra.mxu0 0
        %2537 = vmatprep.subr.bf16.mxu0 0
        %2538 = vmatpush1.bf16.msra.mxu0 0
        %2539 = vmatprep.subr.bf16.mxu0 0
        %2540 = vmatpush1.bf16.msra.mxu0 0
        %2541 = vmatprep.subr.bf16.mxu0 0
        %2542 = vmatpush1.bf16.msra.mxu0 0
        %2543 = vmatprep.subr.bf16.mxu0 0
        %2544 = vmatpush1.bf16.msra.mxu0 0
        %2545 = vmatprep.subr.bf16.mxu0 0
        %2546 = vmatpush1.bf16.msra.mxu0 0
        %2547 = vmatprep.subr.bf16.mxu0 0
        %2548 = vmatpush1.bf16.msra.mxu0 0
        %2549 = vmatprep.subr.bf16.mxu0 0
        %2550 = vmatpush1.bf16.msra.mxu0 0
        %2551 = vmatprep.subr.bf16.mxu0 0
        %2552 = vmatpush1.bf16.msra.mxu0 0
        %2553 = vmatprep.subr.bf16.mxu0 0
        %2554 = vmatpush1.bf16.msra.mxu0 0
        %2555 = vmatprep.subr.bf16.mxu0 0
        %2556 = vmatpush1.bf16.msra.mxu0 0
        %2557 = vmatprep.subr.bf16.mxu0 0
        %2558 = vmatpush1.bf16.msra.mxu0 0
        %2559 = vmatprep.subr.bf16.mxu0 0
        %2560 = vmatpush1.bf16.msra.mxu0 0
        %2561 = vmatprep.subr.bf16.mxu0 0
        %2562 = vmatpush1.bf16.msra.mxu0 0
        %2563 = vmatprep.subr.bf16.mxu0 0
        %2564 = vmatpush1.bf16.msra.mxu0 0
        %2565 = vmatprep.mubr.bf16.mxu0 0
        %2566 = vmatmul.mubr.bf16.gmra.mrb[0].mxu0 %v2528
        %v2567 = vpop.f32.mrb[0].mxu0
        %v2568 = vadd.f32 0.0, %v2567
        %v2569 = vpop.f32.mrb[0].mxu0
        %v2570 = vpop.f32.mrb[0].mxu0
        %v2571 = vpop.f32.mrb[0].mxu0
        %2572 = vdwg.mxu0
        %2573 = vrot.lane.b32.xlu0 %v1733, 56
        %v2574 = vpop.permute.xlu0 %2573
        %v2576 = vsel %vm1982, %v2428, 0
        %v2579 = vand.u32 %v2574, %v1989
        %2581 = vmatprep.subr.bf16.mxu0 0
        %2582 = vmatpush1.bf16.msra.mxu0 %v2579
        %2583 = vmatprep.subr.bf16.mxu0 0
        %2584 = vmatpush1.bf16.msra.mxu0 0
        %2585 = vmatprep.subr.bf16.mxu0 0
        %2586 = vmatpush1.bf16.msra.mxu0 0
        %2587 = vmatprep.subr.bf16.mxu0 0
        %2588 = vmatpush1.bf16.msra.mxu0 0
        %2589 = vmatprep.subr.bf16.mxu0 0
        %2590 = vmatpush1.bf16.msra.mxu0 0
        %2591 = vmatprep.subr.bf16.mxu0 0
        %2592 = vmatpush1.bf16.msra.mxu0 0
        %2593 = vmatprep.subr.bf16.mxu0 0
        %2594 = vmatpush1.bf16.msra.mxu0 0
        %2595 = vmatprep.subr.bf16.mxu0 0
        %2596 = vmatpush1.bf16.msra.mxu0 0
        %2597 = vmatprep.subr.bf16.mxu0 0
        %2598 = vmatpush1.bf16.msra.mxu0 0
        %2599 = vmatprep.subr.bf16.mxu0 0
        %2600 = vmatpush1.bf16.msra.mxu0 0
        %2601 = vmatprep.subr.bf16.mxu0 0
        %2602 = vmatpush1.bf16.msra.mxu0 0
        %2603 = vmatprep.subr.bf16.mxu0 0
        %2604 = vmatpush1.bf16.msra.mxu0 0
        %2605 = vmatprep.subr.bf16.mxu0 0
        %2606 = vmatpush1.bf16.msra.mxu0 0
        %2607 = vmatprep.subr.bf16.mxu0 0
        %2608 = vmatpush1.bf16.msra.mxu0 0
        %2609 = vmatprep.subr.bf16.mxu0 0
        %2610 = vmatpush1.bf16.msra.mxu0 0
        %2611 = vmatprep.subr.bf16.mxu0 0
        %2612 = vmatpush1.bf16.msra.mxu0 0
        %2613 = vmatprep.mubr.bf16.mxu0 0
        %2614 = vmatmul.mubr.bf16.gmra.mrb[0].mxu0 %v2576
        %v2615 = vpop.f32.mrb[0].mxu0
        %v2616 = vadd.f32 0.0, %v2615
        %v2617 = vpop.f32.mrb[0].mxu0
        %v2618 = vpop.f32.mrb[0].mxu0
        %v2619 = vpop.f32.mrb[0].mxu0
        %2620 = vdwg.mxu0
        %2621 = vrot.lane.b32.xlu0 %v1566, 112
        %v2622 = vpop.permute.xlu0 %2621
        %2623 = vrot.lane.b32.xlu0 %v1730, 80
        %v2624 = vpop.permute.xlu0 %2623
        %v2626 = vsel %vm1737, %v2622, 0
        %v2629 = vsel %vm1737, %v2624, 0
        %2631 = vmatprep.subr.bf16.mxu0 0
        %2632 = vmatpush1.bf16.xpose.msra.mxu0 %v2629
        %2633 = vmatprep.subr.bf16.mxu0 0
        %2634 = vmatpush1.bf16.xpose.msra.mxu0 0
        %2635 = vmatprep.subr.bf16.mxu0 0
        %2636 = vmatpush1.bf16.xpose.msra.mxu0 0
        %2637 = vmatprep.subr.bf16.mxu0 0
        %2638 = vmatpush1.bf16.xpose.msra.mxu0 0
        %2639 = vmatprep.subr.bf16.mxu0 0
        %2640 = vmatpush1.bf16.xpose.msra.mxu0 0
        %2641 = vmatprep.subr.bf16.mxu0 0
        %2642 = vmatpush1.bf16.xpose.msra.mxu0 0
        %2643 = vmatprep.subr.bf16.mxu0 0
        %2644 = vmatpush1.bf16.xpose.msra.mxu0 0
        %2645 = vmatprep.subr.bf16.mxu0 0
        %2646 = vmatpush1.bf16.xpose.msra.mxu0 0
        %2647 = vmatprep.subr.bf16.mxu0 0
        %2648 = vmatpush1.bf16.xpose.msra.mxu0 0
        %2649 = vmatprep.subr.bf16.mxu0 0
        %2650 = vmatpush1.bf16.xpose.msra.mxu0 0
        %2651 = vmatprep.subr.bf16.mxu0 0
        %2652 = vmatpush1.bf16.xpose.msra.mxu0 0
        %2653 = vmatprep.subr.bf16.mxu0 0
        %2654 = vmatpush1.bf16.xpose.msra.mxu0 0
        %2655 = vmatprep.subr.bf16.mxu0 0
        %2656 = vmatpush1.bf16.xpose.msra.mxu0 0
        %2657 = vmatprep.subr.bf16.mxu0 0
        %2658 = vmatpush1.bf16.xpose.msra.mxu0 0
        %2659 = vmatprep.subr.bf16.mxu0 0
        %2660 = vmatpush1.bf16.xpose.msra.mxu0 0
        %2661 = vmatprep.subr.bf16.mxu0 0
        %2662 = vmatpush1.bf16.xpose.msra.mxu0 0
        %2663 = vmatprep.mubr.bf16.mxu0 0
        %2664 = vmatmul.mubr.bf16.gmra.mrb[0].mxu0 %v2626
        %v2665 = vpop.f32.mrb[0].mxu0
        %v2666 = vadd.f32 0.0, %v2665
        %v2667 = vpop.f32.mrb[0].mxu0
        %v2668 = vpop.f32.mrb[0].mxu0
        %v2669 = vpop.f32.mrb[0].mxu0
        %2670 = vdwg.mxu0
        %2671 = vrot.lane.b32.xlu0 %v1567, 112
        %v2672 = vpop.permute.xlu0 %2671
        %2673 = vrot.lane.b32.xlu0 %v1731, 80
        %v2674 = vpop.permute.xlu0 %2673
        %v2676 = vsel %vm1737, %v2672, 0
        %v2679 = vsel %vm1737, %v2674, 0
        %2681 = vmatprep.subr.bf16.mxu0 0
        %2682 = vmatpush1.bf16.xpose.msra.mxu0 %v2679
        %2683 = vmatprep.subr.bf16.mxu0 0
        %2684 = vmatpush1.bf16.xpose.msra.mxu0 0
        %2685 = vmatprep.subr.bf16.mxu0 0
        %2686 = vmatpush1.bf16.xpose.msra.mxu0 0
        %2687 = vmatprep.subr.bf16.mxu0 0
        %2688 = vmatpush1.bf16.xpose.msra.mxu0 0
        %2689 = vmatprep.subr.bf16.mxu0 0
        %2690 = vmatpush1.bf16.xpose.msra.mxu0 0
        %2691 = vmatprep.subr.bf16.mxu0 0
        %2692 = vmatpush1.bf16.xpose.msra.mxu0 0
        %2693 = vmatprep.subr.bf16.mxu0 0
        %2694 = vmatpush1.bf16.xpose.msra.mxu0 0
        %2695 = vmatprep.subr.bf16.mxu0 0
        %2696 = vmatpush1.bf16.xpose.msra.mxu0 0
        %2697 = vmatprep.subr.bf16.mxu0 0
        %2698 = vmatpush1.bf16.xpose.msra.mxu0 0
        %2699 = vmatprep.subr.bf16.mxu0 0
        %2700 = vmatpush1.bf16.xpose.msra.mxu0 0
        %2701 = vmatprep.subr.bf16.mxu0 0
        %2702 = vmatpush1.bf16.xpose.msra.mxu0 0
        %2703 = vmatprep.subr.bf16.mxu0 0
        %2704 = vmatpush1.bf16.xpose.msra.mxu0 0
        %2705 = vmatprep.subr.bf16.mxu0 0
        %2706 = vmatpush1.bf16.xpose.msra.mxu0 0
        %2707 = vmatprep.subr.bf16.mxu0 0
        %2708 = vmatpush1.bf16.xpose.msra.mxu0 0
        %2709 = vmatprep.subr.bf16.mxu0 0
        %2710 = vmatpush1.bf16.xpose.msra.mxu0 0
        %2711 = vmatprep.subr.bf16.mxu0 0
        %2712 = vmatpush1.bf16.xpose.msra.mxu0 0
        %2713 = vmatprep.mubr.bf16.mxu0 0
        %2714 = vmatmul.mubr.bf16.gmra.mrb[0].mxu0 %v2676
        %v2715 = vpop.f32.mrb[0].mxu0
        %v2716 = vadd.f32 0.0, %v2715
        %v2717 = vpop.f32.mrb[0].mxu0
        %v2718 = vpop.f32.mrb[0].mxu0
        %v2719 = vpop.f32.mrb[0].mxu0
        %2720 = vdwg.mxu0
        %2721 = vrot.lane.b32.xlu0 %v1568, 112
        %v2722 = vpop.permute.xlu0 %2721
        %2723 = vrot.lane.b32.xlu0 %v1732, 80
        %v2724 = vpop.permute.xlu0 %2723
        %v2726 = vsel %vm1737, %v2722, 0
        %v2729 = vsel %vm1737, %v2724, 0
        %2731 = vmatprep.subr.bf16.mxu0 0
        %2732 = vmatpush1.bf16.xpose.msra.mxu0 %v2729
        %2733 = vmatprep.subr.bf16.mxu0 0
        %2734 = vmatpush1.bf16.xpose.msra.mxu0 0
        %2735 = vmatprep.subr.bf16.mxu0 0
        %2736 = vmatpush1.bf16.xpose.msra.mxu0 0
        %2737 = vmatprep.subr.bf16.mxu0 0
        %2738 = vmatpush1.bf16.xpose.msra.mxu0 0
        %2739 = vmatprep.subr.bf16.mxu0 0
        %2740 = vmatpush1.bf16.xpose.msra.mxu0 0
        %2741 = vmatprep.subr.bf16.mxu0 0
        %2742 = vmatpush1.bf16.xpose.msra.mxu0 0
        %2743 = vmatprep.subr.bf16.mxu0 0
        %2744 = vmatpush1.bf16.xpose.msra.mxu0 0
        %2745 = vmatprep.subr.bf16.mxu0 0
        %2746 = vmatpush1.bf16.xpose.msra.mxu0 0
        %2747 = vmatprep.subr.bf16.mxu0 0
        %2748 = vmatpush1.bf16.xpose.msra.mxu0 0
        %2749 = vmatprep.subr.bf16.mxu0 0
        %2750 = vmatpush1.bf16.xpose.msra.mxu0 0
        %2751 = vmatprep.subr.bf16.mxu0 0
        %2752 = vmatpush1.bf16.xpose.msra.mxu0 0
        %2753 = vmatprep.subr.bf16.mxu0 0
        %2754 = vmatpush1.bf16.xpose.msra.mxu0 0
        %2755 = vmatprep.subr.bf16.mxu0 0
        %2756 = vmatpush1.bf16.xpose.msra.mxu0 0
        %2757 = vmatprep.subr.bf16.mxu0 0
        %2758 = vmatpush1.bf16.xpose.msra.mxu0 0
        %2759 = vmatprep.subr.bf16.mxu0 0
        %2760 = vmatpush1.bf16.xpose.msra.mxu0 0
        %2761 = vmatprep.subr.bf16.mxu0 0
        %2762 = vmatpush1.bf16.xpose.msra.mxu0 0
        %2763 = vmatprep.mubr.bf16.mxu0 0
        %2764 = vmatmul.mubr.bf16.gmra.mrb[0].mxu0 %v2726
        %v2765 = vpop.f32.mrb[0].mxu0
        %v2766 = vadd.f32 0.0, %v2765
        %v2767 = vpop.f32.mrb[0].mxu0
        %v2768 = vpop.f32.mrb[0].mxu0
        %v2769 = vpop.f32.mrb[0].mxu0
        %2770 = vdwg.mxu0
        %2771 = vrot.lane.b32.xlu0 %v1569, 112
        %v2772 = vpop.permute.xlu0 %2771
        %2773 = vrot.lane.b32.xlu0 %v1733, 80
        %v2774 = vpop.permute.xlu0 %2773
        %v2776 = vsel %vm1737, %v2772, 0
        %v2779 = vsel %vm1737, %v2774, 0
        %2781 = vmatprep.subr.bf16.mxu0 0
        %2782 = vmatpush1.bf16.xpose.msra.mxu0 %v2779
        %2783 = vmatprep.subr.bf16.mxu0 0
        %2784 = vmatpush1.bf16.xpose.msra.mxu0 0
        %2785 = vmatprep.subr.bf16.mxu0 0
        %2786 = vmatpush1.bf16.xpose.msra.mxu0 0
        %2787 = vmatprep.subr.bf16.mxu0 0
        %2788 = vmatpush1.bf16.xpose.msra.mxu0 0
        %2789 = vmatprep.subr.bf16.mxu0 0
        %2790 = vmatpush1.bf16.xpose.msra.mxu0 0
        %2791 = vmatprep.subr.bf16.mxu0 0
        %2792 = vmatpush1.bf16.xpose.msra.mxu0 0
        %2793 = vmatprep.subr.bf16.mxu0 0
        %2794 = vmatpush1.bf16.xpose.msra.mxu0 0
        %2795 = vmatprep.subr.bf16.mxu0 0
        %2796 = vmatpush1.bf16.xpose.msra.mxu0 0
        %2797 = vmatprep.subr.bf16.mxu0 0
        %2798 = vmatpush1.bf16.xpose.msra.mxu0 0
        %2799 = vmatprep.subr.bf16.mxu0 0
        %2800 = vmatpush1.bf16.xpose.msra.mxu0 0
        %2801 = vmatprep.subr.bf16.mxu0 0
        %2802 = vmatpush1.bf16.xpose.msra.mxu0 0
        %2803 = vmatprep.subr.bf16.mxu0 0
        %2804 = vmatpush1.bf16.xpose.msra.mxu0 0
        %2805 = vmatprep.subr.bf16.mxu0 0
        %2806 = vmatpush1.bf16.xpose.msra.mxu0 0
        %2807 = vmatprep.subr.bf16.mxu0 0
        %2808 = vmatpush1.bf16.xpose.msra.mxu0 0
        %2809 = vmatprep.subr.bf16.mxu0 0
        %2810 = vmatpush1.bf16.xpose.msra.mxu0 0
        %2811 = vmatprep.subr.bf16.mxu0 0
        %2812 = vmatpush1.bf16.xpose.msra.mxu0 0
        %2813 = vmatprep.mubr.bf16.mxu0 0
        %2814 = vmatmul.mubr.bf16.gmra.mrb[0].mxu0 %v2776
        %v2815 = vpop.f32.mrb[0].mxu0
        %v2816 = vadd.f32 0.0, %v2815
        %v2817 = vpop.f32.mrb[0].mxu0
        %v2818 = vpop.f32.mrb[0].mxu0
        %v2819 = vpop.f32.mrb[0].mxu0
        %2820 = vdwg.mxu0
        %v2821 = vsel %vm1931, %v2666, -inf
        %2822 = vmax.xlane.f32.xlu0 %v2821
        %v2823 = vpop.xlane.xlu0 %2822
        %v2824 = vsel %vm1931, %v2716, -inf
        %2825 = vmax.xlane.f32.xlu0 %v2824
        %v2826 = vpop.xlane.xlu0 %2825
        %v2827 = vsel %vm1931, %v2766, -inf
        %2828 = vmax.xlane.f32.xlu0 %v2827
        %v2829 = vpop.xlane.xlu0 %2828
        %v2830 = vsel %vm1931, %v2816, -inf
        %2831 = vmax.xlane.f32.xlu0 %v2830
        %v2832 = vpop.xlane.xlu0 %2831
        %v2833 = vsub.f32 %v2666, %v2823
        %v2834 = vsub.f32 %v2716, %v2826
        %v2835 = vsub.f32 %v2766, %v2829
        %v2836 = vsub.f32 %v2816, %v2832
        %v2837 = vmul.f32 %v2833, 1.442695
        %v2838 = vpow.pop %v2837
        %v2839 = vmul.f32 %v2834, 1.442695
        %v2840 = vpow.pop %v2839
        %v2841 = vmul.f32 %v2835, 1.442695
        %v2842 = vpow.pop %v2841
        %v2843 = vmul.f32 %v2836, 1.442695
        %v2844 = vpow.pop %v2843
        %v2845 = vsel %vm1931, %v2838, 0.0
        %2846 = vadd.xlane.f32.xlu0 %v2845
        %v2847 = vpop.xlane.xlu0 %2846
        %v2848 = vsel %vm1931, %v2840, 0.0
        %2849 = vadd.xlane.f32.xlu0 %v2848
        %v2850 = vpop.xlane.xlu0 %2849
        %v2851 = vsel %vm1931, %v2842, 0.0
        %2852 = vadd.xlane.f32.xlu0 %v2851
        %v2853 = vpop.xlane.xlu0 %2852
        %v2854 = vsel %vm1931, %v2844, 0.0
        %2855 = vadd.xlane.f32.xlu0 %v2854
        %v2856 = vpop.xlane.xlu0 %2855
        %v2857 = vrcp.pop %v2847
        %v2858 = vrcp.pop %v2850
        %v2859 = vrcp.pop %v2853
        %v2860 = vrcp.pop %v2856
        %v2861 = vmul.f32 %v2838, %v2857
        %v2862 = vmul.f32 %v2840, %v2858
        %v2863 = vmul.f32 %v2842, %v2859
        %v2864 = vmul.f32 %v2844, %v2860
        %v2865 = vpack.c.bf16 %v2861, %v2861
        %v2866 = vpack.c.bf16 %v2862, %v2862
        %v2867 = vpack.c.bf16 %v2863, %v2863
        %v2868 = vpack.c.bf16 %v2864, %v2864
        %2869 = vrot.lane.b32.xlu0 %v1730, 48
        %v2870 = vpop.permute.xlu0 %2869
        %v2872 = vsel %vm1982, %v2865, 0
        %v2875 = vand.u32 %v2870, %v1989
        %2877 = vmatprep.subr.bf16.mxu0 0
        %2878 = vmatpush1.bf16.msra.mxu0 %v2875
        %2879 = vmatprep.subr.bf16.mxu0 0
        %2880 = vmatpush1.bf16.msra.mxu0 0
        %2881 = vmatprep.subr.bf16.mxu0 0
        %2882 = vmatpush1.bf16.msra.mxu0 0
        %2883 = vmatprep.subr.bf16.mxu0 0
        %2884 = vmatpush1.bf16.msra.mxu0 0
        %2885 = vmatprep.subr.bf16.mxu0 0
        %2886 = vmatpush1.bf16.msra.mxu0 0
        %2887 = vmatprep.subr.bf16.mxu0 0
        %2888 = vmatpush1.bf16.msra.mxu0 0
        %2889 = vmatprep.subr.bf16.mxu0 0
        %2890 = vmatpush1.bf16.msra.mxu0 0
        %2891 = vmatprep.subr.bf16.mxu0 0
        %2892 = vmatpush1.bf16.msra.mxu0 0
        %2893 = vmatprep.subr.bf16.mxu0 0
        %2894 = vmatpush1.bf16.msra.mxu0 0
        %2895 = vmatprep.subr.bf16.mxu0 0
        %2896 = vmatpush1.bf16.msra.mxu0 0
        %2897 = vmatprep.subr.bf16.mxu0 0
        %2898 = vmatpush1.bf16.msra.mxu0 0
        %2899 = vmatprep.subr.bf16.mxu0 0
        %2900 = vmatpush1.bf16.msra.mxu0 0
        %2901 = vmatprep.subr.bf16.mxu0 0
        %2902 = vmatpush1.bf16.msra.mxu0 0
        %2903 = vmatprep.subr.bf16.mxu0 0
        %2904 = vmatpush1.bf16.msra.mxu0 0
        %2905 = vmatprep.subr.bf16.mxu0 0
        %2906 = vmatpush1.bf16.msra.mxu0 0
        %2907 = vmatprep.subr.bf16.mxu0 0
        %2908 = vmatpush1.bf16.msra.mxu0 0
        %2909 = vmatprep.mubr.bf16.mxu0 0
        %2910 = vmatmul.mubr.bf16.gmra.mrb[0].mxu0 %v2872
        %v2911 = vpop.f32.mrb[0].mxu0
        %v2912 = vadd.f32 0.0, %v2911
        %v2913 = vpop.f32.mrb[0].mxu0
        %v2914 = vpop.f32.mrb[0].mxu0
        %v2915 = vpop.f32.mrb[0].mxu0
        %2916 = vdwg.mxu0
        %2917 = vrot.lane.b32.xlu0 %v1731, 48
        %v2918 = vpop.permute.xlu0 %2917
        %v2920 = vsel %vm1982, %v2866, 0
        %v2923 = vand.u32 %v2918, %v1989
        %2925 = vmatprep.subr.bf16.mxu0 0
        %2926 = vmatpush1.bf16.msra.mxu0 %v2923
        %2927 = vmatprep.subr.bf16.mxu0 0
        %2928 = vmatpush1.bf16.msra.mxu0 0
        %2929 = vmatprep.subr.bf16.mxu0 0
        %2930 = vmatpush1.bf16.msra.mxu0 0
        %2931 = vmatprep.subr.bf16.mxu0 0
        %2932 = vmatpush1.bf16.msra.mxu0 0
        %2933 = vmatprep.subr.bf16.mxu0 0
        %2934 = vmatpush1.bf16.msra.mxu0 0
        %2935 = vmatprep.subr.bf16.mxu0 0
        %2936 = vmatpush1.bf16.msra.mxu0 0
        %2937 = vmatprep.subr.bf16.mxu0 0
        %2938 = vmatpush1.bf16.msra.mxu0 0
        %2939 = vmatprep.subr.bf16.mxu0 0
        %2940 = vmatpush1.bf16.msra.mxu0 0
        %2941 = vmatprep.subr.bf16.mxu0 0
        %2942 = vmatpush1.bf16.msra.mxu0 0
        %2943 = vmatprep.subr.bf16.mxu0 0
        %2944 = vmatpush1.bf16.msra.mxu0 0
        %2945 = vmatprep.subr.bf16.mxu0 0
        %2946 = vmatpush1.bf16.msra.mxu0 0
        %2947 = vmatprep.subr.bf16.mxu0 0
        %2948 = vmatpush1.bf16.msra.mxu0 0
        %2949 = vmatprep.subr.bf16.mxu0 0
        %2950 = vmatpush1.bf16.msra.mxu0 0
        %2951 = vmatprep.subr.bf16.mxu0 0
        %2952 = vmatpush1.bf16.msra.mxu0 0
        %2953 = vmatprep.subr.bf16.mxu0 0
        %2954 = vmatpush1.bf16.msra.mxu0 0
        %2955 = vmatprep.subr.bf16.mxu0 0
        %2956 = vmatpush1.bf16.msra.mxu0 0
        %2957 = vmatprep.mubr.bf16.mxu0 0
        %2958 = vmatmul.mubr.bf16.gmra.mrb[0].mxu0 %v2920
        %v2959 = vpop.f32.mrb[0].mxu0
        %v2960 = vadd.f32 0.0, %v2959
        %v2961 = vpop.f32.mrb[0].mxu0
        %v2962 = vpop.f32.mrb[0].mxu0
        %v2963 = vpop.f32.mrb[0].mxu0
        %2964 = vdwg.mxu0
        %2965 = vrot.lane.b32.xlu0 %v1732, 48
        %v2966 = vpop.permute.xlu0 %2965
        %v2968 = vsel %vm1982, %v2867, 0
        %v2971 = vand.u32 %v2966, %v1989
        %2973 = vmatprep.subr.bf16.mxu0 0
        %2974 = vmatpush1.bf16.msra.mxu0 %v2971
        %2975 = vmatprep.subr.bf16.mxu0 0
        %2976 = vmatpush1.bf16.msra.mxu0 0
        %2977 = vmatprep.subr.bf16.mxu0 0
        %2978 = vmatpush1.bf16.msra.mxu0 0
        %2979 = vmatprep.subr.bf16.mxu0 0
        %2980 = vmatpush1.bf16.msra.mxu0 0
        %2981 = vmatprep.subr.bf16.mxu0 0
        %2982 = vmatpush1.bf16.msra.mxu0 0
        %2983 = vmatprep.subr.bf16.mxu0 0
        %2984 = vmatpush1.bf16.msra.mxu0 0
        %2985 = vmatprep.subr.bf16.mxu0 0
        %2986 = vmatpush1.bf16.msra.mxu0 0
        %2987 = vmatprep.subr.bf16.mxu0 0
        %2988 = vmatpush1.bf16.msra.mxu0 0
        %2989 = vmatprep.subr.bf16.mxu0 0
        %2990 = vmatpush1.bf16.msra.mxu0 0
        %2991 = vmatprep.subr.bf16.mxu0 0
        %2992 = vmatpush1.bf16.msra.mxu0 0
        %2993 = vmatprep.subr.bf16.mxu0 0
        %2994 = vmatpush1.bf16.msra.mxu0 0
        %2995 = vmatprep.subr.bf16.mxu0 0
        %2996 = vmatpush1.bf16.msra.mxu0 0
        %2997 = vmatprep.subr.bf16.mxu0 0
        %2998 = vmatpush1.bf16.msra.mxu0 0
        %2999 = vmatprep.subr.bf16.mxu0 0
        %3000 = vmatpush1.bf16.msra.mxu0 0
        %3001 = vmatprep.subr.bf16.mxu0 0
        %3002 = vmatpush1.bf16.msra.mxu0 0
        %3003 = vmatprep.subr.bf16.mxu0 0
        %3004 = vmatpush1.bf16.msra.mxu0 0
        %3005 = vmatprep.mubr.bf16.mxu0 0
        %3006 = vmatmul.mubr.bf16.gmra.mrb[0].mxu0 %v2968
        %v3007 = vpop.f32.mrb[0].mxu0
        %v3008 = vadd.f32 0.0, %v3007
        %v3009 = vpop.f32.mrb[0].mxu0
        %v3010 = vpop.f32.mrb[0].mxu0
        %v3011 = vpop.f32.mrb[0].mxu0
        %3012 = vdwg.mxu0
        %3013 = vrot.lane.b32.xlu0 %v1733, 48
        %v3014 = vpop.permute.xlu0 %3013
        %v3016 = vsel %vm1982, %v2868, 0
        %v3019 = vand.u32 %v3014, %v1989
        %3021 = vmatprep.subr.bf16.mxu0 0
        %3022 = vmatpush1.bf16.msra.mxu0 %v3019
        %3023 = vmatprep.subr.bf16.mxu0 0
        %3024 = vmatpush1.bf16.msra.mxu0 0
        %3025 = vmatprep.subr.bf16.mxu0 0
        %3026 = vmatpush1.bf16.msra.mxu0 0
        %3027 = vmatprep.subr.bf16.mxu0 0
        %3028 = vmatpush1.bf16.msra.mxu0 0
        %3029 = vmatprep.subr.bf16.mxu0 0
        %3030 = vmatpush1.bf16.msra.mxu0 0
        %3031 = vmatprep.subr.bf16.mxu0 0
        %3032 = vmatpush1.bf16.msra.mxu0 0
        %3033 = vmatprep.subr.bf16.mxu0 0
        %3034 = vmatpush1.bf16.msra.mxu0 0
        %3035 = vmatprep.subr.bf16.mxu0 0
        %3036 = vmatpush1.bf16.msra.mxu0 0
        %3037 = vmatprep.subr.bf16.mxu0 0
        %3038 = vmatpush1.bf16.msra.mxu0 0
        %3039 = vmatprep.subr.bf16.mxu0 0
        %3040 = vmatpush1.bf16.msra.mxu0 0
        %3041 = vmatprep.subr.bf16.mxu0 0
        %3042 = vmatpush1.bf16.msra.mxu0 0
        %3043 = vmatprep.subr.bf16.mxu0 0
        %3044 = vmatpush1.bf16.msra.mxu0 0
        %3045 = vmatprep.subr.bf16.mxu0 0
        %3046 = vmatpush1.bf16.msra.mxu0 0
        %3047 = vmatprep.subr.bf16.mxu0 0
        %3048 = vmatpush1.bf16.msra.mxu0 0
        %3049 = vmatprep.subr.bf16.mxu0 0
        %3050 = vmatpush1.bf16.msra.mxu0 0
        %3051 = vmatprep.subr.bf16.mxu0 0
        %3052 = vmatpush1.bf16.msra.mxu0 0
        %3053 = vmatprep.mubr.bf16.mxu0 0
        %3054 = vmatmul.mubr.bf16.gmra.mrb[0].mxu0 %v3016
        %v3055 = vpop.f32.mrb[0].mxu0
        %v3056 = vadd.f32 0.0, %v3055
        %v3057 = vpop.f32.mrb[0].mxu0
        %v3058 = vpop.f32.mrb[0].mxu0
        %v3059 = vpop.f32.mrb[0].mxu0
        %3060 = vdwg.mxu0
        %3061 = vrot.lane.b32.xlu0 %v1566, 104
        %v3062 = vpop.permute.xlu0 %3061
        %3063 = vrot.lane.b32.xlu0 %v1730, 72
        %v3064 = vpop.permute.xlu0 %3063
        %v3066 = vsel %vm1737, %v3062, 0
        %v3069 = vsel %vm1737, %v3064, 0
        %3071 = vmatprep.subr.bf16.mxu0 0
        %3072 = vmatpush1.bf16.xpose.msra.mxu0 %v3069
        %3073 = vmatprep.subr.bf16.mxu0 0
        %3074 = vmatpush1.bf16.xpose.msra.mxu0 0
        %3075 = vmatprep.subr.bf16.mxu0 0
        %3076 = vmatpush1.bf16.xpose.msra.mxu0 0
        %3077 = vmatprep.subr.bf16.mxu0 0
        %3078 = vmatpush1.bf16.xpose.msra.mxu0 0
        %3079 = vmatprep.subr.bf16.mxu0 0
        %3080 = vmatpush1.bf16.xpose.msra.mxu0 0
        %3081 = vmatprep.subr.bf16.mxu0 0
        %3082 = vmatpush1.bf16.xpose.msra.mxu0 0
        %3083 = vmatprep.subr.bf16.mxu0 0
        %3084 = vmatpush1.bf16.xpose.msra.mxu0 0
        %3085 = vmatprep.subr.bf16.mxu0 0
        %3086 = vmatpush1.bf16.xpose.msra.mxu0 0
        %3087 = vmatprep.subr.bf16.mxu0 0
        %3088 = vmatpush1.bf16.xpose.msra.mxu0 0
        %3089 = vmatprep.subr.bf16.mxu0 0
        %3090 = vmatpush1.bf16.xpose.msra.mxu0 0
        %3091 = vmatprep.subr.bf16.mxu0 0
        %3092 = vmatpush1.bf16.xpose.msra.mxu0 0
        %3093 = vmatprep.subr.bf16.mxu0 0
        %3094 = vmatpush1.bf16.xpose.msra.mxu0 0
        %3095 = vmatprep.subr.bf16.mxu0 0
        %3096 = vmatpush1.bf16.xpose.msra.mxu0 0
        %3097 = vmatprep.subr.bf16.mxu0 0
        %3098 = vmatpush1.bf16.xpose.msra.mxu0 0
        %3099 = vmatprep.subr.bf16.mxu0 0
        %3100 = vmatpush1.bf16.xpose.msra.mxu0 0
        %3101 = vmatprep.subr.bf16.mxu0 0
        %3102 = vmatpush1.bf16.xpose.msra.mxu0 0
        %3103 = vmatprep.mubr.bf16.mxu0 0
        %3104 = vmatmul.mubr.bf16.gmra.mrb[0].mxu0 %v3066
        %v3105 = vpop.f32.mrb[0].mxu0
        %v3106 = vadd.f32 0.0, %v3105
        %v3107 = vpop.f32.mrb[0].mxu0
        %v3108 = vpop.f32.mrb[0].mxu0
        %v3109 = vpop.f32.mrb[0].mxu0
        %3110 = vdwg.mxu0
        %3111 = vrot.lane.b32.xlu0 %v1567, 104
        %v3112 = vpop.permute.xlu0 %3111
        %3113 = vrot.lane.b32.xlu0 %v1731, 72
        %v3114 = vpop.permute.xlu0 %3113
        %v3116 = vsel %vm1737, %v3112, 0
        %v3119 = vsel %vm1737, %v3114, 0
        %3121 = vmatprep.subr.bf16.mxu0 0
        %3122 = vmatpush1.bf16.xpose.msra.mxu0 %v3119
        %3123 = vmatprep.subr.bf16.mxu0 0
        %3124 = vmatpush1.bf16.xpose.msra.mxu0 0
        %3125 = vmatprep.subr.bf16.mxu0 0
        %3126 = vmatpush1.bf16.xpose.msra.mxu0 0
        %3127 = vmatprep.subr.bf16.mxu0 0
        %3128 = vmatpush1.bf16.xpose.msra.mxu0 0
        %3129 = vmatprep.subr.bf16.mxu0 0
        %3130 = vmatpush1.bf16.xpose.msra.mxu0 0
        %3131 = vmatprep.subr.bf16.mxu0 0
        %3132 = vmatpush1.bf16.xpose.msra.mxu0 0
        %3133 = vmatprep.subr.bf16.mxu0 0
        %3134 = vmatpush1.bf16.xpose.msra.mxu0 0
        %3135 = vmatprep.subr.bf16.mxu0 0
        %3136 = vmatpush1.bf16.xpose.msra.mxu0 0
        %3137 = vmatprep.subr.bf16.mxu0 0
        %3138 = vmatpush1.bf16.xpose.msra.mxu0 0
        %3139 = vmatprep.subr.bf16.mxu0 0
        %3140 = vmatpush1.bf16.xpose.msra.mxu0 0
        %3141 = vmatprep.subr.bf16.mxu0 0
        %3142 = vmatpush1.bf16.xpose.msra.mxu0 0
        %3143 = vmatprep.subr.bf16.mxu0 0
        %3144 = vmatpush1.bf16.xpose.msra.mxu0 0
        %3145 = vmatprep.subr.bf16.mxu0 0
        %3146 = vmatpush1.bf16.xpose.msra.mxu0 0
        %3147 = vmatprep.subr.bf16.mxu0 0
        %3148 = vmatpush1.bf16.xpose.msra.mxu0 0
        %3149 = vmatprep.subr.bf16.mxu0 0
        %3150 = vmatpush1.bf16.xpose.msra.mxu0 0
        %3151 = vmatprep.subr.bf16.mxu0 0
        %3152 = vmatpush1.bf16.xpose.msra.mxu0 0
        %3153 = vmatprep.mubr.bf16.mxu0 0
        %3154 = vmatmul.mubr.bf16.gmra.mrb[0].mxu0 %v3116
        %v3155 = vpop.f32.mrb[0].mxu0
        %v3156 = vadd.f32 0.0, %v3155
        %v3157 = vpop.f32.mrb[0].mxu0
        %v3158 = vpop.f32.mrb[0].mxu0
        %v3159 = vpop.f32.mrb[0].mxu0
        %3160 = vdwg.mxu0
        %3161 = vrot.lane.b32.xlu0 %v1568, 104
        %v3162 = vpop.permute.xlu0 %3161
        %3163 = vrot.lane.b32.xlu0 %v1732, 72
        %v3164 = vpop.permute.xlu0 %3163
        %v3166 = vsel %vm1737, %v3162, 0
        %v3169 = vsel %vm1737, %v3164, 0
        %3171 = vmatprep.subr.bf16.mxu0 0
        %3172 = vmatpush1.bf16.xpose.msra.mxu0 %v3169
        %3173 = vmatprep.subr.bf16.mxu0 0
        %3174 = vmatpush1.bf16.xpose.msra.mxu0 0
        %3175 = vmatprep.subr.bf16.mxu0 0
        %3176 = vmatpush1.bf16.xpose.msra.mxu0 0
        %3177 = vmatprep.subr.bf16.mxu0 0
        %3178 = vmatpush1.bf16.xpose.msra.mxu0 0
        %3179 = vmatprep.subr.bf16.mxu0 0
        %3180 = vmatpush1.bf16.xpose.msra.mxu0 0
        %3181 = vmatprep.subr.bf16.mxu0 0
        %3182 = vmatpush1.bf16.xpose.msra.mxu0 0
        %3183 = vmatprep.subr.bf16.mxu0 0
        %3184 = vmatpush1.bf16.xpose.msra.mxu0 0
        %3185 = vmatprep.subr.bf16.mxu0 0
        %3186 = vmatpush1.bf16.xpose.msra.mxu0 0
        %3187 = vmatprep.subr.bf16.mxu0 0
        %3188 = vmatpush1.bf16.xpose.msra.mxu0 0
        %3189 = vmatprep.subr.bf16.mxu0 0
        %3190 = vmatpush1.bf16.xpose.msra.mxu0 0
        %3191 = vmatprep.subr.bf16.mxu0 0
        %3192 = vmatpush1.bf16.xpose.msra.mxu0 0
        %3193 = vmatprep.subr.bf16.mxu0 0
        %3194 = vmatpush1.bf16.xpose.msra.mxu0 0
        %3195 = vmatprep.subr.bf16.mxu0 0
        %3196 = vmatpush1.bf16.xpose.msra.mxu0 0
        %3197 = vmatprep.subr.bf16.mxu0 0
        %3198 = vmatpush1.bf16.xpose.msra.mxu0 0
        %3199 = vmatprep.subr.bf16.mxu0 0
        %3200 = vmatpush1.bf16.xpose.msra.mxu0 0
        %3201 = vmatprep.subr.bf16.mxu0 0
        %3202 = vmatpush1.bf16.xpose.msra.mxu0 0
        %3203 = vmatprep.mubr.bf16.mxu0 0
        %3204 = vmatmul.mubr.bf16.gmra.mrb[0].mxu0 %v3166
        %v3205 = vpop.f32.mrb[0].mxu0
        %v3206 = vadd.f32 0.0, %v3205
        %v3207 = vpop.f32.mrb[0].mxu0
        %v3208 = vpop.f32.mrb[0].mxu0
        %v3209 = vpop.f32.mrb[0].mxu0
        %3210 = vdwg.mxu0
        %3211 = vrot.lane.b32.xlu0 %v1569, 104
        %v3212 = vpop.permute.xlu0 %3211
        %3213 = vrot.lane.b32.xlu0 %v1733, 72
        %v3214 = vpop.permute.xlu0 %3213
        %v3216 = vsel %vm1737, %v3212, 0
        %v3219 = vsel %vm1737, %v3214, 0
        %3221 = vmatprep.subr.bf16.mxu0 0
        %3222 = vmatpush1.bf16.xpose.msra.mxu0 %v3219
        %3223 = vmatprep.subr.bf16.mxu0 0
        %3224 = vmatpush1.bf16.xpose.msra.mxu0 0
        %3225 = vmatprep.subr.bf16.mxu0 0
        %3226 = vmatpush1.bf16.xpose.msra.mxu0 0
        %3227 = vmatprep.subr.bf16.mxu0 0
        %3228 = vmatpush1.bf16.xpose.msra.mxu0 0
        %3229 = vmatprep.subr.bf16.mxu0 0
        %3230 = vmatpush1.bf16.xpose.msra.mxu0 0
        %3231 = vmatprep.subr.bf16.mxu0 0
        %3232 = vmatpush1.bf16.xpose.msra.mxu0 0
        %3233 = vmatprep.subr.bf16.mxu0 0
        %3234 = vmatpush1.bf16.xpose.msra.mxu0 0
        %3235 = vmatprep.subr.bf16.mxu0 0
        %3236 = vmatpush1.bf16.xpose.msra.mxu0 0
        %3237 = vmatprep.subr.bf16.mxu0 0
        %3238 = vmatpush1.bf16.xpose.msra.mxu0 0
        %3239 = vmatprep.subr.bf16.mxu0 0
        %3240 = vmatpush1.bf16.xpose.msra.mxu0 0
        %3241 = vmatprep.subr.bf16.mxu0 0
        %3242 = vmatpush1.bf16.xpose.msra.mxu0 0
        %3243 = vmatprep.subr.bf16.mxu0 0
        %3244 = vmatpush1.bf16.xpose.msra.mxu0 0
        %3245 = vmatprep.subr.bf16.mxu0 0
        %3246 = vmatpush1.bf16.xpose.msra.mxu0 0
        %3247 = vmatprep.subr.bf16.mxu0 0
        %3248 = vmatpush1.bf16.xpose.msra.mxu0 0
        %3249 = vmatprep.subr.bf16.mxu0 0
        %3250 = vmatpush1.bf16.xpose.msra.mxu0 0
        %3251 = vmatprep.subr.bf16.mxu0 0
        %3252 = vmatpush1.bf16.xpose.msra.mxu0 0
        %3253 = vmatprep.mubr.bf16.mxu0 0
        %3254 = vmatmul.mubr.bf16.gmra.mrb[0].mxu0 %v3216
        %v3255 = vpop.f32.mrb[0].mxu0
        %v3256 = vadd.f32 0.0, %v3255
        %v3257 = vpop.f32.mrb[0].mxu0
        %v3258 = vpop.f32.mrb[0].mxu0
        %v3259 = vpop.f32.mrb[0].mxu0
        %3260 = vdwg.mxu0
        %v3261 = vsel %vm1931, %v3106, -inf
        %3262 = vmax.xlane.f32.xlu0 %v3261
        %v3263 = vpop.xlane.xlu0 %3262
        %v3264 = vsel %vm1931, %v3156, -inf
        %3265 = vmax.xlane.f32.xlu0 %v3264
        %v3266 = vpop.xlane.xlu0 %3265
        %v3267 = vsel %vm1931, %v3206, -inf
        %3268 = vmax.xlane.f32.xlu0 %v3267
        %v3269 = vpop.xlane.xlu0 %3268
        %v3270 = vsel %vm1931, %v3256, -inf
        %3271 = vmax.xlane.f32.xlu0 %v3270
        %v3272 = vpop.xlane.xlu0 %3271
        %v3273 = vsub.f32 %v3106, %v3263
        %v3274 = vsub.f32 %v3156, %v3266
        %v3275 = vsub.f32 %v3206, %v3269
        %v3276 = vsub.f32 %v3256, %v3272
        %v3277 = vmul.f32 %v3273, 1.442695
        %v3278 = vpow.pop %v3277
        %v3279 = vmul.f32 %v3274, 1.442695
        %v3280 = vpow.pop %v3279
        %v3281 = vmul.f32 %v3275, 1.442695
        %v3282 = vpow.pop %v3281
        %v3283 = vmul.f32 %v3276, 1.442695
        %v3284 = vpow.pop %v3283
        %v3285 = vsel %vm1931, %v3278, 0.0
        %3286 = vadd.xlane.f32.xlu0 %v3285
        %v3287 = vpop.xlane.xlu0 %3286
        %v3288 = vsel %vm1931, %v3280, 0.0
        %3289 = vadd.xlane.f32.xlu0 %v3288
        %v3290 = vpop.xlane.xlu0 %3289
        %v3291 = vsel %vm1931, %v3282, 0.0
        %3292 = vadd.xlane.f32.xlu0 %v3291
        %v3293 = vpop.xlane.xlu0 %3292
        %v3294 = vsel %vm1931, %v3284, 0.0
        %3295 = vadd.xlane.f32.xlu0 %v3294
        %v3296 = vpop.xlane.xlu0 %3295
        %v3297 = vrcp.pop %v3287
        %v3298 = vrcp.pop %v3290
        %v3299 = vrcp.pop %v3293
        %v3300 = vrcp.pop %v3296
        %v3301 = vmul.f32 %v3278, %v3297
        %v3302 = vmul.f32 %v3280, %v3298
        %v3303 = vmul.f32 %v3282, %v3299
        %v3304 = vmul.f32 %v3284, %v3300
        %v3305 = vpack.c.bf16 %v3301, %v3301
        %v3306 = vpack.c.bf16 %v3302, %v3302
        %v3307 = vpack.c.bf16 %v3303, %v3303
        %v3308 = vpack.c.bf16 %v3304, %v3304
        %3309 = vrot.lane.b32.xlu0 %v1730, 40
        %v3310 = vpop.permute.xlu0 %3309
        %v3312 = vsel %vm1982, %v3305, 0
        %v3315 = vand.u32 %v3310, %v1989
        %3317 = vmatprep.subr.bf16.mxu0 0
        %3318 = vmatpush1.bf16.msra.mxu0 %v3315
        %3319 = vmatprep.subr.bf16.mxu0 0
        %3320 = vmatpush1.bf16.msra.mxu0 0
        %3321 = vmatprep.subr.bf16.mxu0 0
        %3322 = vmatpush1.bf16.msra.mxu0 0
        %3323 = vmatprep.subr.bf16.mxu0 0
        %3324 = vmatpush1.bf16.msra.mxu0 0
        %3325 = vmatprep.subr.bf16.mxu0 0
        %3326 = vmatpush1.bf16.msra.mxu0 0
        %3327 = vmatprep.subr.bf16.mxu0 0
        %3328 = vmatpush1.bf16.msra.mxu0 0
        %3329 = vmatprep.subr.bf16.mxu0 0
        %3330 = vmatpush1.bf16.msra.mxu0 0
        %3331 = vmatprep.subr.bf16.mxu0 0
        %3332 = vmatpush1.bf16.msra.mxu0 0
        %3333 = vmatprep.subr.bf16.mxu0 0
        %3334 = vmatpush1.bf16.msra.mxu0 0
        %3335 = vmatprep.subr.bf16.mxu0 0
        %3336 = vmatpush1.bf16.msra.mxu0 0
        %3337 = vmatprep.subr.bf16.mxu0 0
        %3338 = vmatpush1.bf16.msra.mxu0 0
        %3339 = vmatprep.subr.bf16.mxu0 0
        %3340 = vmatpush1.bf16.msra.mxu0 0
        %3341 = vmatprep.subr.bf16.mxu0 0
        %3342 = vmatpush1.bf16.msra.mxu0 0
        %3343 = vmatprep.subr.bf16.mxu0 0
        %3344 = vmatpush1.bf16.msra.mxu0 0
        %3345 = vmatprep.subr.bf16.mxu0 0
        %3346 = vmatpush1.bf16.msra.mxu0 0
        %3347 = vmatprep.subr.bf16.mxu0 0
        %3348 = vmatpush1.bf16.msra.mxu0 0
        %3349 = vmatprep.mubr.bf16.mxu0 0
        %3350 = vmatmul.mubr.bf16.gmra.mrb[0].mxu0 %v3312
        %v3351 = vpop.f32.mrb[0].mxu0
        %v3352 = vadd.f32 0.0, %v3351
        %v3353 = vpop.f32.mrb[0].mxu0
        %v3354 = vpop.f32.mrb[0].mxu0
        %v3355 = vpop.f32.mrb[0].mxu0
        %3356 = vdwg.mxu0
        %3357 = vrot.lane.b32.xlu0 %v1731, 40
        %v3358 = vpop.permute.xlu0 %3357
        %v3360 = vsel %vm1982, %v3306, 0
        %v3363 = vand.u32 %v3358, %v1989
        %3365 = vmatprep.subr.bf16.mxu0 0
        %3366 = vmatpush1.bf16.msra.mxu0 %v3363
        %3367 = vmatprep.subr.bf16.mxu0 0
        %3368 = vmatpush1.bf16.msra.mxu0 0
        %3369 = vmatprep.subr.bf16.mxu0 0
        %3370 = vmatpush1.bf16.msra.mxu0 0
        %3371 = vmatprep.subr.bf16.mxu0 0
        %3372 = vmatpush1.bf16.msra.mxu0 0
        %3373 = vmatprep.subr.bf16.mxu0 0
        %3374 = vmatpush1.bf16.msra.mxu0 0
        %3375 = vmatprep.subr.bf16.mxu0 0
        %3376 = vmatpush1.bf16.msra.mxu0 0
        %3377 = vmatprep.subr.bf16.mxu0 0
        %3378 = vmatpush1.bf16.msra.mxu0 0
        %3379 = vmatprep.subr.bf16.mxu0 0
        %3380 = vmatpush1.bf16.msra.mxu0 0
        %3381 = vmatprep.subr.bf16.mxu0 0
        %3382 = vmatpush1.bf16.msra.mxu0 0
        %3383 = vmatprep.subr.bf16.mxu0 0
        %3384 = vmatpush1.bf16.msra.mxu0 0
        %3385 = vmatprep.subr.bf16.mxu0 0
        %3386 = vmatpush1.bf16.msra.mxu0 0
        %3387 = vmatprep.subr.bf16.mxu0 0
        %3388 = vmatpush1.bf16.msra.mxu0 0
        %3389 = vmatprep.subr.bf16.mxu0 0
        %3390 = vmatpush1.bf16.msra.mxu0 0
        %3391 = vmatprep.subr.bf16.mxu0 0
        %3392 = vmatpush1.bf16.msra.mxu0 0
        %3393 = vmatprep.subr.bf16.mxu0 0
        %3394 = vmatpush1.bf16.msra.mxu0 0
        %3395 = vmatprep.subr.bf16.mxu0 0
        %3396 = vmatpush1.bf16.msra.mxu0 0
        %3397 = vmatprep.mubr.bf16.mxu0 0
        %3398 = vmatmul.mubr.bf16.gmra.mrb[0].mxu0 %v3360
        %v3399 = vpop.f32.mrb[0].mxu0
        %v3400 = vadd.f32 0.0, %v3399
        %v3401 = vpop.f32.mrb[0].mxu0
        %v3402 = vpop.f32.mrb[0].mxu0
        %v3403 = vpop.f32.mrb[0].mxu0
        %3404 = vdwg.mxu0
        %3405 = vrot.lane.b32.xlu0 %v1732, 40
        %v3406 = vpop.permute.xlu0 %3405
        %v3408 = vsel %vm1982, %v3307, 0
        %v3411 = vand.u32 %v3406, %v1989
        %3413 = vmatprep.subr.bf16.mxu0 0
        %3414 = vmatpush1.bf16.msra.mxu0 %v3411
        %3415 = vmatprep.subr.bf16.mxu0 0
        %3416 = vmatpush1.bf16.msra.mxu0 0
        %3417 = vmatprep.subr.bf16.mxu0 0
        %3418 = vmatpush1.bf16.msra.mxu0 0
        %3419 = vmatprep.subr.bf16.mxu0 0
        %3420 = vmatpush1.bf16.msra.mxu0 0
        %3421 = vmatprep.subr.bf16.mxu0 0
        %3422 = vmatpush1.bf16.msra.mxu0 0
        %3423 = vmatprep.subr.bf16.mxu0 0
        %3424 = vmatpush1.bf16.msra.mxu0 0
        %3425 = vmatprep.subr.bf16.mxu0 0
        %3426 = vmatpush1.bf16.msra.mxu0 0
        %3427 = vmatprep.subr.bf16.mxu0 0
        %3428 = vmatpush1.bf16.msra.mxu0 0
        %3429 = vmatprep.subr.bf16.mxu0 0
        %3430 = vmatpush1.bf16.msra.mxu0 0
        %3431 = vmatprep.subr.bf16.mxu0 0
        %3432 = vmatpush1.bf16.msra.mxu0 0
        %3433 = vmatprep.subr.bf16.mxu0 0
        %3434 = vmatpush1.bf16.msra.mxu0 0
        %3435 = vmatprep.subr.bf16.mxu0 0
        %3436 = vmatpush1.bf16.msra.mxu0 0
        %3437 = vmatprep.subr.bf16.mxu0 0
        %3438 = vmatpush1.bf16.msra.mxu0 0
        %3439 = vmatprep.subr.bf16.mxu0 0
        %3440 = vmatpush1.bf16.msra.mxu0 0
        %3441 = vmatprep.subr.bf16.mxu0 0
        %3442 = vmatpush1.bf16.msra.mxu0 0
        %3443 = vmatprep.subr.bf16.mxu0 0
        %3444 = vmatpush1.bf16.msra.mxu0 0
        %3445 = vmatprep.mubr.bf16.mxu0 0
        %3446 = vmatmul.mubr.bf16.gmra.mrb[0].mxu0 %v3408
        %v3447 = vpop.f32.mrb[0].mxu0
        %v3448 = vadd.f32 0.0, %v3447
        %v3449 = vpop.f32.mrb[0].mxu0
        %v3450 = vpop.f32.mrb[0].mxu0
        %v3451 = vpop.f32.mrb[0].mxu0
        %3452 = vdwg.mxu0
        %3453 = vrot.lane.b32.xlu0 %v1733, 40
        %v3454 = vpop.permute.xlu0 %3453
        %v3456 = vsel %vm1982, %v3308, 0
        %v3459 = vand.u32 %v3454, %v1989
        %3461 = vmatprep.subr.bf16.mxu0 0
        %3462 = vmatpush1.bf16.msra.mxu0 %v3459
        %3463 = vmatprep.subr.bf16.mxu0 0
        %3464 = vmatpush1.bf16.msra.mxu0 0
        %3465 = vmatprep.subr.bf16.mxu0 0
        %3466 = vmatpush1.bf16.msra.mxu0 0
        %3467 = vmatprep.subr.bf16.mxu0 0
        %3468 = vmatpush1.bf16.msra.mxu0 0
        %3469 = vmatprep.subr.bf16.mxu0 0
        %3470 = vmatpush1.bf16.msra.mxu0 0
        %3471 = vmatprep.subr.bf16.mxu0 0
        %3472 = vmatpush1.bf16.msra.mxu0 0
        %3473 = vmatprep.subr.bf16.mxu0 0
        %3474 = vmatpush1.bf16.msra.mxu0 0
        %3475 = vmatprep.subr.bf16.mxu0 0
        %3476 = vmatpush1.bf16.msra.mxu0 0
        %3477 = vmatprep.subr.bf16.mxu0 0
        %3478 = vmatpush1.bf16.msra.mxu0 0
        %3479 = vmatprep.subr.bf16.mxu0 0
        %3480 = vmatpush1.bf16.msra.mxu0 0
        %3481 = vmatprep.subr.bf16.mxu0 0
        %3482 = vmatpush1.bf16.msra.mxu0 0
        %3483 = vmatprep.subr.bf16.mxu0 0
        %3484 = vmatpush1.bf16.msra.mxu0 0
        %3485 = vmatprep.subr.bf16.mxu0 0
        %3486 = vmatpush1.bf16.msra.mxu0 0
        %3487 = vmatprep.subr.bf16.mxu0 0
        %3488 = vmatpush1.bf16.msra.mxu0 0
        %3489 = vmatprep.subr.bf16.mxu0 0
        %3490 = vmatpush1.bf16.msra.mxu0 0
        %3491 = vmatprep.subr.bf16.mxu0 0
        %3492 = vmatpush1.bf16.msra.mxu0 0
        %3493 = vmatprep.mubr.bf16.mxu0 0
        %3494 = vmatmul.mubr.bf16.gmra.mrb[0].mxu0 %v3456
        %v3495 = vpop.f32.mrb[0].mxu0
        %v3496 = vadd.f32 0.0, %v3495
        %v3497 = vpop.f32.mrb[0].mxu0
        %v3498 = vpop.f32.mrb[0].mxu0
        %v3499 = vpop.f32.mrb[0].mxu0
        %3500 = vdwg.mxu0
        %3505 = vrot.lane.b32.xlu0 %v2472, 8
        %v3506 = vpop.permute.xlu0 %3505
        %3507 = vrot.lane.b32.xlu0 %v2520, 8
        %v3508 = vpop.permute.xlu0 %3507
        %3509 = vrot.lane.b32.xlu0 %v2568, 8
        %v3510 = vpop.permute.xlu0 %3509
        %3511 = vrot.lane.b32.xlu0 %v2616, 8
        %v3512 = vpop.permute.xlu0 %3511
        %3521 = vrot.lane.b32.xlu0 %v2912, 16
        %v3522 = vpop.permute.xlu0 %3521
        %3523 = vrot.lane.b32.xlu0 %v2960, 16
        %v3524 = vpop.permute.xlu0 %3523
        %3525 = vrot.lane.b32.xlu0 %v3008, 16
        %v3526 = vpop.permute.xlu0 %3525
        %3527 = vrot.lane.b32.xlu0 %v3056, 16
        %v3528 = vpop.permute.xlu0 %3527
        %3537 = vrot.lane.b32.xlu0 %v3352, 24
        %v3538 = vpop.permute.xlu0 %3537
        %3539 = vrot.lane.b32.xlu0 %v3400, 24
        %v3540 = vpop.permute.xlu0 %3539
        %3541 = vrot.lane.b32.xlu0 %v3448, 24
        %v3542 = vpop.permute.xlu0 %3541
        %3543 = vrot.lane.b32.xlu0 %v3496, 24
        %v3544 = vpop.permute.xlu0 %3543
        %v3549 = vsel %vm1737, %v2028, %v3506
        %v3550 = vsel %vm1737, %v2076, %v3508
        %v3551 = vsel %vm1737, %v2124, %v3510
        %v3552 = vsel %vm1737, %v2172, %v3512
        %vm3553 = vcmask 130048
        %v3554 = vsel %vm3553, %v3549, %v3522
        %v3555 = vsel %vm3553, %v3550, %v3524
        %v3556 = vsel %vm3553, %v3551, %v3526
        %v3557 = vsel %vm3553, %v3552, %v3528
        %vm3558 = vcmask 195584
        %v3559 = vsel %vm3558, %v3554, %v3538
        %v3560 = vsel %vm3558, %v3555, %v3540
        %v3561 = vsel %vm3558, %v3556, %v3542
        %v3562 = vsel %vm3558, %v3557, %v3544
        %v3567 = vcombine.high %v3559, %v3559
        %v3569 = vunpack.c.l.s4 1966171168
        %v3570 = vunpack.c.0.s8 %v3569
        %v3571 = vlaneseq
        %v3572 = vshrl.u32 %v3571, 7
        %v3573 = vsub.s32 %v3570, %v3572
        %v3574 = vrot.slane %v3559, %v3573
        %v3576 = vunpack.c.l.s4 1966171168
        %v3577 = vunpack.c.0.s8 %v3576
        %v3578 = vlaneseq
        %v3579 = vshrl.u32 %v3578, 7
        %v3580 = vsub.s32 %v3577, %v3579
        %v3581 = vrot.slane %v3567, %v3580
        %v3582 = vcombine.high %v3574, %v3574
        %v3584 = vunpack.c.l.s4 1966171168
        %v3585 = vunpack.c.0.s8 %v3584
        %v3586 = vlaneseq
        %v3587 = vshrl.u32 %v3586, 7
        %v3588 = vsub.s32 %v3585, %v3587
        %v3589 = vrot.slane %v3574, %v3588
        %v3591 = vunpack.c.l.s4 1966171168
        %v3592 = vunpack.c.0.s8 %v3591
        %v3593 = vlaneseq
        %v3594 = vshrl.u32 %v3593, 7
        %v3595 = vsub.s32 %v3592, %v3594
        %v3596 = vrot.slane %v3581, %v3595
        %v3598 = vunpack.c.l.s4 1966171168
        %v3599 = vunpack.c.0.s8 %v3598
        %v3600 = vlaneseq
        %v3601 = vshrl.u32 %v3600, 7
        %v3602 = vsub.s32 %v3599, %v3601
        %v3603 = vrot.slane %v3582, %v3602
        %v3604 = vcombine.high %v3589, %v3589
        %v3605 = vcombine.high %v3603, %v3603
        %v3606 = vcombine.high %v3560, %v3560
        %v3608 = vunpack.c.l.s4 1966171168
        %v3609 = vunpack.c.0.s8 %v3608
        %v3610 = vlaneseq
        %v3611 = vshrl.u32 %v3610, 7
        %v3612 = vsub.s32 %v3609, %v3611
        %v3613 = vrot.slane %v3560, %v3612
        %v3615 = vunpack.c.l.s4 1966171168
        %v3616 = vunpack.c.0.s8 %v3615
        %v3617 = vlaneseq
        %v3618 = vshrl.u32 %v3617, 7
        %v3619 = vsub.s32 %v3616, %v3618
        %v3620 = vrot.slane %v3606, %v3619
        %v3621 = vcombine.high %v3613, %v3613
        %v3623 = vunpack.c.l.s4 1966171168
        %v3624 = vunpack.c.0.s8 %v3623
        %v3625 = vlaneseq
        %v3626 = vshrl.u32 %v3625, 7
        %v3627 = vsub.s32 %v3624, %v3626
        %v3628 = vrot.slane %v3613, %v3627
        %v3630 = vunpack.c.l.s4 1966171168
        %v3631 = vunpack.c.0.s8 %v3630
        %v3632 = vlaneseq
        %v3633 = vshrl.u32 %v3632, 7
        %v3634 = vsub.s32 %v3631, %v3633
        %v3635 = vrot.slane %v3620, %v3634
        %v3637 = vunpack.c.l.s4 1966171168
        %v3638 = vunpack.c.0.s8 %v3637
        %v3639 = vlaneseq
        %v3640 = vshrl.u32 %v3639, 7
        %v3641 = vsub.s32 %v3638, %v3640
        %v3642 = vrot.slane %v3621, %v3641
        %v3643 = vcombine.high %v3628, %v3628
        %v3644 = vcombine.high %v3642, %v3642
        %v3645 = vcombine.high %v3561, %v3561
        %v3647 = vunpack.c.l.s4 1966171168
        %v3648 = vunpack.c.0.s8 %v3647
        %v3649 = vlaneseq
        %v3650 = vshrl.u32 %v3649, 7
        %v3651 = vsub.s32 %v3648, %v3650
        %v3652 = vrot.slane %v3561, %v3651
        %v3654 = vunpack.c.l.s4 1966171168
        %v3655 = vunpack.c.0.s8 %v3654
        %v3656 = vlaneseq
        %v3657 = vshrl.u32 %v3656, 7
        %v3658 = vsub.s32 %v3655, %v3657
        %v3659 = vrot.slane %v3645, %v3658
        %v3660 = vcombine.high %v3652, %v3652
        %v3662 = vunpack.c.l.s4 1966171168
        %v3663 = vunpack.c.0.s8 %v3662
        %v3664 = vlaneseq
        %v3665 = vshrl.u32 %v3664, 7
        %v3666 = vsub.s32 %v3663, %v3665
        %v3667 = vrot.slane %v3652, %v3666
        %v3669 = vunpack.c.l.s4 1966171168
        %v3670 = vunpack.c.0.s8 %v3669
        %v3671 = vlaneseq
        %v3672 = vshrl.u32 %v3671, 7
        %v3673 = vsub.s32 %v3670, %v3672
        %v3674 = vrot.slane %v3659, %v3673
        %v3676 = vunpack.c.l.s4 1966171168
        %v3677 = vunpack.c.0.s8 %v3676
        %v3678 = vlaneseq
        %v3679 = vshrl.u32 %v3678, 7
        %v3680 = vsub.s32 %v3677, %v3679
        %v3681 = vrot.slane %v3660, %v3680
        %v3682 = vcombine.high %v3667, %v3667
        %v3683 = vcombine.high %v3681, %v3681
        %v3684 = vcombine.high %v3562, %v3562
        %v3686 = vunpack.c.l.s4 1966171168
        %v3687 = vunpack.c.0.s8 %v3686
        %v3688 = vlaneseq
        %v3689 = vshrl.u32 %v3688, 7
        %v3690 = vsub.s32 %v3687, %v3689
        %v3691 = vrot.slane %v3562, %v3690
        %v3693 = vunpack.c.l.s4 1966171168
        %v3694 = vunpack.c.0.s8 %v3693
        %v3695 = vlaneseq
        %v3696 = vshrl.u32 %v3695, 7
        %v3697 = vsub.s32 %v3694, %v3696
        %v3698 = vrot.slane %v3684, %v3697
        %v3699 = vcombine.high %v3691, %v3691
        %v3701 = vunpack.c.l.s4 1966171168
        %v3702 = vunpack.c.0.s8 %v3701
        %v3703 = vlaneseq
        %v3704 = vshrl.u32 %v3703, 7
        %v3705 = vsub.s32 %v3702, %v3704
        %v3706 = vrot.slane %v3691, %v3705
        %v3708 = vunpack.c.l.s4 1966171168
        %v3709 = vunpack.c.0.s8 %v3708
        %v3710 = vlaneseq
        %v3711 = vshrl.u32 %v3710, 7
        %v3712 = vsub.s32 %v3709, %v3711
        %v3713 = vrot.slane %v3698, %v3712
        %v3715 = vunpack.c.l.s4 1966171168
        %v3716 = vunpack.c.0.s8 %v3715
        %v3717 = vlaneseq
        %v3718 = vshrl.u32 %v3717, 7
        %v3719 = vsub.s32 %v3716, %v3718
        %v3720 = vrot.slane %v3699, %v3719
        %v3721 = vcombine.high %v3706, %v3706
        %v3722 = vcombine.high %v3720, %v3720
        %v3723 = vcombine.low %v3589, %v3603
        %v3724 = vcombine.low %v3604, %v3605
        %v3725 = vcombine.low %v3596, %v3628
        %v3726 = vcombine.low %v3642, %v3643
        %v3728 = vunpack.c.l.s4 1966171168
        %v3729 = vunpack.c.0.s8 %v3728
        %v3730 = vlaneseq
        %v3731 = vshrl.u32 %v3730, 7
        %v3732 = vsub.s32 %v3729, %v3731
        %v3733 = vrot.slane %v3723, %v3732
        %v3735 = vunpack.c.l.s4 1966171168
        %v3736 = vunpack.c.0.s8 %v3735
        %v3737 = vlaneseq
        %v3738 = vshrl.u32 %v3737, 7
        %v3739 = vsub.s32 %v3736, %v3738
        %v3740 = vrot.slane %v3724, %v3739
        %v3742 = vunpack.c.l.s4 1966171168
        %v3743 = vunpack.c.0.s8 %v3742
        %v3744 = vlaneseq
        %v3745 = vshrl.u32 %v3744, 7
        %v3746 = vsub.s32 %v3743, %v3745
        %v3747 = vrot.slane %v3725, %v3746
        %v3749 = vunpack.c.l.s4 1966171168
        %v3750 = vunpack.c.0.s8 %v3749
        %v3751 = vlaneseq
        %v3752 = vshrl.u32 %v3751, 7
        %v3753 = vsub.s32 %v3750, %v3752
        %v3754 = vrot.slane %v3726, %v3753
        %v3755 = vcombine.low %v3733, %v3740
        %v3756 = vcombine.low %v3747, %v3754
        %v3758 = vunpack.c.l.s4 1966171168
        %v3759 = vunpack.c.0.s8 %v3758
        %v3760 = vlaneseq
        %v3761 = vshrl.u32 %v3760, 7
        %v3762 = vsub.s32 %v3759, %v3761
        %v3763 = vrot.slane %v3755, %v3762
        %v3765 = vunpack.c.l.s4 1966171168
        %v3766 = vunpack.c.0.s8 %v3765
        %v3767 = vlaneseq
        %v3768 = vshrl.u32 %v3767, 7
        %v3769 = vsub.s32 %v3766, %v3768
        %v3770 = vrot.slane %v3756, %v3769
        %v3771 = vcombine.low %v3763, %v3770
        %v3772 = vcombine.low %v3644, %v3635
        %v3773 = vcombine.low %v3667, %v3681
        %v3774 = vcombine.low %v3682, %v3683
        %v3775 = vcombine.low %v3674, %v3706
        %v3777 = vunpack.c.l.s4 1966171168
        %v3778 = vunpack.c.0.s8 %v3777
        %v3779 = vlaneseq
        %v3780 = vshrl.u32 %v3779, 7
        %v3781 = vsub.s32 %v3778, %v3780
        %v3782 = vrot.slane %v3772, %v3781
        %v3784 = vunpack.c.l.s4 1966171168
        %v3785 = vunpack.c.0.s8 %v3784
        %v3786 = vlaneseq
        %v3787 = vshrl.u32 %v3786, 7
        %v3788 = vsub.s32 %v3785, %v3787
        %v3789 = vrot.slane %v3773, %v3788
        %v3791 = vunpack.c.l.s4 1966171168
        %v3792 = vunpack.c.0.s8 %v3791
        %v3793 = vlaneseq
        %v3794 = vshrl.u32 %v3793, 7
        %v3795 = vsub.s32 %v3792, %v3794
        %v3796 = vrot.slane %v3774, %v3795
        %v3798 = vunpack.c.l.s4 1966171168
        %v3799 = vunpack.c.0.s8 %v3798
        %v3800 = vlaneseq
        %v3801 = vshrl.u32 %v3800, 7
        %v3802 = vsub.s32 %v3799, %v3801
        %v3803 = vrot.slane %v3775, %v3802
        %v3804 = vcombine.low %v3782, %v3789
        %v3805 = vcombine.low %v3796, %v3803
        %v3807 = vunpack.c.l.s4 1966171168
        %v3808 = vunpack.c.0.s8 %v3807
        %v3809 = vlaneseq
        %v3810 = vshrl.u32 %v3809, 7
        %v3811 = vsub.s32 %v3808, %v3810
        %v3812 = vrot.slane %v3804, %v3811
        %v3814 = vunpack.c.l.s4 1966171168
        %v3815 = vunpack.c.0.s8 %v3814
        %v3816 = vlaneseq
        %v3817 = vshrl.u32 %v3816, 7
        %v3818 = vsub.s32 %v3815, %v3817
        %v3819 = vrot.slane %v3805, %v3818
        %v3820 = vcombine.low %v3812, %v3819
        %v3821 = vcombine.low %v3720, %v3721
        %v3822 = vcombine.low %v3722, %v3713
        %v3824 = vunpack.c.l.s4 1966171168
        %v3825 = vunpack.c.0.s8 %v3824
        %v3826 = vlaneseq
        %v3827 = vshrl.u32 %v3826, 7
        %v3828 = vsub.s32 %v3825, %v3827
        %v3829 = vrot.slane %v3821, %v3828
        %v3831 = vunpack.c.l.s4 1966171168
        %v3832 = vunpack.c.0.s8 %v3831
        %v3833 = vlaneseq
        %v3834 = vshrl.u32 %v3833, 7
        %v3835 = vsub.s32 %v3832, %v3834
        %v3836 = vrot.slane %v3822, %v3835
        %v3837 = vcombine.low %v3829, %v3836
        %v3839 = vunpack.c.l.s4 1966171168
        %v3840 = vunpack.c.0.s8 %v3839
        %v3841 = vlaneseq
        %v3842 = vshrl.u32 %v3841, 7
        %v3843 = vsub.s32 %v3840, %v3842
        %v3844 = vrot.slane %v3837, %v3843
        %v3848 = vpack.c.bf16 %v3820, %v3771
        %v3849 = vpack.c.bf16 %v3844, %v3844
        %v3850 = vld [vmem:[%s9] sm:$0xf]
        %v3851 = vld [vmem:[%s9 + $0x4] sm:$0xf]
        %v3852 = vld [vmem:[%s9 + $0x8] sm:$0xf]
        %v3853 = vld [vmem:[%s9 + $0xc] sm:$0xf]
        %v3858 = vunpack.c.l.b16 %v3850
        %v3859 = vunpack.c.l.b16 %v3851
        %v3860 = vunpack.c.l.b16 %v3852
        %v3861 = vunpack.c.l.b16 %v3853
        %v3862 = vpack.c.b16 %v3859, %v3858
        %v3863 = vpack.c.b16 %v3861, %v3860
        %v3867 = vsel %vm1011, %v3848, 0
        %v3870 = vsel %vm1011, %v3849, 0
        %3872 = vmatprep.subr.bf16.mxu0 0
        %3873 = vmatpush1.bf16.msra.mxu0 %v3862
        %3874 = vmatprep.subr.bf16.mxu0 0
        %3875 = vmatpush1.bf16.msra.mxu0 %v3863
        %3876 = vmatprep.subr.bf16.mxu0 0
        %3877 = vmatpush1.bf16.msra.mxu0 0
        %3878 = vmatprep.subr.bf16.mxu0 0
        %3879 = vmatpush1.bf16.msra.mxu0 0
        %3880 = vmatprep.subr.bf16.mxu0 0
        %3881 = vmatpush1.bf16.msra.mxu0 0
        %3882 = vmatprep.subr.bf16.mxu0 0
        %3883 = vmatpush1.bf16.msra.mxu0 0
        %3884 = vmatprep.subr.bf16.mxu0 0
        %3885 = vmatpush1.bf16.msra.mxu0 0
        %3886 = vmatprep.subr.bf16.mxu0 0
        %3887 = vmatpush1.bf16.msra.mxu0 0
        %3888 = vmatprep.subr.bf16.mxu0 0
        %3889 = vmatpush1.bf16.msra.mxu0 0
        %3890 = vmatprep.subr.bf16.mxu0 0
        %3891 = vmatpush1.bf16.msra.mxu0 0
        %3892 = vmatprep.subr.bf16.mxu0 0
        %3893 = vmatpush1.bf16.msra.mxu0 0
        %3894 = vmatprep.subr.bf16.mxu0 0
        %3895 = vmatpush1.bf16.msra.mxu0 0
        %3896 = vmatprep.subr.bf16.mxu0 0
        %3897 = vmatpush1.bf16.msra.mxu0 0
        %3898 = vmatprep.subr.bf16.mxu0 0
        %3899 = vmatpush1.bf16.msra.mxu0 0
        %3900 = vmatprep.subr.bf16.mxu0 0
        %3901 = vmatpush1.bf16.msra.mxu0 0
        %3902 = vmatprep.subr.bf16.mxu0 0
        %3903 = vmatpush1.bf16.msra.mxu0 0
        %3904 = vmatprep.mubr.bf16.mxu0 0
        %3905 = vmatmul.mubr.bf16.gmra.mrb[0].mxu0 %v3867
        %v3906 = vpop.f32.mrb[0].mxu0
        %v3907 = vadd.f32 0.0, %v3906
        %v3908 = vpop.f32.mrb[0].mxu0
        %v3909 = vpop.f32.mrb[0].mxu0
        %v3910 = vadd.f32 0.0, %v3909
        %v3911 = vpop.f32.mrb[0].mxu0
        %3912 = vmatprep.mubr.bf16.mxu0 0
        %3913 = vmatmul.mubr.bf16.gmra.mrb[0].mxu0 %v3870
        %v3914 = vpop.f32.mrb[0].mxu0
        %v3915 = vadd.f32 0.0, %v3914
        %v3916 = vpop.f32.mrb[0].mxu0
        %v3917 = vpop.f32.mrb[0].mxu0
        %v3918 = vpop.f32.mrb[0].mxu0
        %3919 = vdwg.mxu0
        %v3920 = vadd.f32 %v1074, %v3907
        %v3921 = vadd.f32 %v1075, %v3910
        %v3922 = vadd.f32 %v1076, %v3915
        %v3923 = vld [vmem:[%s10] sm:$0x1]
        %v3925 = vlaneseq
        %v3926 = vshrl.u32 %v3925, 7
        %v3927 = vsub.s32 0, %v3926
        %v3928 = vrot.slane %v3923, %v3927
        %v3930 = vadd.f32 %v3920, %v3928
        %v3931 = vadd.f32 %v3921, %v3928
        %v3932 = vadd.f32 %v3922, %v3928
        %v3933 = vld [vmem:[%s11] sm:$0x1]
        %v3934 = vld [vmem:[%s12] sm:$0x1]
        %v3935 = vsel %vm1011, %v3930, 0.0
        %3936 = vadd.xlane.f32.xlu0 %v3935
        %v3937 = vpop.xlane.xlu0 %3936
        %v3938 = vsel %vm1011, %v3931, 0.0
        %3939 = vadd.xlane.f32.xlu0 %v3938
        %v3940 = vpop.xlane.xlu0 %3939
        %v3941 = vsel %vm1018, %v3932, 0.0
        %3942 = vadd.xlane.f32.xlu0 %v3941
        %v3943 = vpop.xlane.xlu0 %3942
        %v3944 = vmul.f32 %v3937, %v1022
        %v3945 = vmul.f32 %v3940, %v1022
        %v3946 = vmul.f32 %v3943, %v1022
        %v3947 = vmul.f32 %v3930, %v3930
        %v3948 = vmul.f32 %v3931, %v3931
        %v3949 = vmul.f32 %v3932, %v3932
        %v3950 = vsel %vm1011, %v3947, 0.0
        %3951 = vadd.xlane.f32.xlu0 %v3950
        %v3952 = vpop.xlane.xlu0 %3951
        %v3953 = vsel %vm1011, %v3948, 0.0
        %3954 = vadd.xlane.f32.xlu0 %v3953
        %v3955 = vpop.xlane.xlu0 %3954
        %v3956 = vsel %vm1018, %v3949, 0.0
        %3957 = vadd.xlane.f32.xlu0 %v3956
        %v3958 = vpop.xlane.xlu0 %3957
        %v3959 = vmul.f32 %v3952, %v1022
        %v3960 = vmul.f32 %v3955, %v1022
        %v3961 = vmul.f32 %v3958, %v1022
        %v3962 = vmul.f32 %v3944, %v3944
        %v3963 = vmul.f32 %v3945, %v3945
        %v3964 = vmul.f32 %v3946, %v3946
        %v3965 = vsub.f32 %v3959, %v3962
        %v3966 = vsub.f32 %v3960, %v3963
        %v3967 = vsub.f32 %v3961, %v3964
        %v3968 = vsub.f32 %v3930, %v3944
        %v3969 = vsub.f32 %v3931, %v3945
        %v3970 = vsub.f32 %v3932, %v3946
        %v3971 = vadd.f32 %v3965, 1e-05
        %v3972 = vadd.f32 %v3966, 1e-05
        %v3973 = vadd.f32 %v3967, 1e-05
        %v3974 = vrsqrt.pop %v3971
        %v3975 = vrsqrt.pop %v3972
        %v3976 = vrsqrt.pop %v3973
        %v3977 = vmul.f32 %v3968, %v3974
        %v3978 = vmul.f32 %v3969, %v3975
        %v3979 = vmul.f32 %v3970, %v3976
        %v3981 = vlaneseq
        %v3982 = vshrl.u32 %v3981, 7
        %v3983 = vsub.s32 0, %v3982
        %v3984 = vrot.slane %v3933, %v3983
        %v3986 = vmul.f32 %v3977, %v3984
        %v3987 = vmul.f32 %v3978, %v3984
        %v3988 = vmul.f32 %v3979, %v3984
        %v3990 = vlaneseq
        %v3991 = vshrl.u32 %v3990, 7
        %v3992 = vsub.s32 0, %v3991
        %v3993 = vrot.slane %v3934, %v3992
        %v3995 = vadd.f32 %v3986, %v3993
        %v3996 = vadd.f32 %v3987, %v3993
        %v3997 = vadd.f32 %v3988, %v3993
        %v3998 = vpack.c.bf16 %v3996, %v3995
        %v3999 = vpack.c.bf16 %v3997, %v3997
        %v4000 = vld [vmem:[%s13] sm:$0xf]
        %v4001 = vld [vmem:[%s13 + $0x4] sm:$0xf]
        %v4002 = vld [vmem:[%s13 + $0x8] sm:$0xf]
        %v4003 = vld [vmem:[%s13 + $0xc] sm:$0xf]
        %v4004 = vld [vmem:[%s14] sm:$0x1]
        %v4006 = vlaneseq
        %v4007 = vshrl.u32 %v4006, 7
        %v4008 = vsub.s32 0, %v4007
        %v4009 = vrot.slane %v4004, %v4008
        %v4015 = vunpack.c.l.b16 %v4000
        %v4016 = vunpack.c.l.b16 %v4001
        %v4017 = vunpack.c.l.b16 %v4002
        %v4018 = vunpack.c.l.b16 %v4003
        %v4019 = vpack.c.b16 %v4016, %v4015
        %v4020 = vpack.c.b16 %v4018, %v4017
        %v4024 = vsel %vm1011, %v3998, 0
        %v4027 = vsel %vm1011, %v3999, 0
        %4029 = vmatprep.subr.bf16.mxu0 0
        %4030 = vmatpush1.bf16.msra.mxu0 %v4019
        %4031 = vmatprep.subr.bf16.mxu0 0
        %4032 = vmatpush1.bf16.msra.mxu0 %v4020
        %4033 = vmatprep.subr.bf16.mxu0 0
        %4034 = vmatpush1.bf16.msra.mxu0 0
        %4035 = vmatprep.subr.bf16.mxu0 0
        %4036 = vmatpush1.bf16.msra.mxu0 0
        %4037 = vmatprep.subr.bf16.mxu0 0
        %4038 = vmatpush1.bf16.msra.mxu0 0
        %4039 = vmatprep.subr.bf16.mxu0 0
        %4040 = vmatpush1.bf16.msra.mxu0 0
        %4041 = vmatprep.subr.bf16.mxu0 0
        %4042 = vmatpush1.bf16.msra.mxu0 0
        %4043 = vmatprep.subr.bf16.mxu0 0
        %4044 = vmatpush1.bf16.msra.mxu0 0
        %4045 = vmatprep.subr.bf16.mxu0 0
        %4046 = vmatpush1.bf16.msra.mxu0 0
        %4047 = vmatprep.subr.bf16.mxu0 0
        %4048 = vmatpush1.bf16.msra.mxu0 0
        %4049 = vmatprep.subr.bf16.mxu0 0
        %4050 = vmatpush1.bf16.msra.mxu0 0
        %4051 = vmatprep.subr.bf16.mxu0 0
        %4052 = vmatpush1.bf16.msra.mxu0 0
        %4053 = vmatprep.subr.bf16.mxu0 0
        %4054 = vmatpush1.bf16.msra.mxu0 0
        %4055 = vmatprep.subr.bf16.mxu0 0
        %4056 = vmatpush1.bf16.msra.mxu0 0
        %4057 = vmatprep.subr.bf16.mxu0 0
        %4058 = vmatpush1.bf16.msra.mxu0 0
        %4059 = vmatprep.subr.bf16.mxu0 0
        %4060 = vmatpush1.bf16.msra.mxu0 0
        %4061 = vmatprep.mubr.bf16.mxu0 0
        %4062 = vmatmul.mubr.bf16.gmra.mrb[0].mxu0 %v4024
        %v4063 = vpop.f32.mrb[0].mxu0
        %v4064 = vadd.f32 %v4009, %v4063
        %v4065 = vpop.f32.mrb[0].mxu0
        %v4066 = vpop.f32.mrb[0].mxu0
        %v4067 = vadd.f32 %v4009, %v4066
        %v4068 = vpop.f32.mrb[0].mxu0
        %4069 = vmatprep.mubr.bf16.mxu0 0
        %4070 = vmatmul.mubr.bf16.gmra.mrb[0].mxu0 %v4027
        %v4071 = vpop.f32.mrb[0].mxu0
        %v4072 = vadd.f32 %v4009, %v4071
        %v4073 = vpop.f32.mrb[0].mxu0
        %v4074 = vpop.f32.mrb[0].mxu0
        %v4075 = vpop.f32.mrb[0].mxu0
        %4076 = vdwg.mxu0
        %v4077 = vmul.f32 %v4064, 1.702
        %v4078 = vmul.f32 %v4067, 1.702
        %v4079 = vmul.f32 %v4072, 1.702
        %v4080 = vxor.u32 %v4077, 2147483648
        %v4081 = vxor.u32 %v4078, 2147483648
        %v4082 = vxor.u32 %v4079, 2147483648
        %v4083 = vmul.f32 %v4080, 1.442695
        %v4084 = vpow.pop %v4083
        %v4085 = vmul.f32 %v4081, 1.442695
        %v4086 = vpow.pop %v4085
        %v4087 = vmul.f32 %v4082, 1.442695
        %v4088 = vpow.pop %v4087
        %v4089 = vadd.f32 %v4084, 1.0
        %v4090 = vadd.f32 %v4086, 1.0
        %v4091 = vadd.f32 %v4088, 1.0
        %v4092 = vrcp.pop %v4089
        %v4093 = vmul.f32 1.0, %v4092
        %v4094 = vrcp.pop %v4090
        %v4095 = vmul.f32 1.0, %v4094
        %v4096 = vrcp.pop %v4091
        %v4097 = vmul.f32 1.0, %v4096
        %v4098 = vmul.f32 %v4064, %v4093
        %v4099 = vmul.f32 %v4067, %v4095
        %v4100 = vmul.f32 %v4072, %v4097
        %v4101 = vpack.c.bf16 %v4099, %v4098
        %v4102 = vpack.c.bf16 %v4100, %v4100
        %v4103 = vld [vmem:[%s15] sm:$0xf]
        %v4104 = vld [vmem:[%s15 + $0x4] sm:$0xf]
        %v4105 = vld [vmem:[%s15 + $0x8] sm:$0xf]
        %v4106 = vld [vmem:[%s15 + $0xc] sm:$0xf]
        %v4107 = vld [vmem:[%s15 + $0x10] sm:$0xf]
        %v4108 = vld [vmem:[%s15 + $0x14] sm:$0xf]
        %v4109 = vld [vmem:[%s15 + $0x18] sm:$0xf]
        %v4110 = vld [vmem:[%s15 + $0x1c] sm:$0xf]
        %v4111 = vld [vmem:[%s15 + $0x20] sm:$0xf]
        %v4112 = vld [vmem:[%s15 + $0x24] sm:$0xf]
        %v4113 = vld [vmem:[%s15 + $0x28] sm:$0xf]
        %v4114 = vld [vmem:[%s15 + $0x2c] sm:$0xf]
        %v4115 = vld [vmem:[%s15 + $0x30] sm:$0xf]
        %v4116 = vld [vmem:[%s15 + $0x34] sm:$0xf]
        %v4117 = vld [vmem:[%s15 + $0x38] sm:$0xf]
        %v4118 = vld [vmem:[%s15 + $0x3c] sm:$0xf]
        %v4135 = vunpack.c.l.b16 %v4103
        %v4136 = vunpack.c.l.b16 %v4104
        %v4137 = vunpack.c.l.b16 %v4105
        %v4138 = vunpack.c.l.b16 %v4106
        %v4139 = vunpack.c.l.b16 %v4107
        %v4140 = vunpack.c.l.b16 %v4108
        %v4141 = vunpack.c.l.b16 %v4109
        %v4142 = vunpack.c.l.b16 %v4110
        %v4143 = vunpack.c.l.b16 %v4111
        %v4144 = vunpack.c.l.b16 %v4112
        %v4145 = vunpack.c.l.b16 %v4113
        %v4146 = vunpack.c.l.b16 %v4114
        %v4147 = vunpack.c.l.b16 %v4115
        %v4148 = vunpack.c.l.b16 %v4116
        %v4149 = vunpack.c.l.b16 %v4117
        %v4150 = vunpack.c.l.b16 %v4118
        %v4151 = vpack.c.b16 %v4136, %v4135
        %v4152 = vpack.c.b16 %v4138, %v4137
        %v4153 = vpack.c.b16 %v4140, %v4139
        %v4154 = vpack.c.b16 %v4142, %v4141
        %v4155 = vpack.c.b16 %v4144, %v4143
        %v4156 = vpack.c.b16 %v4146, %v4145
        %v4157 = vpack.c.b16 %v4148, %v4147
        %v4158 = vpack.c.b16 %v4150, %v4149
        %4167 = vmatprep.subr.bf16.mxu0 0
        %4168 = vmatpush1.bf16.msra.mxu0 %v4151
        %4169 = vmatprep.subr.bf16.mxu0 0
        %4170 = vmatpush1.bf16.msra.mxu0 %v4152
        %4171 = vmatprep.subr.bf16.mxu0 0
        %4172 = vmatpush1.bf16.msra.mxu0 %v4153
        %4173 = vmatprep.subr.bf16.mxu0 0
        %4174 = vmatpush1.bf16.msra.mxu0 %v4154
        %4175 = vmatprep.subr.bf16.mxu0 0
        %4176 = vmatpush1.bf16.msra.mxu0 %v4155
        %4177 = vmatprep.subr.bf16.mxu0 0
        %4178 = vmatpush1.bf16.msra.mxu0 %v4156
        %4179 = vmatprep.subr.bf16.mxu0 0
        %4180 = vmatpush1.bf16.msra.mxu0 %v4157
        %4181 = vmatprep.subr.bf16.mxu0 0
        %4182 = vmatpush1.bf16.msra.mxu0 %v4158
        %4183 = vmatprep.subr.bf16.mxu0 0
        %4184 = vmatpush1.bf16.msra.mxu0 0
        %4185 = vmatprep.subr.bf16.mxu0 0
        %4186 = vmatpush1.bf16.msra.mxu0 0
        %4187 = vmatprep.subr.bf16.mxu0 0
        %4188 = vmatpush1.bf16.msra.mxu0 0
        %4189 = vmatprep.subr.bf16.mxu0 0
        %4190 = vmatpush1.bf16.msra.mxu0 0
        %4191 = vmatprep.subr.bf16.mxu0 0
        %4192 = vmatpush1.bf16.msra.mxu0 0
        %4193 = vmatprep.subr.bf16.mxu0 0
        %4194 = vmatpush1.bf16.msra.mxu0 0
        %4195 = vmatprep.subr.bf16.mxu0 0
        %4196 = vmatpush1.bf16.msra.mxu0 0
        %4197 = vmatprep.subr.bf16.mxu0 0
        %4198 = vmatpush1.bf16.msra.mxu0 0
        %4199 = vmatprep.mubr.bf16.mxu0 0
        %4200 = vmatmul.mubr.bf16.gmra.mrb[0].mxu0 %v4101
        %v4201 = vpop.f32.mrb[0].mxu0
        %v4202 = vadd.f32 0.0, %v4201
        %v4203 = vpop.f32.mrb[0].mxu0
        %v4204 = vpop.f32.mrb[0].mxu0
        %v4205 = vadd.f32 0.0, %v4204
        %v4206 = vpop.f32.mrb[0].mxu0
        %4207 = vmatprep.mubr.bf16.mxu0 0
        %4208 = vmatmul.mubr.bf16.gmra.mrb[0].mxu0 %v4102
        %v4209 = vpop.f32.mrb[0].mxu0
        %v4210 = vadd.f32 0.0, %v4209
        %v4211 = vpop.f32.mrb[0].mxu0
        %v4212 = vpop.f32.mrb[0].mxu0
        %v4213 = vpop.f32.mrb[0].mxu0
        %4214 = vdwg.mxu0
        %v4215 = vadd.f32 %v3930, %v4202
        %v4216 = vadd.f32 %v3931, %v4205
        %v4217 = vadd.f32 %v3932, %v4210
        %v4218 = vld [vmem:[%s16] sm:$0x1]
        %v4220 = vlaneseq
        %v4221 = vshrl.u32 %v4220, 7
        %v4222 = vsub.s32 0, %v4221
        %v4223 = vrot.slane %v4218, %v4222
        %v4225 = vadd.f32 %v4215, %v4223
        %v4226 = vadd.f32 %v4216, %v4223
        %v4227 = vadd.f32 %v4217, %v4223
        %s4228 = scalar_lea.vmem %s5, 1
        %v4229 = vld [vmem:[%s4228] sm:$0x1]
        %s4230 = scalar_lea.vmem %s6, 1
        %v4231 = vld [vmem:[%s4230] sm:$0x1]
        %v4232 = vsel %vm1011, %v4225, 0.0
        %4233 = vadd.xlane.f32.xlu0 %v4232
        %v4234 = vpop.xlane.xlu0 %4233
        %v4235 = vsel %vm1011, %v4226, 0.0
        %4236 = vadd.xlane.f32.xlu0 %v4235
        %v4237 = vpop.xlane.xlu0 %4236
        %v4238 = vsel %vm1018, %v4227, 0.0
        %4239 = vadd.xlane.f32.xlu0 %v4238
        %v4240 = vpop.xlane.xlu0 %4239
        %v4241 = vmul.f32 %v4234, %v1022
        %v4242 = vmul.f32 %v4237, %v1022
        %v4243 = vmul.f32 %v4240, %v1022
        %v4244 = vmul.f32 %v4225, %v4225
        %v4245 = vmul.f32 %v4226, %v4226
        %v4246 = vmul.f32 %v4227, %v4227
        %v4247 = vsel %vm1011, %v4244, 0.0
        %4248 = vadd.xlane.f32.xlu0 %v4247
        %v4249 = vpop.xlane.xlu0 %4248
        %v4250 = vsel %vm1011, %v4245, 0.0
        %4251 = vadd.xlane.f32.xlu0 %v4250
        %v4252 = vpop.xlane.xlu0 %4251
        %v4253 = vsel %vm1018, %v4246, 0.0
        %4254 = vadd.xlane.f32.xlu0 %v4253
        %v4255 = vpop.xlane.xlu0 %4254
        %v4256 = vmul.f32 %v4249, %v1022
        %v4257 = vmul.f32 %v4252, %v1022
        %v4258 = vmul.f32 %v4255, %v1022
        %v4259 = vmul.f32 %v4241, %v4241
        %v4260 = vmul.f32 %v4242, %v4242
        %v4261 = vmul.f32 %v4243, %v4243
        %v4262 = vsub.f32 %v4256, %v4259
        %v4263 = vsub.f32 %v4257, %v4260
        %v4264 = vsub.f32 %v4258, %v4261
        %v4265 = vsub.f32 %v4225, %v4241
        %v4266 = vsub.f32 %v4226, %v4242
        %v4267 = vsub.f32 %v4227, %v4243
        %v4268 = vadd.f32 %v4262, 1e-05
        %v4269 = vadd.f32 %v4263, 1e-05
        %v4270 = vadd.f32 %v4264, 1e-05
        %v4271 = vrsqrt.pop %v4268
        %v4272 = vrsqrt.pop %v4269
        %v4273 = vrsqrt.pop %v4270
        %v4274 = vmul.f32 %v4265, %v4271
        %v4275 = vmul.f32 %v4266, %v4272
        %v4276 = vmul.f32 %v4267, %v4273
        %v4278 = vlaneseq
        %v4279 = vshrl.u32 %v4278, 7
        %v4280 = vsub.s32 0, %v4279
        %v4281 = vrot.slane %v4229, %v4280
        %v4283 = vmul.f32 %v4274, %v4281
        %v4284 = vmul.f32 %v4275, %v4281
        %v4285 = vmul.f32 %v4276, %v4281
        %v4287 = vlaneseq
        %v4288 = vshrl.u32 %v4287, 7
        %v4289 = vsub.s32 0, %v4288
        %v4290 = vrot.slane %v4231, %v4289
        %v4292 = vadd.f32 %v4283, %v4290
        %v4293 = vadd.f32 %v4284, %v4290
        %v4294 = vadd.f32 %v4285, %v4290
        %v4295 = vpack.c.bf16 %v4293, %v4292
        %v4296 = vpack.c.bf16 %v4294, %v4294
        %s4297 = scalar_lea.vmem %s7, 16
        %v4298 = vld [vmem:[%s4297] sm:$0xf]
        %v4299 = vld [vmem:[%s4297 + $0x4] sm:$0xf]
        %v4300 = vld [vmem:[%s4297 + $0x8] sm:$0xf]
        %v4301 = vld [vmem:[%s4297 + $0xc] sm:$0xf]
        %s4302 = scalar_lea.vmem %s8, 1
        %v4303 = vld [vmem:[%s4302] sm:$0x1]
        %v4305 = vlaneseq
        %v4306 = vshrl.u32 %v4305, 7
        %v4307 = vsub.s32 0, %v4306
        %v4308 = vrot.slane %v4303, %v4307
        %v4314 = vunpack.c.l.b16 %v4298
        %v4315 = vunpack.c.l.b16 %v4299
        %v4316 = vunpack.c.l.b16 %v4300
        %v4317 = vunpack.c.l.b16 %v4301
        %v4318 = vpack.c.b16 %v4315, %v4314
        %v4319 = vpack.c.b16 %v4317, %v4316
        %v4323 = vsel %vm1011, %v4295, 0
        %v4326 = vsel %vm1011, %v4296, 0
        %4328 = vmatprep.subr.bf16.mxu0 0
        %4329 = vmatpush1.bf16.msra.mxu0 %v4318
        %4330 = vmatprep.subr.bf16.mxu0 0
        %4331 = vmatpush1.bf16.msra.mxu0 %v4319
        %4332 = vmatprep.subr.bf16.mxu0 0
        %4333 = vmatpush1.bf16.msra.mxu0 0
        %4334 = vmatprep.subr.bf16.mxu0 0
        %4335 = vmatpush1.bf16.msra.mxu0 0
        %4336 = vmatprep.subr.bf16.mxu0 0
        %4337 = vmatpush1.bf16.msra.mxu0 0
        %4338 = vmatprep.subr.bf16.mxu0 0
        %4339 = vmatpush1.bf16.msra.mxu0 0
        %4340 = vmatprep.subr.bf16.mxu0 0
        %4341 = vmatpush1.bf16.msra.mxu0 0
        %4342 = vmatprep.subr.bf16.mxu0 0
        %4343 = vmatpush1.bf16.msra.mxu0 0
        %4344 = vmatprep.subr.bf16.mxu0 0
        %4345 = vmatpush1.bf16.msra.mxu0 0
        %4346 = vmatprep.subr.bf16.mxu0 0
        %4347 = vmatpush1.bf16.msra.mxu0 0
        %4348 = vmatprep.subr.bf16.mxu0 0
        %4349 = vmatpush1.bf16.msra.mxu0 0
        %4350 = vmatprep.subr.bf16.mxu0 0
        %4351 = vmatpush1.bf16.msra.mxu0 0
        %4352 = vmatprep.subr.bf16.mxu0 0
        %4353 = vmatpush1.bf16.msra.mxu0 0
        %4354 = vmatprep.subr.bf16.mxu0 0
        %4355 = vmatpush1.bf16.msra.mxu0 0
        %4356 = vmatprep.subr.bf16.mxu0 0
        %4357 = vmatpush1.bf16.msra.mxu0 0
        %4358 = vmatprep.subr.bf16.mxu0 0
        %4359 = vmatpush1.bf16.msra.mxu0 0
        %4360 = vmatprep.mubr.bf16.mxu0 0
        %4361 = vmatmul.mubr.bf16.gmra.mrb[0].mxu0 %v4323
        %v4362 = vpop.f32.mrb[0].mxu0
        %v4363 = vadd.f32 %v4308, %v4362
        %v4364 = vpop.f32.mrb[0].mxu0
        %v4365 = vpop.f32.mrb[0].mxu0
        %v4366 = vadd.f32 %v4308, %v4365
        %v4367 = vpop.f32.mrb[0].mxu0
        %4368 = vmatprep.mubr.bf16.mxu0 0
        %4369 = vmatmul.mubr.bf16.gmra.mrb[0].mxu0 %v4326
        %v4370 = vpop.f32.mrb[0].mxu0
        %v4371 = vadd.f32 %v4308, %v4370
        %v4372 = vpop.f32.mrb[0].mxu0
        %v4373 = vpop.f32.mrb[0].mxu0
        %v4374 = vpop.f32.mrb[0].mxu0
        %4375 = vdwg.mxu0
        %v4379 = vcombine.high %v4363, %v4363
        %v4381 = vunpack.c.l.s4 1966171168
        %v4382 = vunpack.c.0.s8 %v4381
        %v4383 = vlaneseq
        %v4384 = vshrl.u32 %v4383, 7
        %v4385 = vsub.s32 %v4382, %v4384
        %v4386 = vrot.slane %v4363, %v4385
        %v4388 = vunpack.c.l.s4 1966171168
        %v4389 = vunpack.c.0.s8 %v4388
        %v4390 = vlaneseq
        %v4391 = vshrl.u32 %v4390, 7
        %v4392 = vsub.s32 %v4389, %v4391
        %v4393 = vrot.slane %v4379, %v4392
        %v4394 = vcombine.high %v4386, %v4386
        %v4395 = vcombine.high %v4393, %v4393
        %v4397 = vunpack.c.l.s4 1966171168
        %v4398 = vunpack.c.0.s8 %v4397
        %v4399 = vlaneseq
        %v4400 = vshrl.u32 %v4399, 7
        %v4401 = vsub.s32 %v4398, %v4400
        %v4402 = vrot.slane %v4386, %v4401
        %v4404 = vunpack.c.l.s4 1966171168
        %v4405 = vunpack.c.0.s8 %v4404
        %v4406 = vlaneseq
        %v4407 = vshrl.u32 %v4406, 7
        %v4408 = vsub.s32 %v4405, %v4407
        %v4409 = vrot.slane %v4393, %v4408
        %v4411 = vunpack.c.l.s4 1966171168
        %v4412 = vunpack.c.0.s8 %v4411
        %v4413 = vlaneseq
        %v4414 = vshrl.u32 %v4413, 7
        %v4415 = vsub.s32 %v4412, %v4414
        %v4416 = vrot.slane %v4394, %v4415
        %v4418 = vunpack.c.l.s4 1966171168
        %v4419 = vunpack.c.0.s8 %v4418
        %v4420 = vlaneseq
        %v4421 = vshrl.u32 %v4420, 7
        %v4422 = vsub.s32 %v4419, %v4421
        %v4423 = vrot.slane %v4395, %v4422
        %v4424 = vcombine.high %v4402, %v4402
        %v4425 = vcombine.high %v4409, %v4409
        %v4426 = vcombine.high %v4416, %v4416
        %v4427 = vcombine.high %v4423, %v4423
        %v4428 = vcombine.high %v4366, %v4366
        %v4430 = vunpack.c.l.s4 1966171168
        %v4431 = vunpack.c.0.s8 %v4430
        %v4432 = vlaneseq
        %v4433 = vshrl.u32 %v4432, 7
        %v4434 = vsub.s32 %v4431, %v4433
        %v4435 = vrot.slane %v4366, %v4434
        %v4437 = vunpack.c.l.s4 1966171168
        %v4438 = vunpack.c.0.s8 %v4437
        %v4439 = vlaneseq
        %v4440 = vshrl.u32 %v4439, 7
        %v4441 = vsub.s32 %v4438, %v4440
        %v4442 = vrot.slane %v4428, %v4441
        %v4443 = vcombine.high %v4435, %v4435
        %v4444 = vcombine.high %v4442, %v4442
        %v4446 = vunpack.c.l.s4 1966171168
        %v4447 = vunpack.c.0.s8 %v4446
        %v4448 = vlaneseq
        %v4449 = vshrl.u32 %v4448, 7
        %v4450 = vsub.s32 %v4447, %v4449
        %v4451 = vrot.slane %v4435, %v4450
        %v4453 = vunpack.c.l.s4 1966171168
        %v4454 = vunpack.c.0.s8 %v4453
        %v4455 = vlaneseq
        %v4456 = vshrl.u32 %v4455, 7
        %v4457 = vsub.s32 %v4454, %v4456
        %v4458 = vrot.slane %v4442, %v4457
        %v4460 = vunpack.c.l.s4 1966171168
        %v4461 = vunpack.c.0.s8 %v4460
        %v4462 = vlaneseq
        %v4463 = vshrl.u32 %v4462, 7
        %v4464 = vsub.s32 %v4461, %v4463
        %v4465 = vrot.slane %v4443, %v4464
        %v4467 = vunpack.c.l.s4 1966171168
        %v4468 = vunpack.c.0.s8 %v4467
        %v4469 = vlaneseq
        %v4470 = vshrl.u32 %v4469, 7
        %v4471 = vsub.s32 %v4468, %v4470
        %v4472 = vrot.slane %v4444, %v4471
        %v4473 = vcombine.high %v4451, %v4451
        %v4474 = vcombine.high %v4458, %v4458
        %v4475 = vcombine.high %v4465, %v4465
        %v4476 = vcombine.high %v4472, %v4472
        %v4478 = vunpack.c.l.s4 1966171168
        %v4479 = vunpack.c.0.s8 %v4478
        %v4480 = vlaneseq
        %v4481 = vshrl.u32 %v4480, 7
        %v4482 = vsub.s32 %v4479, %v4481
        %v4483 = vrot.slane %v4371, %v4482
        %v4484 = vcombine.high %v4483, %v4483
        %v4486 = vunpack.c.l.s4 1966171168
        %v4487 = vunpack.c.0.s8 %v4486
        %v4488 = vlaneseq
        %v4489 = vshrl.u32 %v4488, 7
        %v4490 = vsub.s32 %v4487, %v4489
        %v4491 = vrot.slane %v4483, %v4490
        %v4493 = vunpack.c.l.s4 1966171168
        %v4494 = vunpack.c.0.s8 %v4493
        %v4495 = vlaneseq
        %v4496 = vshrl.u32 %v4495, 7
        %v4497 = vsub.s32 %v4494, %v4496
        %v4498 = vrot.slane %v4484, %v4497
        %v4499 = vcombine.high %v4491, %v4491
        %v4500 = vcombine.high %v4498, %v4498
        %v4521 = vmul.f32 %v4402, 0.35355338
        %v4522 = vmul.f32 %v4416, 0.35355338
        %v4523 = vmul.f32 %v4424, 0.35355338
        %v4524 = vmul.f32 %v4426, 0.35355338
        %v4525 = vmul.f32 %v4409, 0.35355338
        %v4526 = vmul.f32 %v4423, 0.35355338
        %v4527 = vmul.f32 %v4425, 0.35355338
        %v4528 = vmul.f32 %v4427, 0.35355338
        %v4529 = vmul.f32 %v4451, 0.35355338
        %v4530 = vmul.f32 %v4465, 0.35355338
        %v4531 = vmul.f32 %v4473, 0.35355338
        %v4532 = vmul.f32 %v4475, 0.35355338
        %v4533 = vmul.f32 %v4458, 0.35355338
        %v4534 = vmul.f32 %v4472, 0.35355338
        %v4535 = vmul.f32 %v4474, 0.35355338
        %v4536 = vmul.f32 %v4476, 0.35355338
        %v4537 = vmul.f32 %v4491, 0.35355338
        %v4538 = vmul.f32 %v4498, 0.35355338
        %v4539 = vmul.f32 %v4499, 0.35355338
        %v4540 = vmul.f32 %v4500, 0.35355338
        %v4561 = vcombine.low %v4521, %v4522
        %v4562 = vcombine.low %v4523, %v4524
        %v4564 = vunpack.c.l.s4 1966171168
        %v4565 = vunpack.c.0.s8 %v4564
        %v4566 = vlaneseq
        %v4567 = vshrl.u32 %v4566, 7
        %v4568 = vsub.s32 %v4565, %v4567
        %v4569 = vrot.slane %v4561, %v4568
        %v4571 = vunpack.c.l.s4 1966171168
        %v4572 = vunpack.c.0.s8 %v4571
        %v4573 = vlaneseq
        %v4574 = vshrl.u32 %v4573, 7
        %v4575 = vsub.s32 %v4572, %v4574
        %v4576 = vrot.slane %v4562, %v4575
        %v4578 = vunpack.c.l.s4 1966171168
        %v4579 = vunpack.c.0.s8 %v4578
        %v4580 = vlaneseq
        %v4581 = vshrl.u32 %v4580, 7
        %v4582 = vsub.s32 %v4579, %v4581
        %v4583 = vrot.slane %v4525, %v4582
        %v4584 = vcombine.low %v4569, %v4576
        %v4586 = vunpack.c.l.s4 1966171168
        %v4587 = vunpack.c.0.s8 %v4586
        %v4588 = vlaneseq
        %v4589 = vshrl.u32 %v4588, 7
        %v4590 = vsub.s32 %v4587, %v4589
        %v4591 = vrot.slane %v4584, %v4590
        %v4593 = vunpack.c.l.s4 1966171168
        %v4594 = vunpack.c.0.s8 %v4593
        %v4595 = vlaneseq
        %v4596 = vshrl.u32 %v4595, 7
        %v4597 = vsub.s32 %v4594, %v4596
        %v4598 = vrot.slane %v4583, %v4597
        %v4599 = vcombine.low %v4591, %v4598
        %v4600 = vcombine.low %v4526, %v4527
        %v4601 = vcombine.low %v4528, %v4529
        %v4603 = vunpack.c.l.s4 1966171168
        %v4604 = vunpack.c.0.s8 %v4603
        %v4605 = vlaneseq
        %v4606 = vshrl.u32 %v4605, 7
        %v4607 = vsub.s32 %v4604, %v4606
        %v4608 = vrot.slane %v4600, %v4607
        %v4610 = vunpack.c.l.s4 1966171168
        %v4611 = vunpack.c.0.s8 %v4610
        %v4612 = vlaneseq
        %v4613 = vshrl.u32 %v4612, 7
        %v4614 = vsub.s32 %v4611, %v4613
        %v4615 = vrot.slane %v4601, %v4614
        %v4617 = vunpack.c.l.s4 1966171168
        %v4618 = vunpack.c.0.s8 %v4617
        %v4619 = vlaneseq
        %v4620 = vshrl.u32 %v4619, 7
        %v4621 = vsub.s32 %v4618, %v4620
        %v4622 = vrot.slane %v4530, %v4621
        %v4623 = vcombine.low %v4608, %v4615
        %v4625 = vunpack.c.l.s4 1966171168
        %v4626 = vunpack.c.0.s8 %v4625
        %v4627 = vlaneseq
        %v4628 = vshrl.u32 %v4627, 7
        %v4629 = vsub.s32 %v4626, %v4628
        %v4630 = vrot.slane %v4623, %v4629
        %v4632 = vunpack.c.l.s4 1966171168
        %v4633 = vunpack.c.0.s8 %v4632
        %v4634 = vlaneseq
        %v4635 = vshrl.u32 %v4634, 7
        %v4636 = vsub.s32 %v4633, %v4635
        %v4637 = vrot.slane %v4622, %v4636
        %v4638 = vcombine.low %v4630, %v4637
        %v4639 = vcombine.low %v4531, %v4532
        %v4640 = vcombine.low %v4533, %v4534
        %v4642 = vunpack.c.l.s4 1966171168
        %v4643 = vunpack.c.0.s8 %v4642
        %v4644 = vlaneseq
        %v4645 = vshrl.u32 %v4644, 7
        %v4646 = vsub.s32 %v4643, %v4645
        %v4647 = vrot.slane %v4639, %v4646
        %v4649 = vunpack.c.l.s4 1966171168
        %v4650 = vunpack.c.0.s8 %v4649
        %v4651 = vlaneseq
        %v4652 = vshrl.u32 %v4651, 7
        %v4653 = vsub.s32 %v4650, %v4652
        %v4654 = vrot.slane %v4640, %v4653
        %v4656 = vunpack.c.l.s4 1966171168
        %v4657 = vunpack.c.0.s8 %v4656
        %v4658 = vlaneseq
        %v4659 = vshrl.u32 %v4658, 7
        %v4660 = vsub.s32 %v4657, %v4659
        %v4661 = vrot.slane %v4535, %v4660
        %v4662 = vcombine.low %v4647, %v4654
        %v4664 = vunpack.c.l.s4 1966171168
        %v4665 = vunpack.c.0.s8 %v4664
        %v4666 = vlaneseq
        %v4667 = vshrl.u32 %v4666, 7
        %v4668 = vsub.s32 %v4665, %v4667
        %v4669 = vrot.slane %v4662, %v4668
        %v4671 = vunpack.c.l.s4 1966171168
        %v4672 = vunpack.c.0.s8 %v4671
        %v4673 = vlaneseq
        %v4674 = vshrl.u32 %v4673, 7
        %v4675 = vsub.s32 %v4672, %v4674
        %v4676 = vrot.slane %v4661, %v4675
        %v4677 = vcombine.low %v4669, %v4676
        %v4678 = vcombine.low %v4536, %v4537
        %v4679 = vcombine.low %v4538, %v4539
        %v4681 = vunpack.c.l.s4 1966171168
        %v4682 = vunpack.c.0.s8 %v4681
        %v4683 = vlaneseq
        %v4684 = vshrl.u32 %v4683, 7
        %v4685 = vsub.s32 %v4682, %v4684
        %v4686 = vrot.slane %v4678, %v4685
        %v4688 = vunpack.c.l.s4 1966171168
        %v4689 = vunpack.c.0.s8 %v4688
        %v4690 = vlaneseq
        %v4691 = vshrl.u32 %v4690, 7
        %v4692 = vsub.s32 %v4689, %v4691
        %v4693 = vrot.slane %v4679, %v4692
        %v4695 = vunpack.c.l.s4 1966171168
        %v4696 = vunpack.c.0.s8 %v4695
        %v4697 = vlaneseq
        %v4698 = vshrl.u32 %v4697, 7
        %v4699 = vsub.s32 %v4696, %v4698
        %v4700 = vrot.slane %v4540, %v4699
        %v4701 = vcombine.low %v4686, %v4693
        %v4703 = vunpack.c.l.s4 1966171168
        %v4704 = vunpack.c.0.s8 %v4703
        %v4705 = vlaneseq
        %v4706 = vshrl.u32 %v4705, 7
        %v4707 = vsub.s32 %v4704, %v4706
        %v4708 = vrot.slane %v4701, %v4707
        %v4710 = vunpack.c.l.s4 1966171168
        %v4711 = vunpack.c.0.s8 %v4710
        %v4712 = vlaneseq
        %v4713 = vshrl.u32 %v4712, 7
        %v4714 = vsub.s32 %v4711, %v4713
        %v4715 = vrot.slane %v4700, %v4714
        %v4716 = vcombine.low %v4708, %v4715
        %v4721 = vpack.c.bf16 %v4599, %v4599
        %v4722 = vpack.c.bf16 %v4638, %v4638
        %v4723 = vpack.c.bf16 %v4677, %v4677
        %v4724 = vpack.c.bf16 %v4716, %v4716
        %v4725 = vcombine.low %v4402, %v4416
        %v4726 = vcombine.low %v4424, %v4426
        %v4728 = vunpack.c.l.s4 1966171168
        %v4729 = vunpack.c.0.s8 %v4728
        %v4730 = vlaneseq
        %v4731 = vshrl.u32 %v4730, 7
        %v4732 = vsub.s32 %v4729, %v4731
        %v4733 = vrot.slane %v4725, %v4732
        %v4735 = vunpack.c.l.s4 1966171168
        %v4736 = vunpack.c.0.s8 %v4735
        %v4737 = vlaneseq
        %v4738 = vshrl.u32 %v4737, 7
        %v4739 = vsub.s32 %v4736, %v4738
        %v4740 = vrot.slane %v4726, %v4739
        %v4742 = vunpack.c.l.s4 1966171168
        %v4743 = vunpack.c.0.s8 %v4742
        %v4744 = vlaneseq
        %v4745 = vshrl.u32 %v4744, 7
        %v4746 = vsub.s32 %v4743, %v4745
        %v4747 = vrot.slane %v4409, %v4746
        %v4748 = vcombine.low %v4733, %v4740
        %v4750 = vunpack.c.l.s4 1966171168
        %v4751 = vunpack.c.0.s8 %v4750
        %v4752 = vlaneseq
        %v4753 = vshrl.u32 %v4752, 7
        %v4754 = vsub.s32 %v4751, %v4753
        %v4755 = vrot.slane %v4748, %v4754
        %v4757 = vunpack.c.l.s4 1966171168
        %v4758 = vunpack.c.0.s8 %v4757
        %v4759 = vlaneseq
        %v4760 = vshrl.u32 %v4759, 7
        %v4761 = vsub.s32 %v4758, %v4760
        %v4762 = vrot.slane %v4747, %v4761
        %v4763 = vcombine.low %v4755, %v4762
        %v4764 = vcombine.low %v4423, %v4425
        %v4765 = vcombine.low %v4427, %v4451
        %v4767 = vunpack.c.l.s4 1966171168
        %v4768 = vunpack.c.0.s8 %v4767
        %v4769 = vlaneseq
        %v4770 = vshrl.u32 %v4769, 7
        %v4771 = vsub.s32 %v4768, %v4770
        %v4772 = vrot.slane %v4764, %v4771
        %v4774 = vunpack.c.l.s4 1966171168
        %v4775 = vunpack.c.0.s8 %v4774
        %v4776 = vlaneseq
        %v4777 = vshrl.u32 %v4776, 7
        %v4778 = vsub.s32 %v4775, %v4777
        %v4779 = vrot.slane %v4765, %v4778
        %v4781 = vunpack.c.l.s4 1966171168
        %v4782 = vunpack.c.0.s8 %v4781
        %v4783 = vlaneseq
        %v4784 = vshrl.u32 %v4783, 7
        %v4785 = vsub.s32 %v4782, %v4784
        %v4786 = vrot.slane %v4465, %v4785
        %v4787 = vcombine.low %v4772, %v4779
        %v4789 = vunpack.c.l.s4 1966171168
        %v4790 = vunpack.c.0.s8 %v4789
        %v4791 = vlaneseq
        %v4792 = vshrl.u32 %v4791, 7
        %v4793 = vsub.s32 %v4790, %v4792
        %v4794 = vrot.slane %v4787, %v4793
        %v4796 = vunpack.c.l.s4 1966171168
        %v4797 = vunpack.c.0.s8 %v4796
        %v4798 = vlaneseq
        %v4799 = vshrl.u32 %v4798, 7
        %v4800 = vsub.s32 %v4797, %v4799
        %v4801 = vrot.slane %v4786, %v4800
        %v4802 = vcombine.low %v4794, %v4801
        %v4803 = vcombine.low %v4473, %v4475
        %v4804 = vcombine.low %v4458, %v4472
        %v4806 = vunpack.c.l.s4 1966171168
        %v4807 = vunpack.c.0.s8 %v4806
        %v4808 = vlaneseq
        %v4809 = vshrl.u32 %v4808, 7
        %v4810 = vsub.s32 %v4807, %v4809
        %v4811 = vrot.slane %v4803, %v4810
        %v4813 = vunpack.c.l.s4 1966171168
        %v4814 = vunpack.c.0.s8 %v4813
        %v4815 = vlaneseq
        %v4816 = vshrl.u32 %v4815, 7
        %v4817 = vsub.s32 %v4814, %v4816
        %v4818 = vrot.slane %v4804, %v4817
        %v4820 = vunpack.c.l.s4 1966171168
        %v4821 = vunpack.c.0.s8 %v4820
        %v4822 = vlaneseq
        %v4823 = vshrl.u32 %v4822, 7
        %v4824 = vsub.s32 %v4821, %v4823
        %v4825 = vrot.slane %v4474, %v4824
        %v4826 = vcombine.low %v4811, %v4818
        %v4828 = vunpack.c.l.s4 1966171168
        %v4829 = vunpack.c.0.s8 %v4828
        %v4830 = vlaneseq
        %v4831 = vshrl.u32 %v4830, 7
        %v4832 = vsub.s32 %v4829, %v4831
        %v4833 = vrot.slane %v4826, %v4832
        %v4835 = vunpack.c.l.s4 1966171168
        %v4836 = vunpack.c.0.s8 %v4835
        %v4837 = vlaneseq
        %v4838 = vshrl.u32 %v4837, 7
        %v4839 = vsub.s32 %v4836, %v4838
        %v4840 = vrot.slane %v4825, %v4839
        %v4841 = vcombine.low %v4833, %v4840
        %v4842 = vcombine.low %v4476, %v4491
        %v4843 = vcombine.low %v4498, %v4499
        %v4845 = vunpack.c.l.s4 1966171168
        %v4846 = vunpack.c.0.s8 %v4845
        %v4847 = vlaneseq
        %v4848 = vshrl.u32 %v4847, 7
        %v4849 = vsub.s32 %v4846, %v4848
        %v4850 = vrot.slane %v4842, %v4849
        %v4852 = vunpack.c.l.s4 1966171168
        %v4853 = vunpack.c.0.s8 %v4852
        %v4854 = vlaneseq
        %v4855 = vshrl.u32 %v4854, 7
        %v4856 = vsub.s32 %v4853, %v4855
        %v4857 = vrot.slane %v4843, %v4856
        %v4859 = vunpack.c.l.s4 1966171168
        %v4860 = vunpack.c.0.s8 %v4859
        %v4861 = vlaneseq
        %v4862 = vshrl.u32 %v4861, 7
        %v4863 = vsub.s32 %v4860, %v4862
        %v4864 = vrot.slane %v4500, %v4863
        %v4865 = vcombine.low %v4850, %v4857
        %v4867 = vunpack.c.l.s4 1966171168
        %v4868 = vunpack.c.0.s8 %v4867
        %v4869 = vlaneseq
        %v4870 = vshrl.u32 %v4869, 7
        %v4871 = vsub.s32 %v4868, %v4870
        %v4872 = vrot.slane %v4865, %v4871
        %v4874 = vunpack.c.l.s4 1966171168
        %v4875 = vunpack.c.0.s8 %v4874
        %v4876 = vlaneseq
        %v4877 = vshrl.u32 %v4876, 7
        %v4878 = vsub.s32 %v4875, %v4877
        %v4879 = vrot.slane %v4864, %v4878
        %v4880 = vcombine.low %v4872, %v4879
        %v4885 = vpack.c.bf16 %v4763, %v4763
        %v4886 = vpack.c.bf16 %v4802, %v4802
        %v4887 = vpack.c.bf16 %v4841, %v4841
        %v4888 = vpack.c.bf16 %v4880, %v4880
        %4890 = vrot.lane.b32.xlu0 %v4885, 96
        %v4891 = vpop.permute.xlu0 %4890
        %v4893 = vsel %vm1737, %v4721, 0
        %v4896 = vsel %vm1737, %v4891, 0
        %4898 = vmatprep.subr.bf16.mxu0 0
        %4899 = vmatpush1.bf16.xpose.msra.mxu0 %v4896
        %4900 = vmatprep.subr.bf16.mxu0 0
        %4901 = vmatpush1.bf16.xpose.msra.mxu0 0
        %4902 = vmatprep.subr.bf16.mxu0 0
        %4903 = vmatpush1.bf16.xpose.msra.mxu0 0
        %4904 = vmatprep.subr.bf16.mxu0 0
        %4905 = vmatpush1.bf16.xpose.msra.mxu0 0
        %4906 = vmatprep.subr.bf16.mxu0 0
        %4907 = vmatpush1.bf16.xpose.msra.mxu0 0
        %4908 = vmatprep.subr.bf16.mxu0 0
        %4909 = vmatpush1.bf16.xpose.msra.mxu0 0
        %4910 = vmatprep.subr.bf16.mxu0 0
        %4911 = vmatpush1.bf16.xpose.msra.mxu0 0
        %4912 = vmatprep.subr.bf16.mxu0 0
        %4913 = vmatpush1.bf16.xpose.msra.mxu0 0
        %4914 = vmatprep.subr.bf16.mxu0 0
        %4915 = vmatpush1.bf16.xpose.msra.mxu0 0
        %4916 = vmatprep.subr.bf16.mxu0 0
        %4917 = vmatpush1.bf16.xpose.msra.mxu0 0
        %4918 = vmatprep.subr.bf16.mxu0 0
        %4919 = vmatpush1.bf16.xpose.msra.mxu0 0
        %4920 = vmatprep.subr.bf16.mxu0 0
        %4921 = vmatpush1.bf16.xpose.msra.mxu0 0
        %4922 = vmatprep.subr.bf16.mxu0 0
        %4923 = vmatpush1.bf16.xpose.msra.mxu0 0
        %4924 = vmatprep.subr.bf16.mxu0 0
        %4925 = vmatpush1.bf16.xpose.msra.mxu0 0
        %4926 = vmatprep.subr.bf16.mxu0 0
        %4927 = vmatpush1.bf16.xpose.msra.mxu0 0
        %4928 = vmatprep.subr.bf16.mxu0 0
        %4929 = vmatpush1.bf16.xpose.msra.mxu0 0
        %4930 = vmatprep.mubr.bf16.mxu0 0
        %4931 = vmatmul.mubr.bf16.gmra.mrb[0].mxu0 %v4893
        %v4932 = vpop.f32.mrb[0].mxu0
        %v4933 = vadd.f32 0.0, %v4932
        %v4934 = vpop.f32.mrb[0].mxu0
        %v4935 = vpop.f32.mrb[0].mxu0
        %v4936 = vpop.f32.mrb[0].mxu0
        %4937 = vdwg.mxu0
        %4939 = vrot.lane.b32.xlu0 %v4886, 96
        %v4940 = vpop.permute.xlu0 %4939
        %v4942 = vsel %vm1737, %v4722, 0
        %v4945 = vsel %vm1737, %v4940, 0
        %4947 = vmatprep.subr.bf16.mxu0 0
        %4948 = vmatpush1.bf16.xpose.msra.mxu0 %v4945
        %4949 = vmatprep.subr.bf16.mxu0 0
        %4950 = vmatpush1.bf16.xpose.msra.mxu0 0
        %4951 = vmatprep.subr.bf16.mxu0 0
        %4952 = vmatpush1.bf16.xpose.msra.mxu0 0
        %4953 = vmatprep.subr.bf16.mxu0 0
        %4954 = vmatpush1.bf16.xpose.msra.mxu0 0
        %4955 = vmatprep.subr.bf16.mxu0 0
        %4956 = vmatpush1.bf16.xpose.msra.mxu0 0
        %4957 = vmatprep.subr.bf16.mxu0 0
        %4958 = vmatpush1.bf16.xpose.msra.mxu0 0
        %4959 = vmatprep.subr.bf16.mxu0 0
        %4960 = vmatpush1.bf16.xpose.msra.mxu0 0
        %4961 = vmatprep.subr.bf16.mxu0 0
        %4962 = vmatpush1.bf16.xpose.msra.mxu0 0
        %4963 = vmatprep.subr.bf16.mxu0 0
        %4964 = vmatpush1.bf16.xpose.msra.mxu0 0
        %4965 = vmatprep.subr.bf16.mxu0 0
        %4966 = vmatpush1.bf16.xpose.msra.mxu0 0
        %4967 = vmatprep.subr.bf16.mxu0 0
        %4968 = vmatpush1.bf16.xpose.msra.mxu0 0
        %4969 = vmatprep.subr.bf16.mxu0 0
        %4970 = vmatpush1.bf16.xpose.msra.mxu0 0
        %4971 = vmatprep.subr.bf16.mxu0 0
        %4972 = vmatpush1.bf16.xpose.msra.mxu0 0
        %4973 = vmatprep.subr.bf16.mxu0 0
        %4974 = vmatpush1.bf16.xpose.msra.mxu0 0
        %4975 = vmatprep.subr.bf16.mxu0 0
        %4976 = vmatpush1.bf16.xpose.msra.mxu0 0
        %4977 = vmatprep.subr.bf16.mxu0 0
        %4978 = vmatpush1.bf16.xpose.msra.mxu0 0
        %4979 = vmatprep.mubr.bf16.mxu0 0
        %4980 = vmatmul.mubr.bf16.gmra.mrb[0].mxu0 %v4942
        %v4981 = vpop.f32.mrb[0].mxu0
        %v4982 = vadd.f32 0.0, %v4981
        %v4983 = vpop.f32.mrb[0].mxu0
        %v4984 = vpop.f32.mrb[0].mxu0
        %v4985 = vpop.f32.mrb[0].mxu0
        %4986 = vdwg.mxu0
        %4988 = vrot.lane.b32.xlu0 %v4887, 96
        %v4989 = vpop.permute.xlu0 %4988
        %v4991 = vsel %vm1737, %v4723, 0
        %v4994 = vsel %vm1737, %v4989, 0
        %4996 = vmatprep.subr.bf16.mxu0 0
        %4997 = vmatpush1.bf16.xpose.msra.mxu0 %v4994
        %4998 = vmatprep.subr.bf16.mxu0 0
        %4999 = vmatpush1.bf16.xpose.msra.mxu0 0
        %5000 = vmatprep.subr.bf16.mxu0 0
        %5001 = vmatpush1.bf16.xpose.msra.mxu0 0
        %5002 = vmatprep.subr.bf16.mxu0 0
        %5003 = vmatpush1.bf16.xpose.msra.mxu0 0
        %5004 = vmatprep.subr.bf16.mxu0 0
        %5005 = vmatpush1.bf16.xpose.msra.mxu0 0
        %5006 = vmatprep.subr.bf16.mxu0 0
        %5007 = vmatpush1.bf16.xpose.msra.mxu0 0
        %5008 = vmatprep.subr.bf16.mxu0 0
        %5009 = vmatpush1.bf16.xpose.msra.mxu0 0
        %5010 = vmatprep.subr.bf16.mxu0 0
        %5011 = vmatpush1.bf16.xpose.msra.mxu0 0
        %5012 = vmatprep.subr.bf16.mxu0 0
        %5013 = vmatpush1.bf16.xpose.msra.mxu0 0
        %5014 = vmatprep.subr.bf16.mxu0 0
        %5015 = vmatpush1.bf16.xpose.msra.mxu0 0
        %5016 = vmatprep.subr.bf16.mxu0 0
        %5017 = vmatpush1.bf16.xpose.msra.mxu0 0
        %5018 = vmatprep.subr.bf16.mxu0 0
        %5019 = vmatpush1.bf16.xpose.msra.mxu0 0
        %5020 = vmatprep.subr.bf16.mxu0 0
        %5021 = vmatpush1.bf16.xpose.msra.mxu0 0
        %5022 = vmatprep.subr.bf16.mxu0 0
        %5023 = vmatpush1.bf16.xpose.msra.mxu0 0
        %5024 = vmatprep.subr.bf16.mxu0 0
        %5025 = vmatpush1.bf16.xpose.msra.mxu0 0
        %5026 = vmatprep.subr.bf16.mxu0 0
        %5027 = vmatpush1.bf16.xpose.msra.mxu0 0
        %5028 = vmatprep.mubr.bf16.mxu0 0
        %5029 = vmatmul.mubr.bf16.gmra.mrb[0].mxu0 %v4991
        %v5030 = vpop.f32.mrb[0].mxu0
        %v5031 = vadd.f32 0.0, %v5030
        %v5032 = vpop.f32.mrb[0].mxu0
        %v5033 = vpop.f32.mrb[0].mxu0
        %v5034 = vpop.f32.mrb[0].mxu0
        %5035 = vdwg.mxu0
        %5037 = vrot.lane.b32.xlu0 %v4888, 96
        %v5038 = vpop.permute.xlu0 %5037
        %v5040 = vsel %vm1737, %v4724, 0
        %v5043 = vsel %vm1737, %v5038, 0
        %5045 = vmatprep.subr.bf16.mxu0 0
        %5046 = vmatpush1.bf16.xpose.msra.mxu0 %v5043
        %5047 = vmatprep.subr.bf16.mxu0 0
        %5048 = vmatpush1.bf16.xpose.msra.mxu0 0
        %5049 = vmatprep.subr.bf16.mxu0 0
        %5050 = vmatpush1.bf16.xpose.msra.mxu0 0
        %5051 = vmatprep.subr.bf16.mxu0 0
        %5052 = vmatpush1.bf16.xpose.msra.mxu0 0
        %5053 = vmatprep.subr.bf16.mxu0 0
        %5054 = vmatpush1.bf16.xpose.msra.mxu0 0
        %5055 = vmatprep.subr.bf16.mxu0 0
        %5056 = vmatpush1.bf16.xpose.msra.mxu0 0
        %5057 = vmatprep.subr.bf16.mxu0 0
        %5058 = vmatpush1.bf16.xpose.msra.mxu0 0
        %5059 = vmatprep.subr.bf16.mxu0 0
        %5060 = vmatpush1.bf16.xpose.msra.mxu0 0
        %5061 = vmatprep.subr.bf16.mxu0 0
        %5062 = vmatpush1.bf16.xpose.msra.mxu0 0
        %5063 = vmatprep.subr.bf16.mxu0 0
        %5064 = vmatpush1.bf16.xpose.msra.mxu0 0
        %5065 = vmatprep.subr.bf16.mxu0 0
        %5066 = vmatpush1.bf16.xpose.msra.mxu0 0
        %5067 = vmatprep.subr.bf16.mxu0 0
        %5068 = vmatpush1.bf16.xpose.msra.mxu0 0
        %5069 = vmatprep.subr.bf16.mxu0 0
        %5070 = vmatpush1.bf16.xpose.msra.mxu0 0
        %5071 = vmatprep.subr.bf16.mxu0 0
        %5072 = vmatpush1.bf16.xpose.msra.mxu0 0
        %5073 = vmatprep.subr.bf16.mxu0 0
        %5074 = vmatpush1.bf16.xpose.msra.mxu0 0
        %5075 = vmatprep.subr.bf16.mxu0 0
        %5076 = vmatpush1.bf16.xpose.msra.mxu0 0
        %5077 = vmatprep.mubr.bf16.mxu0 0
        %5078 = vmatmul.mubr.bf16.gmra.mrb[0].mxu0 %v5040
        %v5079 = vpop.f32.mrb[0].mxu0
        %v5080 = vadd.f32 0.0, %v5079
        %v5081 = vpop.f32.mrb[0].mxu0
        %v5082 = vpop.f32.mrb[0].mxu0
        %v5083 = vpop.f32.mrb[0].mxu0
        %5084 = vdwg.mxu0
        %v5085 = vsel %vm1931, %v4933, -inf
        %5086 = vmax.xlane.f32.xlu0 %v5085
        %v5087 = vpop.xlane.xlu0 %5086
        %v5088 = vsel %vm1931, %v4982, -inf
        %5089 = vmax.xlane.f32.xlu0 %v5088
        %v5090 = vpop.xlane.xlu0 %5089
        %v5091 = vsel %vm1931, %v5031, -inf
        %5092 = vmax.xlane.f32.xlu0 %v5091
        %v5093 = vpop.xlane.xlu0 %5092
        %v5094 = vsel %vm1931, %v5080, -inf
        %5095 = vmax.xlane.f32.xlu0 %v5094
        %v5096 = vpop.xlane.xlu0 %5095
        %v5097 = vsub.f32 %v4933, %v5087
        %v5098 = vsub.f32 %v4982, %v5090
        %v5099 = vsub.f32 %v5031, %v5093
        %v5100 = vsub.f32 %v5080, %v5096
        %v5101 = vmul.f32 %v5097, 1.442695
        %v5102 = vpow.pop %v5101
        %v5103 = vmul.f32 %v5098, 1.442695
        %v5104 = vpow.pop %v5103
        %v5105 = vmul.f32 %v5099, 1.442695
        %v5106 = vpow.pop %v5105
        %v5107 = vmul.f32 %v5100, 1.442695
        %v5108 = vpow.pop %v5107
        %v5109 = vsel %vm1931, %v5102, 0.0
        %5110 = vadd.xlane.f32.xlu0 %v5109
        %v5111 = vpop.xlane.xlu0 %5110
        %v5112 = vsel %vm1931, %v5104, 0.0
        %5113 = vadd.xlane.f32.xlu0 %v5112
        %v5114 = vpop.xlane.xlu0 %5113
        %v5115 = vsel %vm1931, %v5106, 0.0
        %5116 = vadd.xlane.f32.xlu0 %v5115
        %v5117 = vpop.xlane.xlu0 %5116
        %v5118 = vsel %vm1931, %v5108, 0.0
        %5119 = vadd.xlane.f32.xlu0 %v5118
        %v5120 = vpop.xlane.xlu0 %5119
        %v5121 = vrcp.pop %v5111
        %v5122 = vrcp.pop %v5114
        %v5123 = vrcp.pop %v5117
        %v5124 = vrcp.pop %v5120
        %v5125 = vmul.f32 %v5102, %v5121
        %v5126 = vmul.f32 %v5104, %v5122
        %v5127 = vmul.f32 %v5106, %v5123
        %v5128 = vmul.f32 %v5108, %v5124
        %v5129 = vpack.c.bf16 %v5125, %v5125
        %v5130 = vpack.c.bf16 %v5126, %v5126
        %v5131 = vpack.c.bf16 %v5127, %v5127
        %v5132 = vpack.c.bf16 %v5128, %v5128
        %5133 = vrot.lane.b32.xlu0 %v4885, 64
        %v5134 = vpop.permute.xlu0 %5133
        %v5136 = vsel %vm1982, %v5129, 0
        %v5139 = vand.u32 %v5134, %v1989
        %5141 = vmatprep.subr.bf16.mxu0 0
        %5142 = vmatpush1.bf16.msra.mxu0 %v5139
        %5143 = vmatprep.subr.bf16.mxu0 0
        %5144 = vmatpush1.bf16.msra.mxu0 0
        %5145 = vmatprep.subr.bf16.mxu0 0
        %5146 = vmatpush1.bf16.msra.mxu0 0
        %5147 = vmatprep.subr.bf16.mxu0 0
        %5148 = vmatpush1.bf16.msra.mxu0 0
        %5149 = vmatprep.subr.bf16.mxu0 0
        %5150 = vmatpush1.bf16.msra.mxu0 0
        %5151 = vmatprep.subr.bf16.mxu0 0
        %5152 = vmatpush1.bf16.msra.mxu0 0
        %5153 = vmatprep.subr.bf16.mxu0 0
        %5154 = vmatpush1.bf16.msra.mxu0 0
        %5155 = vmatprep.subr.bf16.mxu0 0
        %5156 = vmatpush1.bf16.msra.mxu0 0
        %5157 = vmatprep.subr.bf16.mxu0 0
        %5158 = vmatpush1.bf16.msra.mxu0 0
        %5159 = vmatprep.subr.bf16.mxu0 0
        %5160 = vmatpush1.bf16.msra.mxu0 0
        %5161 = vmatprep.subr.bf16.mxu0 0
        %5162 = vmatpush1.bf16.msra.mxu0 0
        %5163 = vmatprep.subr.bf16.mxu0 0
        %5164 = vmatpush1.bf16.msra.mxu0 0
        %5165 = vmatprep.subr.bf16.mxu0 0
        %5166 = vmatpush1.bf16.msra.mxu0 0
        %5167 = vmatprep.subr.bf16.mxu0 0
        %5168 = vmatpush1.bf16.msra.mxu0 0
        %5169 = vmatprep.subr.bf16.mxu0 0
        %5170 = vmatpush1.bf16.msra.mxu0 0
        %5171 = vmatprep.subr.bf16.mxu0 0
        %5172 = vmatpush1.bf16.msra.mxu0 0
        %5173 = vmatprep.mubr.bf16.mxu0 0
        %5174 = vmatmul.mubr.bf16.gmra.mrb[0].mxu0 %v5136
        %v5175 = vpop.f32.mrb[0].mxu0
        %v5176 = vadd.f32 0.0, %v5175
        %v5177 = vpop.f32.mrb[0].mxu0
        %v5178 = vpop.f32.mrb[0].mxu0
        %v5179 = vpop.f32.mrb[0].mxu0
        %5180 = vdwg.mxu0
        %5181 = vrot.lane.b32.xlu0 %v4886, 64
        %v5182 = vpop.permute.xlu0 %5181
        %v5184 = vsel %vm1982, %v5130, 0
        %v5187 = vand.u32 %v5182, %v1989
        %5189 = vmatprep.subr.bf16.mxu0 0
        %5190 = vmatpush1.bf16.msra.mxu0 %v5187
        %5191 = vmatprep.subr.bf16.mxu0 0
        %5192 = vmatpush1.bf16.msra.mxu0 0
        %5193 = vmatprep.subr.bf16.mxu0 0
        %5194 = vmatpush1.bf16.msra.mxu0 0
        %5195 = vmatprep.subr.bf16.mxu0 0
        %5196 = vmatpush1.bf16.msra.mxu0 0
        %5197 = vmatprep.subr.bf16.mxu0 0
        %5198 = vmatpush1.bf16.msra.mxu0 0
        %5199 = vmatprep.subr.bf16.mxu0 0
        %5200 = vmatpush1.bf16.msra.mxu0 0
        %5201 = vmatprep.subr.bf16.mxu0 0
        %5202 = vmatpush1.bf16.msra.mxu0 0
        %5203 = vmatprep.subr.bf16.mxu0 0
        %5204 = vmatpush1.bf16.msra.mxu0 0
        %5205 = vmatprep.subr.bf16.mxu0 0
        %5206 = vmatpush1.bf16.msra.mxu0 0
        %5207 = vmatprep.subr.bf16.mxu0 0
        %5208 = vmatpush1.bf16.msra.mxu0 0
        %5209 = vmatprep.subr.bf16.mxu0 0
        %5210 = vmatpush1.bf16.msra.mxu0 0
        %5211 = vmatprep.subr.bf16.mxu0 0
        %5212 = vmatpush1.bf16.msra.mxu0 0
        %5213 = vmatprep.subr.bf16.mxu0 0
        %5214 = vmatpush1.bf16.msra.mxu0 0
        %5215 = vmatprep.subr.bf16.mxu0 0
        %5216 = vmatpush1.bf16.msra.mxu0 0
        %5217 = vmatprep.subr.bf16.mxu0 0
        %5218 = vmatpush1.bf16.msra.mxu0 0
        %5219 = vmatprep.subr.bf16.mxu0 0
        %5220 = vmatpush1.bf16.msra.mxu0 0
        %5221 = vmatprep.mubr.bf16.mxu0 0
        %5222 = vmatmul.mubr.bf16.gmra.mrb[0].mxu0 %v5184
        %v5223 = vpop.f32.mrb[0].mxu0
        %v5224 = vadd.f32 0.0, %v5223
        %v5225 = vpop.f32.mrb[0].mxu0
        %v5226 = vpop.f32.mrb[0].mxu0
        %v5227 = vpop.f32.mrb[0].mxu0
        %5228 = vdwg.mxu0
        %5229 = vrot.lane.b32.xlu0 %v4887, 64
        %v5230 = vpop.permute.xlu0 %5229
        %v5232 = vsel %vm1982, %v5131, 0
        %v5235 = vand.u32 %v5230, %v1989
        %5237 = vmatprep.subr.bf16.mxu0 0
        %5238 = vmatpush1.bf16.msra.mxu0 %v5235
        %5239 = vmatprep.subr.bf16.mxu0 0
        %5240 = vmatpush1.bf16.msra.mxu0 0
        %5241 = vmatprep.subr.bf16.mxu0 0
        %5242 = vmatpush1.bf16.msra.mxu0 0
        %5243 = vmatprep.subr.bf16.mxu0 0
        %5244 = vmatpush1.bf16.msra.mxu0 0
        %5245 = vmatprep.subr.bf16.mxu0 0
        %5246 = vmatpush1.bf16.msra.mxu0 0
        %5247 = vmatprep.subr.bf16.mxu0 0
        %5248 = vmatpush1.bf16.msra.mxu0 0
        %5249 = vmatprep.subr.bf16.mxu0 0
        %5250 = vmatpush1.bf16.msra.mxu0 0
        %5251 = vmatprep.subr.bf16.mxu0 0
        %5252 = vmatpush1.bf16.msra.mxu0 0
        %5253 = vmatprep.subr.bf16.mxu0 0
        %5254 = vmatpush1.bf16.msra.mxu0 0
        %5255 = vmatprep.subr.bf16.mxu0 0
        %5256 = vmatpush1.bf16.msra.mxu0 0
        %5257 = vmatprep.subr.bf16.mxu0 0
        %5258 = vmatpush1.bf16.msra.mxu0 0
        %5259 = vmatprep.subr.bf16.mxu0 0
        %5260 = vmatpush1.bf16.msra.mxu0 0
        %5261 = vmatprep.subr.bf16.mxu0 0
        %5262 = vmatpush1.bf16.msra.mxu0 0
        %5263 = vmatprep.subr.bf16.mxu0 0
        %5264 = vmatpush1.bf16.msra.mxu0 0
        %5265 = vmatprep.subr.bf16.mxu0 0
        %5266 = vmatpush1.bf16.msra.mxu0 0
        %5267 = vmatprep.subr.bf16.mxu0 0
        %5268 = vmatpush1.bf16.msra.mxu0 0
        %5269 = vmatprep.mubr.bf16.mxu0 0
        %5270 = vmatmul.mubr.bf16.gmra.mrb[0].mxu0 %v5232
        %v5271 = vpop.f32.mrb[0].mxu0
        %v5272 = vadd.f32 0.0, %v5271
        %v5273 = vpop.f32.mrb[0].mxu0
        %v5274 = vpop.f32.mrb[0].mxu0
        %v5275 = vpop.f32.mrb[0].mxu0
        %5276 = vdwg.mxu0
        %5277 = vrot.lane.b32.xlu0 %v4888, 64
        %v5278 = vpop.permute.xlu0 %5277
        %v5280 = vsel %vm1982, %v5132, 0
        %v5283 = vand.u32 %v5278, %v1989
        %5285 = vmatprep.subr.bf16.mxu0 0
        %5286 = vmatpush1.bf16.msra.mxu0 %v5283
        %5287 = vmatprep.subr.bf16.mxu0 0
        %5288 = vmatpush1.bf16.msra.mxu0 0
        %5289 = vmatprep.subr.bf16.mxu0 0
        %5290 = vmatpush1.bf16.msra.mxu0 0
        %5291 = vmatprep.subr.bf16.mxu0 0
        %5292 = vmatpush1.bf16.msra.mxu0 0
        %5293 = vmatprep.subr.bf16.mxu0 0
        %5294 = vmatpush1.bf16.msra.mxu0 0
        %5295 = vmatprep.subr.bf16.mxu0 0
        %5296 = vmatpush1.bf16.msra.mxu0 0
        %5297 = vmatprep.subr.bf16.mxu0 0
        %5298 = vmatpush1.bf16.msra.mxu0 0
        %5299 = vmatprep.subr.bf16.mxu0 0
        %5300 = vmatpush1.bf16.msra.mxu0 0
        %5301 = vmatprep.subr.bf16.mxu0 0
        %5302 = vmatpush1.bf16.msra.mxu0 0
        %5303 = vmatprep.subr.bf16.mxu0 0
        %5304 = vmatpush1.bf16.msra.mxu0 0
        %5305 = vmatprep.subr.bf16.mxu0 0
        %5306 = vmatpush1.bf16.msra.mxu0 0
        %5307 = vmatprep.subr.bf16.mxu0 0
        %5308 = vmatpush1.bf16.msra.mxu0 0
        %5309 = vmatprep.subr.bf16.mxu0 0
        %5310 = vmatpush1.bf16.msra.mxu0 0
        %5311 = vmatprep.subr.bf16.mxu0 0
        %5312 = vmatpush1.bf16.msra.mxu0 0
        %5313 = vmatprep.subr.bf16.mxu0 0
        %5314 = vmatpush1.bf16.msra.mxu0 0
        %5315 = vmatprep.subr.bf16.mxu0 0
        %5316 = vmatpush1.bf16.msra.mxu0 0
        %5317 = vmatprep.mubr.bf16.mxu0 0
        %5318 = vmatmul.mubr.bf16.gmra.mrb[0].mxu0 %v5280
        %v5319 = vpop.f32.mrb[0].mxu0
        %v5320 = vadd.f32 0.0, %v5319
        %v5321 = vpop.f32.mrb[0].mxu0
        %v5322 = vpop.f32.mrb[0].mxu0
        %v5323 = vpop.f32.mrb[0].mxu0
        %5324 = vdwg.mxu0
        %5326 = vrot.lane.b32.xlu0 %v4721, 120
        %v5327 = vpop.permute.xlu0 %5326
        %5328 = vrot.lane.b32.xlu0 %v4885, 88
        %v5329 = vpop.permute.xlu0 %5328
        %v5331 = vsel %vm1737, %v5327, 0
        %v5334 = vsel %vm1737, %v5329, 0
        %5336 = vmatprep.subr.bf16.mxu0 0
        %5337 = vmatpush1.bf16.xpose.msra.mxu0 %v5334
        %5338 = vmatprep.subr.bf16.mxu0 0
        %5339 = vmatpush1.bf16.xpose.msra.mxu0 0
        %5340 = vmatprep.subr.bf16.mxu0 0
        %5341 = vmatpush1.bf16.xpose.msra.mxu0 0
        %5342 = vmatprep.subr.bf16.mxu0 0
        %5343 = vmatpush1.bf16.xpose.msra.mxu0 0
        %5344 = vmatprep.subr.bf16.mxu0 0
        %5345 = vmatpush1.bf16.xpose.msra.mxu0 0
        %5346 = vmatprep.subr.bf16.mxu0 0
        %5347 = vmatpush1.bf16.xpose.msra.mxu0 0
        %5348 = vmatprep.subr.bf16.mxu0 0
        %5349 = vmatpush1.bf16.xpose.msra.mxu0 0
        %5350 = vmatprep.subr.bf16.mxu0 0
        %5351 = vmatpush1.bf16.xpose.msra.mxu0 0
        %5352 = vmatprep.subr.bf16.mxu0 0
        %5353 = vmatpush1.bf16.xpose.msra.mxu0 0
        %5354 = vmatprep.subr.bf16.mxu0 0
        %5355 = vmatpush1.bf16.xpose.msra.mxu0 0
        %5356 = vmatprep.subr.bf16.mxu0 0
        %5357 = vmatpush1.bf16.xpose.msra.mxu0 0
        %5358 = vmatprep.subr.bf16.mxu0 0
        %5359 = vmatpush1.bf16.xpose.msra.mxu0 0
        %5360 = vmatprep.subr.bf16.mxu0 0
        %5361 = vmatpush1.bf16.xpose.msra.mxu0 0
        %5362 = vmatprep.subr.bf16.mxu0 0
        %5363 = vmatpush1.bf16.xpose.msra.mxu0 0
        %5364 = vmatprep.subr.bf16.mxu0 0
        %5365 = vmatpush1.bf16.xpose.msra.mxu0 0
        %5366 = vmatprep.subr.bf16.mxu0 0
        %5367 = vmatpush1.bf16.xpose.msra.mxu0 0
        %5368 = vmatprep.mubr.bf16.mxu0 0
        %5369 = vmatmul.mubr.bf16.gmra.mrb[0].mxu0 %v5331
        %v5370 = vpop.f32.mrb[0].mxu0
        %v5371 = vadd.f32 0.0, %v5370
        %v5372 = vpop.f32.mrb[0].mxu0
        %v5373 = vpop.f32.mrb[0].mxu0
        %v5374 = vpop.f32.mrb[0].mxu0
        %5375 = vdwg.mxu0
        %5377 = vrot.lane.b32.xlu0 %v4722, 120
        %v5378 = vpop.permute.xlu0 %5377
        %5379 = vrot.lane.b32.xlu0 %v4886, 88
        %v5380 = vpop.permute.xlu0 %5379
        %v5382 = vsel %vm1737, %v5378, 0
        %v5385 = vsel %vm1737, %v5380, 0
        %5387 = vmatprep.subr.bf16.mxu0 0
        %5388 = vmatpush1.bf16.xpose.msra.mxu0 %v5385
        %5389 = vmatprep.subr.bf16.mxu0 0
        %5390 = vmatpush1.bf16.xpose.msra.mxu0 0
        %5391 = vmatprep.subr.bf16.mxu0 0
        %5392 = vmatpush1.bf16.xpose.msra.mxu0 0
        %5393 = vmatprep.subr.bf16.mxu0 0
        %5394 = vmatpush1.bf16.xpose.msra.mxu0 0
        %5395 = vmatprep.subr.bf16.mxu0 0
        %5396 = vmatpush1.bf16.xpose.msra.mxu0 0
        %5397 = vmatprep.subr.bf16.mxu0 0
        %5398 = vmatpush1.bf16.xpose.msra.mxu0 0
        %5399 = vmatprep.subr.bf16.mxu0 0
        %5400 = vmatpush1.bf16.xpose.msra.mxu0 0
        %5401 = vmatprep.subr.bf16.mxu0 0
        %5402 = vmatpush1.bf16.xpose.msra.mxu0 0
        %5403 = vmatprep.subr.bf16.mxu0 0
        %5404 = vmatpush1.bf16.xpose.msra.mxu0 0
        %5405 = vmatprep.subr.bf16.mxu0 0
        %5406 = vmatpush1.bf16.xpose.msra.mxu0 0
        %5407 = vmatprep.subr.bf16.mxu0 0
        %5408 = vmatpush1.bf16.xpose.msra.mxu0 0
        %5409 = vmatprep.subr.bf16.mxu0 0
        %5410 = vmatpush1.bf16.xpose.msra.mxu0 0
        %5411 = vmatprep.subr.bf16.mxu0 0
        %5412 = vmatpush1.bf16.xpose.msra.mxu0 0
        %5413 = vmatprep.subr.bf16.mxu0 0
        %5414 = vmatpush1.bf16.xpose.msra.mxu0 0
        %5415 = vmatprep.subr.bf16.mxu0 0
        %5416 = vmatpush1.bf16.xpose.msra.mxu0 0
        %5417 = vmatprep.subr.bf16.mxu0 0
        %5418 = vmatpush1.bf16.xpose.msra.mxu0 0
        %5419 = vmatprep.mubr.bf16.mxu0 0
        %5420 = vmatmul.mubr.bf16.gmra.mrb[0].mxu0 %v5382
        %v5421 = vpop.f32.mrb[0].mxu0
        %v5422 = vadd.f32 0.0, %v5421
        %v5423 = vpop.f32.mrb[0].mxu0
        %v5424 = vpop.f32.mrb[0].mxu0
        %v5425 = vpop.f32.mrb[0].mxu0
        %5426 = vdwg.mxu0
        %5428 = vrot.lane.b32.xlu0 %v4723, 120
        %v5429 = vpop.permute.xlu0 %5428
        %5430 = vrot.lane.b32.xlu0 %v4887, 88
        %v5431 = vpop.permute.xlu0 %5430
        %v5433 = vsel %vm1737, %v5429, 0
        %v5436 = vsel %vm1737, %v5431, 0
        %5438 = vmatprep.subr.bf16.mxu0 0
        %5439 = vmatpush1.bf16.xpose.msra.mxu0 %v5436
        %5440 = vmatprep.subr.bf16.mxu0 0
        %5441 = vmatpush1.bf16.xpose.msra.mxu0 0
        %5442 = vmatprep.subr.bf16.mxu0 0
        %5443 = vmatpush1.bf16.xpose.msra.mxu0 0
        %5444 = vmatprep.subr.bf16.mxu0 0
        %5445 = vmatpush1.bf16.xpose.msra.mxu0 0
        %5446 = vmatprep.subr.bf16.mxu0 0
        %5447 = vmatpush1.bf16.xpose.msra.mxu0 0
        %5448 = vmatprep.subr.bf16.mxu0 0
        %5449 = vmatpush1.bf16.xpose.msra.mxu0 0
        %5450 = vmatprep.subr.bf16.mxu0 0
        %5451 = vmatpush1.bf16.xpose.msra.mxu0 0
        %5452 = vmatprep.subr.bf16.mxu0 0
        %5453 = vmatpush1.bf16.xpose.msra.mxu0 0
        %5454 = vmatprep.subr.bf16.mxu0 0
        %5455 = vmatpush1.bf16.xpose.msra.mxu0 0
        %5456 = vmatprep.subr.bf16.mxu0 0
        %5457 = vmatpush1.bf16.xpose.msra.mxu0 0
        %5458 = vmatprep.subr.bf16.mxu0 0
        %5459 = vmatpush1.bf16.xpose.msra.mxu0 0
        %5460 = vmatprep.subr.bf16.mxu0 0
        %5461 = vmatpush1.bf16.xpose.msra.mxu0 0
        %5462 = vmatprep.subr.bf16.mxu0 0
        %5463 = vmatpush1.bf16.xpose.msra.mxu0 0
        %5464 = vmatprep.subr.bf16.mxu0 0
        %5465 = vmatpush1.bf16.xpose.msra.mxu0 0
        %5466 = vmatprep.subr.bf16.mxu0 0
        %5467 = vmatpush1.bf16.xpose.msra.mxu0 0
        %5468 = vmatprep.subr.bf16.mxu0 0
        %5469 = vmatpush1.bf16.xpose.msra.mxu0 0
        %5470 = vmatprep.mubr.bf16.mxu0 0
        %5471 = vmatmul.mubr.bf16.gmra.mrb[0].mxu0 %v5433
        %v5472 = vpop.f32.mrb[0].mxu0
        %v5473 = vadd.f32 0.0, %v5472
        %v5474 = vpop.f32.mrb[0].mxu0
        %v5475 = vpop.f32.mrb[0].mxu0
        %v5476 = vpop.f32.mrb[0].mxu0
        %5477 = vdwg.mxu0
        %5479 = vrot.lane.b32.xlu0 %v4724, 120
        %v5480 = vpop.permute.xlu0 %5479
        %5481 = vrot.lane.b32.xlu0 %v4888, 88
        %v5482 = vpop.permute.xlu0 %5481
        %v5484 = vsel %vm1737, %v5480, 0
        %v5487 = vsel %vm1737, %v5482, 0
        %5489 = vmatprep.subr.bf16.mxu0 0
        %5490 = vmatpush1.bf16.xpose.msra.mxu0 %v5487
        %5491 = vmatprep.subr.bf16.mxu0 0
        %5492 = vmatpush1.bf16.xpose.msra.mxu0 0
        %5493 = vmatprep.subr.bf16.mxu0 0
        %5494 = vmatpush1.bf16.xpose.msra.mxu0 0
        %5495 = vmatprep.subr.bf16.mxu0 0
        %5496 = vmatpush1.bf16.xpose.msra.mxu0 0
        %5497 = vmatprep.subr.bf16.mxu0 0
        %5498 = vmatpush1.bf16.xpose.msra.mxu0 0
        %5499 = vmatprep.subr.bf16.mxu0 0
        %5500 = vmatpush1.bf16.xpose.msra.mxu0 0
        %5501 = vmatprep.subr.bf16.mxu0 0
        %5502 = vmatpush1.bf16.xpose.msra.mxu0 0
        %5503 = vmatprep.subr.bf16.mxu0 0
        %5504 = vmatpush1.bf16.xpose.msra.mxu0 0
        %5505 = vmatprep.subr.bf16.mxu0 0
        %5506 = vmatpush1.bf16.xpose.msra.mxu0 0
        %5507 = vmatprep.subr.bf16.mxu0 0
        %5508 = vmatpush1.bf16.xpose.msra.mxu0 0
        %5509 = vmatprep.subr.bf16.mxu0 0
        %5510 = vmatpush1.bf16.xpose.msra.mxu0 0
        %5511 = vmatprep.subr.bf16.mxu0 0
        %5512 = vmatpush1.bf16.xpose.msra.mxu0 0
        %5513 = vmatprep.subr.bf16.mxu0 0
        %5514 = vmatpush1.bf16.xpose.msra.mxu0 0
        %5515 = vmatprep.subr.bf16.mxu0 0
        %5516 = vmatpush1.bf16.xpose.msra.mxu0 0
        %5517 = vmatprep.subr.bf16.mxu0 0
        %5518 = vmatpush1.bf16.xpose.msra.mxu0 0
        %5519 = vmatprep.subr.bf16.mxu0 0
        %5520 = vmatpush1.bf16.xpose.msra.mxu0 0
        %5521 = vmatprep.mubr.bf16.mxu0 0
        %5522 = vmatmul.mubr.bf16.gmra.mrb[0].mxu0 %v5484
        %v5523 = vpop.f32.mrb[0].mxu0
        %v5524 = vadd.f32 0.0, %v5523
        %v5525 = vpop.f32.mrb[0].mxu0
        %v5526 = vpop.f32.mrb[0].mxu0
        %v5527 = vpop.f32.mrb[0].mxu0
        %5528 = vdwg.mxu0
        %v5529 = vsel %vm1931, %v5371, -inf
        %5530 = vmax.xlane.f32.xlu0 %v5529
        %v5531 = vpop.xlane.xlu0 %5530
        %v5532 = vsel %vm1931, %v5422, -inf
        %5533 = vmax.xlane.f32.xlu0 %v5532
        %v5534 = vpop.xlane.xlu0 %5533
        %v5535 = vsel %vm1931, %v5473, -inf
        %5536 = vmax.xlane.f32.xlu0 %v5535
        %v5537 = vpop.xlane.xlu0 %5536
        %v5538 = vsel %vm1931, %v5524, -inf
        %5539 = vmax.xlane.f32.xlu0 %v5538
        %v5540 = vpop.xlane.xlu0 %5539
        %v5541 = vsub.f32 %v5371, %v5531
        %v5542 = vsub.f32 %v5422, %v5534
        %v5543 = vsub.f32 %v5473, %v5537
        %v5544 = vsub.f32 %v5524, %v5540
        %v5545 = vmul.f32 %v5541, 1.442695
        %v5546 = vpow.pop %v5545
        %v5547 = vmul.f32 %v5542, 1.442695
        %v5548 = vpow.pop %v5547
        %v5549 = vmul.f32 %v5543, 1.442695
        %v5550 = vpow.pop %v5549
        %v5551 = vmul.f32 %v5544, 1.442695
        %v5552 = vpow.pop %v5551
        %v5553 = vsel %vm1931, %v5546, 0.0
        %5554 = vadd.xlane.f32.xlu0 %v5553
        %v5555 = vpop.xlane.xlu0 %5554
        %v5556 = vsel %vm1931, %v5548, 0.0
        %5557 = vadd.xlane.f32.xlu0 %v5556
        %v5558 = vpop.xlane.xlu0 %5557
        %v5559 = vsel %vm1931, %v5550, 0.0
        %5560 = vadd.xlane.f32.xlu0 %v5559
        %v5561 = vpop.xlane.xlu0 %5560
        %v5562 = vsel %vm1931, %v5552, 0.0
        %5563 = vadd.xlane.f32.xlu0 %v5562
        %v5564 = vpop.xlane.xlu0 %5563
        %v5565 = vrcp.pop %v5555
        %v5566 = vrcp.pop %v5558
        %v5567 = vrcp.pop %v5561
        %v5568 = vrcp.pop %v5564
        %v5569 = vmul.f32 %v5546, %v5565
        %v5570 = vmul.f32 %v5548, %v5566
        %v5571 = vmul.f32 %v5550, %v5567
        %v5572 = vmul.f32 %v5552, %v5568
        %v5573 = vpack.c.bf16 %v5569, %v5569
        %v5574 = vpack.c.bf16 %v5570, %v5570
        %v5575 = vpack.c.bf16 %v5571, %v5571
        %v5576 = vpack.c.bf16 %v5572, %v5572
        %5577 = vrot.lane.b32.xlu0 %v4885, 56
        %v5578 = vpop.permute.xlu0 %5577
        %v5580 = vsel %vm1982, %v5573, 0
        %v5583 = vand.u32 %v5578, %v1989
        %5585 = vmatprep.subr.bf16.mxu0 0
        %5586 = vmatpush1.bf16.msra.mxu0 %v5583
        %5587 = vmatprep.subr.bf16.mxu0 0
        %5588 = vmatpush1.bf16.msra.mxu0 0
        %5589 = vmatprep.subr.bf16.mxu0 0
        %5590 = vmatpush1.bf16.msra.mxu0 0
        %5591 = vmatprep.subr.bf16.mxu0 0
        %5592 = vmatpush1.bf16.msra.mxu0 0
        %5593 = vmatprep.subr.bf16.mxu0 0
        %5594 = vmatpush1.bf16.msra.mxu0 0
        %5595 = vmatprep.subr.bf16.mxu0 0
        %5596 = vmatpush1.bf16.msra.mxu0 0
        %5597 = vmatprep.subr.bf16.mxu0 0
        %5598 = vmatpush1.bf16.msra.mxu0 0
        %5599 = vmatprep.subr.bf16.mxu0 0
        %5600 = vmatpush1.bf16.msra.mxu0 0
        %5601 = vmatprep.subr.bf16.mxu0 0
        %5602 = vmatpush1.bf16.msra.mxu0 0
        %5603 = vmatprep.subr.bf16.mxu0 0
        %5604 = vmatpush1.bf16.msra.mxu0 0
        %5605 = vmatprep.subr.bf16.mxu0 0
        %5606 = vmatpush1.bf16.msra.mxu0 0
        %5607 = vmatprep.subr.bf16.mxu0 0
        %5608 = vmatpush1.bf16.msra.mxu0 0
        %5609 = vmatprep.subr.bf16.mxu0 0
        %5610 = vmatpush1.bf16.msra.mxu0 0
        %5611 = vmatprep.subr.bf16.mxu0 0
        %5612 = vmatpush1.bf16.msra.mxu0 0
        %5613 = vmatprep.subr.bf16.mxu0 0
        %5614 = vmatpush1.bf16.msra.mxu0 0
        %5615 = vmatprep.subr.bf16.mxu0 0
        %5616 = vmatpush1.bf16.msra.mxu0 0
        %5617 = vmatprep.mubr.bf16.mxu0 0
        %5618 = vmatmul.mubr.bf16.gmra.mrb[0].mxu0 %v5580
        %v5619 = vpop.f32.mrb[0].mxu0
        %v5620 = vadd.f32 0.0, %v5619
        %v5621 = vpop.f32.mrb[0].mxu0
        %v5622 = vpop.f32.mrb[0].mxu0
        %v5623 = vpop.f32.mrb[0].mxu0
        %5624 = vdwg.mxu0
        %5625 = vrot.lane.b32.xlu0 %v4886, 56
        %v5626 = vpop.permute.xlu0 %5625
        %v5628 = vsel %vm1982, %v5574, 0
        %v5631 = vand.u32 %v5626, %v1989
        %5633 = vmatprep.subr.bf16.mxu0 0
        %5634 = vmatpush1.bf16.msra.mxu0 %v5631
        %5635 = vmatprep.subr.bf16.mxu0 0
        %5636 = vmatpush1.bf16.msra.mxu0 0
        %5637 = vmatprep.subr.bf16.mxu0 0
        %5638 = vmatpush1.bf16.msra.mxu0 0
        %5639 = vmatprep.subr.bf16.mxu0 0
        %5640 = vmatpush1.bf16.msra.mxu0 0
        %5641 = vmatprep.subr.bf16.mxu0 0
        %5642 = vmatpush1.bf16.msra.mxu0 0
        %5643 = vmatprep.subr.bf16.mxu0 0
        %5644 = vmatpush1.bf16.msra.mxu0 0
        %5645 = vmatprep.subr.bf16.mxu0 0
        %5646 = vmatpush1.bf16.msra.mxu0 0
        %5647 = vmatprep.subr.bf16.mxu0 0
        %5648 = vmatpush1.bf16.msra.mxu0 0
        %5649 = vmatprep.subr.bf16.mxu0 0
        %5650 = vmatpush1.bf16.msra.mxu0 0
        %5651 = vmatprep.subr.bf16.mxu0 0
        %5652 = vmatpush1.bf16.msra.mxu0 0
        %5653 = vmatprep.subr.bf16.mxu0 0
        %5654 = vmatpush1.bf16.msra.mxu0 0
        %5655 = vmatprep.subr.bf16.mxu0 0
        %5656 = vmatpush1.bf16.msra.mxu0 0
        %5657 = vmatprep.subr.bf16.mxu0 0
        %5658 = vmatpush1.bf16.msra.mxu0 0
        %5659 = vmatprep.subr.bf16.mxu0 0
        %5660 = vmatpush1.bf16.msra.mxu0 0
        %5661 = vmatprep.subr.bf16.mxu0 0
        %5662 = vmatpush1.bf16.msra.mxu0 0
        %5663 = vmatprep.subr.bf16.mxu0 0
        %5664 = vmatpush1.bf16.msra.mxu0 0
        %5665 = vmatprep.mubr.bf16.mxu0 0
        %5666 = vmatmul.mubr.bf16.gmra.mrb[0].mxu0 %v5628
        %v5667 = vpop.f32.mrb[0].mxu0
        %v5668 = vadd.f32 0.0, %v5667
        %v5669 = vpop.f32.mrb[0].mxu0
        %v5670 = vpop.f32.mrb[0].mxu0
        %v5671 = vpop.f32.mrb[0].mxu0
        %5672 = vdwg.mxu0
        %5673 = vrot.lane.b32.xlu0 %v4887, 56
        %v5674 = vpop.permute.xlu0 %5673
        %v5676 = vsel %vm1982, %v5575, 0
        %v5679 = vand.u32 %v5674, %v1989
        %5681 = vmatprep.subr.bf16.mxu0 0
        %5682 = vmatpush1.bf16.msra.mxu0 %v5679
        %5683 = vmatprep.subr.bf16.mxu0 0
        %5684 = vmatpush1.bf16.msra.mxu0 0
        %5685 = vmatprep.subr.bf16.mxu0 0
        %5686 = vmatpush1.bf16.msra.mxu0 0
        %5687 = vmatprep.subr.bf16.mxu0 0
        %5688 = vmatpush1.bf16.msra.mxu0 0
        %5689 = vmatprep.subr.bf16.mxu0 0
        %5690 = vmatpush1.bf16.msra.mxu0 0
        %5691 = vmatprep.subr.bf16.mxu0 0
        %5692 = vmatpush1.bf16.msra.mxu0 0
        %5693 = vmatprep.subr.bf16.mxu0 0
        %5694 = vmatpush1.bf16.msra.mxu0 0
        %5695 = vmatprep.subr.bf16.mxu0 0
        %5696 = vmatpush1.bf16.msra.mxu0 0
        %5697 = vmatprep.subr.bf16.mxu0 0
        %5698 = vmatpush1.bf16.msra.mxu0 0
        %5699 = vmatprep.subr.bf16.mxu0 0
        %5700 = vmatpush1.bf16.msra.mxu0 0
        %5701 = vmatprep.subr.bf16.mxu0 0
        %5702 = vmatpush1.bf16.msra.mxu0 0
        %5703 = vmatprep.subr.bf16.mxu0 0
        %5704 = vmatpush1.bf16.msra.mxu0 0
        %5705 = vmatprep.subr.bf16.mxu0 0
        %5706 = vmatpush1.bf16.msra.mxu0 0
        %5707 = vmatprep.subr.bf16.mxu0 0
        %5708 = vmatpush1.bf16.msra.mxu0 0
        %5709 = vmatprep.subr.bf16.mxu0 0
        %5710 = vmatpush1.bf16.msra.mxu0 0
        %5711 = vmatprep.subr.bf16.mxu0 0
        %5712 = vmatpush1.bf16.msra.mxu0 0
        %5713 = vmatprep.mubr.bf16.mxu0 0
        %5714 = vmatmul.mubr.bf16.gmra.mrb[0].mxu0 %v5676
        %v5715 = vpop.f32.mrb[0].mxu0
        %v5716 = vadd.f32 0.0, %v5715
        %v5717 = vpop.f32.mrb[0].mxu0
        %v5718 = vpop.f32.mrb[0].mxu0
        %v5719 = vpop.f32.mrb[0].mxu0
        %5720 = vdwg.mxu0
        %5721 = vrot.lane.b32.xlu0 %v4888, 56
        %v5722 = vpop.permute.xlu0 %5721
        %v5724 = vsel %vm1982, %v5576, 0
        %v5727 = vand.u32 %v5722, %v1989
        %5729 = vmatprep.subr.bf16.mxu0 0
        %5730 = vmatpush1.bf16.msra.mxu0 %v5727
        %5731 = vmatprep.subr.bf16.mxu0 0
        %5732 = vmatpush1.bf16.msra.mxu0 0
        %5733 = vmatprep.subr.bf16.mxu0 0
        %5734 = vmatpush1.bf16.msra.mxu0 0
        %5735 = vmatprep.subr.bf16.mxu0 0
        %5736 = vmatpush1.bf16.msra.mxu0 0
        %5737 = vmatprep.subr.bf16.mxu0 0
        %5738 = vmatpush1.bf16.msra.mxu0 0
        %5739 = vmatprep.subr.bf16.mxu0 0
        %5740 = vmatpush1.bf16.msra.mxu0 0
        %5741 = vmatprep.subr.bf16.mxu0 0
        %5742 = vmatpush1.bf16.msra.mxu0 0
        %5743 = vmatprep.subr.bf16.mxu0 0
        %5744 = vmatpush1.bf16.msra.mxu0 0
        %5745 = vmatprep.subr.bf16.mxu0 0
        %5746 = vmatpush1.bf16.msra.mxu0 0
        %5747 = vmatprep.subr.bf16.mxu0 0
        %5748 = vmatpush1.bf16.msra.mxu0 0
        %5749 = vmatprep.subr.bf16.mxu0 0
        %5750 = vmatpush1.bf16.msra.mxu0 0
        %5751 = vmatprep.subr.bf16.mxu0 0
        %5752 = vmatpush1.bf16.msra.mxu0 0
        %5753 = vmatprep.subr.bf16.mxu0 0
        %5754 = vmatpush1.bf16.msra.mxu0 0
        %5755 = vmatprep.subr.bf16.mxu0 0
        %5756 = vmatpush1.bf16.msra.mxu0 0
        %5757 = vmatprep.subr.bf16.mxu0 0
        %5758 = vmatpush1.bf16.msra.mxu0 0
        %5759 = vmatprep.subr.bf16.mxu0 0
        %5760 = vmatpush1.bf16.msra.mxu0 0
        %5761 = vmatprep.mubr.bf16.mxu0 0
        %5762 = vmatmul.mubr.bf16.gmra.mrb[0].mxu0 %v5724
        %v5763 = vpop.f32.mrb[0].mxu0
        %v5764 = vadd.f32 0.0, %v5763
        %v5765 = vpop.f32.mrb[0].mxu0
        %v5766 = vpop.f32.mrb[0].mxu0
        %v5767 = vpop.f32.mrb[0].mxu0
        %5768 = vdwg.mxu0
        %5769 = vrot.lane.b32.xlu0 %v4721, 112
        %v5770 = vpop.permute.xlu0 %5769
        %5771 = vrot.lane.b32.xlu0 %v4885, 80
        %v5772 = vpop.permute.xlu0 %5771
        %v5774 = vsel %vm1737, %v5770, 0
        %v5777 = vsel %vm1737, %v5772, 0
        %5779 = vmatprep.subr.bf16.mxu0 0
        %5780 = vmatpush1.bf16.xpose.msra.mxu0 %v5777
        %5781 = vmatprep.subr.bf16.mxu0 0
        %5782 = vmatpush1.bf16.xpose.msra.mxu0 0
        %5783 = vmatprep.subr.bf16.mxu0 0
        %5784 = vmatpush1.bf16.xpose.msra.mxu0 0
        %5785 = vmatprep.subr.bf16.mxu0 0
        %5786 = vmatpush1.bf16.xpose.msra.mxu0 0
        %5787 = vmatprep.subr.bf16.mxu0 0
        %5788 = vmatpush1.bf16.xpose.msra.mxu0 0
        %5789 = vmatprep.subr.bf16.mxu0 0
        %5790 = vmatpush1.bf16.xpose.msra.mxu0 0
        %5791 = vmatprep.subr.bf16.mxu0 0
        %5792 = vmatpush1.bf16.xpose.msra.mxu0 0
        %5793 = vmatprep.subr.bf16.mxu0 0
        %5794 = vmatpush1.bf16.xpose.msra.mxu0 0
        %5795 = vmatprep.subr.bf16.mxu0 0
        %5796 = vmatpush1.bf16.xpose.msra.mxu0 0
        %5797 = vmatprep.subr.bf16.mxu0 0
        %5798 = vmatpush1.bf16.xpose.msra.mxu0 0
        %5799 = vmatprep.subr.bf16.mxu0 0
        %5800 = vmatpush1.bf16.xpose.msra.mxu0 0
        %5801 = vmatprep.subr.bf16.mxu0 0
        %5802 = vmatpush1.bf16.xpose.msra.mxu0 0
        %5803 = vmatprep.subr.bf16.mxu0 0
        %5804 = vmatpush1.bf16.xpose.msra.mxu0 0
        %5805 = vmatprep.subr.bf16.mxu0 0
        %5806 = vmatpush1.bf16.xpose.msra.mxu0 0
        %5807 = vmatprep.subr.bf16.mxu0 0
        %5808 = vmatpush1.bf16.xpose.msra.mxu0 0
        %5809 = vmatprep.subr.bf16.mxu0 0
        %5810 = vmatpush1.bf16.xpose.msra.mxu0 0
        %5811 = vmatprep.mubr.bf16.mxu0 0
        %5812 = vmatmul.mubr.bf16.gmra.mrb[0].mxu0 %v5774
        %v5813 = vpop.f32.mrb[0].mxu0
        %v5814 = vadd.f32 0.0, %v5813
        %v5815 = vpop.f32.mrb[0].mxu0
        %v5816 = vpop.f32.mrb[0].mxu0
        %v5817 = vpop.f32.mrb[0].mxu0
        %5818 = vdwg.mxu0
        %5819 = vrot.lane.b32.xlu0 %v4722, 112
        %v5820 = vpop.permute.xlu0 %5819
        %5821 = vrot.lane.b32.xlu0 %v4886, 80
        %v5822 = vpop.permute.xlu0 %5821
        %v5824 = vsel %vm1737, %v5820, 0
        %v5827 = vsel %vm1737, %v5822, 0
        %5829 = vmatprep.subr.bf16.mxu0 0
        %5830 = vmatpush1.bf16.xpose.msra.mxu0 %v5827
        %5831 = vmatprep.subr.bf16.mxu0 0
        %5832 = vmatpush1.bf16.xpose.msra.mxu0 0
        %5833 = vmatprep.subr.bf16.mxu0 0
        %5834 = vmatpush1.bf16.xpose.msra.mxu0 0
        %5835 = vmatprep.subr.bf16.mxu0 0
        %5836 = vmatpush1.bf16.xpose.msra.mxu0 0
        %5837 = vmatprep.subr.bf16.mxu0 0
        %5838 = vmatpush1.bf16.xpose.msra.mxu0 0
        %5839 = vmatprep.subr.bf16.mxu0 0
        %5840 = vmatpush1.bf16.xpose.msra.mxu0 0
        %5841 = vmatprep.subr.bf16.mxu0 0
        %5842 = vmatpush1.bf16.xpose.msra.mxu0 0
        %5843 = vmatprep.subr.bf16.mxu0 0
        %5844 = vmatpush1.bf16.xpose.msra.mxu0 0
        %5845 = vmatprep.subr.bf16.mxu0 0
        %5846 = vmatpush1.bf16.xpose.msra.mxu0 0
        %5847 = vmatprep.subr.bf16.mxu0 0
        %5848 = vmatpush1.bf16.xpose.msra.mxu0 0
        %5849 = vmatprep.subr.bf16.mxu0 0
        %5850 = vmatpush1.bf16.xpose.msra.mxu0 0
        %5851 = vmatprep.subr.bf16.mxu0 0
        %5852 = vmatpush1.bf16.xpose.msra.mxu0 0
        %5853 = vmatprep.subr.bf16.mxu0 0
        %5854 = vmatpush1.bf16.xpose.msra.mxu0 0
        %5855 = vmatprep.subr.bf16.mxu0 0
        %5856 = vmatpush1.bf16.xpose.msra.mxu0 0
        %5857 = vmatprep.subr.bf16.mxu0 0
        %5858 = vmatpush1.bf16.xpose.msra.mxu0 0
        %5859 = vmatprep.subr.bf16.mxu0 0
        %5860 = vmatpush1.bf16.xpose.msra.mxu0 0
        %5861 = vmatprep.mubr.bf16.mxu0 0
        %5862 = vmatmul.mubr.bf16.gmra.mrb[0].mxu0 %v5824
        %v5863 = vpop.f32.mrb[0].mxu0
        %v5864 = vadd.f32 0.0, %v5863
        %v5865 = vpop.f32.mrb[0].mxu0
        %v5866 = vpop.f32.mrb[0].mxu0
        %v5867 = vpop.f32.mrb[0].mxu0
        %5868 = vdwg.mxu0
        %5869 = vrot.lane.b32.xlu0 %v4723, 112
        %v5870 = vpop.permute.xlu0 %5869
        %5871 = vrot.lane.b32.xlu0 %v4887, 80
        %v5872 = vpop.permute.xlu0 %5871
        %v5874 = vsel %vm1737, %v5870, 0
        %v5877 = vsel %vm1737, %v5872, 0
        %5879 = vmatprep.subr.bf16.mxu0 0
        %5880 = vmatpush1.bf16.xpose.msra.mxu0 %v5877
        %5881 = vmatprep.subr.bf16.mxu0 0
        %5882 = vmatpush1.bf16.xpose.msra.mxu0 0
        %5883 = vmatprep.subr.bf16.mxu0 0
        %5884 = vmatpush1.bf16.xpose.msra.mxu0 0
        %5885 = vmatprep.subr.bf16.mxu0 0
        %5886 = vmatpush1.bf16.xpose.msra.mxu0 0
        %5887 = vmatprep.subr.bf16.mxu0 0
        %5888 = vmatpush1.bf16.xpose.msra.mxu0 0
        %5889 = vmatprep.subr.bf16.mxu0 0
        %5890 = vmatpush1.bf16.xpose.msra.mxu0 0
        %5891 = vmatprep.subr.bf16.mxu0 0
        %5892 = vmatpush1.bf16.xpose.msra.mxu0 0
        %5893 = vmatprep.subr.bf16.mxu0 0
        %5894 = vmatpush1.bf16.xpose.msra.mxu0 0
        %5895 = vmatprep.subr.bf16.mxu0 0
        %5896 = vmatpush1.bf16.xpose.msra.mxu0 0
        %5897 = vmatprep.subr.bf16.mxu0 0
        %5898 = vmatpush1.bf16.xpose.msra.mxu0 0
        %5899 = vmatprep.subr.bf16.mxu0 0
        %5900 = vmatpush1.bf16.xpose.msra.mxu0 0
        %5901 = vmatprep.subr.bf16.mxu0 0
        %5902 = vmatpush1.bf16.xpose.msra.mxu0 0
        %5903 = vmatprep.subr.bf16.mxu0 0
        %5904 = vmatpush1.bf16.xpose.msra.mxu0 0
        %5905 = vmatprep.subr.bf16.mxu0 0
        %5906 = vmatpush1.bf16.xpose.msra.mxu0 0
        %5907 = vmatprep.subr.bf16.mxu0 0
        %5908 = vmatpush1.bf16.xpose.msra.mxu0 0
        %5909 = vmatprep.subr.bf16.mxu0 0
        %5910 = vmatpush1.bf16.xpose.msra.mxu0 0
        %5911 = vmatprep.mubr.bf16.mxu0 0
        %5912 = vmatmul.mubr.bf16.gmra.mrb[0].mxu0 %v5874
        %v5913 = vpop.f32.mrb[0].mxu0
        %v5914 = vadd.f32 0.0, %v5913
        %v5915 = vpop.f32.mrb[0].mxu0
        %v5916 = vpop.f32.mrb[0].mxu0
        %v5917 = vpop.f32.mrb[0].mxu0
        %5918 = vdwg.mxu0
        %5919 = vrot.lane.b32.xlu0 %v4724, 112
        %v5920 = vpop.permute.xlu0 %5919
        %5921 = vrot.lane.b32.xlu0 %v4888, 80
        %v5922 = vpop.permute.xlu0 %5921
        %v5924 = vsel %vm1737, %v5920, 0
        %v5927 = vsel %vm1737, %v5922, 0
        %5929 = vmatprep.subr.bf16.mxu0 0
        %5930 = vmatpush1.bf16.xpose.msra.mxu0 %v5927
        %5931 = vmatprep.subr.bf16.mxu0 0
        %5932 = vmatpush1.bf16.xpose.msra.mxu0 0
        %5933 = vmatprep.subr.bf16.mxu0 0
        %5934 = vmatpush1.bf16.xpose.msra.mxu0 0
        %5935 = vmatprep.subr.bf16.mxu0 0
        %5936 = vmatpush1.bf16.xpose.msra.mxu0 0
        %5937 = vmatprep.subr.bf16.mxu0 0
        %5938 = vmatpush1.bf16.xpose.msra.mxu0 0
        %5939 = vmatprep.subr.bf16.mxu0 0
        %5940 = vmatpush1.bf16.xpose.msra.mxu0 0
        %5941 = vmatprep.subr.bf16.mxu0 0
        %5942 = vmatpush1.bf16.xpose.msra.mxu0 0
        %5943 = vmatprep.subr.bf16.mxu0 0
        %5944 = vmatpush1.bf16.xpose.msra.mxu0 0
        %5945 = vmatprep.subr.bf16.mxu0 0
        %5946 = vmatpush1.bf16.xpose.msra.mxu0 0
        %5947 = vmatprep.subr.bf16.mxu0 0
        %5948 = vmatpush1.bf16.xpose.msra.mxu0 0
        %5949 = vmatprep.subr.bf16.mxu0 0
        %5950 = vmatpush1.bf16.xpose.msra.mxu0 0
        %5951 = vmatprep.subr.bf16.mxu0 0
        %5952 = vmatpush1.bf16.xpose.msra.mxu0 0
        %5953 = vmatprep.subr.bf16.mxu0 0
        %5954 = vmatpush1.bf16.xpose.msra.mxu0 0
        %5955 = vmatprep.subr.bf16.mxu0 0
        %5956 = vmatpush1.bf16.xpose.msra.mxu0 0
        %5957 = vmatprep.subr.bf16.mxu0 0
        %5958 = vmatpush1.bf16.xpose.msra.mxu0 0
        %5959 = vmatprep.subr.bf16.mxu0 0
        %5960 = vmatpush1.bf16.xpose.msra.mxu0 0
        %5961 = vmatprep.mubr.bf16.mxu0 0
        %5962 = vmatmul.mubr.bf16.gmra.mrb[0].mxu0 %v5924
        %v5963 = vpop.f32.mrb[0].mxu0
        %v5964 = vadd.f32 0.0, %v5963
        %v5965 = vpop.f32.mrb[0].mxu0
        %v5966 = vpop.f32.mrb[0].mxu0
        %v5967 = vpop.f32.mrb[0].mxu0
        %5968 = vdwg.mxu0
        %v5969 = vsel %vm1931, %v5814, -inf
        %5970 = vmax.xlane.f32.xlu0 %v5969
        %v5971 = vpop.xlane.xlu0 %5970
        %v5972 = vsel %vm1931, %v5864, -inf
        %5973 = vmax.xlane.f32.xlu0 %v5972
        %v5974 = vpop.xlane.xlu0 %5973
        %v5975 = vsel %vm1931, %v5914, -inf
        %5976 = vmax.xlane.f32.xlu0 %v5975
        %v5977 = vpop.xlane.xlu0 %5976
        %v5978 = vsel %vm1931, %v5964, -inf
        %5979 = vmax.xlane.f32.xlu0 %v5978
        %v5980 = vpop.xlane.xlu0 %5979
        %v5981 = vsub.f32 %v5814, %v5971
        %v5982 = vsub.f32 %v5864, %v5974
        %v5983 = vsub.f32 %v5914, %v5977
        %v5984 = vsub.f32 %v5964, %v5980
        %v5985 = vmul.f32 %v5981, 1.442695
        %v5986 = vpow.pop %v5985
        %v5987 = vmul.f32 %v5982, 1.442695
        %v5988 = vpow.pop %v5987
        %v5989 = vmul.f32 %v5983, 1.442695
        %v5990 = vpow.pop %v5989
        %v5991 = vmul.f32 %v5984, 1.442695
        %v5992 = vpow.pop %v5991
        %v5993 = vsel %vm1931, %v5986, 0.0
        %5994 = vadd.xlane.f32.xlu0 %v5993
        %v5995 = vpop.xlane.xlu0 %5994
        %v5996 = vsel %vm1931, %v5988, 0.0
        %5997 = vadd.xlane.f32.xlu0 %v5996
        %v5998 = vpop.xlane.xlu0 %5997
        %v5999 = vsel %vm1931, %v5990, 0.0
        %6000 = vadd.xlane.f32.xlu0 %v5999
        %v6001 = vpop.xlane.xlu0 %6000
        %v6002 = vsel %vm1931, %v5992, 0.0
        %6003 = vadd.xlane.f32.xlu0 %v6002
        %v6004 = vpop.xlane.xlu0 %6003
        %v6005 = vrcp.pop %v5995
        %v6006 = vrcp.pop %v5998
        %v6007 = vrcp.pop %v6001
        %v6008 = vrcp.pop %v6004
        %v6009 = vmul.f32 %v5986, %v6005
        %v6010 = vmul.f32 %v5988, %v6006
        %v6011 = vmul.f32 %v5990, %v6007
        %v6012 = vmul.f32 %v5992, %v6008
        %v6013 = vpack.c.bf16 %v6009, %v6009
        %v6014 = vpack.c.bf16 %v6010, %v6010
        %v6015 = vpack.c.bf16 %v6011, %v6011
        %v6016 = vpack.c.bf16 %v6012, %v6012
        %6017 = vrot.lane.b32.xlu0 %v4885, 48
        %v6018 = vpop.permute.xlu0 %6017
        %v6020 = vsel %vm1982, %v6013, 0
        %v6023 = vand.u32 %v6018, %v1989
        %6025 = vmatprep.subr.bf16.mxu0 0
        %6026 = vmatpush1.bf16.msra.mxu0 %v6023
        %6027 = vmatprep.subr.bf16.mxu0 0
        %6028 = vmatpush1.bf16.msra.mxu0 0
        %6029 = vmatprep.subr.bf16.mxu0 0
        %6030 = vmatpush1.bf16.msra.mxu0 0
        %6031 = vmatprep.subr.bf16.mxu0 0
        %6032 = vmatpush1.bf16.msra.mxu0 0
        %6033 = vmatprep.subr.bf16.mxu0 0
        %6034 = vmatpush1.bf16.msra.mxu0 0
        %6035 = vmatprep.subr.bf16.mxu0 0
        %6036 = vmatpush1.bf16.msra.mxu0 0
        %6037 = vmatprep.subr.bf16.mxu0 0
        %6038 = vmatpush1.bf16.msra.mxu0 0
        %6039 = vmatprep.subr.bf16.mxu0 0
        %6040 = vmatpush1.bf16.msra.mxu0 0
        %6041 = vmatprep.subr.bf16.mxu0 0
        %6042 = vmatpush1.bf16.msra.mxu0 0
        %6043 = vmatprep.subr.bf16.mxu0 0
        %6044 = vmatpush1.bf16.msra.mxu0 0
        %6045 = vmatprep.subr.bf16.mxu0 0
        %6046 = vmatpush1.bf16.msra.mxu0 0
        %6047 = vmatprep.subr.bf16.mxu0 0
        %6048 = vmatpush1.bf16.msra.mxu0 0
        %6049 = vmatprep.subr.bf16.mxu0 0
        %6050 = vmatpush1.bf16.msra.mxu0 0
        %6051 = vmatprep.subr.bf16.mxu0 0
        %6052 = vmatpush1.bf16.msra.mxu0 0
        %6053 = vmatprep.subr.bf16.mxu0 0
        %6054 = vmatpush1.bf16.msra.mxu0 0
        %6055 = vmatprep.subr.bf16.mxu0 0
        %6056 = vmatpush1.bf16.msra.mxu0 0
        %6057 = vmatprep.mubr.bf16.mxu0 0
        %6058 = vmatmul.mubr.bf16.gmra.mrb[0].mxu0 %v6020
        %v6059 = vpop.f32.mrb[0].mxu0
        %v6060 = vadd.f32 0.0, %v6059
        %v6061 = vpop.f32.mrb[0].mxu0
        %v6062 = vpop.f32.mrb[0].mxu0
        %v6063 = vpop.f32.mrb[0].mxu0
        %6064 = vdwg.mxu0
        %6065 = vrot.lane.b32.xlu0 %v4886, 48
        %v6066 = vpop.permute.xlu0 %6065
        %v6068 = vsel %vm1982, %v6014, 0
        %v6071 = vand.u32 %v6066, %v1989
        %6073 = vmatprep.subr.bf16.mxu0 0
        %6074 = vmatpush1.bf16.msra.mxu0 %v6071
        %6075 = vmatprep.subr.bf16.mxu0 0
        %6076 = vmatpush1.bf16.msra.mxu0 0
        %6077 = vmatprep.subr.bf16.mxu0 0
        %6078 = vmatpush1.bf16.msra.mxu0 0
        %6079 = vmatprep.subr.bf16.mxu0 0
        %6080 = vmatpush1.bf16.msra.mxu0 0
        %6081 = vmatprep.subr.bf16.mxu0 0
        %6082 = vmatpush1.bf16.msra.mxu0 0
        %6083 = vmatprep.subr.bf16.mxu0 0
        %6084 = vmatpush1.bf16.msra.mxu0 0
        %6085 = vmatprep.subr.bf16.mxu0 0
        %6086 = vmatpush1.bf16.msra.mxu0 0
        %6087 = vmatprep.subr.bf16.mxu0 0
        %6088 = vmatpush1.bf16.msra.mxu0 0
        %6089 = vmatprep.subr.bf16.mxu0 0
        %6090 = vmatpush1.bf16.msra.mxu0 0
        %6091 = vmatprep.subr.bf16.mxu0 0
        %6092 = vmatpush1.bf16.msra.mxu0 0
        %6093 = vmatprep.subr.bf16.mxu0 0
        %6094 = vmatpush1.bf16.msra.mxu0 0
        %6095 = vmatprep.subr.bf16.mxu0 0
        %6096 = vmatpush1.bf16.msra.mxu0 0
        %6097 = vmatprep.subr.bf16.mxu0 0
        %6098 = vmatpush1.bf16.msra.mxu0 0
        %6099 = vmatprep.subr.bf16.mxu0 0
        %6100 = vmatpush1.bf16.msra.mxu0 0
        %6101 = vmatprep.subr.bf16.mxu0 0
        %6102 = vmatpush1.bf16.msra.mxu0 0
        %6103 = vmatprep.subr.bf16.mxu0 0
        %6104 = vmatpush1.bf16.msra.mxu0 0
        %6105 = vmatprep.mubr.bf16.mxu0 0
        %6106 = vmatmul.mubr.bf16.gmra.mrb[0].mxu0 %v6068
        %v6107 = vpop.f32.mrb[0].mxu0
        %v6108 = vadd.f32 0.0, %v6107
        %v6109 = vpop.f32.mrb[0].mxu0
        %v6110 = vpop.f32.mrb[0].mxu0
        %v6111 = vpop.f32.mrb[0].mxu0
        %6112 = vdwg.mxu0
        %6113 = vrot.lane.b32.xlu0 %v4887, 48
        %v6114 = vpop.permute.xlu0 %6113
        %v6116 = vsel %vm1982, %v6015, 0
        %v6119 = vand.u32 %v6114, %v1989
        %6121 = vmatprep.subr.bf16.mxu0 0
        %6122 = vmatpush1.bf16.msra.mxu0 %v6119
        %6123 = vmatprep.subr.bf16.mxu0 0
        %6124 = vmatpush1.bf16.msra.mxu0 0
        %6125 = vmatprep.subr.bf16.mxu0 0
        %6126 = vmatpush1.bf16.msra.mxu0 0
        %6127 = vmatprep.subr.bf16.mxu0 0
        %6128 = vmatpush1.bf16.msra.mxu0 0
        %6129 = vmatprep.subr.bf16.mxu0 0
        %6130 = vmatpush1.bf16.msra.mxu0 0
        %6131 = vmatprep.subr.bf16.mxu0 0
        %6132 = vmatpush1.bf16.msra.mxu0 0
        %6133 = vmatprep.subr.bf16.mxu0 0
        %6134 = vmatpush1.bf16.msra.mxu0 0
        %6135 = vmatprep.subr.bf16.mxu0 0
        %6136 = vmatpush1.bf16.msra.mxu0 0
        %6137 = vmatprep.subr.bf16.mxu0 0
        %6138 = vmatpush1.bf16.msra.mxu0 0
        %6139 = vmatprep.subr.bf16.mxu0 0
        %6140 = vmatpush1.bf16.msra.mxu0 0
        %6141 = vmatprep.subr.bf16.mxu0 0
        %6142 = vmatpush1.bf16.msra.mxu0 0
        %6143 = vmatprep.subr.bf16.mxu0 0
        %6144 = vmatpush1.bf16.msra.mxu0 0
        %6145 = vmatprep.subr.bf16.mxu0 0
        %6146 = vmatpush1.bf16.msra.mxu0 0
        %6147 = vmatprep.subr.bf16.mxu0 0
        %6148 = vmatpush1.bf16.msra.mxu0 0
        %6149 = vmatprep.subr.bf16.mxu0 0
        %6150 = vmatpush1.bf16.msra.mxu0 0
        %6151 = vmatprep.subr.bf16.mxu0 0
        %6152 = vmatpush1.bf16.msra.mxu0 0
        %6153 = vmatprep.mubr.bf16.mxu0 0
        %6154 = vmatmul.mubr.bf16.gmra.mrb[0].mxu0 %v6116
        %v6155 = vpop.f32.mrb[0].mxu0
        %v6156 = vadd.f32 0.0, %v6155
        %v6157 = vpop.f32.mrb[0].mxu0
        %v6158 = vpop.f32.mrb[0].mxu0
        %v6159 = vpop.f32.mrb[0].mxu0
        %6160 = vdwg.mxu0
        %6161 = vrot.lane.b32.xlu0 %v4888, 48
        %v6162 = vpop.permute.xlu0 %6161
        %v6164 = vsel %vm1982, %v6016, 0
        %v6167 = vand.u32 %v6162, %v1989
        %6169 = vmatprep.subr.bf16.mxu0 0
        %6170 = vmatpush1.bf16.msra.mxu0 %v6167
        %6171 = vmatprep.subr.bf16.mxu0 0
        %6172 = vmatpush1.bf16.msra.mxu0 0
        %6173 = vmatprep.subr.bf16.mxu0 0
        %6174 = vmatpush1.bf16.msra.mxu0 0
        %6175 = vmatprep.subr.bf16.mxu0 0
        %6176 = vmatpush1.bf16.msra.mxu0 0
        %6177 = vmatprep.subr.bf16.mxu0 0
        %6178 = vmatpush1.bf16.msra.mxu0 0
        %6179 = vmatprep.subr.bf16.mxu0 0
        %6180 = vmatpush1.bf16.msra.mxu0 0
        %6181 = vmatprep.subr.bf16.mxu0 0
        %6182 = vmatpush1.bf16.msra.mxu0 0
        %6183 = vmatprep.subr.bf16.mxu0 0
        %6184 = vmatpush1.bf16.msra.mxu0 0
        %6185 = vmatprep.subr.bf16.mxu0 0
        %6186 = vmatpush1.bf16.msra.mxu0 0
        %6187 = vmatprep.subr.bf16.mxu0 0
        %6188 = vmatpush1.bf16.msra.mxu0 0
        %6189 = vmatprep.subr.bf16.mxu0 0
        %6190 = vmatpush1.bf16.msra.mxu0 0
        %6191 = vmatprep.subr.bf16.mxu0 0
        %6192 = vmatpush1.bf16.msra.mxu0 0
        %6193 = vmatprep.subr.bf16.mxu0 0
        %6194 = vmatpush1.bf16.msra.mxu0 0
        %6195 = vmatprep.subr.bf16.mxu0 0
        %6196 = vmatpush1.bf16.msra.mxu0 0
        %6197 = vmatprep.subr.bf16.mxu0 0
        %6198 = vmatpush1.bf16.msra.mxu0 0
        %6199 = vmatprep.subr.bf16.mxu0 0
        %6200 = vmatpush1.bf16.msra.mxu0 0
        %6201 = vmatprep.mubr.bf16.mxu0 0
        %6202 = vmatmul.mubr.bf16.gmra.mrb[0].mxu0 %v6164
        %v6203 = vpop.f32.mrb[0].mxu0
        %v6204 = vadd.f32 0.0, %v6203
        %v6205 = vpop.f32.mrb[0].mxu0
        %v6206 = vpop.f32.mrb[0].mxu0
        %v6207 = vpop.f32.mrb[0].mxu0
        %6208 = vdwg.mxu0
        %6209 = vrot.lane.b32.xlu0 %v4721, 104
        %v6210 = vpop.permute.xlu0 %6209
        %6211 = vrot.lane.b32.xlu0 %v4885, 72
        %v6212 = vpop.permute.xlu0 %6211
        %v6214 = vsel %vm1737, %v6210, 0
        %v6217 = vsel %vm1737, %v6212, 0
        %6219 = vmatprep.subr.bf16.mxu0 0
        %6220 = vmatpush1.bf16.xpose.msra.mxu0 %v6217
        %6221 = vmatprep.subr.bf16.mxu0 0
        %6222 = vmatpush1.bf16.xpose.msra.mxu0 0
        %6223 = vmatprep.subr.bf16.mxu0 0
        %6224 = vmatpush1.bf16.xpose.msra.mxu0 0
        %6225 = vmatprep.subr.bf16.mxu0 0
        %6226 = vmatpush1.bf16.xpose.msra.mxu0 0
        %6227 = vmatprep.subr.bf16.mxu0 0
        %6228 = vmatpush1.bf16.xpose.msra.mxu0 0
        %6229 = vmatprep.subr.bf16.mxu0 0
        %6230 = vmatpush1.bf16.xpose.msra.mxu0 0
        %6231 = vmatprep.subr.bf16.mxu0 0
        %6232 = vmatpush1.bf16.xpose.msra.mxu0 0
        %6233 = vmatprep.subr.bf16.mxu0 0
        %6234 = vmatpush1.bf16.xpose.msra.mxu0 0
        %6235 = vmatprep.subr.bf16.mxu0 0
        %6236 = vmatpush1.bf16.xpose.msra.mxu0 0
        %6237 = vmatprep.subr.bf16.mxu0 0
        %6238 = vmatpush1.bf16.xpose.msra.mxu0 0
        %6239 = vmatprep.subr.bf16.mxu0 0
        %6240 = vmatpush1.bf16.xpose.msra.mxu0 0
        %6241 = vmatprep.subr.bf16.mxu0 0
        %6242 = vmatpush1.bf16.xpose.msra.mxu0 0
        %6243 = vmatprep.subr.bf16.mxu0 0
        %6244 = vmatpush1.bf16.xpose.msra.mxu0 0
        %6245 = vmatprep.subr.bf16.mxu0 0
        %6246 = vmatpush1.bf16.xpose.msra.mxu0 0
        %6247 = vmatprep.subr.bf16.mxu0 0
        %6248 = vmatpush1.bf16.xpose.msra.mxu0 0
        %6249 = vmatprep.subr.bf16.mxu0 0
        %6250 = vmatpush1.bf16.xpose.msra.mxu0 0
        %6251 = vmatprep.mubr.bf16.mxu0 0
        %6252 = vmatmul.mubr.bf16.gmra.mrb[0].mxu0 %v6214
        %v6253 = vpop.f32.mrb[0].mxu0
        %v6254 = vadd.f32 0.0, %v6253
        %v6255 = vpop.f32.mrb[0].mxu0
        %v6256 = vpop.f32.mrb[0].mxu0
        %v6257 = vpop.f32.mrb[0].mxu0
        %6258 = vdwg.mxu0
        %6259 = vrot.lane.b32.xlu0 %v4722, 104
        %v6260 = vpop.permute.xlu0 %6259
        %6261 = vrot.lane.b32.xlu0 %v4886, 72
        %v6262 = vpop.permute.xlu0 %6261
        %v6264 = vsel %vm1737, %v6260, 0
        %v6267 = vsel %vm1737, %v6262, 0
        %6269 = vmatprep.subr.bf16.mxu0 0
        %6270 = vmatpush1.bf16.xpose.msra.mxu0 %v6267
        %6271 = vmatprep.subr.bf16.mxu0 0
        %6272 = vmatpush1.bf16.xpose.msra.mxu0 0
        %6273 = vmatprep.subr.bf16.mxu0 0
        %6274 = vmatpush1.bf16.xpose.msra.mxu0 0
        %6275 = vmatprep.subr.bf16.mxu0 0
        %6276 = vmatpush1.bf16.xpose.msra.mxu0 0
        %6277 = vmatprep.subr.bf16.mxu0 0
        %6278 = vmatpush1.bf16.xpose.msra.mxu0 0
        %6279 = vmatprep.subr.bf16.mxu0 0
        %6280 = vmatpush1.bf16.xpose.msra.mxu0 0
        %6281 = vmatprep.subr.bf16.mxu0 0
        %6282 = vmatpush1.bf16.xpose.msra.mxu0 0
        %6283 = vmatprep.subr.bf16.mxu0 0
        %6284 = vmatpush1.bf16.xpose.msra.mxu0 0
        %6285 = vmatprep.subr.bf16.mxu0 0
        %6286 = vmatpush1.bf16.xpose.msra.mxu0 0
        %6287 = vmatprep.subr.bf16.mxu0 0
        %6288 = vmatpush1.bf16.xpose.msra.mxu0 0
        %6289 = vmatprep.subr.bf16.mxu0 0
        %6290 = vmatpush1.bf16.xpose.msra.mxu0 0
        %6291 = vmatprep.subr.bf16.mxu0 0
        %6292 = vmatpush1.bf16.xpose.msra.mxu0 0
        %6293 = vmatprep.subr.bf16.mxu0 0
        %6294 = vmatpush1.bf16.xpose.msra.mxu0 0
        %6295 = vmatprep.subr.bf16.mxu0 0
        %6296 = vmatpush1.bf16.xpose.msra.mxu0 0
        %6297 = vmatprep.subr.bf16.mxu0 0
        %6298 = vmatpush1.bf16.xpose.msra.mxu0 0
        %6299 = vmatprep.subr.bf16.mxu0 0
        %6300 = vmatpush1.bf16.xpose.msra.mxu0 0
        %6301 = vmatprep.mubr.bf16.mxu0 0
        %6302 = vmatmul.mubr.bf16.gmra.mrb[0].mxu0 %v6264
        %v6303 = vpop.f32.mrb[0].mxu0
        %v6304 = vadd.f32 0.0, %v6303
        %v6305 = vpop.f32.mrb[0].mxu0
        %v6306 = vpop.f32.mrb[0].mxu0
        %v6307 = vpop.f32.mrb[0].mxu0
        %6308 = vdwg.mxu0
        %6309 = vrot.lane.b32.xlu0 %v4723, 104
        %v6310 = vpop.permute.xlu0 %6309
        %6311 = vrot.lane.b32.xlu0 %v4887, 72
        %v6312 = vpop.permute.xlu0 %6311
        %v6314 = vsel %vm1737, %v6310, 0
        %v6317 = vsel %vm1737, %v6312, 0
        %6319 = vmatprep.subr.bf16.mxu0 0
        %6320 = vmatpush1.bf16.xpose.msra.mxu0 %v6317
        %6321 = vmatprep.subr.bf16.mxu0 0
        %6322 = vmatpush1.bf16.xpose.msra.mxu0 0
        %6323 = vmatprep.subr.bf16.mxu0 0
        %6324 = vmatpush1.bf16.xpose.msra.mxu0 0
        %6325 = vmatprep.subr.bf16.mxu0 0
        %6326 = vmatpush1.bf16.xpose.msra.mxu0 0
        %6327 = vmatprep.subr.bf16.mxu0 0
        %6328 = vmatpush1.bf16.xpose.msra.mxu0 0
        %6329 = vmatprep.subr.bf16.mxu0 0
        %6330 = vmatpush1.bf16.xpose.msra.mxu0 0
        %6331 = vmatprep.subr.bf16.mxu0 0
        %6332 = vmatpush1.bf16.xpose.msra.mxu0 0
        %6333 = vmatprep.subr.bf16.mxu0 0
        %6334 = vmatpush1.bf16.xpose.msra.mxu0 0
        %6335 = vmatprep.subr.bf16.mxu0 0
        %6336 = vmatpush1.bf16.xpose.msra.mxu0 0
        %6337 = vmatprep.subr.bf16.mxu0 0
        %6338 = vmatpush1.bf16.xpose.msra.mxu0 0
        %6339 = vmatprep.subr.bf16.mxu0 0
        %6340 = vmatpush1.bf16.xpose.msra.mxu0 0
        %6341 = vmatprep.subr.bf16.mxu0 0
        %6342 = vmatpush1.bf16.xpose.msra.mxu0 0
        %6343 = vmatprep.subr.bf16.mxu0 0
        %6344 = vmatpush1.bf16.xpose.msra.mxu0 0
        %6345 = vmatprep.subr.bf16.mxu0 0
        %6346 = vmatpush1.bf16.xpose.msra.mxu0 0
        %6347 = vmatprep.subr.bf16.mxu0 0
        %6348 = vmatpush1.bf16.xpose.msra.mxu0 0
        %6349 = vmatprep.subr.bf16.mxu0 0
        %6350 = vmatpush1.bf16.xpose.msra.mxu0 0
        %6351 = vmatprep.mubr.bf16.mxu0 0
        %6352 = vmatmul.mubr.bf16.gmra.mrb[0].mxu0 %v6314
        %v6353 = vpop.f32.mrb[0].mxu0
        %v6354 = vadd.f32 0.0, %v6353
        %v6355 = vpop.f32.mrb[0].mxu0
        %v6356 = vpop.f32.mrb[0].mxu0
        %v6357 = vpop.f32.mrb[0].mxu0
        %6358 = vdwg.mxu0
        %6359 = vrot.lane.b32.xlu0 %v4724, 104
        %v6360 = vpop.permute.xlu0 %6359
        %6361 = vrot.lane.b32.xlu0 %v4888, 72
        %v6362 = vpop.permute.xlu0 %6361
        %v6364 = vsel %vm1737, %v6360, 0
        %v6367 = vsel %vm1737, %v6362, 0
        %6369 = vmatprep.subr.bf16.mxu0 0
        %6370 = vmatpush1.bf16.xpose.msra.mxu0 %v6367
        %6371 = vmatprep.subr.bf16.mxu0 0
        %6372 = vmatpush1.bf16.xpose.msra.mxu0 0
        %6373 = vmatprep.subr.bf16.mxu0 0
        %6374 = vmatpush1.bf16.xpose.msra.mxu0 0
        %6375 = vmatprep.subr.bf16.mxu0 0
        %6376 = vmatpush1.bf16.xpose.msra.mxu0 0
        %6377 = vmatprep.subr.bf16.mxu0 0
        %6378 = vmatpush1.bf16.xpose.msra.mxu0 0
        %6379 = vmatprep.subr.bf16.mxu0 0
        %6380 = vmatpush1.bf16.xpose.msra.mxu0 0
        %6381 = vmatprep.subr.bf16.mxu0 0
        %6382 = vmatpush1.bf16.xpose.msra.mxu0 0
        %6383 = vmatprep.subr.bf16.mxu0 0
        %6384 = vmatpush1.bf16.xpose.msra.mxu0 0
        %6385 = vmatprep.subr.bf16.mxu0 0
        %6386 = vmatpush1.bf16.xpose.msra.mxu0 0
        %6387 = vmatprep.subr.bf16.mxu0 0
        %6388 = vmatpush1.bf16.xpose.msra.mxu0 0
        %6389 = vmatprep.subr.bf16.mxu0 0
        %6390 = vmatpush1.bf16.xpose.msra.mxu0 0
        %6391 = vmatprep.subr.bf16.mxu0 0
        %6392 = vmatpush1.bf16.xpose.msra.mxu0 0
        %6393 = vmatprep.subr.bf16.mxu0 0
        %6394 = vmatpush1.bf16.xpose.msra.mxu0 0
        %6395 = vmatprep.subr.bf16.mxu0 0
        %6396 = vmatpush1.bf16.xpose.msra.mxu0 0
        %6397 = vmatprep.subr.bf16.mxu0 0
        %6398 = vmatpush1.bf16.xpose.msra.mxu0 0
        %6399 = vmatprep.subr.bf16.mxu0 0
        %6400 = vmatpush1.bf16.xpose.msra.mxu0 0
        %6401 = vmatprep.mubr.bf16.mxu0 0
        %6402 = vmatmul.mubr.bf16.gmra.mrb[0].mxu0 %v6364
        %v6403 = vpop.f32.mrb[0].mxu0
        %v6404 = vadd.f32 0.0, %v6403
        %v6405 = vpop.f32.mrb[0].mxu0
        %v6406 = vpop.f32.mrb[0].mxu0
        %v6407 = vpop.f32.mrb[0].mxu0
        %6408 = vdwg.mxu0
        %v6409 = vsel %vm1931, %v6254, -inf
        %6410 = vmax.xlane.f32.xlu0 %v6409
        %v6411 = vpop.xlane.xlu0 %6410
        %v6412 = vsel %vm1931, %v6304, -inf
        %6413 = vmax.xlane.f32.xlu0 %v6412
        %v6414 = vpop.xlane.xlu0 %6413
        %v6415 = vsel %vm1931, %v6354, -inf
        %6416 = vmax.xlane.f32.xlu0 %v6415
        %v6417 = vpop.xlane.xlu0 %6416
        %v6418 = vsel %vm1931, %v6404, -inf
        %6419 = vmax.xlane.f32.xlu0 %v6418
        %v6420 = vpop.xlane.xlu0 %6419
        %v6421 = vsub.f32 %v6254, %v6411
        %v6422 = vsub.f32 %v6304, %v6414
        %v6423 = vsub.f32 %v6354, %v6417
        %v6424 = vsub.f32 %v6404, %v6420
        %v6425 = vmul.f32 %v6421, 1.442695
        %v6426 = vpow.pop %v6425
        %v6427 = vmul.f32 %v6422, 1.442695
        %v6428 = vpow.pop %v6427
        %v6429 = vmul.f32 %v6423, 1.442695
        %v6430 = vpow.pop %v6429
        %v6431 = vmul.f32 %v6424, 1.442695
        %v6432 = vpow.pop %v6431
        %v6433 = vsel %vm1931, %v6426, 0.0
        %6434 = vadd.xlane.f32.xlu0 %v6433
        %v6435 = vpop.xlane.xlu0 %6434
        %v6436 = vsel %vm1931, %v6428, 0.0
        %6437 = vadd.xlane.f32.xlu0 %v6436
        %v6438 = vpop.xlane.xlu0 %6437
        %v6439 = vsel %vm1931, %v6430, 0.0
        %6440 = vadd.xlane.f32.xlu0 %v6439
        %v6441 = vpop.xlane.xlu0 %6440
        %v6442 = vsel %vm1931, %v6432, 0.0
        %6443 = vadd.xlane.f32.xlu0 %v6442
        %v6444 = vpop.xlane.xlu0 %6443
        %v6445 = vrcp.pop %v6435
        %v6446 = vrcp.pop %v6438
        %v6447 = vrcp.pop %v6441
        %v6448 = vrcp.pop %v6444
        %v6449 = vmul.f32 %v6426, %v6445
        %v6450 = vmul.f32 %v6428, %v6446
        %v6451 = vmul.f32 %v6430, %v6447
        %v6452 = vmul.f32 %v6432, %v6448
        %v6453 = vpack.c.bf16 %v6449, %v6449
        %v6454 = vpack.c.bf16 %v6450, %v6450
        %v6455 = vpack.c.bf16 %v6451, %v6451
        %v6456 = vpack.c.bf16 %v6452, %v6452
        %6457 = vrot.lane.b32.xlu0 %v4885, 40
        %v6458 = vpop.permute.xlu0 %6457
        %v6460 = vsel %vm1982, %v6453, 0
        %v6463 = vand.u32 %v6458, %v1989
        %6465 = vmatprep.subr.bf16.mxu0 0
        %6466 = vmatpush1.bf16.msra.mxu0 %v6463
        %6467 = vmatprep.subr.bf16.mxu0 0
        %6468 = vmatpush1.bf16.msra.mxu0 0
        %6469 = vmatprep.subr.bf16.mxu0 0
        %6470 = vmatpush1.bf16.msra.mxu0 0
        %6471 = vmatprep.subr.bf16.mxu0 0
        %6472 = vmatpush1.bf16.msra.mxu0 0
        %6473 = vmatprep.subr.bf16.mxu0 0
        %6474 = vmatpush1.bf16.msra.mxu0 0
        %6475 = vmatprep.subr.bf16.mxu0 0
        %6476 = vmatpush1.bf16.msra.mxu0 0
        %6477 = vmatprep.subr.bf16.mxu0 0
        %6478 = vmatpush1.bf16.msra.mxu0 0
        %6479 = vmatprep.subr.bf16.mxu0 0
        %6480 = vmatpush1.bf16.msra.mxu0 0
        %6481 = vmatprep.subr.bf16.mxu0 0
        %6482 = vmatpush1.bf16.msra.mxu0 0
        %6483 = vmatprep.subr.bf16.mxu0 0
        %6484 = vmatpush1.bf16.msra.mxu0 0
        %6485 = vmatprep.subr.bf16.mxu0 0
        %6486 = vmatpush1.bf16.msra.mxu0 0
        %6487 = vmatprep.subr.bf16.mxu0 0
        %6488 = vmatpush1.bf16.msra.mxu0 0
        %6489 = vmatprep.subr.bf16.mxu0 0
        %6490 = vmatpush1.bf16.msra.mxu0 0
        %6491 = vmatprep.subr.bf16.mxu0 0
        %6492 = vmatpush1.bf16.msra.mxu0 0
        %6493 = vmatprep.subr.bf16.mxu0 0
        %6494 = vmatpush1.bf16.msra.mxu0 0
        %6495 = vmatprep.subr.bf16.mxu0 0
        %6496 = vmatpush1.bf16.msra.mxu0 0
        %6497 = vmatprep.mubr.bf16.mxu0 0
        %6498 = vmatmul.mubr.bf16.gmra.mrb[0].mxu0 %v6460
        %v6499 = vpop.f32.mrb[0].mxu0
        %v6500 = vadd.f32 0.0, %v6499
        %v6501 = vpop.f32.mrb[0].mxu0
        %v6502 = vpop.f32.mrb[0].mxu0
        %v6503 = vpop.f32.mrb[0].mxu0
        %6504 = vdwg.mxu0
        %6505 = vrot.lane.b32.xlu0 %v4886, 40
        %v6506 = vpop.permute.xlu0 %6505
        %v6508 = vsel %vm1982, %v6454, 0
        %v6511 = vand.u32 %v6506, %v1989
        %6513 = vmatprep.subr.bf16.mxu0 0
        %6514 = vmatpush1.bf16.msra.mxu0 %v6511
        %6515 = vmatprep.subr.bf16.mxu0 0
        %6516 = vmatpush1.bf16.msra.mxu0 0
        %6517 = vmatprep.subr.bf16.mxu0 0
        %6518 = vmatpush1.bf16.msra.mxu0 0
        %6519 = vmatprep.subr.bf16.mxu0 0
        %6520 = vmatpush1.bf16.msra.mxu0 0
        %6521 = vmatprep.subr.bf16.mxu0 0
        %6522 = vmatpush1.bf16.msra.mxu0 0
        %6523 = vmatprep.subr.bf16.mxu0 0
        %6524 = vmatpush1.bf16.msra.mxu0 0
        %6525 = vmatprep.subr.bf16.mxu0 0
        %6526 = vmatpush1.bf16.msra.mxu0 0
        %6527 = vmatprep.subr.bf16.mxu0 0
        %6528 = vmatpush1.bf16.msra.mxu0 0
        %6529 = vmatprep.subr.bf16.mxu0 0
        %6530 = vmatpush1.bf16.msra.mxu0 0
        %6531 = vmatprep.subr.bf16.mxu0 0
        %6532 = vmatpush1.bf16.msra.mxu0 0
        %6533 = vmatprep.subr.bf16.mxu0 0
        %6534 = vmatpush1.bf16.msra.mxu0 0
        %6535 = vmatprep.subr.bf16.mxu0 0
        %6536 = vmatpush1.bf16.msra.mxu0 0
        %6537 = vmatprep.subr.bf16.mxu0 0
        %6538 = vmatpush1.bf16.msra.mxu0 0
        %6539 = vmatprep.subr.bf16.mxu0 0
        %6540 = vmatpush1.bf16.msra.mxu0 0
        %6541 = vmatprep.subr.bf16.mxu0 0
        %6542 = vmatpush1.bf16.msra.mxu0 0
        %6543 = vmatprep.subr.bf16.mxu0 0
        %6544 = vmatpush1.bf16.msra.mxu0 0
        %6545 = vmatprep.mubr.bf16.mxu0 0
        %6546 = vmatmul.mubr.bf16.gmra.mrb[0].mxu0 %v6508
        %v6547 = vpop.f32.mrb[0].mxu0
        %v6548 = vadd.f32 0.0, %v6547
        %v6549 = vpop.f32.mrb[0].mxu0
        %v6550 = vpop.f32.mrb[0].mxu0
        %v6551 = vpop.f32.mrb[0].mxu0
        %6552 = vdwg.mxu0
        %6553 = vrot.lane.b32.xlu0 %v4887, 40
        %v6554 = vpop.permute.xlu0 %6553
        %v6556 = vsel %vm1982, %v6455, 0
        %v6559 = vand.u32 %v6554, %v1989
        %6561 = vmatprep.subr.bf16.mxu0 0
        %6562 = vmatpush1.bf16.msra.mxu0 %v6559
        %6563 = vmatprep.subr.bf16.mxu0 0
        %6564 = vmatpush1.bf16.msra.mxu0 0
        %6565 = vmatprep.subr.bf16.mxu0 0
        %6566 = vmatpush1.bf16.msra.mxu0 0
        %6567 = vmatprep.subr.bf16.mxu0 0
        %6568 = vmatpush1.bf16.msra.mxu0 0
        %6569 = vmatprep.subr.bf16.mxu0 0
        %6570 = vmatpush1.bf16.msra.mxu0 0
        %6571 = vmatprep.subr.bf16.mxu0 0
        %6572 = vmatpush1.bf16.msra.mxu0 0
        %6573 = vmatprep.subr.bf16.mxu0 0
        %6574 = vmatpush1.bf16.msra.mxu0 0
        %6575 = vmatprep.subr.bf16.mxu0 0
        %6576 = vmatpush1.bf16.msra.mxu0 0
        %6577 = vmatprep.subr.bf16.mxu0 0
        %6578 = vmatpush1.bf16.msra.mxu0 0
        %6579 = vmatprep.subr.bf16.mxu0 0
        %6580 = vmatpush1.bf16.msra.mxu0 0
        %6581 = vmatprep.subr.bf16.mxu0 0
        %6582 = vmatpush1.bf16.msra.mxu0 0
        %6583 = vmatprep.subr.bf16.mxu0 0
        %6584 = vmatpush1.bf16.msra.mxu0 0
        %6585 = vmatprep.subr.bf16.mxu0 0
        %6586 = vmatpush1.bf16.msra.mxu0 0
        %6587 = vmatprep.subr.bf16.mxu0 0
        %6588 = vmatpush1.bf16.msra.mxu0 0
        %6589 = vmatprep.subr.bf16.mxu0 0
        %6590 = vmatpush1.bf16.msra.mxu0 0
        %6591 = vmatprep.subr.bf16.mxu0 0
        %6592 = vmatpush1.bf16.msra.mxu0 0
        %6593 = vmatprep.mubr.bf16.mxu0 0
        %6594 = vmatmul.mubr.bf16.gmra.mrb[0].mxu0 %v6556
        %v6595 = vpop.f32.mrb[0].mxu0
        %v6596 = vadd.f32 0.0, %v6595
        %v6597 = vpop.f32.mrb[0].mxu0
        %v6598 = vpop.f32.mrb[0].mxu0
        %v6599 = vpop.f32.mrb[0].mxu0
        %6600 = vdwg.mxu0
        %6601 = vrot.lane.b32.xlu0 %v4888, 40
        %v6602 = vpop.permute.xlu0 %6601
        %v6604 = vsel %vm1982, %v6456, 0
        %v6607 = vand.u32 %v6602, %v1989
        %6609 = vmatprep.subr.bf16.mxu0 0
        %6610 = vmatpush1.bf16.msra.mxu0 %v6607
        %6611 = vmatprep.subr.bf16.mxu0 0
        %6612 = vmatpush1.bf16.msra.mxu0 0
        %6613 = vmatprep.subr.bf16.mxu0 0
        %6614 = vmatpush1.bf16.msra.mxu0 0
        %6615 = vmatprep.subr.bf16.mxu0 0
        %6616 = vmatpush1.bf16.msra.mxu0 0
        %6617 = vmatprep.subr.bf16.mxu0 0
        %6618 = vmatpush1.bf16.msra.mxu0 0
        %6619 = vmatprep.subr.bf16.mxu0 0
        %6620 = vmatpush1.bf16.msra.mxu0 0
        %6621 = vmatprep.subr.bf16.mxu0 0
        %6622 = vmatpush1.bf16.msra.mxu0 0
        %6623 = vmatprep.subr.bf16.mxu0 0
        %6624 = vmatpush1.bf16.msra.mxu0 0
        %6625 = vmatprep.subr.bf16.mxu0 0
        %6626 = vmatpush1.bf16.msra.mxu0 0
        %6627 = vmatprep.subr.bf16.mxu0 0
        %6628 = vmatpush1.bf16.msra.mxu0 0
        %6629 = vmatprep.subr.bf16.mxu0 0
        %6630 = vmatpush1.bf16.msra.mxu0 0
        %6631 = vmatprep.subr.bf16.mxu0 0
        %6632 = vmatpush1.bf16.msra.mxu0 0
        %6633 = vmatprep.subr.bf16.mxu0 0
        %6634 = vmatpush1.bf16.msra.mxu0 0
        %6635 = vmatprep.subr.bf16.mxu0 0
        %6636 = vmatpush1.bf16.msra.mxu0 0
        %6637 = vmatprep.subr.bf16.mxu0 0
        %6638 = vmatpush1.bf16.msra.mxu0 0
        %6639 = vmatprep.subr.bf16.mxu0 0
        %6640 = vmatpush1.bf16.msra.mxu0 0
        %6641 = vmatprep.mubr.bf16.mxu0 0
        %6642 = vmatmul.mubr.bf16.gmra.mrb[0].mxu0 %v6604
        %v6643 = vpop.f32.mrb[0].mxu0
        %v6644 = vadd.f32 0.0, %v6643
        %v6645 = vpop.f32.mrb[0].mxu0
        %v6646 = vpop.f32.mrb[0].mxu0
        %v6647 = vpop.f32.mrb[0].mxu0
        %6648 = vdwg.mxu0
        %6653 = vrot.lane.b32.xlu0 %v5620, 8
        %v6654 = vpop.permute.xlu0 %6653
        %6655 = vrot.lane.b32.xlu0 %v5668, 8
        %v6656 = vpop.permute.xlu0 %6655
        %6657 = vrot.lane.b32.xlu0 %v5716, 8
        %v6658 = vpop.permute.xlu0 %6657
        %6659 = vrot.lane.b32.xlu0 %v5764, 8
        %v6660 = vpop.permute.xlu0 %6659
        %6669 = vrot.lane.b32.xlu0 %v6060, 16
        %v6670 = vpop.permute.xlu0 %6669
        %6671 = vrot.lane.b32.xlu0 %v6108, 16
        %v6672 = vpop.permute.xlu0 %6671
        %6673 = vrot.lane.b32.xlu0 %v6156, 16
        %v6674 = vpop.permute.xlu0 %6673
        %6675 = vrot.lane.b32.xlu0 %v6204, 16
        %v6676 = vpop.permute.xlu0 %6675
        %6685 = vrot.lane.b32.xlu0 %v6500, 24
        %v6686 = vpop.permute.xlu0 %6685
        %6687 = vrot.lane.b32.xlu0 %v6548, 24
        %v6688 = vpop.permute.xlu0 %6687
        %6689 = vrot.lane.b32.xlu0 %v6596, 24
        %v6690 = vpop.permute.xlu0 %6689
        %6691 = vrot.lane.b32.xlu0 %v6644, 24
        %v6692 = vpop.permute.xlu0 %6691
        %v6697 = vsel %vm1737, %v5176, %v6654
        %v6698 = vsel %vm1737, %v5224, %v6656
        %v6699 = vsel %vm1737, %v5272, %v6658
        %v6700 = vsel %vm1737, %v5320, %v6660
        %v6701 = vsel %vm3553, %v6697, %v6670
        %v6702 = vsel %vm3553, %v6698, %v6672
        %v6703 = vsel %vm3553, %v6699, %v6674
        %v6704 = vsel %vm3553, %v6700, %v6676
        %v6705 = vsel %vm3558, %v6701, %v6686
        %v6706 = vsel %vm3558, %v6702, %v6688
        %v6707 = vsel %vm3558, %v6703, %v6690
        %v6708 = vsel %vm3558, %v6704, %v6692
        %v6713 = vcombine.high %v6705, %v6705
        %v6715 = vunpack.c.l.s4 1966171168
        %v6716 = vunpack.c.0.s8 %v6715
        %v6717 = vlaneseq
        %v6718 = vshrl.u32 %v6717, 7
        %v6719 = vsub.s32 %v6716, %v6718
        %v6720 = vrot.slane %v6705, %v6719
        %v6722 = vunpack.c.l.s4 1966171168
        %v6723 = vunpack.c.0.s8 %v6722
        %v6724 = vlaneseq
        %v6725 = vshrl.u32 %v6724, 7
        %v6726 = vsub.s32 %v6723, %v6725
        %v6727 = vrot.slane %v6713, %v6726
        %v6728 = vcombine.high %v6720, %v6720
        %v6730 = vunpack.c.l.s4 1966171168
        %v6731 = vunpack.c.0.s8 %v6730
        %v6732 = vlaneseq
        %v6733 = vshrl.u32 %v6732, 7
        %v6734 = vsub.s32 %v6731, %v6733
        %v6735 = vrot.slane %v6720, %v6734
        %v6737 = vunpack.c.l.s4 1966171168
        %v6738 = vunpack.c.0.s8 %v6737
        %v6739 = vlaneseq
        %v6740 = vshrl.u32 %v6739, 7
        %v6741 = vsub.s32 %v6738, %v6740
        %v6742 = vrot.slane %v6727, %v6741
        %v6744 = vunpack.c.l.s4 1966171168
        %v6745 = vunpack.c.0.s8 %v6744
        %v6746 = vlaneseq
        %v6747 = vshrl.u32 %v6746, 7
        %v6748 = vsub.s32 %v6745, %v6747
        %v6749 = vrot.slane %v6728, %v6748
        %v6750 = vcombine.high %v6735, %v6735
        %v6751 = vcombine.high %v6749, %v6749
        %v6752 = vcombine.high %v6706, %v6706
        %v6754 = vunpack.c.l.s4 1966171168
        %v6755 = vunpack.c.0.s8 %v6754
        %v6756 = vlaneseq
        %v6757 = vshrl.u32 %v6756, 7
        %v6758 = vsub.s32 %v6755, %v6757
        %v6759 = vrot.slane %v6706, %v6758
        %v6761 = vunpack.c.l.s4 1966171168
        %v6762 = vunpack.c.0.s8 %v6761
        %v6763 = vlaneseq
        %v6764 = vshrl.u32 %v6763, 7
        %v6765 = vsub.s32 %v6762, %v6764
        %v6766 = vrot.slane %v6752, %v6765
        %v6767 = vcombine.high %v6759, %v6759
        %v6769 = vunpack.c.l.s4 1966171168
        %v6770 = vunpack.c.0.s8 %v6769
        %v6771 = vlaneseq
        %v6772 = vshrl.u32 %v6771, 7
        %v6773 = vsub.s32 %v6770, %v6772
        %v6774 = vrot.slane %v6759, %v6773
        %v6776 = vunpack.c.l.s4 1966171168
        %v6777 = vunpack.c.0.s8 %v6776
        %v6778 = vlaneseq
        %v6779 = vshrl.u32 %v6778, 7
        %v6780 = vsub.s32 %v6777, %v6779
        %v6781 = vrot.slane %v6766, %v6780
        %v6783 = vunpack.c.l.s4 1966171168
        %v6784 = vunpack.c.0.s8 %v6783
        %v6785 = vlaneseq
        %v6786 = vshrl.u32 %v6785, 7
        %v6787 = vsub.s32 %v6784, %v6786
        %v6788 = vrot.slane %v6767, %v6787
        %v6789 = vcombine.high %v6774, %v6774
        %v6790 = vcombine.high %v6788, %v6788
        %v6791 = vcombine.high %v6707, %v6707
        %v6793 = vunpack.c.l.s4 1966171168
        %v6794 = vunpack.c.0.s8 %v6793
        %v6795 = vlaneseq
        %v6796 = vshrl.u32 %v6795, 7
        %v6797 = vsub.s32 %v6794, %v6796
        %v6798 = vrot.slane %v6707, %v6797
        %v6800 = vunpack.c.l.s4 1966171168
        %v6801 = vunpack.c.0.s8 %v6800
        %v6802 = vlaneseq
        %v6803 = vshrl.u32 %v6802, 7
        %v6804 = vsub.s32 %v6801, %v6803
        %v6805 = vrot.slane %v6791, %v6804
        %v6806 = vcombine.high %v6798, %v6798
        %v6808 = vunpack.c.l.s4 1966171168
        %v6809 = vunpack.c.0.s8 %v6808
        %v6810 = vlaneseq
        %v6811 = vshrl.u32 %v6810, 7
        %v6812 = vsub.s32 %v6809, %v6811
        %v6813 = vrot.slane %v6798, %v6812
        %v6815 = vunpack.c.l.s4 1966171168
        %v6816 = vunpack.c.0.s8 %v6815
        %v6817 = vlaneseq
        %v6818 = vshrl.u32 %v6817, 7
        %v6819 = vsub.s32 %v6816, %v6818
        %v6820 = vrot.slane %v6805, %v6819
        %v6822 = vunpack.c.l.s4 1966171168
        %v6823 = vunpack.c.0.s8 %v6822
        %v6824 = vlaneseq
        %v6825 = vshrl.u32 %v6824, 7
        %v6826 = vsub.s32 %v6823, %v6825
        %v6827 = vrot.slane %v6806, %v6826
        %v6828 = vcombine.high %v6813, %v6813
        %v6829 = vcombine.high %v6827, %v6827
        %v6830 = vcombine.high %v6708, %v6708
        %v6832 = vunpack.c.l.s4 1966171168
        %v6833 = vunpack.c.0.s8 %v6832
        %v6834 = vlaneseq
        %v6835 = vshrl.u32 %v6834, 7
        %v6836 = vsub.s32 %v6833, %v6835
        %v6837 = vrot.slane %v6708, %v6836
        %v6839 = vunpack.c.l.s4 1966171168
        %v6840 = vunpack.c.0.s8 %v6839
        %v6841 = vlaneseq
        %v6842 = vshrl.u32 %v6841, 7
        %v6843 = vsub.s32 %v6840, %v6842
        %v6844 = vrot.slane %v6830, %v6843
        %v6845 = vcombine.high %v6837, %v6837
        %v6847 = vunpack.c.l.s4 1966171168
        %v6848 = vunpack.c.0.s8 %v6847
        %v6849 = vlaneseq
        %v6850 = vshrl.u32 %v6849, 7
        %v6851 = vsub.s32 %v6848, %v6850
        %v6852 = vrot.slane %v6837, %v6851
        %v6854 = vunpack.c.l.s4 1966171168
        %v6855 = vunpack.c.0.s8 %v6854
        %v6856 = vlaneseq
        %v6857 = vshrl.u32 %v6856, 7
        %v6858 = vsub.s32 %v6855, %v6857
        %v6859 = vrot.slane %v6844, %v6858
        %v6861 = vunpack.c.l.s4 1966171168
        %v6862 = vunpack.c.0.s8 %v6861
        %v6863 = vlaneseq
        %v6864 = vshrl.u32 %v6863, 7
        %v6865 = vsub.s32 %v6862, %v6864
        %v6866 = vrot.slane %v6845, %v6865
        %v6867 = vcombine.high %v6852, %v6852
        %v6868 = vcombine.high %v6866, %v6866
        %v6869 = vcombine.low %v6735, %v6749
        %v6870 = vcombine.low %v6750, %v6751
        %v6871 = vcombine.low %v6742, %v6774
        %v6872 = vcombine.low %v6788, %v6789
        %v6874 = vunpack.c.l.s4 1966171168
        %v6875 = vunpack.c.0.s8 %v6874
        %v6876 = vlaneseq
        %v6877 = vshrl.u32 %v6876, 7
        %v6878 = vsub.s32 %v6875, %v6877
        %v6879 = vrot.slane %v6869, %v6878
        %v6881 = vunpack.c.l.s4 1966171168
        %v6882 = vunpack.c.0.s8 %v6881
        %v6883 = vlaneseq
        %v6884 = vshrl.u32 %v6883, 7
        %v6885 = vsub.s32 %v6882, %v6884
        %v6886 = vrot.slane %v6870, %v6885
        %v6888 = vunpack.c.l.s4 1966171168
        %v6889 = vunpack.c.0.s8 %v6888
        %v6890 = vlaneseq
        %v6891 = vshrl.u32 %v6890, 7
        %v6892 = vsub.s32 %v6889, %v6891
        %v6893 = vrot.slane %v6871, %v6892
        %v6895 = vunpack.c.l.s4 1966171168
        %v6896 = vunpack.c.0.s8 %v6895
        %v6897 = vlaneseq
        %v6898 = vshrl.u32 %v6897, 7
        %v6899 = vsub.s32 %v6896, %v6898
        %v6900 = vrot.slane %v6872, %v6899
        %v6901 = vcombine.low %v6879, %v6886
        %v6902 = vcombine.low %v6893, %v6900
        %v6904 = vunpack.c.l.s4 1966171168
        %v6905 = vunpack.c.0.s8 %v6904
        %v6906 = vlaneseq
        %v6907 = vshrl.u32 %v6906, 7
        %v6908 = vsub.s32 %v6905, %v6907
        %v6909 = vrot.slane %v6901, %v6908
        %v6911 = vunpack.c.l.s4 1966171168
        %v6912 = vunpack.c.0.s8 %v6911
        %v6913 = vlaneseq
        %v6914 = vshrl.u32 %v6913, 7
        %v6915 = vsub.s32 %v6912, %v6914
        %v6916 = vrot.slane %v6902, %v6915
        %v6917 = vcombine.low %v6909, %v6916
        %v6918 = vcombine.low %v6790, %v6781
        %v6919 = vcombine.low %v6813, %v6827
        %v6920 = vcombine.low %v6828, %v6829
        %v6921 = vcombine.low %v6820, %v6852
        %v6923 = vunpack.c.l.s4 1966171168
        %v6924 = vunpack.c.0.s8 %v6923
        %v6925 = vlaneseq
        %v6926 = vshrl.u32 %v6925, 7
        %v6927 = vsub.s32 %v6924, %v6926
        %v6928 = vrot.slane %v6918, %v6927
        %v6930 = vunpack.c.l.s4 1966171168
        %v6931 = vunpack.c.0.s8 %v6930
        %v6932 = vlaneseq
        %v6933 = vshrl.u32 %v6932, 7
        %v6934 = vsub.s32 %v6931, %v6933
        %v6935 = vrot.slane %v6919, %v6934
        %v6937 = vunpack.c.l.s4 1966171168
        %v6938 = vunpack.c.0.s8 %v6937
        %v6939 = vlaneseq
        %v6940 = vshrl.u32 %v6939, 7
        %v6941 = vsub.s32 %v6938, %v6940
        %v6942 = vrot.slane %v6920, %v6941
        %v6944 = vunpack.c.l.s4 1966171168
        %v6945 = vunpack.c.0.s8 %v6944
        %v6946 = vlaneseq
        %v6947 = vshrl.u32 %v6946, 7
        %v6948 = vsub.s32 %v6945, %v6947
        %v6949 = vrot.slane %v6921, %v6948
        %v6950 = vcombine.low %v6928, %v6935
        %v6951 = vcombine.low %v6942, %v6949
        %v6953 = vunpack.c.l.s4 1966171168
        %v6954 = vunpack.c.0.s8 %v6953
        %v6955 = vlaneseq
        %v6956 = vshrl.u32 %v6955, 7
        %v6957 = vsub.s32 %v6954, %v6956
        %v6958 = vrot.slane %v6950, %v6957
        %v6960 = vunpack.c.l.s4 1966171168
        %v6961 = vunpack.c.0.s8 %v6960
        %v6962 = vlaneseq
        %v6963 = vshrl.u32 %v6962, 7
        %v6964 = vsub.s32 %v6961, %v6963
        %v6965 = vrot.slane %v6951, %v6964
        %v6966 = vcombine.low %v6958, %v6965
        %v6967 = vcombine.low %v6866, %v6867
        %v6968 = vcombine.low %v6868, %v6859
        %v6970 = vunpack.c.l.s4 1966171168
        %v6971 = vunpack.c.0.s8 %v6970
        %v6972 = vlaneseq
        %v6973 = vshrl.u32 %v6972, 7
        %v6974 = vsub.s32 %v6971, %v6973
        %v6975 = vrot.slane %v6967, %v6974
        %v6977 = vunpack.c.l.s4 1966171168
        %v6978 = vunpack.c.0.s8 %v6977
        %v6979 = vlaneseq
        %v6980 = vshrl.u32 %v6979, 7
        %v6981 = vsub.s32 %v6978, %v6980
        %v6982 = vrot.slane %v6968, %v6981
        %v6983 = vcombine.low %v6975, %v6982
        %v6985 = vunpack.c.l.s4 1966171168
        %v6986 = vunpack.c.0.s8 %v6985
        %v6987 = vlaneseq
        %v6988 = vshrl.u32 %v6987, 7
        %v6989 = vsub.s32 %v6986, %v6988
        %v6990 = vrot.slane %v6983, %v6989
        %v6994 = vpack.c.bf16 %v6966, %v6917
        %v6995 = vpack.c.bf16 %v6990, %v6990
        %s6996 = scalar_lea.vmem %s9, 16
        %v6997 = vld [vmem:[%s6996] sm:$0xf]
        %v6998 = vld [vmem:[%s6996 + $0x4] sm:$0xf]
        %v6999 = vld [vmem:[%s6996 + $0x8] sm:$0xf]
        %v7000 = vld [vmem:[%s6996 + $0xc] sm:$0xf]
        %v7005 = vunpack.c.l.b16 %v6997
        %v7006 = vunpack.c.l.b16 %v6998
        %v7007 = vunpack.c.l.b16 %v6999
        %v7008 = vunpack.c.l.b16 %v7000
        %v7009 = vpack.c.b16 %v7006, %v7005
        %v7010 = vpack.c.b16 %v7008, %v7007
        %v7014 = vsel %vm1011, %v6994, 0
        %v7017 = vsel %vm1011, %v6995, 0
        %7019 = vmatprep.subr.bf16.mxu0 0
        %7020 = vmatpush1.bf16.msra.mxu0 %v7009
        %7021 = vmatprep.subr.bf16.mxu0 0
        %7022 = vmatpush1.bf16.msra.mxu0 %v7010
        %7023 = vmatprep.subr.bf16.mxu0 0
        %7024 = vmatpush1.bf16.msra.mxu0 0
        %7025 = vmatprep.subr.bf16.mxu0 0
        %7026 = vmatpush1.bf16.msra.mxu0 0
        %7027 = vmatprep.subr.bf16.mxu0 0
        %7028 = vmatpush1.bf16.msra.mxu0 0
        %7029 = vmatprep.subr.bf16.mxu0 0
        %7030 = vmatpush1.bf16.msra.mxu0 0
        %7031 = vmatprep.subr.bf16.mxu0 0
        %7032 = vmatpush1.bf16.msra.mxu0 0
        %7033 = vmatprep.subr.bf16.mxu0 0
        %7034 = vmatpush1.bf16.msra.mxu0 0
        %7035 = vmatprep.subr.bf16.mxu0 0
        %7036 = vmatpush1.bf16.msra.mxu0 0
        %7037 = vmatprep.subr.bf16.mxu0 0
        %7038 = vmatpush1.bf16.msra.mxu0 0
        %7039 = vmatprep.subr.bf16.mxu0 0
        %7040 = vmatpush1.bf16.msra.mxu0 0
        %7041 = vmatprep.subr.bf16.mxu0 0
        %7042 = vmatpush1.bf16.msra.mxu0 0
        %7043 = vmatprep.subr.bf16.mxu0 0
        %7044 = vmatpush1.bf16.msra.mxu0 0
        %7045 = vmatprep.subr.bf16.mxu0 0
        %7046 = vmatpush1.bf16.msra.mxu0 0
        %7047 = vmatprep.subr.bf16.mxu0 0
        %7048 = vmatpush1.bf16.msra.mxu0 0
        %7049 = vmatprep.subr.bf16.mxu0 0
        %7050 = vmatpush1.bf16.msra.mxu0 0
        %7051 = vmatprep.mubr.bf16.mxu0 0
        %7052 = vmatmul.mubr.bf16.gmra.mrb[0].mxu0 %v7014
        %v7053 = vpop.f32.mrb[0].mxu0
        %v7054 = vadd.f32 0.0, %v7053
        %v7055 = vpop.f32.mrb[0].mxu0
        %v7056 = vpop.f32.mrb[0].mxu0
        %v7057 = vadd.f32 0.0, %v7056
        %v7058 = vpop.f32.mrb[0].mxu0
        %7059 = vmatprep.mubr.bf16.mxu0 0
        %7060 = vmatmul.mubr.bf16.gmra.mrb[0].mxu0 %v7017
        %v7061 = vpop.f32.mrb[0].mxu0
        %v7062 = vadd.f32 0.0, %v7061
        %v7063 = vpop.f32.mrb[0].mxu0
        %v7064 = vpop.f32.mrb[0].mxu0
        %v7065 = vpop.f32.mrb[0].mxu0
        %7066 = vdwg.mxu0
        %v7067 = vadd.f32 %v4225, %v7054
        %v7068 = vadd.f32 %v4226, %v7057
        %v7069 = vadd.f32 %v4227, %v7062
        %s7070 = scalar_lea.vmem %s10, 1
        %v7071 = vld [vmem:[%s7070] sm:$0x1]
        %v7073 = vlaneseq
        %v7074 = vshrl.u32 %v7073, 7
        %v7075 = vsub.s32 0, %v7074
        %v7076 = vrot.slane %v7071, %v7075
        %v7078 = vadd.f32 %v7067, %v7076
        %v7079 = vadd.f32 %v7068, %v7076
        %v7080 = vadd.f32 %v7069, %v7076
        %s7081 = scalar_lea.vmem %s11, 1
        %v7082 = vld [vmem:[%s7081] sm:$0x1]
        %s7083 = scalar_lea.vmem %s12, 1
        %v7084 = vld [vmem:[%s7083] sm:$0x1]
        %v7085 = vsel %vm1011, %v7078, 0.0
        %7086 = vadd.xlane.f32.xlu0 %v7085
        %v7087 = vpop.xlane.xlu0 %7086
        %v7088 = vsel %vm1011, %v7079, 0.0
        %7089 = vadd.xlane.f32.xlu0 %v7088
        %v7090 = vpop.xlane.xlu0 %7089
        %v7091 = vsel %vm1018, %v7080, 0.0
        %7092 = vadd.xlane.f32.xlu0 %v7091
        %v7093 = vpop.xlane.xlu0 %7092
        %v7094 = vmul.f32 %v7087, %v1022
        %v7095 = vmul.f32 %v7090, %v1022
        %v7096 = vmul.f32 %v7093, %v1022
        %v7097 = vmul.f32 %v7078, %v7078
        %v7098 = vmul.f32 %v7079, %v7079
        %v7099 = vmul.f32 %v7080, %v7080
        %v7100 = vsel %vm1011, %v7097, 0.0
        %7101 = vadd.xlane.f32.xlu0 %v7100
        %v7102 = vpop.xlane.xlu0 %7101
        %v7103 = vsel %vm1011, %v7098, 0.0
        %7104 = vadd.xlane.f32.xlu0 %v7103
        %v7105 = vpop.xlane.xlu0 %7104
        %v7106 = vsel %vm1018, %v7099, 0.0
        %7107 = vadd.xlane.f32.xlu0 %v7106
        %v7108 = vpop.xlane.xlu0 %7107
        %v7109 = vmul.f32 %v7102, %v1022
        %v7110 = vmul.f32 %v7105, %v1022
        %v7111 = vmul.f32 %v7108, %v1022
        %v7112 = vmul.f32 %v7094, %v7094
        %v7113 = vmul.f32 %v7095, %v7095
        %v7114 = vmul.f32 %v7096, %v7096
        %v7115 = vsub.f32 %v7109, %v7112
        %v7116 = vsub.f32 %v7110, %v7113
        %v7117 = vsub.f32 %v7111, %v7114
        %v7118 = vsub.f32 %v7078, %v7094
        %v7119 = vsub.f32 %v7079, %v7095
        %v7120 = vsub.f32 %v7080, %v7096
        %v7121 = vadd.f32 %v7115, 1e-05
        %v7122 = vadd.f32 %v7116, 1e-05
        %v7123 = vadd.f32 %v7117, 1e-05
        %v7124 = vrsqrt.pop %v7121
        %v7125 = vrsqrt.pop %v7122
        %v7126 = vrsqrt.pop %v7123
        %v7127 = vmul.f32 %v7118, %v7124
        %v7128 = vmul.f32 %v7119, %v7125
        %v7129 = vmul.f32 %v7120, %v7126
        %v7131 = vlaneseq
        %v7132 = vshrl.u32 %v7131, 7
        %v7133 = vsub.s32 0, %v7132
        %v7134 = vrot.slane %v7082, %v7133
        %v7136 = vmul.f32 %v7127, %v7134
        %v7137 = vmul.f32 %v7128, %v7134
        %v7138 = vmul.f32 %v7129, %v7134
        %v7140 = vlaneseq
        %v7141 = vshrl.u32 %v7140, 7
        %v7142 = vsub.s32 0, %v7141
        %v7143 = vrot.slane %v7084, %v7142
        %v7145 = vadd.f32 %v7136, %v7143
        %v7146 = vadd.f32 %v7137, %v7143
        %v7147 = vadd.f32 %v7138, %v7143
        %v7148 = vpack.c.bf16 %v7146, %v7145
        %v7149 = vpack.c.bf16 %v7147, %v7147
        %s7150 = scalar_lea.vmem %s13, 16
        %v7151 = vld [vmem:[%s7150] sm:$0xf]
        %v7152 = vld [vmem:[%s7150 + $0x4] sm:$0xf]
        %v7153 = vld [vmem:[%s7150 + $0x8] sm:$0xf]
        %v7154 = vld [vmem:[%s7150 + $0xc] sm:$0xf]
        %s7155 = scalar_lea.vmem %s14, 1
        %v7156 = vld [vmem:[%s7155] sm:$0x1]
        %v7158 = vlaneseq
        %v7159 = vshrl.u32 %v7158, 7
        %v7160 = vsub.s32 0, %v7159
        %v7161 = vrot.slane %v7156, %v7160
        %v7167 = vunpack.c.l.b16 %v7151
        %v7168 = vunpack.c.l.b16 %v7152
        %v7169 = vunpack.c.l.b16 %v7153
        %v7170 = vunpack.c.l.b16 %v7154
        %v7171 = vpack.c.b16 %v7168, %v7167
        %v7172 = vpack.c.b16 %v7170, %v7169
        %v7176 = vsel %vm1011, %v7148, 0
        %v7179 = vsel %vm1011, %v7149, 0
        %7181 = vmatprep.subr.bf16.mxu0 0
        %7182 = vmatpush1.bf16.msra.mxu0 %v7171
        %7183 = vmatprep.subr.bf16.mxu0 0
        %7184 = vmatpush1.bf16.msra.mxu0 %v7172
        %7185 = vmatprep.subr.bf16.mxu0 0
        %7186 = vmatpush1.bf16.msra.mxu0 0
        %7187 = vmatprep.subr.bf16.mxu0 0
        %7188 = vmatpush1.bf16.msra.mxu0 0
        %7189 = vmatprep.subr.bf16.mxu0 0
        %7190 = vmatpush1.bf16.msra.mxu0 0
        %7191 = vmatprep.subr.bf16.mxu0 0
        %7192 = vmatpush1.bf16.msra.mxu0 0
        %7193 = vmatprep.subr.bf16.mxu0 0
        %7194 = vmatpush1.bf16.msra.mxu0 0
        %7195 = vmatprep.subr.bf16.mxu0 0
        %7196 = vmatpush1.bf16.msra.mxu0 0
        %7197 = vmatprep.subr.bf16.mxu0 0
        %7198 = vmatpush1.bf16.msra.mxu0 0
        %7199 = vmatprep.subr.bf16.mxu0 0
        %7200 = vmatpush1.bf16.msra.mxu0 0
        %7201 = vmatprep.subr.bf16.mxu0 0
        %7202 = vmatpush1.bf16.msra.mxu0 0
        %7203 = vmatprep.subr.bf16.mxu0 0
        %7204 = vmatpush1.bf16.msra.mxu0 0
        %7205 = vmatprep.subr.bf16.mxu0 0
        %7206 = vmatpush1.bf16.msra.mxu0 0
        %7207 = vmatprep.subr.bf16.mxu0 0
        %7208 = vmatpush1.bf16.msra.mxu0 0
        %7209 = vmatprep.subr.bf16.mxu0 0
        %7210 = vmatpush1.bf16.msra.mxu0 0
        %7211 = vmatprep.subr.bf16.mxu0 0
        %7212 = vmatpush1.bf16.msra.mxu0 0
        %7213 = vmatprep.mubr.bf16.mxu0 0
        %7214 = vmatmul.mubr.bf16.gmra.mrb[0].mxu0 %v7176
        %v7215 = vpop.f32.mrb[0].mxu0
        %v7216 = vadd.f32 %v7161, %v7215
        %v7217 = vpop.f32.mrb[0].mxu0
        %v7218 = vpop.f32.mrb[0].mxu0
        %v7219 = vadd.f32 %v7161, %v7218
        %v7220 = vpop.f32.mrb[0].mxu0
        %7221 = vmatprep.mubr.bf16.mxu0 0
        %7222 = vmatmul.mubr.bf16.gmra.mrb[0].mxu0 %v7179
        %v7223 = vpop.f32.mrb[0].mxu0
        %v7224 = vadd.f32 %v7161, %v7223
        %v7225 = vpop.f32.mrb[0].mxu0
        %v7226 = vpop.f32.mrb[0].mxu0
        %v7227 = vpop.f32.mrb[0].mxu0
        %7228 = vdwg.mxu0
        %v7229 = vmul.f32 %v7216, 1.702
        %v7230 = vmul.f32 %v7219, 1.702
        %v7231 = vmul.f32 %v7224, 1.702
        %v7232 = vxor.u32 %v7229, 2147483648
        %v7233 = vxor.u32 %v7230, 2147483648
        %v7234 = vxor.u32 %v7231, 2147483648
        %v7235 = vmul.f32 %v7232, 1.442695
        %v7236 = vpow.pop %v7235
        %v7237 = vmul.f32 %v7233, 1.442695
        %v7238 = vpow.pop %v7237
        %v7239 = vmul.f32 %v7234, 1.442695
        %v7240 = vpow.pop %v7239
        %v7241 = vadd.f32 %v7236, 1.0
        %v7242 = vadd.f32 %v7238, 1.0
        %v7243 = vadd.f32 %v7240, 1.0
        %v7244 = vrcp.pop %v7241
        %v7245 = vmul.f32 1.0, %v7244
        %v7246 = vrcp.pop %v7242
        %v7247 = vmul.f32 1.0, %v7246
        %v7248 = vrcp.pop %v7243
        %v7249 = vmul.f32 1.0, %v7248
        %v7250 = vmul.f32 %v7216, %v7245
        %v7251 = vmul.f32 %v7219, %v7247
        %v7252 = vmul.f32 %v7224, %v7249
        %v7253 = vpack.c.bf16 %v7251, %v7250
        %v7254 = vpack.c.bf16 %v7252, %v7252
        %s7255 = scalar_lea.vmem %s15, 64
        %v7256 = vld [vmem:[%s7255] sm:$0xf]
        %v7257 = vld [vmem:[%s7255 + $0x4] sm:$0xf]
        %v7258 = vld [vmem:[%s7255 + $0x8] sm:$0xf]
        %v7259 = vld [vmem:[%s7255 + $0xc] sm:$0xf]
        %v7260 = vld [vmem:[%s7255 + $0x10] sm:$0xf]
        %v7261 = vld [vmem:[%s7255 + $0x14] sm:$0xf]
        %v7262 = vld [vmem:[%s7255 + $0x18] sm:$0xf]
        %v7263 = vld [vmem:[%s7255 + $0x1c] sm:$0xf]
        %v7264 = vld [vmem:[%s7255 + $0x20] sm:$0xf]
        %v7265 = vld [vmem:[%s7255 + $0x24] sm:$0xf]
        %v7266 = vld [vmem:[%s7255 + $0x28] sm:$0xf]
        %v7267 = vld [vmem:[%s7255 + $0x2c] sm:$0xf]
        %v7268 = vld [vmem:[%s7255 + $0x30] sm:$0xf]
        %v7269 = vld [vmem:[%s7255 + $0x34] sm:$0xf]
        %v7270 = vld [vmem:[%s7255 + $0x38] sm:$0xf]
        %v7271 = vld [vmem:[%s7255 + $0x3c] sm:$0xf]
        %v7288 = vunpack.c.l.b16 %v7256
        %v7289 = vunpack.c.l.b16 %v7257
        %v7290 = vunpack.c.l.b16 %v7258
        %v7291 = vunpack.c.l.b16 %v7259
        %v7292 = vunpack.c.l.b16 %v7260
        %v7293 = vunpack.c.l.b16 %v7261
        %v7294 = vunpack.c.l.b16 %v7262
        %v7295 = vunpack.c.l.b16 %v7263
        %v7296 = vunpack.c.l.b16 %v7264
        %v7297 = vunpack.c.l.b16 %v7265
        %v7298 = vunpack.c.l.b16 %v7266
        %v7299 = vunpack.c.l.b16 %v7267
        %v7300 = vunpack.c.l.b16 %v7268
        %v7301 = vunpack.c.l.b16 %v7269
        %v7302 = vunpack.c.l.b16 %v7270
        %v7303 = vunpack.c.l.b16 %v7271
        %v7304 = vpack.c.b16 %v7289, %v7288
        %v7305 = vpack.c.b16 %v7291, %v7290
        %v7306 = vpack.c.b16 %v7293, %v7292
        %v7307 = vpack.c.b16 %v7295, %v7294
        %v7308 = vpack.c.b16 %v7297, %v7296
        %v7309 = vpack.c.b16 %v7299, %v7298
        %v7310 = vpack.c.b16 %v7301, %v7300
        %v7311 = vpack.c.b16 %v7303, %v7302
        %7320 = vmatprep.subr.bf16.mxu0 0
        %7321 = vmatpush1.bf16.msra.mxu0 %v7304
        %7322 = vmatprep.subr.bf16.mxu0 0
        %7323 = vmatpush1.bf16.msra.mxu0 %v7305
        %7324 = vmatprep.subr.bf16.mxu0 0
        %7325 = vmatpush1.bf16.msra.mxu0 %v7306
        %7326 = vmatprep.subr.bf16.mxu0 0
        %7327 = vmatpush1.bf16.msra.mxu0 %v7307
        %7328 = vmatprep.subr.bf16.mxu0 0
        %7329 = vmatpush1.bf16.msra.mxu0 %v7308
        %7330 = vmatprep.subr.bf16.mxu0 0
        %7331 = vmatpush1.bf16.msra.mxu0 %v7309
        %7332 = vmatprep.subr.bf16.mxu0 0
        %7333 = vmatpush1.bf16.msra.mxu0 %v7310
        %7334 = vmatprep.subr.bf16.mxu0 0
        %7335 = vmatpush1.bf16.msra.mxu0 %v7311
        %7336 = vmatprep.subr.bf16.mxu0 0
        %7337 = vmatpush1.bf16.msra.mxu0 0
        %7338 = vmatprep.subr.bf16.mxu0 0
        %7339 = vmatpush1.bf16.msra.mxu0 0
        %7340 = vmatprep.subr.bf16.mxu0 0
        %7341 = vmatpush1.bf16.msra.mxu0 0
        %7342 = vmatprep.subr.bf16.mxu0 0
        %7343 = vmatpush1.bf16.msra.mxu0 0
        %7344 = vmatprep.subr.bf16.mxu0 0
        %7345 = vmatpush1.bf16.msra.mxu0 0
        %7346 = vmatprep.subr.bf16.mxu0 0
        %7347 = vmatpush1.bf16.msra.mxu0 0
        %7348 = vmatprep.subr.bf16.mxu0 0
        %7349 = vmatpush1.bf16.msra.mxu0 0
        %7350 = vmatprep.subr.bf16.mxu0 0
        %7351 = vmatpush1.bf16.msra.mxu0 0
        %7352 = vmatprep.mubr.bf16.mxu0 0
        %7353 = vmatmul.mubr.bf16.gmra.mrb[0].mxu0 %v7253
        %v7354 = vpop.f32.mrb[0].mxu0
        %v7355 = vadd.f32 0.0, %v7354
        %v7356 = vpop.f32.mrb[0].mxu0
        %v7357 = vpop.f32.mrb[0].mxu0
        %v7358 = vadd.f32 0.0, %v7357
        %v7359 = vpop.f32.mrb[0].mxu0
        %7360 = vmatprep.mubr.bf16.mxu0 0
        %7361 = vmatmul.mubr.bf16.gmra.mrb[0].mxu0 %v7254
        %v7362 = vpop.f32.mrb[0].mxu0
        %v7363 = vpop.f32.mrb[0].mxu0
        %v7364 = vpop.f32.mrb[0].mxu0
        %v7365 = vpop.f32.mrb[0].mxu0
        %7366 = vdwg.mxu0
        %v7367 = vadd.f32 %v7078, %v7355
        %v7368 = vadd.f32 %v7079, %v7358
        %s7369 = scalar_lea.vmem %s16, 1
        %v7370 = vld [vmem:[%s7369] sm:$0x1]
        %v7372 = vlaneseq
        %v7373 = vshrl.u32 %v7372, 7
        %v7374 = vsub.s32 0, %v7373
        %v7375 = vrot.slane %v7370, %v7374
        %v7377 = vadd.f32 %v7367, %v7375
        %v7378 = vadd.f32 %v7368, %v7375
        %v7381 = vcombine.high %v7377, %v7377
        %v7383 = vunpack.c.l.s4 1966171168
        %v7384 = vunpack.c.0.s8 %v7383
        %v7385 = vlaneseq
        %v7386 = vshrl.u32 %v7385, 7
        %v7387 = vsub.s32 %v7384, %v7386
        %v7388 = vrot.slane %v7377, %v7387
        %v7390 = vunpack.c.l.s4 1966171168
        %v7391 = vunpack.c.0.s8 %v7390
        %v7392 = vlaneseq
        %v7393 = vshrl.u32 %v7392, 7
        %v7394 = vsub.s32 %v7391, %v7393
        %v7395 = vrot.slane %v7381, %v7394
        %v7396 = vcombine.high %v7395, %v7395
        %v7398 = vunpack.c.l.s4 1966171168
        %v7399 = vunpack.c.0.s8 %v7398
        %v7400 = vlaneseq
        %v7401 = vshrl.u32 %v7400, 7
        %v7402 = vsub.s32 %v7399, %v7401
        %v7403 = vrot.slane %v7388, %v7402
        %v7405 = vunpack.c.l.s4 1966171168
        %v7406 = vunpack.c.0.s8 %v7405
        %v7407 = vlaneseq
        %v7408 = vshrl.u32 %v7407, 7
        %v7409 = vsub.s32 %v7406, %v7408
        %v7410 = vrot.slane %v7396, %v7409
        %v7411 = vcombine.high %v7378, %v7378
        %v7413 = vunpack.c.l.s4 1966171168
        %v7414 = vunpack.c.0.s8 %v7413
        %v7415 = vlaneseq
        %v7416 = vshrl.u32 %v7415, 7
        %v7417 = vsub.s32 %v7414, %v7416
        %v7418 = vrot.slane %v7378, %v7417
        %v7420 = vunpack.c.l.s4 1966171168
        %v7421 = vunpack.c.0.s8 %v7420
        %v7422 = vlaneseq
        %v7423 = vshrl.u32 %v7422, 7
        %v7424 = vsub.s32 %v7421, %v7423
        %v7425 = vrot.slane %v7411, %v7424
        %v7426 = vcombine.high %v7425, %v7425
        %v7428 = vunpack.c.l.s4 1966171168
        %v7429 = vunpack.c.0.s8 %v7428
        %v7430 = vlaneseq
        %v7431 = vshrl.u32 %v7430, 7
        %v7432 = vsub.s32 %v7429, %v7431
        %v7433 = vrot.slane %v7418, %v7432
        %v7435 = vunpack.c.l.s4 1966171168
        %v7436 = vunpack.c.0.s8 %v7435
        %v7437 = vlaneseq
        %v7438 = vshrl.u32 %v7437, 7
        %v7439 = vsub.s32 %v7436, %v7438
        %v7440 = vrot.slane %v7426, %v7439
        %v7441 = vcombine.high %v7433, %v7433
        %v7442 = vcombine.high %v7440, %v7440
        %v7447 = vld [vmem:[%s17] sm:$0x1]
        %v7448 = vld [vmem:[%s18] sm:$0x1]
        %v7449 = vcombine.low %v7403, %v7410
        %v7450 = vcombine.low %v7441, %v7442
        %v7452 = vunpack.c.l.s4 1966171168
        %v7453 = vunpack.c.0.s8 %v7452
        %v7454 = vlaneseq
        %v7455 = vshrl.u32 %v7454, 7
        %v7456 = vsub.s32 %v7453, %v7455
        %v7457 = vrot.slane %v7449, %v7456
        %v7459 = vunpack.c.l.s4 1966171168
        %v7460 = vunpack.c.0.s8 %v7459
        %v7461 = vlaneseq
        %v7462 = vshrl.u32 %v7461, 7
        %v7463 = vsub.s32 %v7460, %v7462
        %v7464 = vrot.slane %v7450, %v7463
        %v7465 = vcombine.low %v7457, %v7464
        %v7467 = vunpack.c.l.s4 1966171168
        %v7468 = vunpack.c.0.s8 %v7467
        %v7469 = vlaneseq
        %v7470 = vshrl.u32 %v7469, 7
        %v7471 = vsub.s32 %v7468, %v7470
        %v7472 = vrot.slane %v7465, %v7471
        %v7474 = vsel %vm1018, %v7472, 0.0
        %7475 = vadd.xlane.f32.xlu0 %v7474
        %v7476 = vpop.xlane.xlu0 %7475
        %v7477 = vmul.f32 %v7476, %v1022
        %v7478 = vmul.f32 %v7403, %v7403
        %v7479 = vmul.f32 %v7410, %v7410
        %v7480 = vmul.f32 %v7441, %v7441
        %v7481 = vmul.f32 %v7442, %v7442
        %v7486 = vcombine.low %v7478, %v7479
        %v7487 = vcombine.low %v7480, %v7481
        %v7489 = vunpack.c.l.s4 1966171168
        %v7490 = vunpack.c.0.s8 %v7489
        %v7491 = vlaneseq
        %v7492 = vshrl.u32 %v7491, 7
        %v7493 = vsub.s32 %v7490, %v7492
        %v7494 = vrot.slane %v7486, %v7493
        %v7496 = vunpack.c.l.s4 1966171168
        %v7497 = vunpack.c.0.s8 %v7496
        %v7498 = vlaneseq
        %v7499 = vshrl.u32 %v7498, 7
        %v7500 = vsub.s32 %v7497, %v7499
        %v7501 = vrot.slane %v7487, %v7500
        %v7502 = vcombine.low %v7494, %v7501
        %v7504 = vunpack.c.l.s4 1966171168
        %v7505 = vunpack.c.0.s8 %v7504
        %v7506 = vlaneseq
        %v7507 = vshrl.u32 %v7506, 7
        %v7508 = vsub.s32 %v7505, %v7507
        %v7509 = vrot.slane %v7502, %v7508
        %v7511 = vsel %vm1018, %v7509, 0.0
        %7512 = vadd.xlane.f32.xlu0 %v7511
        %v7513 = vpop.xlane.xlu0 %7512
        %v7514 = vmul.f32 %v7513, %v1022
        %v7515 = vmul.f32 %v7477, %v7477
        %v7516 = vsub.f32 %v7514, %v7515
        %v7518 = vlaneseq
        %v7519 = vshrl.u32 %v7518, 7
        %v7520 = vsub.s32 0, %v7519
        %v7521 = vrot.slane %v7477, %v7520
        %v7522 = vlaneseq
        %v7523 = vshrl.u32 %v7522, 7
        %v7524 = vsub.s32 1, %v7523
        %v7525 = vrot.slane %v7477, %v7524
        %v7526 = vlaneseq
        %v7527 = vshrl.u32 %v7526, 7
        %v7528 = vsub.s32 2, %v7527
        %v7529 = vrot.slane %v7477, %v7528
        %v7530 = vlaneseq
        %v7531 = vshrl.u32 %v7530, 7
        %v7532 = vsub.s32 3, %v7531
        %v7533 = vrot.slane %v7477, %v7532
        %v7538 = vsub.f32 %v7403, %v7521
        %v7539 = vsub.f32 %v7410, %v7525
        %v7540 = vsub.f32 %v7441, %v7529
        %v7541 = vsub.f32 %v7442, %v7533
        %v7542 = vadd.f32 %v7516, 1e-05
        %v7543 = vrsqrt.pop %v7542
        %v7545 = vlaneseq
        %v7546 = vshrl.u32 %v7545, 7
        %v7547 = vsub.s32 0, %v7546
        %v7548 = vrot.slane %v7543, %v7547
        %v7549 = vlaneseq
        %v7550 = vshrl.u32 %v7549, 7
        %v7551 = vsub.s32 1, %v7550
        %v7552 = vrot.slane %v7543, %v7551
        %v7553 = vlaneseq
        %v7554 = vshrl.u32 %v7553, 7
        %v7555 = vsub.s32 2, %v7554
        %v7556 = vrot.slane %v7543, %v7555
        %v7557 = vlaneseq
        %v7558 = vshrl.u32 %v7557, 7
        %v7559 = vsub.s32 3, %v7558
        %v7560 = vrot.slane %v7543, %v7559
        %v7565 = vmul.f32 %v7538, %v7548
        %v7566 = vmul.f32 %v7539, %v7552
        %v7567 = vmul.f32 %v7540, %v7556
        %v7568 = vmul.f32 %v7541, %v7560
        %v7570 = vlaneseq
        %v7571 = vshrl.u32 %v7570, 7
        %v7572 = vsub.s32 0, %v7571
        %v7573 = vrot.slane %v7447, %v7572
        %v7575 = vunpack.c.l.s4 1966171168
        %v7576 = vunpack.c.0.s8 %v7575
        %v7577 = vlaneseq
        %v7578 = vshrl.u32 %v7577, 7
        %v7579 = vsub.s32 %v7576, %v7578
        %v7580 = vrot.slane %v7573, %v7579
        %v7581 = vcombine.high %v7580, %v7580
        %v7583 = vunpack.c.l.s4 1966171168
        %v7584 = vunpack.c.0.s8 %v7583
        %v7585 = vlaneseq
        %v7586 = vshrl.u32 %v7585, 7
        %v7587 = vsub.s32 %v7584, %v7586
        %v7588 = vrot.slane %v7580, %v7587
        %v7590 = vunpack.c.l.s4 1966171168
        %v7591 = vunpack.c.0.s8 %v7590
        %v7592 = vlaneseq
        %v7593 = vshrl.u32 %v7592, 7
        %v7594 = vsub.s32 %v7591, %v7593
        %v7595 = vrot.slane %v7581, %v7594
        %v7596 = vcombine.high %v7588, %v7588
        %v7597 = vcombine.high %v7595, %v7595
        %v7602 = vmul.f32 %v7565, %v7588
        %v7603 = vmul.f32 %v7566, %v7595
        %v7604 = vmul.f32 %v7567, %v7596
        %v7605 = vmul.f32 %v7568, %v7597
        %v7607 = vlaneseq
        %v7608 = vshrl.u32 %v7607, 7
        %v7609 = vsub.s32 0, %v7608
        %v7610 = vrot.slane %v7448, %v7609
        %v7612 = vunpack.c.l.s4 1966171168
        %v7613 = vunpack.c.0.s8 %v7612
        %v7614 = vlaneseq
        %v7615 = vshrl.u32 %v7614, 7
        %v7616 = vsub.s32 %v7613, %v7615
        %v7617 = vrot.slane %v7610, %v7616
        %v7618 = vcombine.high %v7617, %v7617
        %v7620 = vunpack.c.l.s4 1966171168
        %v7621 = vunpack.c.0.s8 %v7620
        %v7622 = vlaneseq
        %v7623 = vshrl.u32 %v7622, 7
        %v7624 = vsub.s32 %v7621, %v7623
        %v7625 = vrot.slane %v7617, %v7624
        %v7627 = vunpack.c.l.s4 1966171168
        %v7628 = vunpack.c.0.s8 %v7627
        %v7629 = vlaneseq
        %v7630 = vshrl.u32 %v7629, 7
        %v7631 = vsub.s32 %v7628, %v7630
        %v7632 = vrot.slane %v7618, %v7631
        %v7633 = vcombine.high %v7625, %v7625
        %v7634 = vcombine.high %v7632, %v7632
        %v7639 = vadd.f32 %v7602, %v7625
        %v7640 = vadd.f32 %v7603, %v7632
        %v7641 = vadd.f32 %v7604, %v7633
        %v7642 = vadd.f32 %v7605, %v7634
        %v7643 = vpack.c.bf16 %v7639, %v7639
        %v7644 = vpack.c.bf16 %v7640, %v7640
        %v7645 = vpack.c.bf16 %v7641, %v7641
        %v7646 = vpack.c.bf16 %v7642, %v7642
        %v7647 = vld [vmem:[%s19] sm:$0xf]
        %v7648 = vld [vmem:[%s19 + $0x4] sm:$0xf]
        %v7649 = vld [vmem:[%s19 + $0x8] sm:$0xf]
        %v7650 = vld [vmem:[%s19 + $0xc] sm:$0xf]
        %v7655 = vunpack.c.l.b16 %v7643
        %v7656 = vunpack.c.l.b16 %v7644
        %v7657 = vunpack.c.l.b16 %v7645
        %v7658 = vunpack.c.l.b16 %v7646
        %v7659 = vrot.slane %v7656, 7
        %vm7660 = vcmask 1041409
        %v7661 = vsel %vm7660, %v7659, %v7655
        %v7662 = vrot.slane %v7657, 6
        %vm7663 = vcmask 1042434
        %v7664 = vsel %vm7663, %v7662, %v7661
        %v7665 = vrot.slane %v7658, 5
        %vm7666 = vcmask 1043459
        %v7667 = vsel %vm7666, %v7665, %v7664
        %v7668 = vpack.c.b16 %v7667, %v7667
        %v7673 = vunpack.c.l.b16 %v7647
        %v7674 = vunpack.c.l.b16 %v7648
        %v7675 = vunpack.c.l.b16 %v7649
        %v7676 = vunpack.c.l.b16 %v7650
        %v7677 = vpack.c.b16 %v7674, %v7673
        %v7678 = vpack.c.b16 %v7676, %v7675
        %v7682 = vsel %vm1011, %v7668, 0
        %7684 = vmatprep.subr.bf16.mxu0 0
        %7685 = vmatpush1.bf16.msra.mxu0 %v7677
        %7686 = vmatprep.subr.bf16.mxu0 0
        %7687 = vmatpush1.bf16.msra.mxu0 %v7678
        %7688 = vmatprep.subr.bf16.mxu0 0
        %7689 = vmatpush1.bf16.msra.mxu0 0
        %7690 = vmatprep.subr.bf16.mxu0 0
        %7691 = vmatpush1.bf16.msra.mxu0 0
        %7692 = vmatprep.subr.bf16.mxu0 0
        %7693 = vmatpush1.bf16.msra.mxu0 0
        %7694 = vmatprep.subr.bf16.mxu0 0
        %7695 = vmatpush1.bf16.msra.mxu0 0
        %7696 = vmatprep.subr.bf16.mxu0 0
        %7697 = vmatpush1.bf16.msra.mxu0 0
        %7698 = vmatprep.subr.bf16.mxu0 0
        %7699 = vmatpush1.bf16.msra.mxu0 0
        %7700 = vmatprep.subr.bf16.mxu0 0
        %7701 = vmatpush1.bf16.msra.mxu0 0
        %7702 = vmatprep.subr.bf16.mxu0 0
        %7703 = vmatpush1.bf16.msra.mxu0 0
        %7704 = vmatprep.subr.bf16.mxu0 0
        %7705 = vmatpush1.bf16.msra.mxu0 0
        %7706 = vmatprep.subr.bf16.mxu0 0
        %7707 = vmatpush1.bf16.msra.mxu0 0
        %7708 = vmatprep.subr.bf16.mxu0 0
        %7709 = vmatpush1.bf16.msra.mxu0 0
        %7710 = vmatprep.subr.bf16.mxu0 0
        %7711 = vmatpush1.bf16.msra.mxu0 0
        %7712 = vmatprep.subr.bf16.mxu0 0
        %7713 = vmatpush1.bf16.msra.mxu0 0
        %7714 = vmatprep.subr.bf16.mxu0 0
        %7715 = vmatpush1.bf16.msra.mxu0 0
        %7716 = vmatprep.mubr.bf16.mxu0 0
        %7717 = vmatmul.mubr.bf16.gmra.mrb[0].mxu0 %v7682
        %v7718 = vpop.f32.mrb[0].mxu0
        %v7719 = vadd.f32 0.0, %v7718
        %v7720 = vpop.f32.mrb[0].mxu0
        %v7721 = vpop.f32.mrb[0].mxu0
        %v7722 = vpop.f32.mrb[0].mxu0
        %7723 = vdwg.mxu0
        %vm7724 = vcmask 125952
        %7725 = vst.msk [vmem:[%s625] sm:$0xf] %vm7724, %v7719
        %s7726 = sand.u32 %s467, 1
        %s7727 = scalar_lea.sflag [#allocation3], %s7726
        %s7728 = sand.u32 %s467, 1
        %s7729 = smul.addr %s7728, 4
        %s7730 = scalar_lea.vmem [#allocation2], %s7729
        // Predicated region
        $region101: #{encode_image.1} parent=99 // pred_check
          %p7731 = pneg %p477
        $region102: #{encode_image.1} parent=99 // pred_check_branch
          %7733 = sbr.rel (%p7731) target = $region104
        $region103: #{encode_image.1} parent=99 // pred_region
          %s7735 = ssub.s32 64, 64
          %7736 = vsyncadd %s7727, %s7735
          %s7737 = smul.addr %s34, 64
          %s7738 = scalar_lea.hbm %s20, %s7737
          %s7740 = sshll.u32 %s7730, 4
          %s7741 = int_to_ptr.vmem [resolvable:$true] %s7740
          %7743 = dma.vmem_to_hbm [thread:$0]  %s7741, 64, %s7738, %s7727
        $region104: #{encode_image.1} parent=99 // pred_fallthru
          _
      $region100: #{encode_image.1} parent=5 // pred_fallthru
        _
      %p7744 = scmp.le.s32.totalorder 2, %s29
      // Predicated region
      $region105: #{encode_image.1} parent=5 // pred_check
        %p7745 = pneg %p7744
      $region106: #{encode_image.1} parent=5 // pred_check_branch
        %7747 = sbr.rel (%p7745) target = $region108
      $region107: #{encode_image.1} parent=5 // pred_region
        %s7748 = ssub.s32 %s29, 2
        // Predicated region
        $region109: #{encode_image.1} parent=107 // pred_check
          %p7749 = pneg %p483
        $region110: #{encode_image.1} parent=107 // pred_check_branch
          %7751 = sbr.rel (%p7749) target = $region112
        $region111: #{encode_image.1} parent=107 // pred_region
          %s7752 = sand.u32 %s468, 1
          %s7753 = scalar_lea.sflag [#allocation3], %s7752
          %s7754 = sand.u32 %s468, 1
          %s7755 = smul.addr %s7754, 4
          %s7756 = scalar_lea.vmem [#allocation2], %s7755
          %7757 = dma.done %s7753, 64
        $region112: #{encode_image.1} parent=107 // pred_fallthru
          _
      $region108: #{encode_image.1} parent=5 // pred_fallthru
        _
    $region6: #{encode_image.1} parent=1 // loop_footer
      %s33 = sadd.s32 1, %s29
    $region7: #{encode_image.1} parent=1 // loop_footer_branch
      %28 = sbr.rel target = $region3
    $region8: #{encode_image.1} parent=1 // loop_exit
      _
    %7758 = vsyncpa [#allocation3], 1
    %s7759 = scalar_lea.sflag [#allocation3], 1
    %7760 = vsyncpa %s7759, 1

</llo_original>
